<compile_context>
chip_gen: v6e
topology: v6e:2x2x1
jax: 0.10.0
libtpu: 0.0.40
codegen_flags: <defaults>
</compile_context>

<pallas_src>
import jax
import jax.numpy as jnp
from jax import lax
from jax.experimental import pallas as pl
from jax.experimental.pallas import tpu as pltpu  # noqa: F401  (TPU backend assumed)

# ---------------- hyper-parameters (small shapes consistent with the torch module) -------
PATCH_SIZE = 64
NUM_PATCH  = 2
NPERSEG    = 8
NUM_FREQ   = NPERSEG // 2 + 1             # num_nodes N (onesided STFT bins) = 5
NUM_FRAMES = PATCH_SIZE // NPERSEG + 1    # frames with center=True, hop = nperseg = 9
INPUT_DIM  = NUM_FRAMES                   # per-node feature dim f (nn.Linear in_dim)
NUM_NODES  = NUM_FREQ
HIDDEN_DIM = 4
BATCH      = 2

assert PATCH_SIZE % NPERSEG == 0 and NPERSEG % 2 == 0


# ---------------- small in-kernel helpers ------------------------------------------------
def _leaky_relu(x, slope=0.01):          # matches torch.nn.functional.leaky_relu default
    return jnp.where(x >= 0, x, slope * x)


def _sigmoid(x):
    # one EUP transcendental instead of exp + reciprocal; mathematically exact
    return 0.5 * jnp.tanh(0.5 * x) + 0.5


def _softmax_last(x):
    m = jnp.max(x, axis=-1, keepdims=True)
    e = jnp.exp(x - m)
    return e * pl.reciprocal(jnp.sum(e, axis=-1, keepdims=True), approx=True)


# ---------------- the single fused kernel -------------------------------------------------
def _fused_kernel(cos_ref, sin_ref, frm_ref,
                  wnl_ref, bnl_ref,
                  watt_ref, batt_ref, watg_ref, batg_ref, wath_ref, bath_ref,
                  wth_ref, bth_ref,
                  wih1_ref, bl1_ref, whf1_ref, whb1_ref,
                  wih2_ref, bl2_ref, whf2_ref, whb2_ref,
                  wih3_ref, bl3_ref, whf3_ref, whb3_ref,
                  wfc1_ref, bfc1_ref, wfc2_ref, bfc2_ref, wfc3_ref, bfc3_ref,
                  out_ref):
    N  = cos_ref.shape[0]              # num nodes / onesided freq bins
    F  = NUM_FRAMES                    # per-node feature dim
    P  = NUM_PATCH
    B4 = frm_ref.shape[1] // F         # bs * num_patch graphs
    BS = B4 // P                       # original batch size

    # ---- 1) STFT magnitude: hann window folded into the (transposed) DFT basis ----------
    frm = frm_ref[...]                                                  # (nperseg, B4*F)
    re = jnp.dot(cos_ref[...], frm, preferred_element_type=jnp.float32)  # (N, B4*F)
    im = jnp.dot(sin_ref[...], frm, preferred_element_type=jnp.float32)
    mag = jnp.sqrt(re * re + im * im)                                   # col index = g*F + t

    # ---- 2) global Pearson correlation per original batch element (corrcoef_...full) ----
    # normalize rows first (avoids an in-kernel (N,1)->(1,N) transpose; same math,
    # no epsilon, matching torch)
    pcc = []
    for b in range(BS):
        xf = mag[:, b * P * F:(b + 1) * P * F]                          # (N, P*F)
        c = xf - jnp.mean(xf, axis=-1, keepdims=True)
        cn = c * lax.rsqrt(jnp.sum(c * c, axis=-1, keepdims=True))
        pcc.append(lax.dot_general(cn, cn, (((1,), (1,)), ((), ())),
                                   preferred_element_type=jnp.float32))  # (N, N)

    # ---- 3) per-graph: nonlin_map -> dot-graph -> attention gating -> MPNN (k=1) ---------
    row = lax.broadcasted_iota(jnp.int32, (N, N), 0)
    col = lax.broadcasted_iota(jnp.int32, (N, N), 1)
    eye = (row == col).astype(jnp.float32)                              # built once
    diag_inf = eye * 1e8                                                # hoisted out of loop

    w_nl = wnl_ref[...]; b_nl = bnl_ref[...]
    w_att_T = watt_ref[...]; b_att_T = batt_ref[...]                    # [W_Z_T | W_R_T]
    w_att_G = watg_ref[...]; b_att_G = batg_ref[...]                    # [W_Z_G | W_R_G | W_h_T]
    w_att_h = wath_ref[...]; b_att_h = bath_ref[...]                    # W_h
    w_th = wth_ref[...]; b_th = bth_ref[...]

    mpnn = []                                                           # per graph: (N, 3F)
    for g in range(B4):
        a_in = mag[:, g * F:(g + 1) * F]                                # (N, F)
        a_ = jnp.dot(a_in, w_nl, preferred_element_type=jnp.float32) + b_nl      # (N, 2F)
        adj = lax.dot_general(a_, a_, (((1,), (1,)), ((), ())),
                              preferred_element_type=jnp.float32)       # a_ @ a_.T
        local = _softmax_last(_leaky_relu(adj - diag_inf)) + eye        # dot_graph_construction
        G = pcc[g // P]
        zr_T = jnp.dot(local, w_att_T, preferred_element_type=jnp.float32) + b_att_T   # (N, 2N)
        zrh_G = jnp.dot(G, w_att_G, preferred_element_type=jnp.float32) + b_att_G      # (N, 3N)
        z = _sigmoid(zr_T[:, 0:N] + zrh_G[:, 0:N])
        r = _sigmoid(zr_T[:, N:2 * N] + zrh_G[:, N:2 * N])
        a_hat = jnp.tanh(zrh_G[:, 2 * N:3 * N]
                         + jnp.dot(r, w_att_h, preferred_element_type=jnp.float32) + b_att_h)
        a_fin = (1.0 - z) * local + z * a_hat
        a_fin = _softmax_last(a_fin - diag_inf) + eye                   # Graph_atten_block
        agg = jnp.dot(a_fin, a_, preferred_element_type=jnp.float32)    # (N, 2F)
        mpnn.append(_leaky_relu(
            jnp.dot(agg, w_th, preferred_element_type=jnp.float32) + b_th))      # (N, 3F)

    # ---- 4) 3-layer bidirectional LSTM, fully unrolled (T = BS = 2) ----------------------
    # LSTM batch rows are (patch p, node n); the recurrence is row-independent, so each
    # patch-chunk of 5 rows is processed on its own (no sublane concat needed).
    def bilstm(seq, wih, bias, whh_f, whh_b):
        # seq: list over time of (R, Din); wih/bias are lane-fused [fwd | bwd].
        H = whh_f.shape[0]
        T = len(seq)
        R = seq[0].shape[0]
        # hoisted input projection (independent of the recurrent state)
        gin = [jnp.dot(xt, wih, preferred_element_type=jnp.float32) + bias for xt in seq]

        def run(direction):
            whh = whh_f if direction == 0 else whh_b
            off = 0 if direction == 0 else 4 * H
            hs = jnp.zeros((R, H), jnp.float32)
            cs = jnp.zeros((R, H), jnp.float32)
            order = range(T) if direction == 0 else range(T - 1, -1, -1)
            out = [None] * T
            for t in order:                                             # fully unrolled
                gates = gin[t][:, off:off + 4 * H] + jnp.dot(
                    hs, whh, preferred_element_type=jnp.float32)        # (R, 4H), order i,f,g,o
                i_g = _sigmoid(gates[:, 0:H])
                f_g = _sigmoid(gates[:, H:2 * H])
                g_g = jnp.tanh(gates[:, 2 * H:3 * H])
                o_g = _sigmoid(gates[:, 3 * H:4 * H])
                cs = f_g * cs + i_g * g_g
                hs = o_g * jnp.tanh(cs)
                out[t] = hs
            return out

        fo = run(0)
        bo = run(1)
        return [fo[t] + bo[t] for t in range(T)]                        # split-in-half-and-sum

    lstm_ws = [(wih1_ref[...], bl1_ref[...], whf1_ref[...], whb1_ref[...]),
               (wih2_ref[...], bl2_ref[...], whf2_ref[...], whb2_ref[...]),
               (wih3_ref[...], bl3_ref[...], whf3_ref[...], whb3_ref[...])]

    td = []                         # td[p][t]: (N, 3*HIDDEN_DIM) final Bi-LSTM output
    for p in range(P):
        seq = [mpnn[t * P + p] for t in range(BS)]
        for (wih, bias, whf, whb) in lstm_ws:
            seq = bilstm(seq, wih, bias, whf, whb)
        td.append(seq)

    # ---- 5) leaky_relu + fc1(120->16) + relu + fc2(16->8) + relu + cls(8->1) --------------
    # fc1 weight is stored as (P*N, 3H, 16): row (p*N + n) holds the columns of the torch
    # (120, 16) matrix that multiply that TD row, so the flatten becomes a small sum of dots.
    b1 = bfc1_ref[...]
    w2 = wfc2_ref[...]; b2 = bfc2_ref[...]
    w3 = wfc3_ref[...]; b3 = bfc3_ref[...]
    for t in range(BS):
        acc = b1                                                        # (1, 16)
        for p in range(P):
            h3 = _leaky_relu(td[p][t])                                  # F.leaky_relu on TD out
            for n_i in range(N):
                acc = acc + jnp.dot(h3[n_i:n_i + 1, :], wfc1_ref[p * N + n_i],
                                    preferred_element_type=jnp.float32)
        h1 = jnp.maximum(acc, 0.0)
        h2 = jnp.maximum(jnp.dot(h1, w2, preferred_element_type=jnp.float32) + b2, 0.0)
        y = jnp.dot(h2, w3, preferred_element_type=jnp.float32) + b3    # (1, 1)
        out_ref[t:t + 1, :] = y


# ---------------- wrapper: only framing + constant DFT basis stay outside the kernel -------
def forward(X, params):
    bs = X.shape[0]
    x = X.reshape(bs * NUM_PATCH, PATCH_SIZE)

    # torch.stft(center=True, pad_mode='reflect', hop=win=nfft=nperseg): disjoint frames
    pad = NPERSEG // 2
    xp = jnp.pad(x, ((0, 0), (pad, pad)), mode='reflect')
    frames = xp.reshape(bs * NUM_PATCH, NUM_FRAMES, NPERSEG)
    # (nperseg, num_graphs*num_frames), column index = graph*NUM_FRAMES + frame
    fkm = frames.transpose(2, 0, 1).reshape(
        NPERSEG, bs * NUM_PATCH * NUM_FRAMES).astype(jnp.float32)

    # windowed one-sided DFT basis (constants under jit; hann window folded in)
    n = jnp.arange(NPERSEG, dtype=jnp.float32)
    k = jnp.arange(NUM_FREQ, dtype=jnp.float32)
    window = 0.5 - 0.5 * jnp.cos(2.0 * jnp.pi * n / NPERSEG)            # periodic hann
    ang = 2.0 * jnp.pi * jnp.outer(k, n) / NPERSEG                      # (NUM_FREQ, NPERSEG)
    cosT = (window[None, :] * jnp.cos(ang)).astype(jnp.float32)
    sinT = (window[None, :] * jnp.sin(ang)).astype(jnp.float32)

    lstm_flat = []
    for layer in params['lstm']:
        lstm_flat += [layer['wih'], layer['b'], layer['whh_f'], layer['whh_b']]

    out = pl.pallas_call(
        _fused_kernel,
        out_shape=jax.ShapeDtypeStruct((bs, 1), jnp.float32),
    )(cosT, sinT, fkm,
      params['w_nl'], params['b_nl'],
      params['w_att_T'], params['b_att_T'],
      params['w_att_G'], params['b_att_G'],
      params['w_att_h'], params['b_att_h'],
      params['w_theta'], params['b_theta'],
      *lstm_flat,
      params['w1'], params['b1'], params['w2'], params['b2'],
      params['w3'], params['b3'])
    return out


# ---------------- deterministic parameter init (weights stored matmul-ready, fused) --------
def init_params(key):
    def nrm(k, shape, scale=0.1):
        return scale * jax.random.normal(k, shape, dtype=jnp.float32)

    keys = iter(jax.random.split(key, 64))
    f, N, H = INPUT_DIM, NUM_NODES, HIDDEN_DIM
    p = {
        # nonlin_map: Linear(f -> 2f), stored (in, out)
        'w_nl': nrm(next(keys), (f, 2 * f)),
        'b_nl': nrm(next(keys), (1, 2 * f)),
        # Graph_atten_block, lane-fused: [W_Z_T | W_R_T], [W_Z_G | W_R_G | W_h_T], W_h
        'w_att_T': nrm(next(keys), (N, 2 * N)),
        'b_att_T': nrm(next(keys), (1, 2 * N)),
        'w_att_G': nrm(next(keys), (N, 3 * N)),
        'b_att_G': nrm(next(keys), (1, 3 * N)),
        'w_att_h': nrm(next(keys), (N, N)),
        'b_att_h': nrm(next(keys), (1, N)),
        # MPNN theta: Linear(2f -> 3f)
        'w_theta': nrm(next(keys), (2 * f, 3 * f)),
        'b_theta': nrm(next(keys), (1, 3 * f)),
    }
    # Bi-LSTM stack dims: (3f -> 3H), (3H -> 6H), (6H -> 3H).
    # wih / bias are lane-fused [fwd | bwd]; bias = b_ih + b_hh per direction; gates i,f,g,o.
    lstm_dims = [(3 * f, 3 * H), (3 * H, 6 * H), (6 * H, 3 * H)]
    p['lstm'] = []
    for din, h in lstm_dims:
        p['lstm'].append({
            'wih':   nrm(next(keys), (din, 8 * h)),
            'b':     nrm(next(keys), (1, 8 * h)),
            'whh_f': nrm(next(keys), (h, 4 * h)),
            'whh_b': nrm(next(keys), (h, 4 * h)),
        })
    # final MLP; fc1 weight stored as (P*N, 3H, 16) == torch (120, 16) reshaped row-major
    p.update({
        'w1': nrm(next(keys), (NUM_PATCH * N, 3 * H, 16)),
        'b1': nrm(next(keys), (1, 16)),
        'w2': nrm(next(keys), (16, 8)),  'b2': nrm(next(keys), (1, 8)),
        'w3': nrm(next(keys), (8, 1)),   'b3': nrm(next(keys), (1, 1)),
    })
    return p


if __name__ == "__main__":
    key = jax.random.PRNGKey(0)
    kx, kp = jax.random.split(key)
    X = jax.random.normal(kx, (BATCH, NUM_PATCH * PATCH_SIZE), dtype=jnp.float32)
    params = init_params(kp)

    fwd = jax.jit(forward)
    out = fwd(X, params)
    jax.block_until_ready(out)
    assert out.shape == (BATCH, 1) and out.dtype == jnp.float32
    print("KERNEL_OK")
</pallas_src>

<mosaic_0001>
module attributes {stable_mosaic.version = 11 : i64} {
  func.func @_fused_kernel(%arg0: memref<5x8xf32, #tpu.memory_space<vmem>>, %arg1: memref<5x8xf32, #tpu.memory_space<vmem>>, %arg2: memref<8x36xf32, #tpu.memory_space<vmem>>, %arg3: memref<9x18xf32, #tpu.memory_space<vmem>>, %arg4: memref<1x18xf32, #tpu.memory_space<vmem>>, %arg5: memref<5x10xf32, #tpu.memory_space<vmem>>, %arg6: memref<1x10xf32, #tpu.memory_space<vmem>>, %arg7: memref<5x15xf32, #tpu.memory_space<vmem>>, %arg8: memref<1x15xf32, #tpu.memory_space<vmem>>, %arg9: memref<5x5xf32, #tpu.memory_space<vmem>>, %arg10: memref<1x5xf32, #tpu.memory_space<vmem>>, %arg11: memref<18x27xf32, #tpu.memory_space<vmem>>, %arg12: memref<1x27xf32, #tpu.memory_space<vmem>>, %arg13: memref<27x96xf32, #tpu.memory_space<vmem>>, %arg14: memref<1x96xf32, #tpu.memory_space<vmem>>, %arg15: memref<12x48xf32, #tpu.memory_space<vmem>>, %arg16: memref<12x48xf32, #tpu.memory_space<vmem>>, %arg17: memref<12x192xf32, #tpu.memory_space<vmem>>, %arg18: memref<1x192xf32, #tpu.memory_space<vmem>>, %arg19: memref<24x96xf32, #tpu.memory_space<vmem>>, %arg20: memref<24x96xf32, #tpu.memory_space<vmem>>, %arg21: memref<24x96xf32, #tpu.memory_space<vmem>>, %arg22: memref<1x96xf32, #tpu.memory_space<vmem>>, %arg23: memref<12x48xf32, #tpu.memory_space<vmem>>, %arg24: memref<12x48xf32, #tpu.memory_space<vmem>>, %arg25: memref<10x12x16xf32, #tpu.memory_space<vmem>>, %arg26: memref<1x16xf32, #tpu.memory_space<vmem>>, %arg27: memref<16x8xf32, #tpu.memory_space<vmem>>, %arg28: memref<1x8xf32, #tpu.memory_space<vmem>>, %arg29: memref<8x1xf32, #tpu.memory_space<vmem>>, %arg30: memref<1x1xf32, #tpu.memory_space<vmem>>, %arg31: memref<2x1xf32, #tpu.memory_space<vmem>>) attributes {dimension_semantics = [], scalar_prefetch = 0 : i64, scratch_operands = 0 : i64, tpu.core_type = #tpu.core_type<tc>} {
    %c0 = arith.constant 0 : index
    %c0_0 = arith.constant 0 : index
    %0 = vector.load %arg2[%c0, %c0_0] : memref<8x36xf32, #tpu.memory_space<vmem>>, vector<8x36xf32>
    %c0_1 = arith.constant 0 : index
    %c0_2 = arith.constant 0 : index
    %1 = vector.load %arg0[%c0_1, %c0_2] : memref<5x8xf32, #tpu.memory_space<vmem>>, vector<5x8xf32>
    %cst = arith.constant dense<0.000000e+00> : vector<5x36xf32>
    %2 = tpu.matmul %1, %0, %cst {dimension_numbers = #tpu.dot_dimension_numbers<[1], [0], [0], [1], [0, 0, 1, 1], [], []>} : vector<5x8xf32>, vector<8x36xf32>, vector<5x36xf32> -> vector<5x36xf32>
    %c0_3 = arith.constant 0 : index
    %c0_4 = arith.constant 0 : index
    %3 = vector.load %arg1[%c0_3, %c0_4] : memref<5x8xf32, #tpu.memory_space<vmem>>, vector<5x8xf32>
    %cst_5 = arith.constant dense<0.000000e+00> : vector<5x36xf32>
    %4 = tpu.matmul %3, %0, %cst_5 {dimension_numbers = #tpu.dot_dimension_numbers<[1], [0], [0], [1], [0, 0, 1, 1], [], []>} : vector<5x8xf32>, vector<8x36xf32>, vector<5x36xf32> -> vector<5x36xf32>
    %5 = arith.mulf %2, %2 : vector<5x36xf32>
    %6 = arith.mulf %4, %4 : vector<5x36xf32>
    %7 = arith.addf %5, %6 : vector<5x36xf32>
    %8 = math.sqrt %7 : vector<5x36xf32>
    %9 = vector.extract_strided_slice %8 {offsets = [0, 0], sizes = [5, 18], strides = [1, 1]} : vector<5x36xf32> to vector<5x18xf32>
    %cst_6 = arith.constant dense<0.000000e+00> : vector<5xf32>
    %10 = vector.multi_reduction <add>, %9, %cst_6 [1] : vector<5x18xf32> to vector<5xf32>
    %11 = vector.shape_cast %10 : vector<5xf32> to vector<5x1xf32>
    %cst_7 = arith.constant 1.800000e+01 : f32
    %12 = vector.broadcast %cst_7 : f32 to vector<5x1xf32>
    %13 = arith.divf %11, %12 : vector<5x1xf32>
    %14 = vector.broadcast %13 : vector<5x1xf32> to vector<5x18xf32>
    %15 = arith.subf %9, %14 : vector<5x18xf32>
    %16 = arith.mulf %15, %15 : vector<5x18xf32>
    %cst_8 = arith.constant dense<0.000000e+00> : vector<5xf32>
    %17 = vector.multi_reduction <add>, %16, %cst_8 [1] : vector<5x18xf32> to vector<5xf32>
    %18 = vector.shape_cast %17 : vector<5xf32> to vector<5x1xf32>
    %19 = math.rsqrt %18 : vector<5x1xf32>
    %20 = vector.broadcast %19 : vector<5x1xf32> to vector<5x18xf32>
    %21 = arith.mulf %15, %20 : vector<5x18xf32>
    %cst_9 = arith.constant dense<0.000000e+00> : vector<5x5xf32>
    %22 = tpu.matmul %21, %21, %cst_9 {dimension_numbers = #tpu.dot_dimension_numbers<[1], [1], [0], [0], [0, 0, 1, 0], [], []>} : vector<5x18xf32>, vector<5x18xf32>, vector<5x5xf32> -> vector<5x5xf32>
    %23 = vector.extract_strided_slice %8 {offsets = [0, 18], sizes = [5, 18], strides = [1, 1]} : vector<5x36xf32> to vector<5x18xf32>
    %cst_10 = arith.constant dense<0.000000e+00> : vector<5xf32>
    %24 = vector.multi_reduction <add>, %23, %cst_10 [1] : vector<5x18xf32> to vector<5xf32>
    %25 = vector.shape_cast %24 : vector<5xf32> to vector<5x1xf32>
    %cst_11 = arith.constant 1.800000e+01 : f32
    %26 = vector.broadcast %cst_11 : f32 to vector<5x1xf32>
    %27 = arith.divf %25, %26 : vector<5x1xf32>
    %28 = vector.broadcast %27 : vector<5x1xf32> to vector<5x18xf32>
    %29 = arith.subf %23, %28 : vector<5x18xf32>
    %30 = arith.mulf %29, %29 : vector<5x18xf32>
    %cst_12 = arith.constant dense<0.000000e+00> : vector<5xf32>
    %31 = vector.multi_reduction <add>, %30, %cst_12 [1] : vector<5x18xf32> to vector<5xf32>
    %32 = vector.shape_cast %31 : vector<5xf32> to vector<5x1xf32>
    %33 = math.rsqrt %32 : vector<5x1xf32>
    %34 = vector.broadcast %33 : vector<5x1xf32> to vector<5x18xf32>
    %35 = arith.mulf %29, %34 : vector<5x18xf32>
    %cst_13 = arith.constant dense<0.000000e+00> : vector<5x5xf32>
    %36 = tpu.matmul %35, %35, %cst_13 {dimension_numbers = #tpu.dot_dimension_numbers<[1], [1], [0], [0], [0, 0, 1, 0], [], []>} : vector<5x18xf32>, vector<5x18xf32>, vector<5x5xf32> -> vector<5x5xf32>
    %37 = tpu.iota {dimensions = array<i32: 0>} : vector<5x5xi32>
    %38 = tpu.iota {dimensions = array<i32: 1>} : vector<5x5xi32>
    %39 = arith.cmpi eq, %37, %38 : vector<5x5xi32>
    %40 = arith.extui %39 : vector<5x5xi1> to vector<5x5xi32>
    %41 = arith.sitofp %40 : vector<5x5xi32> to vector<5x5xf32>
    %cst_14 = arith.constant 1.000000e+08 : f32
    %42 = vector.broadcast %cst_14 : f32 to vector<5x5xf32>
    %43 = arith.mulf %41, %42 : vector<5x5xf32>
    %c0_15 = arith.constant 0 : index
    %c0_16 = arith.constant 0 : index
    %44 = vector.load %arg3[%c0_15, %c0_16] : memref<9x18xf32, #tpu.memory_space<vmem>>, vector<9x18xf32>
    %c0_17 = arith.constant 0 : index
    %c0_18 = arith.constant 0 : index
    %45 = vector.load %arg4[%c0_17, %c0_18] : memref<1x18xf32, #tpu.memory_space<vmem>>, vector<1x18xf32>
    %c0_19 = arith.constant 0 : index
    %c0_20 = arith.constant 0 : index
    %46 = vector.load %arg5[%c0_19, %c0_20] : memref<5x10xf32, #tpu.memory_space<vmem>>, vector<5x10xf32>
    %c0_21 = arith.constant 0 : index
    %c0_22 = arith.constant 0 : index
    %47 = vector.load %arg6[%c0_21, %c0_22] : memref<1x10xf32, #tpu.memory_space<vmem>>, vector<1x10xf32>
    %c0_23 = arith.constant 0 : index
    %c0_24 = arith.constant 0 : index
    %48 = vector.load %arg7[%c0_23, %c0_24] : memref<5x15xf32, #tpu.memory_space<vmem>>, vector<5x15xf32>
    %c0_25 = arith.constant 0 : index
    %c0_26 = arith.constant 0 : index
    %49 = vector.load %arg8[%c0_25, %c0_26] : memref<1x15xf32, #tpu.memory_space<vmem>>, vector<1x15xf32>
    %c0_27 = arith.constant 0 : index
    %c0_28 = arith.constant 0 : index
    %50 = vector.load %arg9[%c0_27, %c0_28] : memref<5x5xf32, #tpu.memory_space<vmem>>, vector<5x5xf32>
    %c0_29 = arith.constant 0 : index
    %c0_30 = arith.constant 0 : index
    %51 = vector.load %arg10[%c0_29, %c0_30] : memref<1x5xf32, #tpu.memory_space<vmem>>, vector<1x5xf32>
    %c0_31 = arith.constant 0 : index
    %c0_32 = arith.constant 0 : index
    %52 = vector.load %arg11[%c0_31, %c0_32] : memref<18x27xf32, #tpu.memory_space<vmem>>, vector<18x27xf32>
    %c0_33 = arith.constant 0 : index
    %c0_34 = arith.constant 0 : index
    %53 = vector.load %arg12[%c0_33, %c0_34] : memref<1x27xf32, #tpu.memory_space<vmem>>, vector<1x27xf32>
    %54 = vector.extract_strided_slice %8 {offsets = [0, 0], sizes = [5, 9], strides = [1, 1]} : vector<5x36xf32> to vector<5x9xf32>
    %cst_35 = arith.constant dense<0.000000e+00> : vector<5x18xf32>
    %55 = tpu.matmul %54, %44, %cst_35 {dimension_numbers = #tpu.dot_dimension_numbers<[1], [0], [0], [1], [0, 0, 1, 1], [], []>} : vector<5x9xf32>, vector<9x18xf32>, vector<5x18xf32> -> vector<5x18xf32>
    %56 = vector.broadcast %45 : vector<1x18xf32> to vector<5x18xf32>
    %57 = arith.addf %55, %56 : vector<5x18xf32>
    %cst_36 = arith.constant dense<0.000000e+00> : vector<5x5xf32>
    %58 = tpu.matmul %57, %57, %cst_36 {dimension_numbers = #tpu.dot_dimension_numbers<[1], [1], [0], [0], [0, 0, 1, 0], [], []>} : vector<5x18xf32>, vector<5x18xf32>, vector<5x5xf32> -> vector<5x5xf32>
    %59 = arith.subf %58, %43 : vector<5x5xf32>
    %cst_37 = arith.constant 0.000000e+00 : f32
    %60 = vector.broadcast %cst_37 : f32 to vector<5x5xf32>
    %61 = arith.cmpf oge, %59, %60 : vector<5x5xf32>
    %cst_38 = arith.constant 0.00999999977 : f32
    %62 = vector.broadcast %cst_38 : f32 to vector<5x5xf32>
    %63 = arith.mulf %62, %59 : vector<5x5xf32>
    %64 = arith.select %61, %59, %63 : vector<5x5xi1>, vector<5x5xf32>
    %cst_39 = arith.constant dense<0xFF800000> : vector<5xf32>
    %65 = vector.multi_reduction <maximumf>, %64, %cst_39 [1] : vector<5x5xf32> to vector<5xf32>
    %66 = vector.shape_cast %65 : vector<5xf32> to vector<5x1xf32>
    %67 = vector.broadcast %66 : vector<5x1xf32> to vector<5x5xf32>
    %68 = arith.subf %64, %67 : vector<5x5xf32>
    %69 = math.exp %68 : vector<5x5xf32>
    %cst_40 = arith.constant dense<0.000000e+00> : vector<5xf32>
    %70 = vector.multi_reduction <add>, %69, %cst_40 [1] : vector<5x5xf32> to vector<5xf32>
    %71 = vector.shape_cast %70 : vector<5xf32> to vector<5x1xf32>
    %72 = tpu.reciprocal %71 {approx = true} : vector<5x1xf32> -> vector<5x1xf32>
    %73 = vector.broadcast %72 : vector<5x1xf32> to vector<5x5xf32>
    %74 = arith.mulf %69, %73 : vector<5x5xf32>
    %75 = arith.addf %74, %41 : vector<5x5xf32>
    %cst_41 = arith.constant dense<0.000000e+00> : vector<5x10xf32>
    %76 = tpu.matmul %75, %46, %cst_41 {dimension_numbers = #tpu.dot_dimension_numbers<[1], [0], [0], [1], [0, 0, 1, 1], [], []>} : vector<5x5xf32>, vector<5x10xf32>, vector<5x10xf32> -> vector<5x10xf32>
    %77 = vector.broadcast %47 : vector<1x10xf32> to vector<5x10xf32>
    %78 = arith.addf %76, %77 : vector<5x10xf32>
    %cst_42 = arith.constant dense<0.000000e+00> : vector<5x15xf32>
    %79 = tpu.matmul %22, %48, %cst_42 {dimension_numbers = #tpu.dot_dimension_numbers<[1], [0], [0], [1], [0, 0, 1, 1], [], []>} : vector<5x5xf32>, vector<5x15xf32>, vector<5x15xf32> -> vector<5x15xf32>
    %80 = vector.broadcast %49 : vector<1x15xf32> to vector<5x15xf32>
    %81 = arith.addf %79, %80 : vector<5x15xf32>
    %82 = vector.extract_strided_slice %78 {offsets = [0, 0], sizes = [5, 5], strides = [1, 1]} : vector<5x10xf32> to vector<5x5xf32>
    %83 = vector.extract_strided_slice %81 {offsets = [0, 0], sizes = [5, 5], strides = [1, 1]} : vector<5x15xf32> to vector<5x5xf32>
    %84 = arith.addf %82, %83 : vector<5x5xf32>
    %cst_43 = arith.constant 5.000000e-01 : f32
    %85 = vector.broadcast %cst_43 : f32 to vector<5x5xf32>
    %86 = arith.mulf %85, %84 : vector<5x5xf32>
    %87 = math.tanh %86 : vector<5x5xf32>
    %cst_44 = arith.constant 5.000000e-01 : f32
    %88 = vector.broadcast %cst_44 : f32 to vector<5x5xf32>
    %89 = arith.mulf %88, %87 : vector<5x5xf32>
    %cst_45 = arith.constant 5.000000e-01 : f32
    %90 = vector.broadcast %cst_45 : f32 to vector<5x5xf32>
    %91 = arith.addf %89, %90 : vector<5x5xf32>
    %92 = vector.extract_strided_slice %78 {offsets = [0, 5], sizes = [5, 5], strides = [1, 1]} : vector<5x10xf32> to vector<5x5xf32>
    %93 = vector.extract_strided_slice %81 {offsets = [0, 5], sizes = [5, 5], strides = [1, 1]} : vector<5x15xf32> to vector<5x5xf32>
    %94 = arith.addf %92, %93 : vector<5x5xf32>
    %cst_46 = arith.constant 5.000000e-01 : f32
    %95 = vector.broadcast %cst_46 : f32 to vector<5x5xf32>
    %96 = arith.mulf %95, %94 : vector<5x5xf32>
    %97 = math.tanh %96 : vector<5x5xf32>
    %cst_47 = arith.constant 5.000000e-01 : f32
    %98 = vector.broadcast %cst_47 : f32 to vector<5x5xf32>
    %99 = arith.mulf %98, %97 : vector<5x5xf32>
    %cst_48 = arith.constant 5.000000e-01 : f32
    %100 = vector.broadcast %cst_48 : f32 to vector<5x5xf32>
    %101 = arith.addf %99, %100 : vector<5x5xf32>
    %102 = vector.extract_strided_slice %81 {offsets = [0, 10], sizes = [5, 5], strides = [1, 1]} : vector<5x15xf32> to vector<5x5xf32>
    %cst_49 = arith.constant dense<0.000000e+00> : vector<5x5xf32>
    %103 = tpu.matmul %101, %50, %cst_49 {dimension_numbers = #tpu.dot_dimension_numbers<[1], [0], [0], [1], [0, 0, 1, 1], [], []>} : vector<5x5xf32>, vector<5x5xf32>, vector<5x5xf32> -> vector<5x5xf32>
    %104 = arith.addf %102, %103 : vector<5x5xf32>
    %105 = vector.broadcast %51 : vector<1x5xf32> to vector<5x5xf32>
    %106 = arith.addf %104, %105 : vector<5x5xf32>
    %107 = math.tanh %106 : vector<5x5xf32>
    %cst_50 = arith.constant 1.000000e+00 : f32
    %108 = vector.broadcast %cst_50 : f32 to vector<5x5xf32>
    %109 = arith.subf %108, %91 : vector<5x5xf32>
    %110 = arith.mulf %109, %75 : vector<5x5xf32>
    %111 = arith.mulf %91, %107 : vector<5x5xf32>
    %112 = arith.addf %110, %111 : vector<5x5xf32>
    %113 = arith.subf %112, %43 : vector<5x5xf32>
    %cst_51 = arith.constant dense<0xFF800000> : vector<5xf32>
    %114 = vector.multi_reduction <maximumf>, %113, %cst_51 [1] : vector<5x5xf32> to vector<5xf32>
    %115 = vector.shape_cast %114 : vector<5xf32> to vector<5x1xf32>
    %116 = vector.broadcast %115 : vector<5x1xf32> to vector<5x5xf32>
    %117 = arith.subf %113, %116 : vector<5x5xf32>
    %118 = math.exp %117 : vector<5x5xf32>
    %cst_52 = arith.constant dense<0.000000e+00> : vector<5xf32>
    %119 = vector.multi_reduction <add>, %118, %cst_52 [1] : vector<5x5xf32> to vector<5xf32>
    %120 = vector.shape_cast %119 : vector<5xf32> to vector<5x1xf32>
    %121 = tpu.reciprocal %120 {approx = true} : vector<5x1xf32> -> vector<5x1xf32>
    %122 = vector.broadcast %121 : vector<5x1xf32> to vector<5x5xf32>
    %123 = arith.mulf %118, %122 : vector<5x5xf32>
    %124 = arith.addf %123, %41 : vector<5x5xf32>
    %cst_53 = arith.constant dense<0.000000e+00> : vector<5x18xf32>
    %125 = tpu.matmul %124, %57, %cst_53 {dimension_numbers = #tpu.dot_dimension_numbers<[1], [0], [0], [1], [0, 0, 1, 1], [], []>} : vector<5x5xf32>, vector<5x18xf32>, vector<5x18xf32> -> vector<5x18xf32>
    %cst_54 = arith.constant dense<0.000000e+00> : vector<5x27xf32>
    %126 = tpu.matmul %125, %52, %cst_54 {dimension_numbers = #tpu.dot_dimension_numbers<[1], [0], [0], [1], [0, 0, 1, 1], [], []>} : vector<5x18xf32>, vector<18x27xf32>, vector<5x27xf32> -> vector<5x27xf32>
    %127 = vector.broadcast %53 : vector<1x27xf32> to vector<5x27xf32>
    %128 = arith.addf %126, %127 : vector<5x27xf32>
    %cst_55 = arith.constant 0.000000e+00 : f32
    %129 = vector.broadcast %cst_55 : f32 to vector<5x27xf32>
    %130 = arith.cmpf oge, %128, %129 : vector<5x27xf32>
    %cst_56 = arith.constant 0.00999999977 : f32
    %131 = vector.broadcast %cst_56 : f32 to vector<5x27xf32>
    %132 = arith.mulf %131, %128 : vector<5x27xf32>
    %133 = arith.select %130, %128, %132 : vector<5x27xi1>, vector<5x27xf32>
    %134 = vector.extract_strided_slice %8 {offsets = [0, 9], sizes = [5, 9], strides = [1, 1]} : vector<5x36xf32> to vector<5x9xf32>
    %cst_57 = arith.constant dense<0.000000e+00> : vector<5x18xf32>
    %135 = tpu.matmul %134, %44, %cst_57 {dimension_numbers = #tpu.dot_dimension_numbers<[1], [0], [0], [1], [0, 0, 1, 1], [], []>} : vector<5x9xf32>, vector<9x18xf32>, vector<5x18xf32> -> vector<5x18xf32>
    %136 = vector.broadcast %45 : vector<1x18xf32> to vector<5x18xf32>
    %137 = arith.addf %135, %136 : vector<5x18xf32>
    %cst_58 = arith.constant dense<0.000000e+00> : vector<5x5xf32>
    %138 = tpu.matmul %137, %137, %cst_58 {dimension_numbers = #tpu.dot_dimension_numbers<[1], [1], [0], [0], [0, 0, 1, 0], [], []>} : vector<5x18xf32>, vector<5x18xf32>, vector<5x5xf32> -> vector<5x5xf32>
    %139 = arith.subf %138, %43 : vector<5x5xf32>
    %cst_59 = arith.constant 0.000000e+00 : f32
    %140 = vector.broadcast %cst_59 : f32 to vector<5x5xf32>
    %141 = arith.cmpf oge, %139, %140 : vector<5x5xf32>
    %cst_60 = arith.constant 0.00999999977 : f32
    %142 = vector.broadcast %cst_60 : f32 to vector<5x5xf32>
    %143 = arith.mulf %142, %139 : vector<5x5xf32>
    %144 = arith.select %141, %139, %143 : vector<5x5xi1>, vector<5x5xf32>
    %cst_61 = arith.constant dense<0xFF800000> : vector<5xf32>
    %145 = vector.multi_reduction <maximumf>, %144, %cst_61 [1] : vector<5x5xf32> to vector<5xf32>
    %146 = vector.shape_cast %145 : vector<5xf32> to vector<5x1xf32>
    %147 = vector.broadcast %146 : vector<5x1xf32> to vector<5x5xf32>
    %148 = arith.subf %144, %147 : vector<5x5xf32>
    %149 = math.exp %148 : vector<5x5xf32>
    %cst_62 = arith.constant dense<0.000000e+00> : vector<5xf32>
    %150 = vector.multi_reduction <add>, %149, %cst_62 [1] : vector<5x5xf32> to vector<5xf32>
    %151 = vector.shape_cast %150 : vector<5xf32> to vector<5x1xf32>
    %152 = tpu.reciprocal %151 {approx = true} : vector<5x1xf32> -> vector<5x1xf32>
    %153 = vector.broadcast %152 : vector<5x1xf32> to vector<5x5xf32>
    %154 = arith.mulf %149, %153 : vector<5x5xf32>
    %155 = arith.addf %154, %41 : vector<5x5xf32>
    %cst_63 = arith.constant dense<0.000000e+00> : vector<5x10xf32>
    %156 = tpu.matmul %155, %46, %cst_63 {dimension_numbers = #tpu.dot_dimension_numbers<[1], [0], [0], [1], [0, 0, 1, 1], [], []>} : vector<5x5xf32>, vector<5x10xf32>, vector<5x10xf32> -> vector<5x10xf32>
    %157 = vector.broadcast %47 : vector<1x10xf32> to vector<5x10xf32>
    %158 = arith.addf %156, %157 : vector<5x10xf32>
    %cst_64 = arith.constant dense<0.000000e+00> : vector<5x15xf32>
    %159 = tpu.matmul %22, %48, %cst_64 {dimension_numbers = #tpu.dot_dimension_numbers<[1], [0], [0], [1], [0, 0, 1, 1], [], []>} : vector<5x5xf32>, vector<5x15xf32>, vector<5x15xf32> -> vector<5x15xf32>
    %160 = vector.broadcast %49 : vector<1x15xf32> to vector<5x15xf32>
    %161 = arith.addf %159, %160 : vector<5x15xf32>
    %162 = vector.extract_strided_slice %158 {offsets = [0, 0], sizes = [5, 5], strides = [1, 1]} : vector<5x10xf32> to vector<5x5xf32>
    %163 = vector.extract_strided_slice %161 {offsets = [0, 0], sizes = [5, 5], strides = [1, 1]} : vector<5x15xf32> to vector<5x5xf32>
    %164 = arith.addf %162, %163 : vector<5x5xf32>
    %cst_65 = arith.constant 5.000000e-01 : f32
    %165 = vector.broadcast %cst_65 : f32 to vector<5x5xf32>
    %166 = arith.mulf %165, %164 : vector<5x5xf32>
    %167 = math.tanh %166 : vector<5x5xf32>
    %cst_66 = arith.constant 5.000000e-01 : f32
    %168 = vector.broadcast %cst_66 : f32 to vector<5x5xf32>
    %169 = arith.mulf %168, %167 : vector<5x5xf32>
    %cst_67 = arith.constant 5.000000e-01 : f32
    %170 = vector.broadcast %cst_67 : f32 to vector<5x5xf32>
    %171 = arith.addf %169, %170 : vector<5x5xf32>
    %172 = vector.extract_strided_slice %158 {offsets = [0, 5], sizes = [5, 5], strides = [1, 1]} : vector<5x10xf32> to vector<5x5xf32>
    %173 = vector.extract_strided_slice %161 {offsets = [0, 5], sizes = [5, 5], strides = [1, 1]} : vector<5x15xf32> to vector<5x5xf32>
    %174 = arith.addf %172, %173 : vector<5x5xf32>
    %cst_68 = arith.constant 5.000000e-01 : f32
    %175 = vector.broadcast %cst_68 : f32 to vector<5x5xf32>
    %176 = arith.mulf %175, %174 : vector<5x5xf32>
    %177 = math.tanh %176 : vector<5x5xf32>
    %cst_69 = arith.constant 5.000000e-01 : f32
    %178 = vector.broadcast %cst_69 : f32 to vector<5x5xf32>
    %179 = arith.mulf %178, %177 : vector<5x5xf32>
    %cst_70 = arith.constant 5.000000e-01 : f32
    %180 = vector.broadcast %cst_70 : f32 to vector<5x5xf32>
    %181 = arith.addf %179, %180 : vector<5x5xf32>
    %182 = vector.extract_strided_slice %161 {offsets = [0, 10], sizes = [5, 5], strides = [1, 1]} : vector<5x15xf32> to vector<5x5xf32>
    %cst_71 = arith.constant dense<0.000000e+00> : vector<5x5xf32>
    %183 = tpu.matmul %181, %50, %cst_71 {dimension_numbers = #tpu.dot_dimension_numbers<[1], [0], [0], [1], [0, 0, 1, 1], [], []>} : vector<5x5xf32>, vector<5x5xf32>, vector<5x5xf32> -> vector<5x5xf32>
    %184 = arith.addf %182, %183 : vector<5x5xf32>
    %185 = vector.broadcast %51 : vector<1x5xf32> to vector<5x5xf32>
    %186 = arith.addf %184, %185 : vector<5x5xf32>
    %187 = math.tanh %186 : vector<5x5xf32>
    %cst_72 = arith.constant 1.000000e+00 : f32
    %188 = vector.broadcast %cst_72 : f32 to vector<5x5xf32>
    %189 = arith.subf %188, %171 : vector<5x5xf32>
    %190 = arith.mulf %189, %155 : vector<5x5xf32>
    %191 = arith.mulf %171, %187 : vector<5x5xf32>
    %192 = arith.addf %190, %191 : vector<5x5xf32>
    %193 = arith.subf %192, %43 : vector<5x5xf32>
    %cst_73 = arith.constant dense<0xFF800000> : vector<5xf32>
    %194 = vector.multi_reduction <maximumf>, %193, %cst_73 [1] : vector<5x5xf32> to vector<5xf32>
    %195 = vector.shape_cast %194 : vector<5xf32> to vector<5x1xf32>
    %196 = vector.broadcast %195 : vector<5x1xf32> to vector<5x5xf32>
    %197 = arith.subf %193, %196 : vector<5x5xf32>
    %198 = math.exp %197 : vector<5x5xf32>
    %cst_74 = arith.constant dense<0.000000e+00> : vector<5xf32>
    %199 = vector.multi_reduction <add>, %198, %cst_74 [1] : vector<5x5xf32> to vector<5xf32>
    %200 = vector.shape_cast %199 : vector<5xf32> to vector<5x1xf32>
    %201 = tpu.reciprocal %200 {approx = true} : vector<5x1xf32> -> vector<5x1xf32>
    %202 = vector.broadcast %201 : vector<5x1xf32> to vector<5x5xf32>
    %203 = arith.mulf %198, %202 : vector<5x5xf32>
    %204 = arith.addf %203, %41 : vector<5x5xf32>
    %cst_75 = arith.constant dense<0.000000e+00> : vector<5x18xf32>
    %205 = tpu.matmul %204, %137, %cst_75 {dimension_numbers = #tpu.dot_dimension_numbers<[1], [0], [0], [1], [0, 0, 1, 1], [], []>} : vector<5x5xf32>, vector<5x18xf32>, vector<5x18xf32> -> vector<5x18xf32>
    %cst_76 = arith.constant dense<0.000000e+00> : vector<5x27xf32>
    %206 = tpu.matmul %205, %52, %cst_76 {dimension_numbers = #tpu.dot_dimension_numbers<[1], [0], [0], [1], [0, 0, 1, 1], [], []>} : vector<5x18xf32>, vector<18x27xf32>, vector<5x27xf32> -> vector<5x27xf32>
    %207 = vector.broadcast %53 : vector<1x27xf32> to vector<5x27xf32>
    %208 = arith.addf %206, %207 : vector<5x27xf32>
    %cst_77 = arith.constant 0.000000e+00 : f32
    %209 = vector.broadcast %cst_77 : f32 to vector<5x27xf32>
    %210 = arith.cmpf oge, %208, %209 : vector<5x27xf32>
    %cst_78 = arith.constant 0.00999999977 : f32
    %211 = vector.broadcast %cst_78 : f32 to vector<5x27xf32>
    %212 = arith.mulf %211, %208 : vector<5x27xf32>
    %213 = arith.select %210, %208, %212 : vector<5x27xi1>, vector<5x27xf32>
    %214 = vector.extract_strided_slice %8 {offsets = [0, 18], sizes = [5, 9], strides = [1, 1]} : vector<5x36xf32> to vector<5x9xf32>
    %cst_79 = arith.constant dense<0.000000e+00> : vector<5x18xf32>
    %215 = tpu.matmul %214, %44, %cst_79 {dimension_numbers = #tpu.dot_dimension_numbers<[1], [0], [0], [1], [0, 0, 1, 1], [], []>} : vector<5x9xf32>, vector<9x18xf32>, vector<5x18xf32> -> vector<5x18xf32>
    %216 = vector.broadcast %45 : vector<1x18xf32> to vector<5x18xf32>
    %217 = arith.addf %215, %216 : vector<5x18xf32>
    %cst_80 = arith.constant dense<0.000000e+00> : vector<5x5xf32>
    %218 = tpu.matmul %217, %217, %cst_80 {dimension_numbers = #tpu.dot_dimension_numbers<[1], [1], [0], [0], [0, 0, 1, 0], [], []>} : vector<5x18xf32>, vector<5x18xf32>, vector<5x5xf32> -> vector<5x5xf32>
    %219 = arith.subf %218, %43 : vector<5x5xf32>
    %cst_81 = arith.constant 0.000000e+00 : f32
    %220 = vector.broadcast %cst_81 : f32 to vector<5x5xf32>
    %221 = arith.cmpf oge, %219, %220 : vector<5x5xf32>
    %cst_82 = arith.constant 0.00999999977 : f32
    %222 = vector.broadcast %cst_82 : f32 to vector<5x5xf32>
    %223 = arith.mulf %222, %219 : vector<5x5xf32>
    %224 = arith.select %221, %219, %223 : vector<5x5xi1>, vector<5x5xf32>
    %cst_83 = arith.constant dense<0xFF800000> : vector<5xf32>
    %225 = vector.multi_reduction <maximumf>, %224, %cst_83 [1] : vector<5x5xf32> to vector<5xf32>
    %226 = vector.shape_cast %225 : vector<5xf32> to vector<5x1xf32>
    %227 = vector.broadcast %226 : vector<5x1xf32> to vector<5x5xf32>
    %228 = arith.subf %224, %227 : vector<5x5xf32>
    %229 = math.exp %228 : vector<5x5xf32>
    %cst_84 = arith.constant dense<0.000000e+00> : vector<5xf32>
    %230 = vector.multi_reduction <add>, %229, %cst_84 [1] : vector<5x5xf32> to vector<5xf32>
    %231 = vector.shape_cast %230 : vector<5xf32> to vector<5x1xf32>
    %232 = tpu.reciprocal %231 {approx = true} : vector<5x1xf32> -> vector<5x1xf32>
    %233 = vector.broadcast %232 : vector<5x1xf32> to vector<5x5xf32>
    %234 = arith.mulf %229, %233 : vector<5x5xf32>
    %235 = arith.addf %234, %41 : vector<5x5xf32>
    %cst_85 = arith.constant dense<0.000000e+00> : vector<5x10xf32>
    %236 = tpu.matmul %235, %46, %cst_85 {dimension_numbers = #tpu.dot_dimension_numbers<[1], [0], [0], [1], [0, 0, 1, 1], [], []>} : vector<5x5xf32>, vector<5x10xf32>, vector<5x10xf32> -> vector<5x10xf32>
    %237 = vector.broadcast %47 : vector<1x10xf32> to vector<5x10xf32>
    %238 = arith.addf %236, %237 : vector<5x10xf32>
    %cst_86 = arith.constant dense<0.000000e+00> : vector<5x15xf32>
    %239 = tpu.matmul %36, %48, %cst_86 {dimension_numbers = #tpu.dot_dimension_numbers<[1], [0], [0], [1], [0, 0, 1, 1], [], []>} : vector<5x5xf32>, vector<5x15xf32>, vector<5x15xf32> -> vector<5x15xf32>
    %240 = vector.broadcast %49 : vector<1x15xf32> to vector<5x15xf32>
    %241 = arith.addf %239, %240 : vector<5x15xf32>
    %242 = vector.extract_strided_slice %238 {offsets = [0, 0], sizes = [5, 5], strides = [1, 1]} : vector<5x10xf32> to vector<5x5xf32>
    %243 = vector.extract_strided_slice %241 {offsets = [0, 0], sizes = [5, 5], strides = [1, 1]} : vector<5x15xf32> to vector<5x5xf32>
    %244 = arith.addf %242, %243 : vector<5x5xf32>
    %cst_87 = arith.constant 5.000000e-01 : f32
    %245 = vector.broadcast %cst_87 : f32 to vector<5x5xf32>
    %246 = arith.mulf %245, %244 : vector<5x5xf32>
    %247 = math.tanh %246 : vector<5x5xf32>
    %cst_88 = arith.constant 5.000000e-01 : f32
    %248 = vector.broadcast %cst_88 : f32 to vector<5x5xf32>
    %249 = arith.mulf %248, %247 : vector<5x5xf32>
    %cst_89 = arith.constant 5.000000e-01 : f32
    %250 = vector.broadcast %cst_89 : f32 to vector<5x5xf32>
    %251 = arith.addf %249, %250 : vector<5x5xf32>
    %252 = vector.extract_strided_slice %238 {offsets = [0, 5], sizes = [5, 5], strides = [1, 1]} : vector<5x10xf32> to vector<5x5xf32>
    %253 = vector.extract_strided_slice %241 {offsets = [0, 5], sizes = [5, 5], strides = [1, 1]} : vector<5x15xf32> to vector<5x5xf32>
    %254 = arith.addf %252, %253 : vector<5x5xf32>
    %cst_90 = arith.constant 5.000000e-01 : f32
    %255 = vector.broadcast %cst_90 : f32 to vector<5x5xf32>
    %256 = arith.mulf %255, %254 : vector<5x5xf32>
    %257 = math.tanh %256 : vector<5x5xf32>
    %cst_91 = arith.constant 5.000000e-01 : f32
    %258 = vector.broadcast %cst_91 : f32 to vector<5x5xf32>
    %259 = arith.mulf %258, %257 : vector<5x5xf32>
    %cst_92 = arith.constant 5.000000e-01 : f32
    %260 = vector.broadcast %cst_92 : f32 to vector<5x5xf32>
    %261 = arith.addf %259, %260 : vector<5x5xf32>
    %262 = vector.extract_strided_slice %241 {offsets = [0, 10], sizes = [5, 5], strides = [1, 1]} : vector<5x15xf32> to vector<5x5xf32>
    %cst_93 = arith.constant dense<0.000000e+00> : vector<5x5xf32>
    %263 = tpu.matmul %261, %50, %cst_93 {dimension_numbers = #tpu.dot_dimension_numbers<[1], [0], [0], [1], [0, 0, 1, 1], [], []>} : vector<5x5xf32>, vector<5x5xf32>, vector<5x5xf32> -> vector<5x5xf32>
    %264 = arith.addf %262, %263 : vector<5x5xf32>
    %265 = vector.broadcast %51 : vector<1x5xf32> to vector<5x5xf32>
    %266 = arith.addf %264, %265 : vector<5x5xf32>
    %267 = math.tanh %266 : vector<5x5xf32>
    %cst_94 = arith.constant 1.000000e+00 : f32
    %268 = vector.broadcast %cst_94 : f32 to vector<5x5xf32>
    %269 = arith.subf %268, %251 : vector<5x5xf32>
    %270 = arith.mulf %269, %235 : vector<5x5xf32>
    %271 = arith.mulf %251, %267 : vector<5x5xf32>
    %272 = arith.addf %270, %271 : vector<5x5xf32>
    %273 = arith.subf %272, %43 : vector<5x5xf32>
    %cst_95 = arith.constant dense<0xFF800000> : vector<5xf32>
    %274 = vector.multi_reduction <maximumf>, %273, %cst_95 [1] : vector<5x5xf32> to vector<5xf32>
    %275 = vector.shape_cast %274 : vector<5xf32> to vector<5x1xf32>
    %276 = vector.broadcast %275 : vector<5x1xf32> to vector<5x5xf32>
    %277 = arith.subf %273, %276 : vector<5x5xf32>
    %278 = math.exp %277 : vector<5x5xf32>
    %cst_96 = arith.constant dense<0.000000e+00> : vector<5xf32>
    %279 = vector.multi_reduction <add>, %278, %cst_96 [1] : vector<5x5xf32> to vector<5xf32>
    %280 = vector.shape_cast %279 : vector<5xf32> to vector<5x1xf32>
    %281 = tpu.reciprocal %280 {approx = true} : vector<5x1xf32> -> vector<5x1xf32>
    %282 = vector.broadcast %281 : vector<5x1xf32> to vector<5x5xf32>
    %283 = arith.mulf %278, %282 : vector<5x5xf32>
    %284 = arith.addf %283, %41 : vector<5x5xf32>
    %cst_97 = arith.constant dense<0.000000e+00> : vector<5x18xf32>
    %285 = tpu.matmul %284, %217, %cst_97 {dimension_numbers = #tpu.dot_dimension_numbers<[1], [0], [0], [1], [0, 0, 1, 1], [], []>} : vector<5x5xf32>, vector<5x18xf32>, vector<5x18xf32> -> vector<5x18xf32>
    %cst_98 = arith.constant dense<0.000000e+00> : vector<5x27xf32>
    %286 = tpu.matmul %285, %52, %cst_98 {dimension_numbers = #tpu.dot_dimension_numbers<[1], [0], [0], [1], [0, 0, 1, 1], [], []>} : vector<5x18xf32>, vector<18x27xf32>, vector<5x27xf32> -> vector<5x27xf32>
    %287 = vector.broadcast %53 : vector<1x27xf32> to vector<5x27xf32>
    %288 = arith.addf %286, %287 : vector<5x27xf32>
    %cst_99 = arith.constant 0.000000e+00 : f32
    %289 = vector.broadcast %cst_99 : f32 to vector<5x27xf32>
    %290 = arith.cmpf oge, %288, %289 : vector<5x27xf32>
    %cst_100 = arith.constant 0.00999999977 : f32
    %291 = vector.broadcast %cst_100 : f32 to vector<5x27xf32>
    %292 = arith.mulf %291, %288 : vector<5x27xf32>
    %293 = arith.select %290, %288, %292 : vector<5x27xi1>, vector<5x27xf32>
    %294 = vector.extract_strided_slice %8 {offsets = [0, 27], sizes = [5, 9], strides = [1, 1]} : vector<5x36xf32> to vector<5x9xf32>
    %cst_101 = arith.constant dense<0.000000e+00> : vector<5x18xf32>
    %295 = tpu.matmul %294, %44, %cst_101 {dimension_numbers = #tpu.dot_dimension_numbers<[1], [0], [0], [1], [0, 0, 1, 1], [], []>} : vector<5x9xf32>, vector<9x18xf32>, vector<5x18xf32> -> vector<5x18xf32>
    %296 = vector.broadcast %45 : vector<1x18xf32> to vector<5x18xf32>
    %297 = arith.addf %295, %296 : vector<5x18xf32>
    %cst_102 = arith.constant dense<0.000000e+00> : vector<5x5xf32>
    %298 = tpu.matmul %297, %297, %cst_102 {dimension_numbers = #tpu.dot_dimension_numbers<[1], [1], [0], [0], [0, 0, 1, 0], [], []>} : vector<5x18xf32>, vector<5x18xf32>, vector<5x5xf32> -> vector<5x5xf32>
    %299 = arith.subf %298, %43 : vector<5x5xf32>
    %cst_103 = arith.constant 0.000000e+00 : f32
    %300 = vector.broadcast %cst_103 : f32 to vector<5x5xf32>
    %301 = arith.cmpf oge, %299, %300 : vector<5x5xf32>
    %cst_104 = arith.constant 0.00999999977 : f32
    %302 = vector.broadcast %cst_104 : f32 to vector<5x5xf32>
    %303 = arith.mulf %302, %299 : vector<5x5xf32>
    %304 = arith.select %301, %299, %303 : vector<5x5xi1>, vector<5x5xf32>
    %cst_105 = arith.constant dense<0xFF800000> : vector<5xf32>
    %305 = vector.multi_reduction <maximumf>, %304, %cst_105 [1] : vector<5x5xf32> to vector<5xf32>
    %306 = vector.shape_cast %305 : vector<5xf32> to vector<5x1xf32>
    %307 = vector.broadcast %306 : vector<5x1xf32> to vector<5x5xf32>
    %308 = arith.subf %304, %307 : vector<5x5xf32>
    %309 = math.exp %308 : vector<5x5xf32>
    %cst_106 = arith.constant dense<0.000000e+00> : vector<5xf32>
    %310 = vector.multi_reduction <add>, %309, %cst_106 [1] : vector<5x5xf32> to vector<5xf32>
    %311 = vector.shape_cast %310 : vector<5xf32> to vector<5x1xf32>
    %312 = tpu.reciprocal %311 {approx = true} : vector<5x1xf32> -> vector<5x1xf32>
    %313 = vector.broadcast %312 : vector<5x1xf32> to vector<5x5xf32>
    %314 = arith.mulf %309, %313 : vector<5x5xf32>
    %315 = arith.addf %314, %41 : vector<5x5xf32>
    %cst_107 = arith.constant dense<0.000000e+00> : vector<5x10xf32>
    %316 = tpu.matmul %315, %46, %cst_107 {dimension_numbers = #tpu.dot_dimension_numbers<[1], [0], [0], [1], [0, 0, 1, 1], [], []>} : vector<5x5xf32>, vector<5x10xf32>, vector<5x10xf32> -> vector<5x10xf32>
    %317 = vector.broadcast %47 : vector<1x10xf32> to vector<5x10xf32>
    %318 = arith.addf %316, %317 : vector<5x10xf32>
    %cst_108 = arith.constant dense<0.000000e+00> : vector<5x15xf32>
    %319 = tpu.matmul %36, %48, %cst_108 {dimension_numbers = #tpu.dot_dimension_numbers<[1], [0], [0], [1], [0, 0, 1, 1], [], []>} : vector<5x5xf32>, vector<5x15xf32>, vector<5x15xf32> -> vector<5x15xf32>
    %320 = vector.broadcast %49 : vector<1x15xf32> to vector<5x15xf32>
    %321 = arith.addf %319, %320 : vector<5x15xf32>
    %322 = vector.extract_strided_slice %318 {offsets = [0, 0], sizes = [5, 5], strides = [1, 1]} : vector<5x10xf32> to vector<5x5xf32>
    %323 = vector.extract_strided_slice %321 {offsets = [0, 0], sizes = [5, 5], strides = [1, 1]} : vector<5x15xf32> to vector<5x5xf32>
    %324 = arith.addf %322, %323 : vector<5x5xf32>
    %cst_109 = arith.constant 5.000000e-01 : f32
    %325 = vector.broadcast %cst_109 : f32 to vector<5x5xf32>
    %326 = arith.mulf %325, %324 : vector<5x5xf32>
    %327 = math.tanh %326 : vector<5x5xf32>
    %cst_110 = arith.constant 5.000000e-01 : f32
    %328 = vector.broadcast %cst_110 : f32 to vector<5x5xf32>
    %329 = arith.mulf %328, %327 : vector<5x5xf32>
    %cst_111 = arith.constant 5.000000e-01 : f32
    %330 = vector.broadcast %cst_111 : f32 to vector<5x5xf32>
    %331 = arith.addf %329, %330 : vector<5x5xf32>
    %332 = vector.extract_strided_slice %318 {offsets = [0, 5], sizes = [5, 5], strides = [1, 1]} : vector<5x10xf32> to vector<5x5xf32>
    %333 = vector.extract_strided_slice %321 {offsets = [0, 5], sizes = [5, 5], strides = [1, 1]} : vector<5x15xf32> to vector<5x5xf32>
    %334 = arith.addf %332, %333 : vector<5x5xf32>
    %cst_112 = arith.constant 5.000000e-01 : f32
    %335 = vector.broadcast %cst_112 : f32 to vector<5x5xf32>
    %336 = arith.mulf %335, %334 : vector<5x5xf32>
    %337 = math.tanh %336 : vector<5x5xf32>
    %cst_113 = arith.constant 5.000000e-01 : f32
    %338 = vector.broadcast %cst_113 : f32 to vector<5x5xf32>
    %339 = arith.mulf %338, %337 : vector<5x5xf32>
    %cst_114 = arith.constant 5.000000e-01 : f32
    %340 = vector.broadcast %cst_114 : f32 to vector<5x5xf32>
    %341 = arith.addf %339, %340 : vector<5x5xf32>
    %342 = vector.extract_strided_slice %321 {offsets = [0, 10], sizes = [5, 5], strides = [1, 1]} : vector<5x15xf32> to vector<5x5xf32>
    %cst_115 = arith.constant dense<0.000000e+00> : vector<5x5xf32>
    %343 = tpu.matmul %341, %50, %cst_115 {dimension_numbers = #tpu.dot_dimension_numbers<[1], [0], [0], [1], [0, 0, 1, 1], [], []>} : vector<5x5xf32>, vector<5x5xf32>, vector<5x5xf32> -> vector<5x5xf32>
    %344 = arith.addf %342, %343 : vector<5x5xf32>
    %345 = vector.broadcast %51 : vector<1x5xf32> to vector<5x5xf32>
    %346 = arith.addf %344, %345 : vector<5x5xf32>
    %347 = math.tanh %346 : vector<5x5xf32>
    %cst_116 = arith.constant 1.000000e+00 : f32
    %348 = vector.broadcast %cst_116 : f32 to vector<5x5xf32>
    %349 = arith.subf %348, %331 : vector<5x5xf32>
    %350 = arith.mulf %349, %315 : vector<5x5xf32>
    %351 = arith.mulf %331, %347 : vector<5x5xf32>
    %352 = arith.addf %350, %351 : vector<5x5xf32>
    %353 = arith.subf %352, %43 : vector<5x5xf32>
    %cst_117 = arith.constant dense<0xFF800000> : vector<5xf32>
    %354 = vector.multi_reduction <maximumf>, %353, %cst_117 [1] : vector<5x5xf32> to vector<5xf32>
    %355 = vector.shape_cast %354 : vector<5xf32> to vector<5x1xf32>
    %356 = vector.broadcast %355 : vector<5x1xf32> to vector<5x5xf32>
    %357 = arith.subf %353, %356 : vector<5x5xf32>
    %358 = math.exp %357 : vector<5x5xf32>
    %cst_118 = arith.constant dense<0.000000e+00> : vector<5xf32>
    %359 = vector.multi_reduction <add>, %358, %cst_118 [1] : vector<5x5xf32> to vector<5xf32>
    %360 = vector.shape_cast %359 : vector<5xf32> to vector<5x1xf32>
    %361 = tpu.reciprocal %360 {approx = true} : vector<5x1xf32> -> vector<5x1xf32>
    %362 = vector.broadcast %361 : vector<5x1xf32> to vector<5x5xf32>
    %363 = arith.mulf %358, %362 : vector<5x5xf32>
    %364 = arith.addf %363, %41 : vector<5x5xf32>
    %cst_119 = arith.constant dense<0.000000e+00> : vector<5x18xf32>
    %365 = tpu.matmul %364, %297, %cst_119 {dimension_numbers = #tpu.dot_dimension_numbers<[1], [0], [0], [1], [0, 0, 1, 1], [], []>} : vector<5x5xf32>, vector<5x18xf32>, vector<5x18xf32> -> vector<5x18xf32>
    %cst_120 = arith.constant dense<0.000000e+00> : vector<5x27xf32>
    %366 = tpu.matmul %365, %52, %cst_120 {dimension_numbers = #tpu.dot_dimension_numbers<[1], [0], [0], [1], [0, 0, 1, 1], [], []>} : vector<5x18xf32>, vector<18x27xf32>, vector<5x27xf32> -> vector<5x27xf32>
    %367 = vector.broadcast %53 : vector<1x27xf32> to vector<5x27xf32>
    %368 = arith.addf %366, %367 : vector<5x27xf32>
    %cst_121 = arith.constant 0.000000e+00 : f32
    %369 = vector.broadcast %cst_121 : f32 to vector<5x27xf32>
    %370 = arith.cmpf oge, %368, %369 : vector<5x27xf32>
    %cst_122 = arith.constant 0.00999999977 : f32
    %371 = vector.broadcast %cst_122 : f32 to vector<5x27xf32>
    %372 = arith.mulf %371, %368 : vector<5x27xf32>
    %373 = arith.select %370, %368, %372 : vector<5x27xi1>, vector<5x27xf32>
    %c0_123 = arith.constant 0 : index
    %c0_124 = arith.constant 0 : index
    %374 = vector.load %arg13[%c0_123, %c0_124] : memref<27x96xf32, #tpu.memory_space<vmem>>, vector<27x96xf32>
    %c0_125 = arith.constant 0 : index
    %c0_126 = arith.constant 0 : index
    %375 = vector.load %arg14[%c0_125, %c0_126] : memref<1x96xf32, #tpu.memory_space<vmem>>, vector<1x96xf32>
    %c0_127 = arith.constant 0 : index
    %c0_128 = arith.constant 0 : index
    %376 = vector.load %arg15[%c0_127, %c0_128] : memref<12x48xf32, #tpu.memory_space<vmem>>, vector<12x48xf32>
    %c0_129 = arith.constant 0 : index
    %c0_130 = arith.constant 0 : index
    %377 = vector.load %arg16[%c0_129, %c0_130] : memref<12x48xf32, #tpu.memory_space<vmem>>, vector<12x48xf32>
    %c0_131 = arith.constant 0 : index
    %c0_132 = arith.constant 0 : index
    %378 = vector.load %arg17[%c0_131, %c0_132] : memref<12x192xf32, #tpu.memory_space<vmem>>, vector<12x192xf32>
    %c0_133 = arith.constant 0 : index
    %c0_134 = arith.constant 0 : index
    %379 = vector.load %arg18[%c0_133, %c0_134] : memref<1x192xf32, #tpu.memory_space<vmem>>, vector<1x192xf32>
    %c0_135 = arith.constant 0 : index
    %c0_136 = arith.constant 0 : index
    %380 = vector.load %arg19[%c0_135, %c0_136] : memref<24x96xf32, #tpu.memory_space<vmem>>, vector<24x96xf32>
    %c0_137 = arith.constant 0 : index
    %c0_138 = arith.constant 0 : index
    %381 = vector.load %arg20[%c0_137, %c0_138] : memref<24x96xf32, #tpu.memory_space<vmem>>, vector<24x96xf32>
    %c0_139 = arith.constant 0 : index
    %c0_140 = arith.constant 0 : index
    %382 = vector.load %arg21[%c0_139, %c0_140] : memref<24x96xf32, #tpu.memory_space<vmem>>, vector<24x96xf32>
    %c0_141 = arith.constant 0 : index
    %c0_142 = arith.constant 0 : index
    %383 = vector.load %arg22[%c0_141, %c0_142] : memref<1x96xf32, #tpu.memory_space<vmem>>, vector<1x96xf32>
    %c0_143 = arith.constant 0 : index
    %c0_144 = arith.constant 0 : index
    %384 = vector.load %arg23[%c0_143, %c0_144] : memref<12x48xf32, #tpu.memory_space<vmem>>, vector<12x48xf32>
    %c0_145 = arith.constant 0 : index
    %c0_146 = arith.constant 0 : index
    %385 = vector.load %arg24[%c0_145, %c0_146] : memref<12x48xf32, #tpu.memory_space<vmem>>, vector<12x48xf32>
    %cst_147 = arith.constant dense<0.000000e+00> : vector<5x96xf32>
    %386 = tpu.matmul %133, %374, %cst_147 {dimension_numbers = #tpu.dot_dimension_numbers<[1], [0], [0], [1], [0, 0, 1, 1], [], []>} : vector<5x27xf32>, vector<27x96xf32>, vector<5x96xf32> -> vector<5x96xf32>
    %387 = vector.broadcast %375 : vector<1x96xf32> to vector<5x96xf32>
    %388 = arith.addf %386, %387 : vector<5x96xf32>
    %cst_148 = arith.constant dense<0.000000e+00> : vector<5x96xf32>
    %389 = tpu.matmul %293, %374, %cst_148 {dimension_numbers = #tpu.dot_dimension_numbers<[1], [0], [0], [1], [0, 0, 1, 1], [], []>} : vector<5x27xf32>, vector<27x96xf32>, vector<5x96xf32> -> vector<5x96xf32>
    %390 = vector.broadcast %375 : vector<1x96xf32> to vector<5x96xf32>
    %391 = arith.addf %389, %390 : vector<5x96xf32>
    %cst_149 = arith.constant 0.000000e+00 : f32
    %392 = vector.broadcast %cst_149 : f32 to vector<5x12xf32>
    %cst_150 = arith.constant 0.000000e+00 : f32
    %393 = vector.broadcast %cst_150 : f32 to vector<5x12xf32>
    %394 = vector.extract_strided_slice %388 {offsets = [0, 0], sizes = [5, 48], strides = [1, 1]} : vector<5x96xf32> to vector<5x48xf32>
    %cst_151 = arith.constant dense<0.000000e+00> : vector<5x48xf32>
    %395 = tpu.matmul %392, %376, %cst_151 {dimension_numbers = #tpu.dot_dimension_numbers<[1], [0], [0], [1], [0, 0, 1, 1], [], []>} : vector<5x12xf32>, vector<12x48xf32>, vector<5x48xf32> -> vector<5x48xf32>
    %396 = arith.addf %394, %395 : vector<5x48xf32>
    %397 = vector.extract_strided_slice %396 {offsets = [0, 0], sizes = [5, 12], strides = [1, 1]} : vector<5x48xf32> to vector<5x12xf32>
    %cst_152 = arith.constant 5.000000e-01 : f32
    %398 = vector.broadcast %cst_152 : f32 to vector<5x12xf32>
    %399 = arith.mulf %398, %397 : vector<5x12xf32>
    %400 = math.tanh %399 : vector<5x12xf32>
    %cst_153 = arith.constant 5.000000e-01 : f32
    %401 = vector.broadcast %cst_153 : f32 to vector<5x12xf32>
    %402 = arith.mulf %401, %400 : vector<5x12xf32>
    %cst_154 = arith.constant 5.000000e-01 : f32
    %403 = vector.broadcast %cst_154 : f32 to vector<5x12xf32>
    %404 = arith.addf %402, %403 : vector<5x12xf32>
    %405 = vector.extract_strided_slice %396 {offsets = [0, 12], sizes = [5, 12], strides = [1, 1]} : vector<5x48xf32> to vector<5x12xf32>
    %cst_155 = arith.constant 5.000000e-01 : f32
    %406 = vector.broadcast %cst_155 : f32 to vector<5x12xf32>
    %407 = arith.mulf %406, %405 : vector<5x12xf32>
    %408 = math.tanh %407 : vector<5x12xf32>
    %cst_156 = arith.constant 5.000000e-01 : f32
    %409 = vector.broadcast %cst_156 : f32 to vector<5x12xf32>
    %410 = arith.mulf %409, %408 : vector<5x12xf32>
    %cst_157 = arith.constant 5.000000e-01 : f32
    %411 = vector.broadcast %cst_157 : f32 to vector<5x12xf32>
    %412 = arith.addf %410, %411 : vector<5x12xf32>
    %413 = vector.extract_strided_slice %396 {offsets = [0, 24], sizes = [5, 12], strides = [1, 1]} : vector<5x48xf32> to vector<5x12xf32>
    %414 = math.tanh %413 : vector<5x12xf32>
    %415 = vector.extract_strided_slice %396 {offsets = [0, 36], sizes = [5, 12], strides = [1, 1]} : vector<5x48xf32> to vector<5x12xf32>
    %cst_158 = arith.constant 5.000000e-01 : f32
    %416 = vector.broadcast %cst_158 : f32 to vector<5x12xf32>
    %417 = arith.mulf %416, %415 : vector<5x12xf32>
    %418 = math.tanh %417 : vector<5x12xf32>
    %cst_159 = arith.constant 5.000000e-01 : f32
    %419 = vector.broadcast %cst_159 : f32 to vector<5x12xf32>
    %420 = arith.mulf %419, %418 : vector<5x12xf32>
    %cst_160 = arith.constant 5.000000e-01 : f32
    %421 = vector.broadcast %cst_160 : f32 to vector<5x12xf32>
    %422 = arith.addf %420, %421 : vector<5x12xf32>
    %423 = arith.mulf %412, %393 : vector<5x12xf32>
    %424 = arith.mulf %404, %414 : vector<5x12xf32>
    %425 = arith.addf %423, %424 : vector<5x12xf32>
    %426 = math.tanh %425 : vector<5x12xf32>
    %427 = arith.mulf %422, %426 : vector<5x12xf32>
    %428 = vector.extract_strided_slice %391 {offsets = [0, 0], sizes = [5, 48], strides = [1, 1]} : vector<5x96xf32> to vector<5x48xf32>
    %cst_161 = arith.constant dense<0.000000e+00> : vector<5x48xf32>
    %429 = tpu.matmul %427, %376, %cst_161 {dimension_numbers = #tpu.dot_dimension_numbers<[1], [0], [0], [1], [0, 0, 1, 1], [], []>} : vector<5x12xf32>, vector<12x48xf32>, vector<5x48xf32> -> vector<5x48xf32>
    %430 = arith.addf %428, %429 : vector<5x48xf32>
    %431 = vector.extract_strided_slice %430 {offsets = [0, 0], sizes = [5, 12], strides = [1, 1]} : vector<5x48xf32> to vector<5x12xf32>
    %cst_162 = arith.constant 5.000000e-01 : f32
    %432 = vector.broadcast %cst_162 : f32 to vector<5x12xf32>
    %433 = arith.mulf %432, %431 : vector<5x12xf32>
    %434 = math.tanh %433 : vector<5x12xf32>
    %cst_163 = arith.constant 5.000000e-01 : f32
    %435 = vector.broadcast %cst_163 : f32 to vector<5x12xf32>
    %436 = arith.mulf %435, %434 : vector<5x12xf32>
    %cst_164 = arith.constant 5.000000e-01 : f32
    %437 = vector.broadcast %cst_164 : f32 to vector<5x12xf32>
    %438 = arith.addf %436, %437 : vector<5x12xf32>
    %439 = vector.extract_strided_slice %430 {offsets = [0, 12], sizes = [5, 12], strides = [1, 1]} : vector<5x48xf32> to vector<5x12xf32>
    %cst_165 = arith.constant 5.000000e-01 : f32
    %440 = vector.broadcast %cst_165 : f32 to vector<5x12xf32>
    %441 = arith.mulf %440, %439 : vector<5x12xf32>
    %442 = math.tanh %441 : vector<5x12xf32>
    %cst_166 = arith.constant 5.000000e-01 : f32
    %443 = vector.broadcast %cst_166 : f32 to vector<5x12xf32>
    %444 = arith.mulf %443, %442 : vector<5x12xf32>
    %cst_167 = arith.constant 5.000000e-01 : f32
    %445 = vector.broadcast %cst_167 : f32 to vector<5x12xf32>
    %446 = arith.addf %444, %445 : vector<5x12xf32>
    %447 = vector.extract_strided_slice %430 {offsets = [0, 24], sizes = [5, 12], strides = [1, 1]} : vector<5x48xf32> to vector<5x12xf32>
    %448 = math.tanh %447 : vector<5x12xf32>
    %449 = vector.extract_strided_slice %430 {offsets = [0, 36], sizes = [5, 12], strides = [1, 1]} : vector<5x48xf32> to vector<5x12xf32>
    %cst_168 = arith.constant 5.000000e-01 : f32
    %450 = vector.broadcast %cst_168 : f32 to vector<5x12xf32>
    %451 = arith.mulf %450, %449 : vector<5x12xf32>
    %452 = math.tanh %451 : vector<5x12xf32>
    %cst_169 = arith.constant 5.000000e-01 : f32
    %453 = vector.broadcast %cst_169 : f32 to vector<5x12xf32>
    %454 = arith.mulf %453, %452 : vector<5x12xf32>
    %cst_170 = arith.constant 5.000000e-01 : f32
    %455 = vector.broadcast %cst_170 : f32 to vector<5x12xf32>
    %456 = arith.addf %454, %455 : vector<5x12xf32>
    %457 = arith.mulf %446, %425 : vector<5x12xf32>
    %458 = arith.mulf %438, %448 : vector<5x12xf32>
    %459 = arith.addf %457, %458 : vector<5x12xf32>
    %460 = math.tanh %459 : vector<5x12xf32>
    %461 = arith.mulf %456, %460 : vector<5x12xf32>
    %cst_171 = arith.constant 0.000000e+00 : f32
    %462 = vector.broadcast %cst_171 : f32 to vector<5x12xf32>
    %cst_172 = arith.constant 0.000000e+00 : f32
    %463 = vector.broadcast %cst_172 : f32 to vector<5x12xf32>
    %464 = vector.extract_strided_slice %391 {offsets = [0, 48], sizes = [5, 48], strides = [1, 1]} : vector<5x96xf32> to vector<5x48xf32>
    %cst_173 = arith.constant dense<0.000000e+00> : vector<5x48xf32>
    %465 = tpu.matmul %462, %377, %cst_173 {dimension_numbers = #tpu.dot_dimension_numbers<[1], [0], [0], [1], [0, 0, 1, 1], [], []>} : vector<5x12xf32>, vector<12x48xf32>, vector<5x48xf32> -> vector<5x48xf32>
    %466 = arith.addf %464, %465 : vector<5x48xf32>
    %467 = vector.extract_strided_slice %466 {offsets = [0, 0], sizes = [5, 12], strides = [1, 1]} : vector<5x48xf32> to vector<5x12xf32>
    %cst_174 = arith.constant 5.000000e-01 : f32
    %468 = vector.broadcast %cst_174 : f32 to vector<5x12xf32>
    %469 = arith.mulf %468, %467 : vector<5x12xf32>
    %470 = math.tanh %469 : vector<5x12xf32>
    %cst_175 = arith.constant 5.000000e-01 : f32
    %471 = vector.broadcast %cst_175 : f32 to vector<5x12xf32>
    %472 = arith.mulf %471, %470 : vector<5x12xf32>
    %cst_176 = arith.constant 5.000000e-01 : f32
    %473 = vector.broadcast %cst_176 : f32 to vector<5x12xf32>
    %474 = arith.addf %472, %473 : vector<5x12xf32>
    %475 = vector.extract_strided_slice %466 {offsets = [0, 12], sizes = [5, 12], strides = [1, 1]} : vector<5x48xf32> to vector<5x12xf32>
    %cst_177 = arith.constant 5.000000e-01 : f32
    %476 = vector.broadcast %cst_177 : f32 to vector<5x12xf32>
    %477 = arith.mulf %476, %475 : vector<5x12xf32>
    %478 = math.tanh %477 : vector<5x12xf32>
    %cst_178 = arith.constant 5.000000e-01 : f32
    %479 = vector.broadcast %cst_178 : f32 to vector<5x12xf32>
    %480 = arith.mulf %479, %478 : vector<5x12xf32>
    %cst_179 = arith.constant 5.000000e-01 : f32
    %481 = vector.broadcast %cst_179 : f32 to vector<5x12xf32>
    %482 = arith.addf %480, %481 : vector<5x12xf32>
    %483 = vector.extract_strided_slice %466 {offsets = [0, 24], sizes = [5, 12], strides = [1, 1]} : vector<5x48xf32> to vector<5x12xf32>
    %484 = math.tanh %483 : vector<5x12xf32>
    %485 = vector.extract_strided_slice %466 {offsets = [0, 36], sizes = [5, 12], strides = [1, 1]} : vector<5x48xf32> to vector<5x12xf32>
    %cst_180 = arith.constant 5.000000e-01 : f32
    %486 = vector.broadcast %cst_180 : f32 to vector<5x12xf32>
    %487 = arith.mulf %486, %485 : vector<5x12xf32>
    %488 = math.tanh %487 : vector<5x12xf32>
    %cst_181 = arith.constant 5.000000e-01 : f32
    %489 = vector.broadcast %cst_181 : f32 to vector<5x12xf32>
    %490 = arith.mulf %489, %488 : vector<5x12xf32>
    %cst_182 = arith.constant 5.000000e-01 : f32
    %491 = vector.broadcast %cst_182 : f32 to vector<5x12xf32>
    %492 = arith.addf %490, %491 : vector<5x12xf32>
    %493 = arith.mulf %482, %463 : vector<5x12xf32>
    %494 = arith.mulf %474, %484 : vector<5x12xf32>
    %495 = arith.addf %493, %494 : vector<5x12xf32>
    %496 = math.tanh %495 : vector<5x12xf32>
    %497 = arith.mulf %492, %496 : vector<5x12xf32>
    %498 = vector.extract_strided_slice %388 {offsets = [0, 48], sizes = [5, 48], strides = [1, 1]} : vector<5x96xf32> to vector<5x48xf32>
    %cst_183 = arith.constant dense<0.000000e+00> : vector<5x48xf32>
    %499 = tpu.matmul %497, %377, %cst_183 {dimension_numbers = #tpu.dot_dimension_numbers<[1], [0], [0], [1], [0, 0, 1, 1], [], []>} : vector<5x12xf32>, vector<12x48xf32>, vector<5x48xf32> -> vector<5x48xf32>
    %500 = arith.addf %498, %499 : vector<5x48xf32>
    %501 = vector.extract_strided_slice %500 {offsets = [0, 0], sizes = [5, 12], strides = [1, 1]} : vector<5x48xf32> to vector<5x12xf32>
    %cst_184 = arith.constant 5.000000e-01 : f32
    %502 = vector.broadcast %cst_184 : f32 to vector<5x12xf32>
    %503 = arith.mulf %502, %501 : vector<5x12xf32>
    %504 = math.tanh %503 : vector<5x12xf32>
    %cst_185 = arith.constant 5.000000e-01 : f32
    %505 = vector.broadcast %cst_185 : f32 to vector<5x12xf32>
    %506 = arith.mulf %505, %504 : vector<5x12xf32>
    %cst_186 = arith.constant 5.000000e-01 : f32
    %507 = vector.broadcast %cst_186 : f32 to vector<5x12xf32>
    %508 = arith.addf %506, %507 : vector<5x12xf32>
    %509 = vector.extract_strided_slice %500 {offsets = [0, 12], sizes = [5, 12], strides = [1, 1]} : vector<5x48xf32> to vector<5x12xf32>
    %cst_187 = arith.constant 5.000000e-01 : f32
    %510 = vector.broadcast %cst_187 : f32 to vector<5x12xf32>
    %511 = arith.mulf %510, %509 : vector<5x12xf32>
    %512 = math.tanh %511 : vector<5x12xf32>
    %cst_188 = arith.constant 5.000000e-01 : f32
    %513 = vector.broadcast %cst_188 : f32 to vector<5x12xf32>
    %514 = arith.mulf %513, %512 : vector<5x12xf32>
    %cst_189 = arith.constant 5.000000e-01 : f32
    %515 = vector.broadcast %cst_189 : f32 to vector<5x12xf32>
    %516 = arith.addf %514, %515 : vector<5x12xf32>
    %517 = vector.extract_strided_slice %500 {offsets = [0, 24], sizes = [5, 12], strides = [1, 1]} : vector<5x48xf32> to vector<5x12xf32>
    %518 = math.tanh %517 : vector<5x12xf32>
    %519 = vector.extract_strided_slice %500 {offsets = [0, 36], sizes = [5, 12], strides = [1, 1]} : vector<5x48xf32> to vector<5x12xf32>
    %cst_190 = arith.constant 5.000000e-01 : f32
    %520 = vector.broadcast %cst_190 : f32 to vector<5x12xf32>
    %521 = arith.mulf %520, %519 : vector<5x12xf32>
    %522 = math.tanh %521 : vector<5x12xf32>
    %cst_191 = arith.constant 5.000000e-01 : f32
    %523 = vector.broadcast %cst_191 : f32 to vector<5x12xf32>
    %524 = arith.mulf %523, %522 : vector<5x12xf32>
    %cst_192 = arith.constant 5.000000e-01 : f32
    %525 = vector.broadcast %cst_192 : f32 to vector<5x12xf32>
    %526 = arith.addf %524, %525 : vector<5x12xf32>
    %527 = arith.mulf %516, %495 : vector<5x12xf32>
    %528 = arith.mulf %508, %518 : vector<5x12xf32>
    %529 = arith.addf %527, %528 : vector<5x12xf32>
    %530 = math.tanh %529 : vector<5x12xf32>
    %531 = arith.mulf %526, %530 : vector<5x12xf32>
    %532 = arith.addf %427, %531 : vector<5x12xf32>
    %533 = arith.addf %461, %497 : vector<5x12xf32>
    %cst_193 = arith.constant dense<0.000000e+00> : vector<5x192xf32>
    %534 = tpu.matmul %532, %378, %cst_193 {dimension_numbers = #tpu.dot_dimension_numbers<[1], [0], [0], [1], [0, 0, 1, 1], [], []>} : vector<5x12xf32>, vector<12x192xf32>, vector<5x192xf32> -> vector<5x192xf32>
    %535 = vector.broadcast %379 : vector<1x192xf32> to vector<5x192xf32>
    %536 = arith.addf %534, %535 : vector<5x192xf32>
    %cst_194 = arith.constant dense<0.000000e+00> : vector<5x192xf32>
    %537 = tpu.matmul %533, %378, %cst_194 {dimension_numbers = #tpu.dot_dimension_numbers<[1], [0], [0], [1], [0, 0, 1, 1], [], []>} : vector<5x12xf32>, vector<12x192xf32>, vector<5x192xf32> -> vector<5x192xf32>
    %538 = vector.broadcast %379 : vector<1x192xf32> to vector<5x192xf32>
    %539 = arith.addf %537, %538 : vector<5x192xf32>
    %cst_195 = arith.constant 0.000000e+00 : f32
    %540 = vector.broadcast %cst_195 : f32 to vector<5x24xf32>
    %cst_196 = arith.constant 0.000000e+00 : f32
    %541 = vector.broadcast %cst_196 : f32 to vector<5x24xf32>
    %542 = vector.extract_strided_slice %536 {offsets = [0, 0], sizes = [5, 96], strides = [1, 1]} : vector<5x192xf32> to vector<5x96xf32>
    %cst_197 = arith.constant dense<0.000000e+00> : vector<5x96xf32>
    %543 = tpu.matmul %540, %380, %cst_197 {dimension_numbers = #tpu.dot_dimension_numbers<[1], [0], [0], [1], [0, 0, 1, 1], [], []>} : vector<5x24xf32>, vector<24x96xf32>, vector<5x96xf32> -> vector<5x96xf32>
    %544 = arith.addf %542, %543 : vector<5x96xf32>
    %545 = vector.extract_strided_slice %544 {offsets = [0, 0], sizes = [5, 24], strides = [1, 1]} : vector<5x96xf32> to vector<5x24xf32>
    %cst_198 = arith.constant 5.000000e-01 : f32
    %546 = vector.broadcast %cst_198 : f32 to vector<5x24xf32>
    %547 = arith.mulf %546, %545 : vector<5x24xf32>
    %548 = math.tanh %547 : vector<5x24xf32>
    %cst_199 = arith.constant 5.000000e-01 : f32
    %549 = vector.broadcast %cst_199 : f32 to vector<5x24xf32>
    %550 = arith.mulf %549, %548 : vector<5x24xf32>
    %cst_200 = arith.constant 5.000000e-01 : f32
    %551 = vector.broadcast %cst_200 : f32 to vector<5x24xf32>
    %552 = arith.addf %550, %551 : vector<5x24xf32>
    %553 = vector.extract_strided_slice %544 {offsets = [0, 24], sizes = [5, 24], strides = [1, 1]} : vector<5x96xf32> to vector<5x24xf32>
    %cst_201 = arith.constant 5.000000e-01 : f32
    %554 = vector.broadcast %cst_201 : f32 to vector<5x24xf32>
    %555 = arith.mulf %554, %553 : vector<5x24xf32>
    %556 = math.tanh %555 : vector<5x24xf32>
    %cst_202 = arith.constant 5.000000e-01 : f32
    %557 = vector.broadcast %cst_202 : f32 to vector<5x24xf32>
    %558 = arith.mulf %557, %556 : vector<5x24xf32>
    %cst_203 = arith.constant 5.000000e-01 : f32
    %559 = vector.broadcast %cst_203 : f32 to vector<5x24xf32>
    %560 = arith.addf %558, %559 : vector<5x24xf32>
    %561 = vector.extract_strided_slice %544 {offsets = [0, 48], sizes = [5, 24], strides = [1, 1]} : vector<5x96xf32> to vector<5x24xf32>
    %562 = math.tanh %561 : vector<5x24xf32>
    %563 = vector.extract_strided_slice %544 {offsets = [0, 72], sizes = [5, 24], strides = [1, 1]} : vector<5x96xf32> to vector<5x24xf32>
    %cst_204 = arith.constant 5.000000e-01 : f32
    %564 = vector.broadcast %cst_204 : f32 to vector<5x24xf32>
    %565 = arith.mulf %564, %563 : vector<5x24xf32>
    %566 = math.tanh %565 : vector<5x24xf32>
    %cst_205 = arith.constant 5.000000e-01 : f32
    %567 = vector.broadcast %cst_205 : f32 to vector<5x24xf32>
    %568 = arith.mulf %567, %566 : vector<5x24xf32>
    %cst_206 = arith.constant 5.000000e-01 : f32
    %569 = vector.broadcast %cst_206 : f32 to vector<5x24xf32>
    %570 = arith.addf %568, %569 : vector<5x24xf32>
    %571 = arith.mulf %560, %541 : vector<5x24xf32>
    %572 = arith.mulf %552, %562 : vector<5x24xf32>
    %573 = arith.addf %571, %572 : vector<5x24xf32>
    %574 = math.tanh %573 : vector<5x24xf32>
    %575 = arith.mulf %570, %574 : vector<5x24xf32>
    %576 = vector.extract_strided_slice %539 {offsets = [0, 0], sizes = [5, 96], strides = [1, 1]} : vector<5x192xf32> to vector<5x96xf32>
    %cst_207 = arith.constant dense<0.000000e+00> : vector<5x96xf32>
    %577 = tpu.matmul %575, %380, %cst_207 {dimension_numbers = #tpu.dot_dimension_numbers<[1], [0], [0], [1], [0, 0, 1, 1], [], []>} : vector<5x24xf32>, vector<24x96xf32>, vector<5x96xf32> -> vector<5x96xf32>
    %578 = arith.addf %576, %577 : vector<5x96xf32>
    %579 = vector.extract_strided_slice %578 {offsets = [0, 0], sizes = [5, 24], strides = [1, 1]} : vector<5x96xf32> to vector<5x24xf32>
    %cst_208 = arith.constant 5.000000e-01 : f32
    %580 = vector.broadcast %cst_208 : f32 to vector<5x24xf32>
    %581 = arith.mulf %580, %579 : vector<5x24xf32>
    %582 = math.tanh %581 : vector<5x24xf32>
    %cst_209 = arith.constant 5.000000e-01 : f32
    %583 = vector.broadcast %cst_209 : f32 to vector<5x24xf32>
    %584 = arith.mulf %583, %582 : vector<5x24xf32>
    %cst_210 = arith.constant 5.000000e-01 : f32
    %585 = vector.broadcast %cst_210 : f32 to vector<5x24xf32>
    %586 = arith.addf %584, %585 : vector<5x24xf32>
    %587 = vector.extract_strided_slice %578 {offsets = [0, 24], sizes = [5, 24], strides = [1, 1]} : vector<5x96xf32> to vector<5x24xf32>
    %cst_211 = arith.constant 5.000000e-01 : f32
    %588 = vector.broadcast %cst_211 : f32 to vector<5x24xf32>
    %589 = arith.mulf %588, %587 : vector<5x24xf32>
    %590 = math.tanh %589 : vector<5x24xf32>
    %cst_212 = arith.constant 5.000000e-01 : f32
    %591 = vector.broadcast %cst_212 : f32 to vector<5x24xf32>
    %592 = arith.mulf %591, %590 : vector<5x24xf32>
    %cst_213 = arith.constant 5.000000e-01 : f32
    %593 = vector.broadcast %cst_213 : f32 to vector<5x24xf32>
    %594 = arith.addf %592, %593 : vector<5x24xf32>
    %595 = vector.extract_strided_slice %578 {offsets = [0, 48], sizes = [5, 24], strides = [1, 1]} : vector<5x96xf32> to vector<5x24xf32>
    %596 = math.tanh %595 : vector<5x24xf32>
    %597 = vector.extract_strided_slice %578 {offsets = [0, 72], sizes = [5, 24], strides = [1, 1]} : vector<5x96xf32> to vector<5x24xf32>
    %cst_214 = arith.constant 5.000000e-01 : f32
    %598 = vector.broadcast %cst_214 : f32 to vector<5x24xf32>
    %599 = arith.mulf %598, %597 : vector<5x24xf32>
    %600 = math.tanh %599 : vector<5x24xf32>
    %cst_215 = arith.constant 5.000000e-01 : f32
    %601 = vector.broadcast %cst_215 : f32 to vector<5x24xf32>
    %602 = arith.mulf %601, %600 : vector<5x24xf32>
    %cst_216 = arith.constant 5.000000e-01 : f32
    %603 = vector.broadcast %cst_216 : f32 to vector<5x24xf32>
    %604 = arith.addf %602, %603 : vector<5x24xf32>
    %605 = arith.mulf %594, %573 : vector<5x24xf32>
    %606 = arith.mulf %586, %596 : vector<5x24xf32>
    %607 = arith.addf %605, %606 : vector<5x24xf32>
    %608 = math.tanh %607 : vector<5x24xf32>
    %609 = arith.mulf %604, %608 : vector<5x24xf32>
    %cst_217 = arith.constant 0.000000e+00 : f32
    %610 = vector.broadcast %cst_217 : f32 to vector<5x24xf32>
    %cst_218 = arith.constant 0.000000e+00 : f32
    %611 = vector.broadcast %cst_218 : f32 to vector<5x24xf32>
    %612 = vector.extract_strided_slice %539 {offsets = [0, 96], sizes = [5, 96], strides = [1, 1]} : vector<5x192xf32> to vector<5x96xf32>
    %cst_219 = arith.constant dense<0.000000e+00> : vector<5x96xf32>
    %613 = tpu.matmul %610, %381, %cst_219 {dimension_numbers = #tpu.dot_dimension_numbers<[1], [0], [0], [1], [0, 0, 1, 1], [], []>} : vector<5x24xf32>, vector<24x96xf32>, vector<5x96xf32> -> vector<5x96xf32>
    %614 = arith.addf %612, %613 : vector<5x96xf32>
    %615 = vector.extract_strided_slice %614 {offsets = [0, 0], sizes = [5, 24], strides = [1, 1]} : vector<5x96xf32> to vector<5x24xf32>
    %cst_220 = arith.constant 5.000000e-01 : f32
    %616 = vector.broadcast %cst_220 : f32 to vector<5x24xf32>
    %617 = arith.mulf %616, %615 : vector<5x24xf32>
    %618 = math.tanh %617 : vector<5x24xf32>
    %cst_221 = arith.constant 5.000000e-01 : f32
    %619 = vector.broadcast %cst_221 : f32 to vector<5x24xf32>
    %620 = arith.mulf %619, %618 : vector<5x24xf32>
    %cst_222 = arith.constant 5.000000e-01 : f32
    %621 = vector.broadcast %cst_222 : f32 to vector<5x24xf32>
    %622 = arith.addf %620, %621 : vector<5x24xf32>
    %623 = vector.extract_strided_slice %614 {offsets = [0, 24], sizes = [5, 24], strides = [1, 1]} : vector<5x96xf32> to vector<5x24xf32>
    %cst_223 = arith.constant 5.000000e-01 : f32
    %624 = vector.broadcast %cst_223 : f32 to vector<5x24xf32>
    %625 = arith.mulf %624, %623 : vector<5x24xf32>
    %626 = math.tanh %625 : vector<5x24xf32>
    %cst_224 = arith.constant 5.000000e-01 : f32
    %627 = vector.broadcast %cst_224 : f32 to vector<5x24xf32>
    %628 = arith.mulf %627, %626 : vector<5x24xf32>
    %cst_225 = arith.constant 5.000000e-01 : f32
    %629 = vector.broadcast %cst_225 : f32 to vector<5x24xf32>
    %630 = arith.addf %628, %629 : vector<5x24xf32>
    %631 = vector.extract_strided_slice %614 {offsets = [0, 48], sizes = [5, 24], strides = [1, 1]} : vector<5x96xf32> to vector<5x24xf32>
    %632 = math.tanh %631 : vector<5x24xf32>
    %633 = vector.extract_strided_slice %614 {offsets = [0, 72], sizes = [5, 24], strides = [1, 1]} : vector<5x96xf32> to vector<5x24xf32>
    %cst_226 = arith.constant 5.000000e-01 : f32
    %634 = vector.broadcast %cst_226 : f32 to vector<5x24xf32>
    %635 = arith.mulf %634, %633 : vector<5x24xf32>
    %636 = math.tanh %635 : vector<5x24xf32>
    %cst_227 = arith.constant 5.000000e-01 : f32
    %637 = vector.broadcast %cst_227 : f32 to vector<5x24xf32>
    %638 = arith.mulf %637, %636 : vector<5x24xf32>
    %cst_228 = arith.constant 5.000000e-01 : f32
    %639 = vector.broadcast %cst_228 : f32 to vector<5x24xf32>
    %640 = arith.addf %638, %639 : vector<5x24xf32>
    %641 = arith.mulf %630, %611 : vector<5x24xf32>
    %642 = arith.mulf %622, %632 : vector<5x24xf32>
    %643 = arith.addf %641, %642 : vector<5x24xf32>
    %644 = math.tanh %643 : vector<5x24xf32>
    %645 = arith.mulf %640, %644 : vector<5x24xf32>
    %646 = vector.extract_strided_slice %536 {offsets = [0, 96], sizes = [5, 96], strides = [1, 1]} : vector<5x192xf32> to vector<5x96xf32>
    %cst_229 = arith.constant dense<0.000000e+00> : vector<5x96xf32>
    %647 = tpu.matmul %645, %381, %cst_229 {dimension_numbers = #tpu.dot_dimension_numbers<[1], [0], [0], [1], [0, 0, 1, 1], [], []>} : vector<5x24xf32>, vector<24x96xf32>, vector<5x96xf32> -> vector<5x96xf32>
    %648 = arith.addf %646, %647 : vector<5x96xf32>
    %649 = vector.extract_strided_slice %648 {offsets = [0, 0], sizes = [5, 24], strides = [1, 1]} : vector<5x96xf32> to vector<5x24xf32>
    %cst_230 = arith.constant 5.000000e-01 : f32
    %650 = vector.broadcast %cst_230 : f32 to vector<5x24xf32>
    %651 = arith.mulf %650, %649 : vector<5x24xf32>
    %652 = math.tanh %651 : vector<5x24xf32>
    %cst_231 = arith.constant 5.000000e-01 : f32
    %653 = vector.broadcast %cst_231 : f32 to vector<5x24xf32>
    %654 = arith.mulf %653, %652 : vector<5x24xf32>
    %cst_232 = arith.constant 5.000000e-01 : f32
    %655 = vector.broadcast %cst_232 : f32 to vector<5x24xf32>
    %656 = arith.addf %654, %655 : vector<5x24xf32>
    %657 = vector.extract_strided_slice %648 {offsets = [0, 24], sizes = [5, 24], strides = [1, 1]} : vector<5x96xf32> to vector<5x24xf32>
    %cst_233 = arith.constant 5.000000e-01 : f32
    %658 = vector.broadcast %cst_233 : f32 to vector<5x24xf32>
    %659 = arith.mulf %658, %657 : vector<5x24xf32>
    %660 = math.tanh %659 : vector<5x24xf32>
    %cst_234 = arith.constant 5.000000e-01 : f32
    %661 = vector.broadcast %cst_234 : f32 to vector<5x24xf32>
    %662 = arith.mulf %661, %660 : vector<5x24xf32>
    %cst_235 = arith.constant 5.000000e-01 : f32
    %663 = vector.broadcast %cst_235 : f32 to vector<5x24xf32>
    %664 = arith.addf %662, %663 : vector<5x24xf32>
    %665 = vector.extract_strided_slice %648 {offsets = [0, 48], sizes = [5, 24], strides = [1, 1]} : vector<5x96xf32> to vector<5x24xf32>
    %666 = math.tanh %665 : vector<5x24xf32>
    %667 = vector.extract_strided_slice %648 {offsets = [0, 72], sizes = [5, 24], strides = [1, 1]} : vector<5x96xf32> to vector<5x24xf32>
    %cst_236 = arith.constant 5.000000e-01 : f32
    %668 = vector.broadcast %cst_236 : f32 to vector<5x24xf32>
    %669 = arith.mulf %668, %667 : vector<5x24xf32>
    %670 = math.tanh %669 : vector<5x24xf32>
    %cst_237 = arith.constant 5.000000e-01 : f32
    %671 = vector.broadcast %cst_237 : f32 to vector<5x24xf32>
    %672 = arith.mulf %671, %670 : vector<5x24xf32>
    %cst_238 = arith.constant 5.000000e-01 : f32
    %673 = vector.broadcast %cst_238 : f32 to vector<5x24xf32>
    %674 = arith.addf %672, %673 : vector<5x24xf32>
    %675 = arith.mulf %664, %643 : vector<5x24xf32>
    %676 = arith.mulf %656, %666 : vector<5x24xf32>
    %677 = arith.addf %675, %676 : vector<5x24xf32>
    %678 = math.tanh %677 : vector<5x24xf32>
    %679 = arith.mulf %674, %678 : vector<5x24xf32>
    %680 = arith.addf %575, %679 : vector<5x24xf32>
    %681 = arith.addf %609, %645 : vector<5x24xf32>
    %cst_239 = arith.constant dense<0.000000e+00> : vector<5x96xf32>
    %682 = tpu.matmul %680, %382, %cst_239 {dimension_numbers = #tpu.dot_dimension_numbers<[1], [0], [0], [1], [0, 0, 1, 1], [], []>} : vector<5x24xf32>, vector<24x96xf32>, vector<5x96xf32> -> vector<5x96xf32>
    %683 = vector.broadcast %383 : vector<1x96xf32> to vector<5x96xf32>
    %684 = arith.addf %682, %683 : vector<5x96xf32>
    %cst_240 = arith.constant dense<0.000000e+00> : vector<5x96xf32>
    %685 = tpu.matmul %681, %382, %cst_240 {dimension_numbers = #tpu.dot_dimension_numbers<[1], [0], [0], [1], [0, 0, 1, 1], [], []>} : vector<5x24xf32>, vector<24x96xf32>, vector<5x96xf32> -> vector<5x96xf32>
    %686 = vector.broadcast %383 : vector<1x96xf32> to vector<5x96xf32>
    %687 = arith.addf %685, %686 : vector<5x96xf32>
    %cst_241 = arith.constant 0.000000e+00 : f32
    %688 = vector.broadcast %cst_241 : f32 to vector<5x12xf32>
    %cst_242 = arith.constant 0.000000e+00 : f32
    %689 = vector.broadcast %cst_242 : f32 to vector<5x12xf32>
    %690 = vector.extract_strided_slice %684 {offsets = [0, 0], sizes = [5, 48], strides = [1, 1]} : vector<5x96xf32> to vector<5x48xf32>
    %cst_243 = arith.constant dense<0.000000e+00> : vector<5x48xf32>
    %691 = tpu.matmul %688, %384, %cst_243 {dimension_numbers = #tpu.dot_dimension_numbers<[1], [0], [0], [1], [0, 0, 1, 1], [], []>} : vector<5x12xf32>, vector<12x48xf32>, vector<5x48xf32> -> vector<5x48xf32>
    %692 = arith.addf %690, %691 : vector<5x48xf32>
    %693 = vector.extract_strided_slice %692 {offsets = [0, 0], sizes = [5, 12], strides = [1, 1]} : vector<5x48xf32> to vector<5x12xf32>
    %cst_244 = arith.constant 5.000000e-01 : f32
    %694 = vector.broadcast %cst_244 : f32 to vector<5x12xf32>
    %695 = arith.mulf %694, %693 : vector<5x12xf32>
    %696 = math.tanh %695 : vector<5x12xf32>
    %cst_245 = arith.constant 5.000000e-01 : f32
    %697 = vector.broadcast %cst_245 : f32 to vector<5x12xf32>
    %698 = arith.mulf %697, %696 : vector<5x12xf32>
    %cst_246 = arith.constant 5.000000e-01 : f32
    %699 = vector.broadcast %cst_246 : f32 to vector<5x12xf32>
    %700 = arith.addf %698, %699 : vector<5x12xf32>
    %701 = vector.extract_strided_slice %692 {offsets = [0, 12], sizes = [5, 12], strides = [1, 1]} : vector<5x48xf32> to vector<5x12xf32>
    %cst_247 = arith.constant 5.000000e-01 : f32
    %702 = vector.broadcast %cst_247 : f32 to vector<5x12xf32>
    %703 = arith.mulf %702, %701 : vector<5x12xf32>
    %704 = math.tanh %703 : vector<5x12xf32>
    %cst_248 = arith.constant 5.000000e-01 : f32
    %705 = vector.broadcast %cst_248 : f32 to vector<5x12xf32>
    %706 = arith.mulf %705, %704 : vector<5x12xf32>
    %cst_249 = arith.constant 5.000000e-01 : f32
    %707 = vector.broadcast %cst_249 : f32 to vector<5x12xf32>
    %708 = arith.addf %706, %707 : vector<5x12xf32>
    %709 = vector.extract_strided_slice %692 {offsets = [0, 24], sizes = [5, 12], strides = [1, 1]} : vector<5x48xf32> to vector<5x12xf32>
    %710 = math.tanh %709 : vector<5x12xf32>
    %711 = vector.extract_strided_slice %692 {offsets = [0, 36], sizes = [5, 12], strides = [1, 1]} : vector<5x48xf32> to vector<5x12xf32>
    %cst_250 = arith.constant 5.000000e-01 : f32
    %712 = vector.broadcast %cst_250 : f32 to vector<5x12xf32>
    %713 = arith.mulf %712, %711 : vector<5x12xf32>
    %714 = math.tanh %713 : vector<5x12xf32>
    %cst_251 = arith.constant 5.000000e-01 : f32
    %715 = vector.broadcast %cst_251 : f32 to vector<5x12xf32>
    %716 = arith.mulf %715, %714 : vector<5x12xf32>
    %cst_252 = arith.constant 5.000000e-01 : f32
    %717 = vector.broadcast %cst_252 : f32 to vector<5x12xf32>
    %718 = arith.addf %716, %717 : vector<5x12xf32>
    %719 = arith.mulf %708, %689 : vector<5x12xf32>
    %720 = arith.mulf %700, %710 : vector<5x12xf32>
    %721 = arith.addf %719, %720 : vector<5x12xf32>
    %722 = math.tanh %721 : vector<5x12xf32>
    %723 = arith.mulf %718, %722 : vector<5x12xf32>
    %724 = vector.extract_strided_slice %687 {offsets = [0, 0], sizes = [5, 48], strides = [1, 1]} : vector<5x96xf32> to vector<5x48xf32>
    %cst_253 = arith.constant dense<0.000000e+00> : vector<5x48xf32>
    %725 = tpu.matmul %723, %384, %cst_253 {dimension_numbers = #tpu.dot_dimension_numbers<[1], [0], [0], [1], [0, 0, 1, 1], [], []>} : vector<5x12xf32>, vector<12x48xf32>, vector<5x48xf32> -> vector<5x48xf32>
    %726 = arith.addf %724, %725 : vector<5x48xf32>
    %727 = vector.extract_strided_slice %726 {offsets = [0, 0], sizes = [5, 12], strides = [1, 1]} : vector<5x48xf32> to vector<5x12xf32>
    %cst_254 = arith.constant 5.000000e-01 : f32
    %728 = vector.broadcast %cst_254 : f32 to vector<5x12xf32>
    %729 = arith.mulf %728, %727 : vector<5x12xf32>
    %730 = math.tanh %729 : vector<5x12xf32>
    %cst_255 = arith.constant 5.000000e-01 : f32
    %731 = vector.broadcast %cst_255 : f32 to vector<5x12xf32>
    %732 = arith.mulf %731, %730 : vector<5x12xf32>
    %cst_256 = arith.constant 5.000000e-01 : f32
    %733 = vector.broadcast %cst_256 : f32 to vector<5x12xf32>
    %734 = arith.addf %732, %733 : vector<5x12xf32>
    %735 = vector.extract_strided_slice %726 {offsets = [0, 12], sizes = [5, 12], strides = [1, 1]} : vector<5x48xf32> to vector<5x12xf32>
    %cst_257 = arith.constant 5.000000e-01 : f32
    %736 = vector.broadcast %cst_257 : f32 to vector<5x12xf32>
    %737 = arith.mulf %736, %735 : vector<5x12xf32>
    %738 = math.tanh %737 : vector<5x12xf32>
    %cst_258 = arith.constant 5.000000e-01 : f32
    %739 = vector.broadcast %cst_258 : f32 to vector<5x12xf32>
    %740 = arith.mulf %739, %738 : vector<5x12xf32>
    %cst_259 = arith.constant 5.000000e-01 : f32
    %741 = vector.broadcast %cst_259 : f32 to vector<5x12xf32>
    %742 = arith.addf %740, %741 : vector<5x12xf32>
    %743 = vector.extract_strided_slice %726 {offsets = [0, 24], sizes = [5, 12], strides = [1, 1]} : vector<5x48xf32> to vector<5x12xf32>
    %744 = math.tanh %743 : vector<5x12xf32>
    %745 = vector.extract_strided_slice %726 {offsets = [0, 36], sizes = [5, 12], strides = [1, 1]} : vector<5x48xf32> to vector<5x12xf32>
    %cst_260 = arith.constant 5.000000e-01 : f32
    %746 = vector.broadcast %cst_260 : f32 to vector<5x12xf32>
    %747 = arith.mulf %746, %745 : vector<5x12xf32>
    %748 = math.tanh %747 : vector<5x12xf32>
    %cst_261 = arith.constant 5.000000e-01 : f32
    %749 = vector.broadcast %cst_261 : f32 to vector<5x12xf32>
    %750 = arith.mulf %749, %748 : vector<5x12xf32>
    %cst_262 = arith.constant 5.000000e-01 : f32
    %751 = vector.broadcast %cst_262 : f32 to vector<5x12xf32>
    %752 = arith.addf %750, %751 : vector<5x12xf32>
    %753 = arith.mulf %742, %721 : vector<5x12xf32>
    %754 = arith.mulf %734, %744 : vector<5x12xf32>
    %755 = arith.addf %753, %754 : vector<5x12xf32>
    %756 = math.tanh %755 : vector<5x12xf32>
    %757 = arith.mulf %752, %756 : vector<5x12xf32>
    %cst_263 = arith.constant 0.000000e+00 : f32
    %758 = vector.broadcast %cst_263 : f32 to vector<5x12xf32>
    %cst_264 = arith.constant 0.000000e+00 : f32
    %759 = vector.broadcast %cst_264 : f32 to vector<5x12xf32>
    %760 = vector.extract_strided_slice %687 {offsets = [0, 48], sizes = [5, 48], strides = [1, 1]} : vector<5x96xf32> to vector<5x48xf32>
    %cst_265 = arith.constant dense<0.000000e+00> : vector<5x48xf32>
    %761 = tpu.matmul %758, %385, %cst_265 {dimension_numbers = #tpu.dot_dimension_numbers<[1], [0], [0], [1], [0, 0, 1, 1], [], []>} : vector<5x12xf32>, vector<12x48xf32>, vector<5x48xf32> -> vector<5x48xf32>
    %762 = arith.addf %760, %761 : vector<5x48xf32>
    %763 = vector.extract_strided_slice %762 {offsets = [0, 0], sizes = [5, 12], strides = [1, 1]} : vector<5x48xf32> to vector<5x12xf32>
    %cst_266 = arith.constant 5.000000e-01 : f32
    %764 = vector.broadcast %cst_266 : f32 to vector<5x12xf32>
    %765 = arith.mulf %764, %763 : vector<5x12xf32>
    %766 = math.tanh %765 : vector<5x12xf32>
    %cst_267 = arith.constant 5.000000e-01 : f32
    %767 = vector.broadcast %cst_267 : f32 to vector<5x12xf32>
    %768 = arith.mulf %767, %766 : vector<5x12xf32>
    %cst_268 = arith.constant 5.000000e-01 : f32
    %769 = vector.broadcast %cst_268 : f32 to vector<5x12xf32>
    %770 = arith.addf %768, %769 : vector<5x12xf32>
    %771 = vector.extract_strided_slice %762 {offsets = [0, 12], sizes = [5, 12], strides = [1, 1]} : vector<5x48xf32> to vector<5x12xf32>
    %cst_269 = arith.constant 5.000000e-01 : f32
    %772 = vector.broadcast %cst_269 : f32 to vector<5x12xf32>
    %773 = arith.mulf %772, %771 : vector<5x12xf32>
    %774 = math.tanh %773 : vector<5x12xf32>
    %cst_270 = arith.constant 5.000000e-01 : f32
    %775 = vector.broadcast %cst_270 : f32 to vector<5x12xf32>
    %776 = arith.mulf %775, %774 : vector<5x12xf32>
    %cst_271 = arith.constant 5.000000e-01 : f32
    %777 = vector.broadcast %cst_271 : f32 to vector<5x12xf32>
    %778 = arith.addf %776, %777 : vector<5x12xf32>
    %779 = vector.extract_strided_slice %762 {offsets = [0, 24], sizes = [5, 12], strides = [1, 1]} : vector<5x48xf32> to vector<5x12xf32>
    %780 = math.tanh %779 : vector<5x12xf32>
    %781 = vector.extract_strided_slice %762 {offsets = [0, 36], sizes = [5, 12], strides = [1, 1]} : vector<5x48xf32> to vector<5x12xf32>
    %cst_272 = arith.constant 5.000000e-01 : f32
    %782 = vector.broadcast %cst_272 : f32 to vector<5x12xf32>
    %783 = arith.mulf %782, %781 : vector<5x12xf32>
    %784 = math.tanh %783 : vector<5x12xf32>
    %cst_273 = arith.constant 5.000000e-01 : f32
    %785 = vector.broadcast %cst_273 : f32 to vector<5x12xf32>
    %786 = arith.mulf %785, %784 : vector<5x12xf32>
    %cst_274 = arith.constant 5.000000e-01 : f32
    %787 = vector.broadcast %cst_274 : f32 to vector<5x12xf32>
    %788 = arith.addf %786, %787 : vector<5x12xf32>
    %789 = arith.mulf %778, %759 : vector<5x12xf32>
    %790 = arith.mulf %770, %780 : vector<5x12xf32>
    %791 = arith.addf %789, %790 : vector<5x12xf32>
    %792 = math.tanh %791 : vector<5x12xf32>
    %793 = arith.mulf %788, %792 : vector<5x12xf32>
    %794 = vector.extract_strided_slice %684 {offsets = [0, 48], sizes = [5, 48], strides = [1, 1]} : vector<5x96xf32> to vector<5x48xf32>
    %cst_275 = arith.constant dense<0.000000e+00> : vector<5x48xf32>
    %795 = tpu.matmul %793, %385, %cst_275 {dimension_numbers = #tpu.dot_dimension_numbers<[1], [0], [0], [1], [0, 0, 1, 1], [], []>} : vector<5x12xf32>, vector<12x48xf32>, vector<5x48xf32> -> vector<5x48xf32>
    %796 = arith.addf %794, %795 : vector<5x48xf32>
    %797 = vector.extract_strided_slice %796 {offsets = [0, 0], sizes = [5, 12], strides = [1, 1]} : vector<5x48xf32> to vector<5x12xf32>
    %cst_276 = arith.constant 5.000000e-01 : f32
    %798 = vector.broadcast %cst_276 : f32 to vector<5x12xf32>
    %799 = arith.mulf %798, %797 : vector<5x12xf32>
    %800 = math.tanh %799 : vector<5x12xf32>
    %cst_277 = arith.constant 5.000000e-01 : f32
    %801 = vector.broadcast %cst_277 : f32 to vector<5x12xf32>
    %802 = arith.mulf %801, %800 : vector<5x12xf32>
    %cst_278 = arith.constant 5.000000e-01 : f32
    %803 = vector.broadcast %cst_278 : f32 to vector<5x12xf32>
    %804 = arith.addf %802, %803 : vector<5x12xf32>
    %805 = vector.extract_strided_slice %796 {offsets = [0, 12], sizes = [5, 12], strides = [1, 1]} : vector<5x48xf32> to vector<5x12xf32>
    %cst_279 = arith.constant 5.000000e-01 : f32
    %806 = vector.broadcast %cst_279 : f32 to vector<5x12xf32>
    %807 = arith.mulf %806, %805 : vector<5x12xf32>
    %808 = math.tanh %807 : vector<5x12xf32>
    %cst_280 = arith.constant 5.000000e-01 : f32
    %809 = vector.broadcast %cst_280 : f32 to vector<5x12xf32>
    %810 = arith.mulf %809, %808 : vector<5x12xf32>
    %cst_281 = arith.constant 5.000000e-01 : f32
    %811 = vector.broadcast %cst_281 : f32 to vector<5x12xf32>
    %812 = arith.addf %810, %811 : vector<5x12xf32>
    %813 = vector.extract_strided_slice %796 {offsets = [0, 24], sizes = [5, 12], strides = [1, 1]} : vector<5x48xf32> to vector<5x12xf32>
    %814 = math.tanh %813 : vector<5x12xf32>
    %815 = vector.extract_strided_slice %796 {offsets = [0, 36], sizes = [5, 12], strides = [1, 1]} : vector<5x48xf32> to vector<5x12xf32>
    %cst_282 = arith.constant 5.000000e-01 : f32
    %816 = vector.broadcast %cst_282 : f32 to vector<5x12xf32>
    %817 = arith.mulf %816, %815 : vector<5x12xf32>
    %818 = math.tanh %817 : vector<5x12xf32>
    %cst_283 = arith.constant 5.000000e-01 : f32
    %819 = vector.broadcast %cst_283 : f32 to vector<5x12xf32>
    %820 = arith.mulf %819, %818 : vector<5x12xf32>
    %cst_284 = arith.constant 5.000000e-01 : f32
    %821 = vector.broadcast %cst_284 : f32 to vector<5x12xf32>
    %822 = arith.addf %820, %821 : vector<5x12xf32>
    %823 = arith.mulf %812, %791 : vector<5x12xf32>
    %824 = arith.mulf %804, %814 : vector<5x12xf32>
    %825 = arith.addf %823, %824 : vector<5x12xf32>
    %826 = math.tanh %825 : vector<5x12xf32>
    %827 = arith.mulf %822, %826 : vector<5x12xf32>
    %828 = arith.addf %723, %827 : vector<5x12xf32>
    %829 = arith.addf %757, %793 : vector<5x12xf32>
    %cst_285 = arith.constant dense<0.000000e+00> : vector<5x96xf32>
    %830 = tpu.matmul %213, %374, %cst_285 {dimension_numbers = #tpu.dot_dimension_numbers<[1], [0], [0], [1], [0, 0, 1, 1], [], []>} : vector<5x27xf32>, vector<27x96xf32>, vector<5x96xf32> -> vector<5x96xf32>
    %831 = vector.broadcast %375 : vector<1x96xf32> to vector<5x96xf32>
    %832 = arith.addf %830, %831 : vector<5x96xf32>
    %cst_286 = arith.constant dense<0.000000e+00> : vector<5x96xf32>
    %833 = tpu.matmul %373, %374, %cst_286 {dimension_numbers = #tpu.dot_dimension_numbers<[1], [0], [0], [1], [0, 0, 1, 1], [], []>} : vector<5x27xf32>, vector<27x96xf32>, vector<5x96xf32> -> vector<5x96xf32>
    %834 = vector.broadcast %375 : vector<1x96xf32> to vector<5x96xf32>
    %835 = arith.addf %833, %834 : vector<5x96xf32>
    %cst_287 = arith.constant 0.000000e+00 : f32
    %836 = vector.broadcast %cst_287 : f32 to vector<5x12xf32>
    %cst_288 = arith.constant 0.000000e+00 : f32
    %837 = vector.broadcast %cst_288 : f32 to vector<5x12xf32>
    %838 = vector.extract_strided_slice %832 {offsets = [0, 0], sizes = [5, 48], strides = [1, 1]} : vector<5x96xf32> to vector<5x48xf32>
    %cst_289 = arith.constant dense<0.000000e+00> : vector<5x48xf32>
    %839 = tpu.matmul %836, %376, %cst_289 {dimension_numbers = #tpu.dot_dimension_numbers<[1], [0], [0], [1], [0, 0, 1, 1], [], []>} : vector<5x12xf32>, vector<12x48xf32>, vector<5x48xf32> -> vector<5x48xf32>
    %840 = arith.addf %838, %839 : vector<5x48xf32>
    %841 = vector.extract_strided_slice %840 {offsets = [0, 0], sizes = [5, 12], strides = [1, 1]} : vector<5x48xf32> to vector<5x12xf32>
    %cst_290 = arith.constant 5.000000e-01 : f32
    %842 = vector.broadcast %cst_290 : f32 to vector<5x12xf32>
    %843 = arith.mulf %842, %841 : vector<5x12xf32>
    %844 = math.tanh %843 : vector<5x12xf32>
    %cst_291 = arith.constant 5.000000e-01 : f32
    %845 = vector.broadcast %cst_291 : f32 to vector<5x12xf32>
    %846 = arith.mulf %845, %844 : vector<5x12xf32>
    %cst_292 = arith.constant 5.000000e-01 : f32
    %847 = vector.broadcast %cst_292 : f32 to vector<5x12xf32>
    %848 = arith.addf %846, %847 : vector<5x12xf32>
    %849 = vector.extract_strided_slice %840 {offsets = [0, 12], sizes = [5, 12], strides = [1, 1]} : vector<5x48xf32> to vector<5x12xf32>
    %cst_293 = arith.constant 5.000000e-01 : f32
    %850 = vector.broadcast %cst_293 : f32 to vector<5x12xf32>
    %851 = arith.mulf %850, %849 : vector<5x12xf32>
    %852 = math.tanh %851 : vector<5x12xf32>
    %cst_294 = arith.constant 5.000000e-01 : f32
    %853 = vector.broadcast %cst_294 : f32 to vector<5x12xf32>
    %854 = arith.mulf %853, %852 : vector<5x12xf32>
    %cst_295 = arith.constant 5.000000e-01 : f32
    %855 = vector.broadcast %cst_295 : f32 to vector<5x12xf32>
    %856 = arith.addf %854, %855 : vector<5x12xf32>
    %857 = vector.extract_strided_slice %840 {offsets = [0, 24], sizes = [5, 12], strides = [1, 1]} : vector<5x48xf32> to vector<5x12xf32>
    %858 = math.tanh %857 : vector<5x12xf32>
    %859 = vector.extract_strided_slice %840 {offsets = [0, 36], sizes = [5, 12], strides = [1, 1]} : vector<5x48xf32> to vector<5x12xf32>
    %cst_296 = arith.constant 5.000000e-01 : f32
    %860 = vector.broadcast %cst_296 : f32 to vector<5x12xf32>
    %861 = arith.mulf %860, %859 : vector<5x12xf32>
    %862 = math.tanh %861 : vector<5x12xf32>
    %cst_297 = arith.constant 5.000000e-01 : f32
    %863 = vector.broadcast %cst_297 : f32 to vector<5x12xf32>
    %864 = arith.mulf %863, %862 : vector<5x12xf32>
    %cst_298 = arith.constant 5.000000e-01 : f32
    %865 = vector.broadcast %cst_298 : f32 to vector<5x12xf32>
    %866 = arith.addf %864, %865 : vector<5x12xf32>
    %867 = arith.mulf %856, %837 : vector<5x12xf32>
    %868 = arith.mulf %848, %858 : vector<5x12xf32>
    %869 = arith.addf %867, %868 : vector<5x12xf32>
    %870 = math.tanh %869 : vector<5x12xf32>
    %871 = arith.mulf %866, %870 : vector<5x12xf32>
    %872 = vector.extract_strided_slice %835 {offsets = [0, 0], sizes = [5, 48], strides = [1, 1]} : vector<5x96xf32> to vector<5x48xf32>
    %cst_299 = arith.constant dense<0.000000e+00> : vector<5x48xf32>
    %873 = tpu.matmul %871, %376, %cst_299 {dimension_numbers = #tpu.dot_dimension_numbers<[1], [0], [0], [1], [0, 0, 1, 1], [], []>} : vector<5x12xf32>, vector<12x48xf32>, vector<5x48xf32> -> vector<5x48xf32>
    %874 = arith.addf %872, %873 : vector<5x48xf32>
    %875 = vector.extract_strided_slice %874 {offsets = [0, 0], sizes = [5, 12], strides = [1, 1]} : vector<5x48xf32> to vector<5x12xf32>
    %cst_300 = arith.constant 5.000000e-01 : f32
    %876 = vector.broadcast %cst_300 : f32 to vector<5x12xf32>
    %877 = arith.mulf %876, %875 : vector<5x12xf32>
    %878 = math.tanh %877 : vector<5x12xf32>
    %cst_301 = arith.constant 5.000000e-01 : f32
    %879 = vector.broadcast %cst_301 : f32 to vector<5x12xf32>
    %880 = arith.mulf %879, %878 : vector<5x12xf32>
    %cst_302 = arith.constant 5.000000e-01 : f32
    %881 = vector.broadcast %cst_302 : f32 to vector<5x12xf32>
    %882 = arith.addf %880, %881 : vector<5x12xf32>
    %883 = vector.extract_strided_slice %874 {offsets = [0, 12], sizes = [5, 12], strides = [1, 1]} : vector<5x48xf32> to vector<5x12xf32>
    %cst_303 = arith.constant 5.000000e-01 : f32
    %884 = vector.broadcast %cst_303 : f32 to vector<5x12xf32>
    %885 = arith.mulf %884, %883 : vector<5x12xf32>
    %886 = math.tanh %885 : vector<5x12xf32>
    %cst_304 = arith.constant 5.000000e-01 : f32
    %887 = vector.broadcast %cst_304 : f32 to vector<5x12xf32>
    %888 = arith.mulf %887, %886 : vector<5x12xf32>
    %cst_305 = arith.constant 5.000000e-01 : f32
    %889 = vector.broadcast %cst_305 : f32 to vector<5x12xf32>
    %890 = arith.addf %888, %889 : vector<5x12xf32>
    %891 = vector.extract_strided_slice %874 {offsets = [0, 24], sizes = [5, 12], strides = [1, 1]} : vector<5x48xf32> to vector<5x12xf32>
    %892 = math.tanh %891 : vector<5x12xf32>
    %893 = vector.extract_strided_slice %874 {offsets = [0, 36], sizes = [5, 12], strides = [1, 1]} : vector<5x48xf32> to vector<5x12xf32>
    %cst_306 = arith.constant 5.000000e-01 : f32
    %894 = vector.broadcast %cst_306 : f32 to vector<5x12xf32>
    %895 = arith.mulf %894, %893 : vector<5x12xf32>
    %896 = math.tanh %895 : vector<5x12xf32>
    %cst_307 = arith.constant 5.000000e-01 : f32
    %897 = vector.broadcast %cst_307 : f32 to vector<5x12xf32>
    %898 = arith.mulf %897, %896 : vector<5x12xf32>
    %cst_308 = arith.constant 5.000000e-01 : f32
    %899 = vector.broadcast %cst_308 : f32 to vector<5x12xf32>
    %900 = arith.addf %898, %899 : vector<5x12xf32>
    %901 = arith.mulf %890, %869 : vector<5x12xf32>
    %902 = arith.mulf %882, %892 : vector<5x12xf32>
    %903 = arith.addf %901, %902 : vector<5x12xf32>
    %904 = math.tanh %903 : vector<5x12xf32>
    %905 = arith.mulf %900, %904 : vector<5x12xf32>
    %cst_309 = arith.constant 0.000000e+00 : f32
    %906 = vector.broadcast %cst_309 : f32 to vector<5x12xf32>
    %cst_310 = arith.constant 0.000000e+00 : f32
    %907 = vector.broadcast %cst_310 : f32 to vector<5x12xf32>
    %908 = vector.extract_strided_slice %835 {offsets = [0, 48], sizes = [5, 48], strides = [1, 1]} : vector<5x96xf32> to vector<5x48xf32>
    %cst_311 = arith.constant dense<0.000000e+00> : vector<5x48xf32>
    %909 = tpu.matmul %906, %377, %cst_311 {dimension_numbers = #tpu.dot_dimension_numbers<[1], [0], [0], [1], [0, 0, 1, 1], [], []>} : vector<5x12xf32>, vector<12x48xf32>, vector<5x48xf32> -> vector<5x48xf32>
    %910 = arith.addf %908, %909 : vector<5x48xf32>
    %911 = vector.extract_strided_slice %910 {offsets = [0, 0], sizes = [5, 12], strides = [1, 1]} : vector<5x48xf32> to vector<5x12xf32>
    %cst_312 = arith.constant 5.000000e-01 : f32
    %912 = vector.broadcast %cst_312 : f32 to vector<5x12xf32>
    %913 = arith.mulf %912, %911 : vector<5x12xf32>
    %914 = math.tanh %913 : vector<5x12xf32>
    %cst_313 = arith.constant 5.000000e-01 : f32
    %915 = vector.broadcast %cst_313 : f32 to vector<5x12xf32>
    %916 = arith.mulf %915, %914 : vector<5x12xf32>
    %cst_314 = arith.constant 5.000000e-01 : f32
    %917 = vector.broadcast %cst_314 : f32 to vector<5x12xf32>
    %918 = arith.addf %916, %917 : vector<5x12xf32>
    %919 = vector.extract_strided_slice %910 {offsets = [0, 12], sizes = [5, 12], strides = [1, 1]} : vector<5x48xf32> to vector<5x12xf32>
    %cst_315 = arith.constant 5.000000e-01 : f32
    %920 = vector.broadcast %cst_315 : f32 to vector<5x12xf32>
    %921 = arith.mulf %920, %919 : vector<5x12xf32>
    %922 = math.tanh %921 : vector<5x12xf32>
    %cst_316 = arith.constant 5.000000e-01 : f32
    %923 = vector.broadcast %cst_316 : f32 to vector<5x12xf32>
    %924 = arith.mulf %923, %922 : vector<5x12xf32>
    %cst_317 = arith.constant 5.000000e-01 : f32
    %925 = vector.broadcast %cst_317 : f32 to vector<5x12xf32>
    %926 = arith.addf %924, %925 : vector<5x12xf32>
    %927 = vector.extract_strided_slice %910 {offsets = [0, 24], sizes = [5, 12], strides = [1, 1]} : vector<5x48xf32> to vector<5x12xf32>
    %928 = math.tanh %927 : vector<5x12xf32>
    %929 = vector.extract_strided_slice %910 {offsets = [0, 36], sizes = [5, 12], strides = [1, 1]} : vector<5x48xf32> to vector<5x12xf32>
    %cst_318 = arith.constant 5.000000e-01 : f32
    %930 = vector.broadcast %cst_318 : f32 to vector<5x12xf32>
    %931 = arith.mulf %930, %929 : vector<5x12xf32>
    %932 = math.tanh %931 : vector<5x12xf32>
    %cst_319 = arith.constant 5.000000e-01 : f32
    %933 = vector.broadcast %cst_319 : f32 to vector<5x12xf32>
    %934 = arith.mulf %933, %932 : vector<5x12xf32>
    %cst_320 = arith.constant 5.000000e-01 : f32
    %935 = vector.broadcast %cst_320 : f32 to vector<5x12xf32>
    %936 = arith.addf %934, %935 : vector<5x12xf32>
    %937 = arith.mulf %926, %907 : vector<5x12xf32>
    %938 = arith.mulf %918, %928 : vector<5x12xf32>
    %939 = arith.addf %937, %938 : vector<5x12xf32>
    %940 = math.tanh %939 : vector<5x12xf32>
    %941 = arith.mulf %936, %940 : vector<5x12xf32>
    %942 = vector.extract_strided_slice %832 {offsets = [0, 48], sizes = [5, 48], strides = [1, 1]} : vector<5x96xf32> to vector<5x48xf32>
    %cst_321 = arith.constant dense<0.000000e+00> : vector<5x48xf32>
    %943 = tpu.matmul %941, %377, %cst_321 {dimension_numbers = #tpu.dot_dimension_numbers<[1], [0], [0], [1], [0, 0, 1, 1], [], []>} : vector<5x12xf32>, vector<12x48xf32>, vector<5x48xf32> -> vector<5x48xf32>
    %944 = arith.addf %942, %943 : vector<5x48xf32>
    %945 = vector.extract_strided_slice %944 {offsets = [0, 0], sizes = [5, 12], strides = [1, 1]} : vector<5x48xf32> to vector<5x12xf32>
    %cst_322 = arith.constant 5.000000e-01 : f32
    %946 = vector.broadcast %cst_322 : f32 to vector<5x12xf32>
    %947 = arith.mulf %946, %945 : vector<5x12xf32>
    %948 = math.tanh %947 : vector<5x12xf32>
    %cst_323 = arith.constant 5.000000e-01 : f32
    %949 = vector.broadcast %cst_323 : f32 to vector<5x12xf32>
    %950 = arith.mulf %949, %948 : vector<5x12xf32>
    %cst_324 = arith.constant 5.000000e-01 : f32
    %951 = vector.broadcast %cst_324 : f32 to vector<5x12xf32>
    %952 = arith.addf %950, %951 : vector<5x12xf32>
    %953 = vector.extract_strided_slice %944 {offsets = [0, 12], sizes = [5, 12], strides = [1, 1]} : vector<5x48xf32> to vector<5x12xf32>
    %cst_325 = arith.constant 5.000000e-01 : f32
    %954 = vector.broadcast %cst_325 : f32 to vector<5x12xf32>
    %955 = arith.mulf %954, %953 : vector<5x12xf32>
    %956 = math.tanh %955 : vector<5x12xf32>
    %cst_326 = arith.constant 5.000000e-01 : f32
    %957 = vector.broadcast %cst_326 : f32 to vector<5x12xf32>
    %958 = arith.mulf %957, %956 : vector<5x12xf32>
    %cst_327 = arith.constant 5.000000e-01 : f32
    %959 = vector.broadcast %cst_327 : f32 to vector<5x12xf32>
    %960 = arith.addf %958, %959 : vector<5x12xf32>
    %961 = vector.extract_strided_slice %944 {offsets = [0, 24], sizes = [5, 12], strides = [1, 1]} : vector<5x48xf32> to vector<5x12xf32>
    %962 = math.tanh %961 : vector<5x12xf32>
    %963 = vector.extract_strided_slice %944 {offsets = [0, 36], sizes = [5, 12], strides = [1, 1]} : vector<5x48xf32> to vector<5x12xf32>
    %cst_328 = arith.constant 5.000000e-01 : f32
    %964 = vector.broadcast %cst_328 : f32 to vector<5x12xf32>
    %965 = arith.mulf %964, %963 : vector<5x12xf32>
    %966 = math.tanh %965 : vector<5x12xf32>
    %cst_329 = arith.constant 5.000000e-01 : f32
    %967 = vector.broadcast %cst_329 : f32 to vector<5x12xf32>
    %968 = arith.mulf %967, %966 : vector<5x12xf32>
    %cst_330 = arith.constant 5.000000e-01 : f32
    %969 = vector.broadcast %cst_330 : f32 to vector<5x12xf32>
    %970 = arith.addf %968, %969 : vector<5x12xf32>
    %971 = arith.mulf %960, %939 : vector<5x12xf32>
    %972 = arith.mulf %952, %962 : vector<5x12xf32>
    %973 = arith.addf %971, %972 : vector<5x12xf32>
    %974 = math.tanh %973 : vector<5x12xf32>
    %975 = arith.mulf %970, %974 : vector<5x12xf32>
    %976 = arith.addf %871, %975 : vector<5x12xf32>
    %977 = arith.addf %905, %941 : vector<5x12xf32>
    %cst_331 = arith.constant dense<0.000000e+00> : vector<5x192xf32>
    %978 = tpu.matmul %976, %378, %cst_331 {dimension_numbers = #tpu.dot_dimension_numbers<[1], [0], [0], [1], [0, 0, 1, 1], [], []>} : vector<5x12xf32>, vector<12x192xf32>, vector<5x192xf32> -> vector<5x192xf32>
    %979 = vector.broadcast %379 : vector<1x192xf32> to vector<5x192xf32>
    %980 = arith.addf %978, %979 : vector<5x192xf32>
    %cst_332 = arith.constant dense<0.000000e+00> : vector<5x192xf32>
    %981 = tpu.matmul %977, %378, %cst_332 {dimension_numbers = #tpu.dot_dimension_numbers<[1], [0], [0], [1], [0, 0, 1, 1], [], []>} : vector<5x12xf32>, vector<12x192xf32>, vector<5x192xf32> -> vector<5x192xf32>
    %982 = vector.broadcast %379 : vector<1x192xf32> to vector<5x192xf32>
    %983 = arith.addf %981, %982 : vector<5x192xf32>
    %cst_333 = arith.constant 0.000000e+00 : f32
    %984 = vector.broadcast %cst_333 : f32 to vector<5x24xf32>
    %cst_334 = arith.constant 0.000000e+00 : f32
    %985 = vector.broadcast %cst_334 : f32 to vector<5x24xf32>
    %986 = vector.extract_strided_slice %980 {offsets = [0, 0], sizes = [5, 96], strides = [1, 1]} : vector<5x192xf32> to vector<5x96xf32>
    %cst_335 = arith.constant dense<0.000000e+00> : vector<5x96xf32>
    %987 = tpu.matmul %984, %380, %cst_335 {dimension_numbers = #tpu.dot_dimension_numbers<[1], [0], [0], [1], [0, 0, 1, 1], [], []>} : vector<5x24xf32>, vector<24x96xf32>, vector<5x96xf32> -> vector<5x96xf32>
    %988 = arith.addf %986, %987 : vector<5x96xf32>
    %989 = vector.extract_strided_slice %988 {offsets = [0, 0], sizes = [5, 24], strides = [1, 1]} : vector<5x96xf32> to vector<5x24xf32>
    %cst_336 = arith.constant 5.000000e-01 : f32
    %990 = vector.broadcast %cst_336 : f32 to vector<5x24xf32>
    %991 = arith.mulf %990, %989 : vector<5x24xf32>
    %992 = math.tanh %991 : vector<5x24xf32>
    %cst_337 = arith.constant 5.000000e-01 : f32
    %993 = vector.broadcast %cst_337 : f32 to vector<5x24xf32>
    %994 = arith.mulf %993, %992 : vector<5x24xf32>
    %cst_338 = arith.constant 5.000000e-01 : f32
    %995 = vector.broadcast %cst_338 : f32 to vector<5x24xf32>
    %996 = arith.addf %994, %995 : vector<5x24xf32>
    %997 = vector.extract_strided_slice %988 {offsets = [0, 24], sizes = [5, 24], strides = [1, 1]} : vector<5x96xf32> to vector<5x24xf32>
    %cst_339 = arith.constant 5.000000e-01 : f32
    %998 = vector.broadcast %cst_339 : f32 to vector<5x24xf32>
    %999 = arith.mulf %998, %997 : vector<5x24xf32>
    %1000 = math.tanh %999 : vector<5x24xf32>
    %cst_340 = arith.constant 5.000000e-01 : f32
    %1001 = vector.broadcast %cst_340 : f32 to vector<5x24xf32>
    %1002 = arith.mulf %1001, %1000 : vector<5x24xf32>
    %cst_341 = arith.constant 5.000000e-01 : f32
    %1003 = vector.broadcast %cst_341 : f32 to vector<5x24xf32>
    %1004 = arith.addf %1002, %1003 : vector<5x24xf32>
    %1005 = vector.extract_strided_slice %988 {offsets = [0, 48], sizes = [5, 24], strides = [1, 1]} : vector<5x96xf32> to vector<5x24xf32>
    %1006 = math.tanh %1005 : vector<5x24xf32>
    %1007 = vector.extract_strided_slice %988 {offsets = [0, 72], sizes = [5, 24], strides = [1, 1]} : vector<5x96xf32> to vector<5x24xf32>
    %cst_342 = arith.constant 5.000000e-01 : f32
    %1008 = vector.broadcast %cst_342 : f32 to vector<5x24xf32>
    %1009 = arith.mulf %1008, %1007 : vector<5x24xf32>
    %1010 = math.tanh %1009 : vector<5x24xf32>
    %cst_343 = arith.constant 5.000000e-01 : f32
    %1011 = vector.broadcast %cst_343 : f32 to vector<5x24xf32>
    %1012 = arith.mulf %1011, %1010 : vector<5x24xf32>
    %cst_344 = arith.constant 5.000000e-01 : f32
    %1013 = vector.broadcast %cst_344 : f32 to vector<5x24xf32>
    %1014 = arith.addf %1012, %1013 : vector<5x24xf32>
    %1015 = arith.mulf %1004, %985 : vector<5x24xf32>
    %1016 = arith.mulf %996, %1006 : vector<5x24xf32>
    %1017 = arith.addf %1015, %1016 : vector<5x24xf32>
    %1018 = math.tanh %1017 : vector<5x24xf32>
    %1019 = arith.mulf %1014, %1018 : vector<5x24xf32>
    %1020 = vector.extract_strided_slice %983 {offsets = [0, 0], sizes = [5, 96], strides = [1, 1]} : vector<5x192xf32> to vector<5x96xf32>
    %cst_345 = arith.constant dense<0.000000e+00> : vector<5x96xf32>
    %1021 = tpu.matmul %1019, %380, %cst_345 {dimension_numbers = #tpu.dot_dimension_numbers<[1], [0], [0], [1], [0, 0, 1, 1], [], []>} : vector<5x24xf32>, vector<24x96xf32>, vector<5x96xf32> -> vector<5x96xf32>
    %1022 = arith.addf %1020, %1021 : vector<5x96xf32>
    %1023 = vector.extract_strided_slice %1022 {offsets = [0, 0], sizes = [5, 24], strides = [1, 1]} : vector<5x96xf32> to vector<5x24xf32>
    %cst_346 = arith.constant 5.000000e-01 : f32
    %1024 = vector.broadcast %cst_346 : f32 to vector<5x24xf32>
    %1025 = arith.mulf %1024, %1023 : vector<5x24xf32>
    %1026 = math.tanh %1025 : vector<5x24xf32>
    %cst_347 = arith.constant 5.000000e-01 : f32
    %1027 = vector.broadcast %cst_347 : f32 to vector<5x24xf32>
    %1028 = arith.mulf %1027, %1026 : vector<5x24xf32>
    %cst_348 = arith.constant 5.000000e-01 : f32
    %1029 = vector.broadcast %cst_348 : f32 to vector<5x24xf32>
    %1030 = arith.addf %1028, %1029 : vector<5x24xf32>
    %1031 = vector.extract_strided_slice %1022 {offsets = [0, 24], sizes = [5, 24], strides = [1, 1]} : vector<5x96xf32> to vector<5x24xf32>
    %cst_349 = arith.constant 5.000000e-01 : f32
    %1032 = vector.broadcast %cst_349 : f32 to vector<5x24xf32>
    %1033 = arith.mulf %1032, %1031 : vector<5x24xf32>
    %1034 = math.tanh %1033 : vector<5x24xf32>
    %cst_350 = arith.constant 5.000000e-01 : f32
    %1035 = vector.broadcast %cst_350 : f32 to vector<5x24xf32>
    %1036 = arith.mulf %1035, %1034 : vector<5x24xf32>
    %cst_351 = arith.constant 5.000000e-01 : f32
    %1037 = vector.broadcast %cst_351 : f32 to vector<5x24xf32>
    %1038 = arith.addf %1036, %1037 : vector<5x24xf32>
    %1039 = vector.extract_strided_slice %1022 {offsets = [0, 48], sizes = [5, 24], strides = [1, 1]} : vector<5x96xf32> to vector<5x24xf32>
    %1040 = math.tanh %1039 : vector<5x24xf32>
    %1041 = vector.extract_strided_slice %1022 {offsets = [0, 72], sizes = [5, 24], strides = [1, 1]} : vector<5x96xf32> to vector<5x24xf32>
    %cst_352 = arith.constant 5.000000e-01 : f32
    %1042 = vector.broadcast %cst_352 : f32 to vector<5x24xf32>
    %1043 = arith.mulf %1042, %1041 : vector<5x24xf32>
    %1044 = math.tanh %1043 : vector<5x24xf32>
    %cst_353 = arith.constant 5.000000e-01 : f32
    %1045 = vector.broadcast %cst_353 : f32 to vector<5x24xf32>
    %1046 = arith.mulf %1045, %1044 : vector<5x24xf32>
    %cst_354 = arith.constant 5.000000e-01 : f32
    %1047 = vector.broadcast %cst_354 : f32 to vector<5x24xf32>
    %1048 = arith.addf %1046, %1047 : vector<5x24xf32>
    %1049 = arith.mulf %1038, %1017 : vector<5x24xf32>
    %1050 = arith.mulf %1030, %1040 : vector<5x24xf32>
    %1051 = arith.addf %1049, %1050 : vector<5x24xf32>
    %1052 = math.tanh %1051 : vector<5x24xf32>
    %1053 = arith.mulf %1048, %1052 : vector<5x24xf32>
    %cst_355 = arith.constant 0.000000e+00 : f32
    %1054 = vector.broadcast %cst_355 : f32 to vector<5x24xf32>
    %cst_356 = arith.constant 0.000000e+00 : f32
    %1055 = vector.broadcast %cst_356 : f32 to vector<5x24xf32>
    %1056 = vector.extract_strided_slice %983 {offsets = [0, 96], sizes = [5, 96], strides = [1, 1]} : vector<5x192xf32> to vector<5x96xf32>
    %cst_357 = arith.constant dense<0.000000e+00> : vector<5x96xf32>
    %1057 = tpu.matmul %1054, %381, %cst_357 {dimension_numbers = #tpu.dot_dimension_numbers<[1], [0], [0], [1], [0, 0, 1, 1], [], []>} : vector<5x24xf32>, vector<24x96xf32>, vector<5x96xf32> -> vector<5x96xf32>
    %1058 = arith.addf %1056, %1057 : vector<5x96xf32>
    %1059 = vector.extract_strided_slice %1058 {offsets = [0, 0], sizes = [5, 24], strides = [1, 1]} : vector<5x96xf32> to vector<5x24xf32>
    %cst_358 = arith.constant 5.000000e-01 : f32
    %1060 = vector.broadcast %cst_358 : f32 to vector<5x24xf32>
    %1061 = arith.mulf %1060, %1059 : vector<5x24xf32>
    %1062 = math.tanh %1061 : vector<5x24xf32>
    %cst_359 = arith.constant 5.000000e-01 : f32
    %1063 = vector.broadcast %cst_359 : f32 to vector<5x24xf32>
    %1064 = arith.mulf %1063, %1062 : vector<5x24xf32>
    %cst_360 = arith.constant 5.000000e-01 : f32
    %1065 = vector.broadcast %cst_360 : f32 to vector<5x24xf32>
    %1066 = arith.addf %1064, %1065 : vector<5x24xf32>
    %1067 = vector.extract_strided_slice %1058 {offsets = [0, 24], sizes = [5, 24], strides = [1, 1]} : vector<5x96xf32> to vector<5x24xf32>
    %cst_361 = arith.constant 5.000000e-01 : f32
    %1068 = vector.broadcast %cst_361 : f32 to vector<5x24xf32>
    %1069 = arith.mulf %1068, %1067 : vector<5x24xf32>
    %1070 = math.tanh %1069 : vector<5x24xf32>
    %cst_362 = arith.constant 5.000000e-01 : f32
    %1071 = vector.broadcast %cst_362 : f32 to vector<5x24xf32>
    %1072 = arith.mulf %1071, %1070 : vector<5x24xf32>
    %cst_363 = arith.constant 5.000000e-01 : f32
    %1073 = vector.broadcast %cst_363 : f32 to vector<5x24xf32>
    %1074 = arith.addf %1072, %1073 : vector<5x24xf32>
    %1075 = vector.extract_strided_slice %1058 {offsets = [0, 48], sizes = [5, 24], strides = [1, 1]} : vector<5x96xf32> to vector<5x24xf32>
    %1076 = math.tanh %1075 : vector<5x24xf32>
    %1077 = vector.extract_strided_slice %1058 {offsets = [0, 72], sizes = [5, 24], strides = [1, 1]} : vector<5x96xf32> to vector<5x24xf32>
    %cst_364 = arith.constant 5.000000e-01 : f32
    %1078 = vector.broadcast %cst_364 : f32 to vector<5x24xf32>
    %1079 = arith.mulf %1078, %1077 : vector<5x24xf32>
    %1080 = math.tanh %1079 : vector<5x24xf32>
    %cst_365 = arith.constant 5.000000e-01 : f32
    %1081 = vector.broadcast %cst_365 : f32 to vector<5x24xf32>
    %1082 = arith.mulf %1081, %1080 : vector<5x24xf32>
    %cst_366 = arith.constant 5.000000e-01 : f32
    %1083 = vector.broadcast %cst_366 : f32 to vector<5x24xf32>
    %1084 = arith.addf %1082, %1083 : vector<5x24xf32>
    %1085 = arith.mulf %1074, %1055 : vector<5x24xf32>
    %1086 = arith.mulf %1066, %1076 : vector<5x24xf32>
    %1087 = arith.addf %1085, %1086 : vector<5x24xf32>
    %1088 = math.tanh %1087 : vector<5x24xf32>
    %1089 = arith.mulf %1084, %1088 : vector<5x24xf32>
    %1090 = vector.extract_strided_slice %980 {offsets = [0, 96], sizes = [5, 96], strides = [1, 1]} : vector<5x192xf32> to vector<5x96xf32>
    %cst_367 = arith.constant dense<0.000000e+00> : vector<5x96xf32>
    %1091 = tpu.matmul %1089, %381, %cst_367 {dimension_numbers = #tpu.dot_dimension_numbers<[1], [0], [0], [1], [0, 0, 1, 1], [], []>} : vector<5x24xf32>, vector<24x96xf32>, vector<5x96xf32> -> vector<5x96xf32>
    %1092 = arith.addf %1090, %1091 : vector<5x96xf32>
    %1093 = vector.extract_strided_slice %1092 {offsets = [0, 0], sizes = [5, 24], strides = [1, 1]} : vector<5x96xf32> to vector<5x24xf32>
    %cst_368 = arith.constant 5.000000e-01 : f32
    %1094 = vector.broadcast %cst_368 : f32 to vector<5x24xf32>
    %1095 = arith.mulf %1094, %1093 : vector<5x24xf32>
    %1096 = math.tanh %1095 : vector<5x24xf32>
    %cst_369 = arith.constant 5.000000e-01 : f32
    %1097 = vector.broadcast %cst_369 : f32 to vector<5x24xf32>
    %1098 = arith.mulf %1097, %1096 : vector<5x24xf32>
    %cst_370 = arith.constant 5.000000e-01 : f32
    %1099 = vector.broadcast %cst_370 : f32 to vector<5x24xf32>
    %1100 = arith.addf %1098, %1099 : vector<5x24xf32>
    %1101 = vector.extract_strided_slice %1092 {offsets = [0, 24], sizes = [5, 24], strides = [1, 1]} : vector<5x96xf32> to vector<5x24xf32>
    %cst_371 = arith.constant 5.000000e-01 : f32
    %1102 = vector.broadcast %cst_371 : f32 to vector<5x24xf32>
    %1103 = arith.mulf %1102, %1101 : vector<5x24xf32>
    %1104 = math.tanh %1103 : vector<5x24xf32>
    %cst_372 = arith.constant 5.000000e-01 : f32
    %1105 = vector.broadcast %cst_372 : f32 to vector<5x24xf32>
    %1106 = arith.mulf %1105, %1104 : vector<5x24xf32>
    %cst_373 = arith.constant 5.000000e-01 : f32
    %1107 = vector.broadcast %cst_373 : f32 to vector<5x24xf32>
    %1108 = arith.addf %1106, %1107 : vector<5x24xf32>
    %1109 = vector.extract_strided_slice %1092 {offsets = [0, 48], sizes = [5, 24], strides = [1, 1]} : vector<5x96xf32> to vector<5x24xf32>
    %1110 = math.tanh %1109 : vector<5x24xf32>
    %1111 = vector.extract_strided_slice %1092 {offsets = [0, 72], sizes = [5, 24], strides = [1, 1]} : vector<5x96xf32> to vector<5x24xf32>
    %cst_374 = arith.constant 5.000000e-01 : f32
    %1112 = vector.broadcast %cst_374 : f32 to vector<5x24xf32>
    %1113 = arith.mulf %1112, %1111 : vector<5x24xf32>
    %1114 = math.tanh %1113 : vector<5x24xf32>
    %cst_375 = arith.constant 5.000000e-01 : f32
    %1115 = vector.broadcast %cst_375 : f32 to vector<5x24xf32>
    %1116 = arith.mulf %1115, %1114 : vector<5x24xf32>
    %cst_376 = arith.constant 5.000000e-01 : f32
    %1117 = vector.broadcast %cst_376 : f32 to vector<5x24xf32>
    %1118 = arith.addf %1116, %1117 : vector<5x24xf32>
    %1119 = arith.mulf %1108, %1087 : vector<5x24xf32>
    %1120 = arith.mulf %1100, %1110 : vector<5x24xf32>
    %1121 = arith.addf %1119, %1120 : vector<5x24xf32>
    %1122 = math.tanh %1121 : vector<5x24xf32>
    %1123 = arith.mulf %1118, %1122 : vector<5x24xf32>
    %1124 = arith.addf %1019, %1123 : vector<5x24xf32>
    %1125 = arith.addf %1053, %1089 : vector<5x24xf32>
    %cst_377 = arith.constant dense<0.000000e+00> : vector<5x96xf32>
    %1126 = tpu.matmul %1124, %382, %cst_377 {dimension_numbers = #tpu.dot_dimension_numbers<[1], [0], [0], [1], [0, 0, 1, 1], [], []>} : vector<5x24xf32>, vector<24x96xf32>, vector<5x96xf32> -> vector<5x96xf32>
    %1127 = vector.broadcast %383 : vector<1x96xf32> to vector<5x96xf32>
    %1128 = arith.addf %1126, %1127 : vector<5x96xf32>
    %cst_378 = arith.constant dense<0.000000e+00> : vector<5x96xf32>
    %1129 = tpu.matmul %1125, %382, %cst_378 {dimension_numbers = #tpu.dot_dimension_numbers<[1], [0], [0], [1], [0, 0, 1, 1], [], []>} : vector<5x24xf32>, vector<24x96xf32>, vector<5x96xf32> -> vector<5x96xf32>
    %1130 = vector.broadcast %383 : vector<1x96xf32> to vector<5x96xf32>
    %1131 = arith.addf %1129, %1130 : vector<5x96xf32>
    %cst_379 = arith.constant 0.000000e+00 : f32
    %1132 = vector.broadcast %cst_379 : f32 to vector<5x12xf32>
    %cst_380 = arith.constant 0.000000e+00 : f32
    %1133 = vector.broadcast %cst_380 : f32 to vector<5x12xf32>
    %1134 = vector.extract_strided_slice %1128 {offsets = [0, 0], sizes = [5, 48], strides = [1, 1]} : vector<5x96xf32> to vector<5x48xf32>
    %cst_381 = arith.constant dense<0.000000e+00> : vector<5x48xf32>
    %1135 = tpu.matmul %1132, %384, %cst_381 {dimension_numbers = #tpu.dot_dimension_numbers<[1], [0], [0], [1], [0, 0, 1, 1], [], []>} : vector<5x12xf32>, vector<12x48xf32>, vector<5x48xf32> -> vector<5x48xf32>
    %1136 = arith.addf %1134, %1135 : vector<5x48xf32>
    %1137 = vector.extract_strided_slice %1136 {offsets = [0, 0], sizes = [5, 12], strides = [1, 1]} : vector<5x48xf32> to vector<5x12xf32>
    %cst_382 = arith.constant 5.000000e-01 : f32
    %1138 = vector.broadcast %cst_382 : f32 to vector<5x12xf32>
    %1139 = arith.mulf %1138, %1137 : vector<5x12xf32>
    %1140 = math.tanh %1139 : vector<5x12xf32>
    %cst_383 = arith.constant 5.000000e-01 : f32
    %1141 = vector.broadcast %cst_383 : f32 to vector<5x12xf32>
    %1142 = arith.mulf %1141, %1140 : vector<5x12xf32>
    %cst_384 = arith.constant 5.000000e-01 : f32
    %1143 = vector.broadcast %cst_384 : f32 to vector<5x12xf32>
    %1144 = arith.addf %1142, %1143 : vector<5x12xf32>
    %1145 = vector.extract_strided_slice %1136 {offsets = [0, 12], sizes = [5, 12], strides = [1, 1]} : vector<5x48xf32> to vector<5x12xf32>
    %cst_385 = arith.constant 5.000000e-01 : f32
    %1146 = vector.broadcast %cst_385 : f32 to vector<5x12xf32>
    %1147 = arith.mulf %1146, %1145 : vector<5x12xf32>
    %1148 = math.tanh %1147 : vector<5x12xf32>
    %cst_386 = arith.constant 5.000000e-01 : f32
    %1149 = vector.broadcast %cst_386 : f32 to vector<5x12xf32>
    %1150 = arith.mulf %1149, %1148 : vector<5x12xf32>
    %cst_387 = arith.constant 5.000000e-01 : f32
    %1151 = vector.broadcast %cst_387 : f32 to vector<5x12xf32>
    %1152 = arith.addf %1150, %1151 : vector<5x12xf32>
    %1153 = vector.extract_strided_slice %1136 {offsets = [0, 24], sizes = [5, 12], strides = [1, 1]} : vector<5x48xf32> to vector<5x12xf32>
    %1154 = math.tanh %1153 : vector<5x12xf32>
    %1155 = vector.extract_strided_slice %1136 {offsets = [0, 36], sizes = [5, 12], strides = [1, 1]} : vector<5x48xf32> to vector<5x12xf32>
    %cst_388 = arith.constant 5.000000e-01 : f32
    %1156 = vector.broadcast %cst_388 : f32 to vector<5x12xf32>
    %1157 = arith.mulf %1156, %1155 : vector<5x12xf32>
    %1158 = math.tanh %1157 : vector<5x12xf32>
    %cst_389 = arith.constant 5.000000e-01 : f32
    %1159 = vector.broadcast %cst_389 : f32 to vector<5x12xf32>
    %1160 = arith.mulf %1159, %1158 : vector<5x12xf32>
    %cst_390 = arith.constant 5.000000e-01 : f32
    %1161 = vector.broadcast %cst_390 : f32 to vector<5x12xf32>
    %1162 = arith.addf %1160, %1161 : vector<5x12xf32>
    %1163 = arith.mulf %1152, %1133 : vector<5x12xf32>
    %1164 = arith.mulf %1144, %1154 : vector<5x12xf32>
    %1165 = arith.addf %1163, %1164 : vector<5x12xf32>
    %1166 = math.tanh %1165 : vector<5x12xf32>
    %1167 = arith.mulf %1162, %1166 : vector<5x12xf32>
    %1168 = vector.extract_strided_slice %1131 {offsets = [0, 0], sizes = [5, 48], strides = [1, 1]} : vector<5x96xf32> to vector<5x48xf32>
    %cst_391 = arith.constant dense<0.000000e+00> : vector<5x48xf32>
    %1169 = tpu.matmul %1167, %384, %cst_391 {dimension_numbers = #tpu.dot_dimension_numbers<[1], [0], [0], [1], [0, 0, 1, 1], [], []>} : vector<5x12xf32>, vector<12x48xf32>, vector<5x48xf32> -> vector<5x48xf32>
    %1170 = arith.addf %1168, %1169 : vector<5x48xf32>
    %1171 = vector.extract_strided_slice %1170 {offsets = [0, 0], sizes = [5, 12], strides = [1, 1]} : vector<5x48xf32> to vector<5x12xf32>
    %cst_392 = arith.constant 5.000000e-01 : f32
    %1172 = vector.broadcast %cst_392 : f32 to vector<5x12xf32>
    %1173 = arith.mulf %1172, %1171 : vector<5x12xf32>
    %1174 = math.tanh %1173 : vector<5x12xf32>
    %cst_393 = arith.constant 5.000000e-01 : f32
    %1175 = vector.broadcast %cst_393 : f32 to vector<5x12xf32>
    %1176 = arith.mulf %1175, %1174 : vector<5x12xf32>
    %cst_394 = arith.constant 5.000000e-01 : f32
    %1177 = vector.broadcast %cst_394 : f32 to vector<5x12xf32>
    %1178 = arith.addf %1176, %1177 : vector<5x12xf32>
    %1179 = vector.extract_strided_slice %1170 {offsets = [0, 12], sizes = [5, 12], strides = [1, 1]} : vector<5x48xf32> to vector<5x12xf32>
    %cst_395 = arith.constant 5.000000e-01 : f32
    %1180 = vector.broadcast %cst_395 : f32 to vector<5x12xf32>
    %1181 = arith.mulf %1180, %1179 : vector<5x12xf32>
    %1182 = math.tanh %1181 : vector<5x12xf32>
    %cst_396 = arith.constant 5.000000e-01 : f32
    %1183 = vector.broadcast %cst_396 : f32 to vector<5x12xf32>
    %1184 = arith.mulf %1183, %1182 : vector<5x12xf32>
    %cst_397 = arith.constant 5.000000e-01 : f32
    %1185 = vector.broadcast %cst_397 : f32 to vector<5x12xf32>
    %1186 = arith.addf %1184, %1185 : vector<5x12xf32>
    %1187 = vector.extract_strided_slice %1170 {offsets = [0, 24], sizes = [5, 12], strides = [1, 1]} : vector<5x48xf32> to vector<5x12xf32>
    %1188 = math.tanh %1187 : vector<5x12xf32>
    %1189 = vector.extract_strided_slice %1170 {offsets = [0, 36], sizes = [5, 12], strides = [1, 1]} : vector<5x48xf32> to vector<5x12xf32>
    %cst_398 = arith.constant 5.000000e-01 : f32
    %1190 = vector.broadcast %cst_398 : f32 to vector<5x12xf32>
    %1191 = arith.mulf %1190, %1189 : vector<5x12xf32>
    %1192 = math.tanh %1191 : vector<5x12xf32>
    %cst_399 = arith.constant 5.000000e-01 : f32
    %1193 = vector.broadcast %cst_399 : f32 to vector<5x12xf32>
    %1194 = arith.mulf %1193, %1192 : vector<5x12xf32>
    %cst_400 = arith.constant 5.000000e-01 : f32
    %1195 = vector.broadcast %cst_400 : f32 to vector<5x12xf32>
    %1196 = arith.addf %1194, %1195 : vector<5x12xf32>
    %1197 = arith.mulf %1186, %1165 : vector<5x12xf32>
    %1198 = arith.mulf %1178, %1188 : vector<5x12xf32>
    %1199 = arith.addf %1197, %1198 : vector<5x12xf32>
    %1200 = math.tanh %1199 : vector<5x12xf32>
    %1201 = arith.mulf %1196, %1200 : vector<5x12xf32>
    %cst_401 = arith.constant 0.000000e+00 : f32
    %1202 = vector.broadcast %cst_401 : f32 to vector<5x12xf32>
    %cst_402 = arith.constant 0.000000e+00 : f32
    %1203 = vector.broadcast %cst_402 : f32 to vector<5x12xf32>
    %1204 = vector.extract_strided_slice %1131 {offsets = [0, 48], sizes = [5, 48], strides = [1, 1]} : vector<5x96xf32> to vector<5x48xf32>
    %cst_403 = arith.constant dense<0.000000e+00> : vector<5x48xf32>
    %1205 = tpu.matmul %1202, %385, %cst_403 {dimension_numbers = #tpu.dot_dimension_numbers<[1], [0], [0], [1], [0, 0, 1, 1], [], []>} : vector<5x12xf32>, vector<12x48xf32>, vector<5x48xf32> -> vector<5x48xf32>
    %1206 = arith.addf %1204, %1205 : vector<5x48xf32>
    %1207 = vector.extract_strided_slice %1206 {offsets = [0, 0], sizes = [5, 12], strides = [1, 1]} : vector<5x48xf32> to vector<5x12xf32>
    %cst_404 = arith.constant 5.000000e-01 : f32
    %1208 = vector.broadcast %cst_404 : f32 to vector<5x12xf32>
    %1209 = arith.mulf %1208, %1207 : vector<5x12xf32>
    %1210 = math.tanh %1209 : vector<5x12xf32>
    %cst_405 = arith.constant 5.000000e-01 : f32
    %1211 = vector.broadcast %cst_405 : f32 to vector<5x12xf32>
    %1212 = arith.mulf %1211, %1210 : vector<5x12xf32>
    %cst_406 = arith.constant 5.000000e-01 : f32
    %1213 = vector.broadcast %cst_406 : f32 to vector<5x12xf32>
    %1214 = arith.addf %1212, %1213 : vector<5x12xf32>
    %1215 = vector.extract_strided_slice %1206 {offsets = [0, 12], sizes = [5, 12], strides = [1, 1]} : vector<5x48xf32> to vector<5x12xf32>
    %cst_407 = arith.constant 5.000000e-01 : f32
    %1216 = vector.broadcast %cst_407 : f32 to vector<5x12xf32>
    %1217 = arith.mulf %1216, %1215 : vector<5x12xf32>
    %1218 = math.tanh %1217 : vector<5x12xf32>
    %cst_408 = arith.constant 5.000000e-01 : f32
    %1219 = vector.broadcast %cst_408 : f32 to vector<5x12xf32>
    %1220 = arith.mulf %1219, %1218 : vector<5x12xf32>
    %cst_409 = arith.constant 5.000000e-01 : f32
    %1221 = vector.broadcast %cst_409 : f32 to vector<5x12xf32>
    %1222 = arith.addf %1220, %1221 : vector<5x12xf32>
    %1223 = vector.extract_strided_slice %1206 {offsets = [0, 24], sizes = [5, 12], strides = [1, 1]} : vector<5x48xf32> to vector<5x12xf32>
    %1224 = math.tanh %1223 : vector<5x12xf32>
    %1225 = vector.extract_strided_slice %1206 {offsets = [0, 36], sizes = [5, 12], strides = [1, 1]} : vector<5x48xf32> to vector<5x12xf32>
    %cst_410 = arith.constant 5.000000e-01 : f32
    %1226 = vector.broadcast %cst_410 : f32 to vector<5x12xf32>
    %1227 = arith.mulf %1226, %1225 : vector<5x12xf32>
    %1228 = math.tanh %1227 : vector<5x12xf32>
    %cst_411 = arith.constant 5.000000e-01 : f32
    %1229 = vector.broadcast %cst_411 : f32 to vector<5x12xf32>
    %1230 = arith.mulf %1229, %1228 : vector<5x12xf32>
    %cst_412 = arith.constant 5.000000e-01 : f32
    %1231 = vector.broadcast %cst_412 : f32 to vector<5x12xf32>
    %1232 = arith.addf %1230, %1231 : vector<5x12xf32>
    %1233 = arith.mulf %1222, %1203 : vector<5x12xf32>
    %1234 = arith.mulf %1214, %1224 : vector<5x12xf32>
    %1235 = arith.addf %1233, %1234 : vector<5x12xf32>
    %1236 = math.tanh %1235 : vector<5x12xf32>
    %1237 = arith.mulf %1232, %1236 : vector<5x12xf32>
    %1238 = vector.extract_strided_slice %1128 {offsets = [0, 48], sizes = [5, 48], strides = [1, 1]} : vector<5x96xf32> to vector<5x48xf32>
    %cst_413 = arith.constant dense<0.000000e+00> : vector<5x48xf32>
    %1239 = tpu.matmul %1237, %385, %cst_413 {dimension_numbers = #tpu.dot_dimension_numbers<[1], [0], [0], [1], [0, 0, 1, 1], [], []>} : vector<5x12xf32>, vector<12x48xf32>, vector<5x48xf32> -> vector<5x48xf32>
    %1240 = arith.addf %1238, %1239 : vector<5x48xf32>
    %1241 = vector.extract_strided_slice %1240 {offsets = [0, 0], sizes = [5, 12], strides = [1, 1]} : vector<5x48xf32> to vector<5x12xf32>
    %cst_414 = arith.constant 5.000000e-01 : f32
    %1242 = vector.broadcast %cst_414 : f32 to vector<5x12xf32>
    %1243 = arith.mulf %1242, %1241 : vector<5x12xf32>
    %1244 = math.tanh %1243 : vector<5x12xf32>
    %cst_415 = arith.constant 5.000000e-01 : f32
    %1245 = vector.broadcast %cst_415 : f32 to vector<5x12xf32>
    %1246 = arith.mulf %1245, %1244 : vector<5x12xf32>
    %cst_416 = arith.constant 5.000000e-01 : f32
    %1247 = vector.broadcast %cst_416 : f32 to vector<5x12xf32>
    %1248 = arith.addf %1246, %1247 : vector<5x12xf32>
    %1249 = vector.extract_strided_slice %1240 {offsets = [0, 12], sizes = [5, 12], strides = [1, 1]} : vector<5x48xf32> to vector<5x12xf32>
    %cst_417 = arith.constant 5.000000e-01 : f32
    %1250 = vector.broadcast %cst_417 : f32 to vector<5x12xf32>
    %1251 = arith.mulf %1250, %1249 : vector<5x12xf32>
    %1252 = math.tanh %1251 : vector<5x12xf32>
    %cst_418 = arith.constant 5.000000e-01 : f32
    %1253 = vector.broadcast %cst_418 : f32 to vector<5x12xf32>
    %1254 = arith.mulf %1253, %1252 : vector<5x12xf32>
    %cst_419 = arith.constant 5.000000e-01 : f32
    %1255 = vector.broadcast %cst_419 : f32 to vector<5x12xf32>
    %1256 = arith.addf %1254, %1255 : vector<5x12xf32>
    %1257 = vector.extract_strided_slice %1240 {offsets = [0, 24], sizes = [5, 12], strides = [1, 1]} : vector<5x48xf32> to vector<5x12xf32>
    %1258 = math.tanh %1257 : vector<5x12xf32>
    %1259 = vector.extract_strided_slice %1240 {offsets = [0, 36], sizes = [5, 12], strides = [1, 1]} : vector<5x48xf32> to vector<5x12xf32>
    %cst_420 = arith.constant 5.000000e-01 : f32
    %1260 = vector.broadcast %cst_420 : f32 to vector<5x12xf32>
    %1261 = arith.mulf %1260, %1259 : vector<5x12xf32>
    %1262 = math.tanh %1261 : vector<5x12xf32>
    %cst_421 = arith.constant 5.000000e-01 : f32
    %1263 = vector.broadcast %cst_421 : f32 to vector<5x12xf32>
    %1264 = arith.mulf %1263, %1262 : vector<5x12xf32>
    %cst_422 = arith.constant 5.000000e-01 : f32
    %1265 = vector.broadcast %cst_422 : f32 to vector<5x12xf32>
    %1266 = arith.addf %1264, %1265 : vector<5x12xf32>
    %1267 = arith.mulf %1256, %1235 : vector<5x12xf32>
    %1268 = arith.mulf %1248, %1258 : vector<5x12xf32>
    %1269 = arith.addf %1267, %1268 : vector<5x12xf32>
    %1270 = math.tanh %1269 : vector<5x12xf32>
    %1271 = arith.mulf %1266, %1270 : vector<5x12xf32>
    %1272 = arith.addf %1167, %1271 : vector<5x12xf32>
    %1273 = arith.addf %1201, %1237 : vector<5x12xf32>
    %c0_423 = arith.constant 0 : index
    %c0_424 = arith.constant 0 : index
    %1274 = vector.load %arg26[%c0_423, %c0_424] : memref<1x16xf32, #tpu.memory_space<vmem>>, vector<1x16xf32>
    %c0_425 = arith.constant 0 : index
    %c0_426 = arith.constant 0 : index
    %1275 = vector.load %arg27[%c0_425, %c0_426] : memref<16x8xf32, #tpu.memory_space<vmem>>, vector<16x8xf32>
    %c0_427 = arith.constant 0 : index
    %c0_428 = arith.constant 0 : index
    %1276 = vector.load %arg28[%c0_427, %c0_428] : memref<1x8xf32, #tpu.memory_space<vmem>>, vector<1x8xf32>
    %c0_429 = arith.constant 0 : index
    %c0_430 = arith.constant 0 : index
    %1277 = vector.load %arg29[%c0_429, %c0_430] : memref<8x1xf32, #tpu.memory_space<vmem>>, vector<8x1xf32>
    %c0_431 = arith.constant 0 : index
    %c0_432 = arith.constant 0 : index
    %1278 = vector.load %arg30[%c0_431, %c0_432] : memref<1x1xf32, #tpu.memory_space<vmem>>, vector<1x1xf32>
    %cst_433 = arith.constant 0.000000e+00 : f32
    %1279 = vector.broadcast %cst_433 : f32 to vector<5x12xf32>
    %1280 = arith.cmpf oge, %828, %1279 : vector<5x12xf32>
    %cst_434 = arith.constant 0.00999999977 : f32
    %1281 = vector.broadcast %cst_434 : f32 to vector<5x12xf32>
    %1282 = arith.mulf %1281, %828 : vector<5x12xf32>
    %1283 = arith.select %1280, %828, %1282 : vector<5x12xi1>, vector<5x12xf32>
    %1284 = vector.extract_strided_slice %1283 {offsets = [0, 0], sizes = [1, 12], strides = [1, 1]} : vector<5x12xf32> to vector<1x12xf32>
    %c0_435 = arith.constant 0 : index
    %c0_436 = arith.constant 0 : index
    %c0_437 = arith.constant 0 : index
    %1285 = vector.load %arg25[%c0_435, %c0_436, %c0_437] : memref<10x12x16xf32, #tpu.memory_space<vmem>>, vector<1x12x16xf32>
    %1286 = vector.shape_cast %1285 : vector<1x12x16xf32> to vector<12x16xf32>
    %cst_438 = arith.constant dense<0.000000e+00> : vector<1x16xf32>
    %1287 = tpu.matmul %1284, %1286, %cst_438 {dimension_numbers = #tpu.dot_dimension_numbers<[1], [0], [0], [1], [0, 0, 1, 1], [], []>} : vector<1x12xf32>, vector<12x16xf32>, vector<1x16xf32> -> vector<1x16xf32>
    %1288 = arith.addf %1274, %1287 : vector<1x16xf32>
    %1289 = vector.extract_strided_slice %1283 {offsets = [1, 0], sizes = [1, 12], strides = [1, 1]} : vector<5x12xf32> to vector<1x12xf32>
    %c1 = arith.constant 1 : index
    %c0_439 = arith.constant 0 : index
    %c0_440 = arith.constant 0 : index
    %1290 = vector.load %arg25[%c1, %c0_439, %c0_440] : memref<10x12x16xf32, #tpu.memory_space<vmem>>, vector<1x12x16xf32>
    %1291 = vector.shape_cast %1290 : vector<1x12x16xf32> to vector<12x16xf32>
    %cst_441 = arith.constant dense<0.000000e+00> : vector<1x16xf32>
    %1292 = tpu.matmul %1289, %1291, %cst_441 {dimension_numbers = #tpu.dot_dimension_numbers<[1], [0], [0], [1], [0, 0, 1, 1], [], []>} : vector<1x12xf32>, vector<12x16xf32>, vector<1x16xf32> -> vector<1x16xf32>
    %1293 = arith.addf %1288, %1292 : vector<1x16xf32>
    %1294 = vector.extract_strided_slice %1283 {offsets = [2, 0], sizes = [1, 12], strides = [1, 1]} : vector<5x12xf32> to vector<1x12xf32>
    %c2 = arith.constant 2 : index
    %c0_442 = arith.constant 0 : index
    %c0_443 = arith.constant 0 : index
    %1295 = vector.load %arg25[%c2, %c0_442, %c0_443] : memref<10x12x16xf32, #tpu.memory_space<vmem>>, vector<1x12x16xf32>
    %1296 = vector.shape_cast %1295 : vector<1x12x16xf32> to vector<12x16xf32>
    %cst_444 = arith.constant dense<0.000000e+00> : vector<1x16xf32>
    %1297 = tpu.matmul %1294, %1296, %cst_444 {dimension_numbers = #tpu.dot_dimension_numbers<[1], [0], [0], [1], [0, 0, 1, 1], [], []>} : vector<1x12xf32>, vector<12x16xf32>, vector<1x16xf32> -> vector<1x16xf32>
    %1298 = arith.addf %1293, %1297 : vector<1x16xf32>
    %1299 = vector.extract_strided_slice %1283 {offsets = [3, 0], sizes = [1, 12], strides = [1, 1]} : vector<5x12xf32> to vector<1x12xf32>
    %c3 = arith.constant 3 : index
    %c0_445 = arith.constant 0 : index
    %c0_446 = arith.constant 0 : index
    %1300 = vector.load %arg25[%c3, %c0_445, %c0_446] : memref<10x12x16xf32, #tpu.memory_space<vmem>>, vector<1x12x16xf32>
    %1301 = vector.shape_cast %1300 : vector<1x12x16xf32> to vector<12x16xf32>
    %cst_447 = arith.constant dense<0.000000e+00> : vector<1x16xf32>
    %1302 = tpu.matmul %1299, %1301, %cst_447 {dimension_numbers = #tpu.dot_dimension_numbers<[1], [0], [0], [1], [0, 0, 1, 1], [], []>} : vector<1x12xf32>, vector<12x16xf32>, vector<1x16xf32> -> vector<1x16xf32>
    %1303 = arith.addf %1298, %1302 : vector<1x16xf32>
    %1304 = vector.extract_strided_slice %1283 {offsets = [4, 0], sizes = [1, 12], strides = [1, 1]} : vector<5x12xf32> to vector<1x12xf32>
    %c4 = arith.constant 4 : index
    %c0_448 = arith.constant 0 : index
    %c0_449 = arith.constant 0 : index
    %1305 = vector.load %arg25[%c4, %c0_448, %c0_449] : memref<10x12x16xf32, #tpu.memory_space<vmem>>, vector<1x12x16xf32>
    %1306 = vector.shape_cast %1305 : vector<1x12x16xf32> to vector<12x16xf32>
    %cst_450 = arith.constant dense<0.000000e+00> : vector<1x16xf32>
    %1307 = tpu.matmul %1304, %1306, %cst_450 {dimension_numbers = #tpu.dot_dimension_numbers<[1], [0], [0], [1], [0, 0, 1, 1], [], []>} : vector<1x12xf32>, vector<12x16xf32>, vector<1x16xf32> -> vector<1x16xf32>
    %1308 = arith.addf %1303, %1307 : vector<1x16xf32>
    %cst_451 = arith.constant 0.000000e+00 : f32
    %1309 = vector.broadcast %cst_451 : f32 to vector<5x12xf32>
    %1310 = arith.cmpf oge, %1272, %1309 : vector<5x12xf32>
    %cst_452 = arith.constant 0.00999999977 : f32
    %1311 = vector.broadcast %cst_452 : f32 to vector<5x12xf32>
    %1312 = arith.mulf %1311, %1272 : vector<5x12xf32>
    %1313 = arith.select %1310, %1272, %1312 : vector<5x12xi1>, vector<5x12xf32>
    %1314 = vector.extract_strided_slice %1313 {offsets = [0, 0], sizes = [1, 12], strides = [1, 1]} : vector<5x12xf32> to vector<1x12xf32>
    %c5 = arith.constant 5 : index
    %c0_453 = arith.constant 0 : index
    %c0_454 = arith.constant 0 : index
    %1315 = vector.load %arg25[%c5, %c0_453, %c0_454] : memref<10x12x16xf32, #tpu.memory_space<vmem>>, vector<1x12x16xf32>
    %1316 = vector.shape_cast %1315 : vector<1x12x16xf32> to vector<12x16xf32>
    %cst_455 = arith.constant dense<0.000000e+00> : vector<1x16xf32>
    %1317 = tpu.matmul %1314, %1316, %cst_455 {dimension_numbers = #tpu.dot_dimension_numbers<[1], [0], [0], [1], [0, 0, 1, 1], [], []>} : vector<1x12xf32>, vector<12x16xf32>, vector<1x16xf32> -> vector<1x16xf32>
    %1318 = arith.addf %1308, %1317 : vector<1x16xf32>
    %1319 = vector.extract_strided_slice %1313 {offsets = [1, 0], sizes = [1, 12], strides = [1, 1]} : vector<5x12xf32> to vector<1x12xf32>
    %c6 = arith.constant 6 : index
    %c0_456 = arith.constant 0 : index
    %c0_457 = arith.constant 0 : index
    %1320 = vector.load %arg25[%c6, %c0_456, %c0_457] : memref<10x12x16xf32, #tpu.memory_space<vmem>>, vector<1x12x16xf32>
    %1321 = vector.shape_cast %1320 : vector<1x12x16xf32> to vector<12x16xf32>
    %cst_458 = arith.constant dense<0.000000e+00> : vector<1x16xf32>
    %1322 = tpu.matmul %1319, %1321, %cst_458 {dimension_numbers = #tpu.dot_dimension_numbers<[1], [0], [0], [1], [0, 0, 1, 1], [], []>} : vector<1x12xf32>, vector<12x16xf32>, vector<1x16xf32> -> vector<1x16xf32>
    %1323 = arith.addf %1318, %1322 : vector<1x16xf32>
    %1324 = vector.extract_strided_slice %1313 {offsets = [2, 0], sizes = [1, 12], strides = [1, 1]} : vector<5x12xf32> to vector<1x12xf32>
    %c7 = arith.constant 7 : index
    %c0_459 = arith.constant 0 : index
    %c0_460 = arith.constant 0 : index
    %1325 = vector.load %arg25[%c7, %c0_459, %c0_460] : memref<10x12x16xf32, #tpu.memory_space<vmem>>, vector<1x12x16xf32>
    %1326 = vector.shape_cast %1325 : vector<1x12x16xf32> to vector<12x16xf32>
    %cst_461 = arith.constant dense<0.000000e+00> : vector<1x16xf32>
    %1327 = tpu.matmul %1324, %1326, %cst_461 {dimension_numbers = #tpu.dot_dimension_numbers<[1], [0], [0], [1], [0, 0, 1, 1], [], []>} : vector<1x12xf32>, vector<12x16xf32>, vector<1x16xf32> -> vector<1x16xf32>
    %1328 = arith.addf %1323, %1327 : vector<1x16xf32>
    %1329 = vector.extract_strided_slice %1313 {offsets = [3, 0], sizes = [1, 12], strides = [1, 1]} : vector<5x12xf32> to vector<1x12xf32>
    %c8 = arith.constant 8 : index
    %c0_462 = arith.constant 0 : index
    %c0_463 = arith.constant 0 : index
    %1330 = vector.load %arg25[%c8, %c0_462, %c0_463] : memref<10x12x16xf32, #tpu.memory_space<vmem>>, vector<1x12x16xf32>
    %1331 = vector.shape_cast %1330 : vector<1x12x16xf32> to vector<12x16xf32>
    %cst_464 = arith.constant dense<0.000000e+00> : vector<1x16xf32>
    %1332 = tpu.matmul %1329, %1331, %cst_464 {dimension_numbers = #tpu.dot_dimension_numbers<[1], [0], [0], [1], [0, 0, 1, 1], [], []>} : vector<1x12xf32>, vector<12x16xf32>, vector<1x16xf32> -> vector<1x16xf32>
    %1333 = arith.addf %1328, %1332 : vector<1x16xf32>
    %1334 = vector.extract_strided_slice %1313 {offsets = [4, 0], sizes = [1, 12], strides = [1, 1]} : vector<5x12xf32> to vector<1x12xf32>
    %c9 = arith.constant 9 : index
    %c0_465 = arith.constant 0 : index
    %c0_466 = arith.constant 0 : index
    %1335 = vector.load %arg25[%c9, %c0_465, %c0_466] : memref<10x12x16xf32, #tpu.memory_space<vmem>>, vector<1x12x16xf32>
    %1336 = vector.shape_cast %1335 : vector<1x12x16xf32> to vector<12x16xf32>
    %cst_467 = arith.constant dense<0.000000e+00> : vector<1x16xf32>
    %1337 = tpu.matmul %1334, %1336, %cst_467 {dimension_numbers = #tpu.dot_dimension_numbers<[1], [0], [0], [1], [0, 0, 1, 1], [], []>} : vector<1x12xf32>, vector<12x16xf32>, vector<1x16xf32> -> vector<1x16xf32>
    %1338 = arith.addf %1333, %1337 : vector<1x16xf32>
    %cst_468 = arith.constant 0.000000e+00 : f32
    %1339 = vector.broadcast %cst_468 : f32 to vector<1x16xf32>
    %1340 = arith.maximumf %1338, %1339 : vector<1x16xf32>
    %cst_469 = arith.constant dense<0.000000e+00> : vector<1x8xf32>
    %1341 = tpu.matmul %1340, %1275, %cst_469 {dimension_numbers = #tpu.dot_dimension_numbers<[1], [0], [0], [1], [0, 0, 1, 1], [], []>} : vector<1x16xf32>, vector<16x8xf32>, vector<1x8xf32> -> vector<1x8xf32>
    %1342 = arith.addf %1341, %1276 : vector<1x8xf32>
    %cst_470 = arith.constant 0.000000e+00 : f32
    %1343 = vector.broadcast %cst_470 : f32 to vector<1x8xf32>
    %1344 = arith.maximumf %1342, %1343 : vector<1x8xf32>
    %cst_471 = arith.constant dense<0.000000e+00> : vector<1x1xf32>
    %1345 = tpu.matmul %1344, %1277, %cst_471 {dimension_numbers = #tpu.dot_dimension_numbers<[1], [0], [0], [1], [0, 0, 1, 1], [], []>} : vector<1x8xf32>, vector<8x1xf32>, vector<1x1xf32> -> vector<1x1xf32>
    %1346 = arith.addf %1345, %1278 : vector<1x1xf32>
    %c0_472 = arith.constant 0 : index
    %c0_473 = arith.constant 0 : index
    %1347 = vector.load %arg31[%c0_472, %c0_473] : memref<2x1xf32, #tpu.memory_space<vmem>>, vector<1x1xf32>
    tpu.vector_store %arg31[%c0_472, %c0_473], %1346 {strides = array<i32>} : memref<2x1xf32, #tpu.memory_space<vmem>>, vector<1x1xf32>,
    %cst_474 = arith.constant 0.000000e+00 : f32
    %1348 = vector.broadcast %cst_474 : f32 to vector<5x12xf32>
    %1349 = arith.cmpf oge, %829, %1348 : vector<5x12xf32>
    %cst_475 = arith.constant 0.00999999977 : f32
    %1350 = vector.broadcast %cst_475 : f32 to vector<5x12xf32>
    %1351 = arith.mulf %1350, %829 : vector<5x12xf32>
    %1352 = arith.select %1349, %829, %1351 : vector<5x12xi1>, vector<5x12xf32>
    %1353 = vector.extract_strided_slice %1352 {offsets = [0, 0], sizes = [1, 12], strides = [1, 1]} : vector<5x12xf32> to vector<1x12xf32>
    %c0_476 = arith.constant 0 : index
    %c0_477 = arith.constant 0 : index
    %c0_478 = arith.constant 0 : index
    %1354 = vector.load %arg25[%c0_476, %c0_477, %c0_478] : memref<10x12x16xf32, #tpu.memory_space<vmem>>, vector<1x12x16xf32>
    %1355 = vector.shape_cast %1354 : vector<1x12x16xf32> to vector<12x16xf32>
    %cst_479 = arith.constant dense<0.000000e+00> : vector<1x16xf32>
    %1356 = tpu.matmul %1353, %1355, %cst_479 {dimension_numbers = #tpu.dot_dimension_numbers<[1], [0], [0], [1], [0, 0, 1, 1], [], []>} : vector<1x12xf32>, vector<12x16xf32>, vector<1x16xf32> -> vector<1x16xf32>
    %1357 = arith.addf %1274, %1356 : vector<1x16xf32>
    %1358 = vector.extract_strided_slice %1352 {offsets = [1, 0], sizes = [1, 12], strides = [1, 1]} : vector<5x12xf32> to vector<1x12xf32>
    %c1_480 = arith.constant 1 : index
    %c0_481 = arith.constant 0 : index
    %c0_482 = arith.constant 0 : index
    %1359 = vector.load %arg25[%c1_480, %c0_481, %c0_482] : memref<10x12x16xf32, #tpu.memory_space<vmem>>, vector<1x12x16xf32>
    %1360 = vector.shape_cast %1359 : vector<1x12x16xf32> to vector<12x16xf32>
    %cst_483 = arith.constant dense<0.000000e+00> : vector<1x16xf32>
    %1361 = tpu.matmul %1358, %1360, %cst_483 {dimension_numbers = #tpu.dot_dimension_numbers<[1], [0], [0], [1], [0, 0, 1, 1], [], []>} : vector<1x12xf32>, vector<12x16xf32>, vector<1x16xf32> -> vector<1x16xf32>
    %1362 = arith.addf %1357, %1361 : vector<1x16xf32>
    %1363 = vector.extract_strided_slice %1352 {offsets = [2, 0], sizes = [1, 12], strides = [1, 1]} : vector<5x12xf32> to vector<1x12xf32>
    %c2_484 = arith.constant 2 : index
    %c0_485 = arith.constant 0 : index
    %c0_486 = arith.constant 0 : index
    %1364 = vector.load %arg25[%c2_484, %c0_485, %c0_486] : memref<10x12x16xf32, #tpu.memory_space<vmem>>, vector<1x12x16xf32>
    %1365 = vector.shape_cast %1364 : vector<1x12x16xf32> to vector<12x16xf32>
    %cst_487 = arith.constant dense<0.000000e+00> : vector<1x16xf32>
    %1366 = tpu.matmul %1363, %1365, %cst_487 {dimension_numbers = #tpu.dot_dimension_numbers<[1], [0], [0], [1], [0, 0, 1, 1], [], []>} : vector<1x12xf32>, vector<12x16xf32>, vector<1x16xf32> -> vector<1x16xf32>
    %1367 = arith.addf %1362, %1366 : vector<1x16xf32>
    %1368 = vector.extract_strided_slice %1352 {offsets = [3, 0], sizes = [1, 12], strides = [1, 1]} : vector<5x12xf32> to vector<1x12xf32>
    %c3_488 = arith.constant 3 : index
    %c0_489 = arith.constant 0 : index
    %c0_490 = arith.constant 0 : index
    %1369 = vector.load %arg25[%c3_488, %c0_489, %c0_490] : memref<10x12x16xf32, #tpu.memory_space<vmem>>, vector<1x12x16xf32>
    %1370 = vector.shape_cast %1369 : vector<1x12x16xf32> to vector<12x16xf32>
    %cst_491 = arith.constant dense<0.000000e+00> : vector<1x16xf32>
    %1371 = tpu.matmul %1368, %1370, %cst_491 {dimension_numbers = #tpu.dot_dimension_numbers<[1], [0], [0], [1], [0, 0, 1, 1], [], []>} : vector<1x12xf32>, vector<12x16xf32>, vector<1x16xf32> -> vector<1x16xf32>
    %1372 = arith.addf %1367, %1371 : vector<1x16xf32>
    %1373 = vector.extract_strided_slice %1352 {offsets = [4, 0], sizes = [1, 12], strides = [1, 1]} : vector<5x12xf32> to vector<1x12xf32>
    %c4_492 = arith.constant 4 : index
    %c0_493 = arith.constant 0 : index
    %c0_494 = arith.constant 0 : index
    %1374 = vector.load %arg25[%c4_492, %c0_493, %c0_494] : memref<10x12x16xf32, #tpu.memory_space<vmem>>, vector<1x12x16xf32>
    %1375 = vector.shape_cast %1374 : vector<1x12x16xf32> to vector<12x16xf32>
    %cst_495 = arith.constant dense<0.000000e+00> : vector<1x16xf32>
    %1376 = tpu.matmul %1373, %1375, %cst_495 {dimension_numbers = #tpu.dot_dimension_numbers<[1], [0], [0], [1], [0, 0, 1, 1], [], []>} : vector<1x12xf32>, vector<12x16xf32>, vector<1x16xf32> -> vector<1x16xf32>
    %1377 = arith.addf %1372, %1376 : vector<1x16xf32>
    %cst_496 = arith.constant 0.000000e+00 : f32
    %1378 = vector.broadcast %cst_496 : f32 to vector<5x12xf32>
    %1379 = arith.cmpf oge, %1273, %1378 : vector<5x12xf32>
    %cst_497 = arith.constant 0.00999999977 : f32
    %1380 = vector.broadcast %cst_497 : f32 to vector<5x12xf32>
    %1381 = arith.mulf %1380, %1273 : vector<5x12xf32>
    %1382 = arith.select %1379, %1273, %1381 : vector<5x12xi1>, vector<5x12xf32>
    %1383 = vector.extract_strided_slice %1382 {offsets = [0, 0], sizes = [1, 12], strides = [1, 1]} : vector<5x12xf32> to vector<1x12xf32>
    %c5_498 = arith.constant 5 : index
    %c0_499 = arith.constant 0 : index
    %c0_500 = arith.constant 0 : index
    %1384 = vector.load %arg25[%c5_498, %c0_499, %c0_500] : memref<10x12x16xf32, #tpu.memory_space<vmem>>, vector<1x12x16xf32>
    %1385 = vector.shape_cast %1384 : vector<1x12x16xf32> to vector<12x16xf32>
    %cst_501 = arith.constant dense<0.000000e+00> : vector<1x16xf32>
    %1386 = tpu.matmul %1383, %1385, %cst_501 {dimension_numbers = #tpu.dot_dimension_numbers<[1], [0], [0], [1], [0, 0, 1, 1], [], []>} : vector<1x12xf32>, vector<12x16xf32>, vector<1x16xf32> -> vector<1x16xf32>
    %1387 = arith.addf %1377, %1386 : vector<1x16xf32>
    %1388 = vector.extract_strided_slice %1382 {offsets = [1, 0], sizes = [1, 12], strides = [1, 1]} : vector<5x12xf32> to vector<1x12xf32>
    %c6_502 = arith.constant 6 : index
    %c0_503 = arith.constant 0 : index
    %c0_504 = arith.constant 0 : index
    %1389 = vector.load %arg25[%c6_502, %c0_503, %c0_504] : memref<10x12x16xf32, #tpu.memory_space<vmem>>, vector<1x12x16xf32>
    %1390 = vector.shape_cast %1389 : vector<1x12x16xf32> to vector<12x16xf32>
    %cst_505 = arith.constant dense<0.000000e+00> : vector<1x16xf32>
    %1391 = tpu.matmul %1388, %1390, %cst_505 {dimension_numbers = #tpu.dot_dimension_numbers<[1], [0], [0], [1], [0, 0, 1, 1], [], []>} : vector<1x12xf32>, vector<12x16xf32>, vector<1x16xf32> -> vector<1x16xf32>
    %1392 = arith.addf %1387, %1391 : vector<1x16xf32>
    %1393 = vector.extract_strided_slice %1382 {offsets = [2, 0], sizes = [1, 12], strides = [1, 1]} : vector<5x12xf32> to vector<1x12xf32>
    %c7_506 = arith.constant 7 : index
    %c0_507 = arith.constant 0 : index
    %c0_508 = arith.constant 0 : index
    %1394 = vector.load %arg25[%c7_506, %c0_507, %c0_508] : memref<10x12x16xf32, #tpu.memory_space<vmem>>, vector<1x12x16xf32>
    %1395 = vector.shape_cast %1394 : vector<1x12x16xf32> to vector<12x16xf32>
    %cst_509 = arith.constant dense<0.000000e+00> : vector<1x16xf32>
    %1396 = tpu.matmul %1393, %1395, %cst_509 {dimension_numbers = #tpu.dot_dimension_numbers<[1], [0], [0], [1], [0, 0, 1, 1], [], []>} : vector<1x12xf32>, vector<12x16xf32>, vector<1x16xf32> -> vector<1x16xf32>
    %1397 = arith.addf %1392, %1396 : vector<1x16xf32>
    %1398 = vector.extract_strided_slice %1382 {offsets = [3, 0], sizes = [1, 12], strides = [1, 1]} : vector<5x12xf32> to vector<1x12xf32>
    %c8_510 = arith.constant 8 : index
    %c0_511 = arith.constant 0 : index
    %c0_512 = arith.constant 0 : index
    %1399 = vector.load %arg25[%c8_510, %c0_511, %c0_512] : memref<10x12x16xf32, #tpu.memory_space<vmem>>, vector<1x12x16xf32>
    %1400 = vector.shape_cast %1399 : vector<1x12x16xf32> to vector<12x16xf32>
    %cst_513 = arith.constant dense<0.000000e+00> : vector<1x16xf32>
    %1401 = tpu.matmul %1398, %1400, %cst_513 {dimension_numbers = #tpu.dot_dimension_numbers<[1], [0], [0], [1], [0, 0, 1, 1], [], []>} : vector<1x12xf32>, vector<12x16xf32>, vector<1x16xf32> -> vector<1x16xf32>
    %1402 = arith.addf %1397, %1401 : vector<1x16xf32>
    %1403 = vector.extract_strided_slice %1382 {offsets = [4, 0], sizes = [1, 12], strides = [1, 1]} : vector<5x12xf32> to vector<1x12xf32>
    %c9_514 = arith.constant 9 : index
    %c0_515 = arith.constant 0 : index
    %c0_516 = arith.constant 0 : index
    %1404 = vector.load %arg25[%c9_514, %c0_515, %c0_516] : memref<10x12x16xf32, #tpu.memory_space<vmem>>, vector<1x12x16xf32>
    %1405 = vector.shape_cast %1404 : vector<1x12x16xf32> to vector<12x16xf32>
    %cst_517 = arith.constant dense<0.000000e+00> : vector<1x16xf32>
    %1406 = tpu.matmul %1403, %1405, %cst_517 {dimension_numbers = #tpu.dot_dimension_numbers<[1], [0], [0], [1], [0, 0, 1, 1], [], []>} : vector<1x12xf32>, vector<12x16xf32>, vector<1x16xf32> -> vector<1x16xf32>
    %1407 = arith.addf %1402, %1406 : vector<1x16xf32>
    %cst_518 = arith.constant 0.000000e+00 : f32
    %1408 = vector.broadcast %cst_518 : f32 to vector<1x16xf32>
    %1409 = arith.maximumf %1407, %1408 : vector<1x16xf32>
    %cst_519 = arith.constant dense<0.000000e+00> : vector<1x8xf32>
    %1410 = tpu.matmul %1409, %1275, %cst_519 {dimension_numbers = #tpu.dot_dimension_numbers<[1], [0], [0], [1], [0, 0, 1, 1], [], []>} : vector<1x16xf32>, vector<16x8xf32>, vector<1x8xf32> -> vector<1x8xf32>
    %1411 = arith.addf %1410, %1276 : vector<1x8xf32>
    %cst_520 = arith.constant 0.000000e+00 : f32
    %1412 = vector.broadcast %cst_520 : f32 to vector<1x8xf32>
    %1413 = arith.maximumf %1411, %1412 : vector<1x8xf32>
    %cst_521 = arith.constant dense<0.000000e+00> : vector<1x1xf32>
    %1414 = tpu.matmul %1413, %1277, %cst_521 {dimension_numbers = #tpu.dot_dimension_numbers<[1], [0], [0], [1], [0, 0, 1, 1], [], []>} : vector<1x8xf32>, vector<8x1xf32>, vector<1x1xf32> -> vector<1x1xf32>
    %1415 = arith.addf %1414, %1278 : vector<1x1xf32>
    %c1_522 = arith.constant 1 : index
    %c0_523 = arith.constant 0 : index
    %1416 = vector.load %arg31[%c1_522, %c0_523] : memref<2x1xf32, #tpu.memory_space<vmem>>, vector<1x1xf32>
    tpu.vector_store %arg31[%c1_522, %c0_523], %1415 {strides = array<i32>} : memref<2x1xf32, #tpu.memory_space<vmem>>, vector<1x1xf32>,
    return
  }
}

</mosaic_0001>

<llo_original>
// kernel: forward.1
$region0: #{forward.1}
  #allocation0 [shape = 'u32[]', space=smem, size = 0x4, offset = 0x4, fixed_abs, tag = 'smem constant byte address 0x4 - core index']
  #allocation1 [shape = 'u32[144,128]{1,0:T(1,128)}', space=vmem, size = 0x12000, scoped, tag = 'internal scratch']
  #allocation2 [shape = 'f32[1,1]{1,0:T(1,128)S(1)}', space=vmem, size = 0x200, scoped, tag = 'scoped memory for forward.1']
  %s0 = inlined_call_operand.smem [shape: u32[32], index: -1, kind: input, shape index: {}]
  %s1 = sld [smem:[%s0]]
  %s2 = scalar_lea.smem %s0, 1
  %s3 = sld [smem:[%s2]]
  %s4 = scalar_lea.smem %s0, 2
  %s5 = sld [smem:[%s4]]
  %s6 = scalar_lea.smem %s0, 3
  %s7 = sld [smem:[%s6]]
  %s8 = scalar_lea.smem %s0, 4
  %s9 = sld [smem:[%s8]]
  %s10 = scalar_lea.smem %s0, 5
  %s11 = sld [smem:[%s10]]
  %s12 = scalar_lea.smem %s0, 6
  %s13 = sld [smem:[%s12]]
  %s14 = scalar_lea.smem %s0, 7
  %s15 = sld [smem:[%s14]]
  %s16 = scalar_lea.smem %s0, 8
  %s17 = sld [smem:[%s16]]
  %s18 = scalar_lea.smem %s0, 9
  %s19 = sld [smem:[%s18]]
  %s20 = scalar_lea.smem %s0, 10
  %s21 = sld [smem:[%s20]]
  %s22 = scalar_lea.smem %s0, 11
  %s23 = sld [smem:[%s22]]
  %s24 = scalar_lea.smem %s0, 12
  %s25 = sld [smem:[%s24]]
  %s26 = scalar_lea.smem %s0, 13
  %s27 = sld [smem:[%s26]]
  %s28 = scalar_lea.smem %s0, 14
  %s29 = sld [smem:[%s28]]
  %s30 = scalar_lea.smem %s0, 15
  %s31 = sld [smem:[%s30]]
  %s32 = scalar_lea.smem %s0, 16
  %s33 = sld [smem:[%s32]]
  %s34 = scalar_lea.smem %s0, 17
  %s35 = sld [smem:[%s34]]
  %s36 = scalar_lea.smem %s0, 18
  %s37 = sld [smem:[%s36]]
  %s38 = scalar_lea.smem %s0, 19
  %s39 = sld [smem:[%s38]]
  %s40 = scalar_lea.smem %s0, 20
  %s41 = sld [smem:[%s40]]
  %s42 = scalar_lea.smem %s0, 21
  %s43 = sld [smem:[%s42]]
  %s44 = scalar_lea.smem %s0, 22
  %s45 = sld [smem:[%s44]]
  %s46 = scalar_lea.smem %s0, 23
  %s47 = sld [smem:[%s46]]
  %s48 = scalar_lea.smem %s0, 24
  %s49 = sld [smem:[%s48]]
  %s50 = scalar_lea.smem %s0, 25
  %s51 = sld [smem:[%s50]]
  %s52 = scalar_lea.smem %s0, 26
  %s53 = sld [smem:[%s52]]
  %s54 = scalar_lea.smem %s0, 27
  %s55 = sld [smem:[%s54]]
  %s56 = scalar_lea.smem %s0, 28
  %s57 = sld [smem:[%s56]]
  %s58 = scalar_lea.smem %s0, 29
  %s59 = sld [smem:[%s58]]
  %s60 = scalar_lea.smem %s0, 30
  %s61 = sld [smem:[%s60]]
  %s62 = scalar_lea.smem %s0, 31
  %s63 = sld [smem:[%s62]]
  %s64 = sld [smem:[#allocation0]]
  $region174: #{forward.1} parent=0
    _
  %s66 = ssub.s32 1, %s64
  %s67 = scalar_select 0, %s66, %s64
  %v68 = vstv %s61
  %69 = vst [vmem:[#allocation2] sm:$0x1] %v68
  $region1: #{forward.1} parent=0
    #allocation3 [shape = 'u8[8192]{0}', space=vmem, size = 0x2000, scoped, tag = 'input window, operand 3, single buffered']
    #allocation4 [shape = 's32[1]{0}', space=sflag, size = 0x4, scoped, tag = 'scoped memory for forward.1']
    #allocation5 [shape = 'u8[4096]{0}', space=vmem, size = 0x1000, scoped, tag = 'input window, operand 5, single buffered']
    #allocation6 [shape = 's32[1]{0}', space=sflag, size = 0x4, scoped, tag = 'scoped memory for forward.1']
    #allocation7 [shape = 'u8[4096]{0}', space=vmem, size = 0x1000, scoped, tag = 'input window, operand 7, single buffered']
    #allocation8 [shape = 'u8[4096]{0}', space=vmem, size = 0x1000, scoped, tag = 'input window, operand 9, single buffered']
    #allocation9 [shape = 's32[1]{0}', space=sflag, size = 0x4, scoped, tag = 'scoped memory for forward.1']
    #allocation10 [shape = 'u8[512]{0}', space=vmem, size = 0x400, scoped, tag = 'input window, operand 14, single buffered']
    #allocation11 [shape = 'u8[8192]{0}', space=vmem, size = 0x2000, scoped, tag = 'input window, operand 16, single buffered']
    #allocation12 [shape = 's32[1]{0}', space=sflag, size = 0x4, scoped, tag = 'scoped memory for forward.1']
    #allocation13 [shape = 'u8[1024]{0}', space=vmem, size = 0x400, scoped, tag = 'input window, operand 18, single buffered']
    #allocation14 [shape = 'u8[512]{0}', space=vmem, size = 0x400, scoped, tag = 'input window, operand 22, single buffered']
    #allocation15 [shape = 's32[1]{0}', space=sflag, size = 0x4, scoped, tag = 'scoped memory for forward.1']
    #allocation16 [shape = 'u8[8192]{0}', space=vmem, size = 0x2000, scoped, tag = 'input window, operand 23, single buffered']
    #allocation17 [shape = 'u8[8192]{0}', space=vmem, size = 0x2000, scoped, tag = 'input window, operand 24, single buffered']
    #allocation18 [shape = 's32[1]{0}', space=sflag, size = 0x4, scoped, tag = 'scoped memory for forward.1']
    %70 = vsyncpa [#allocation4], 0
    %71 = vsyncpa [#allocation6], 0
    %72 = vsyncpa [#allocation9], 0
    %73 = vsyncpa [#allocation12], 0
    %74 = vsyncpa [#allocation15], 0
    %75 = vsyncpa [#allocation18], 0
    // Predicated region
    $region2: #{forward.1} parent=1 // pred_check
      _
    $region3: #{forward.1} parent=1 // pred_check_branch
      %77 = sbr.rel (0) target = $region5
    $region4: #{forward.1} parent=1 // pred_region
      _
    $region5: #{forward.1} parent=1 // pred_fallthru
      _
    // Predicated region
    $region6: #{forward.1} parent=1 // pred_check
      _
    $region7: #{forward.1} parent=1 // pred_check_branch
      %79 = sbr.rel (0) target = $region9
    $region8: #{forward.1} parent=1 // pred_region
      _
    $region9: #{forward.1} parent=1 // pred_fallthru
      _
    // Predicated region
    $region10: #{forward.1} parent=1 // pred_check
      _
    $region11: #{forward.1} parent=1 // pred_check_branch
      %81 = sbr.rel (0) target = $region13
    $region12: #{forward.1} parent=1 // pred_region
      _
    $region13: #{forward.1} parent=1 // pred_fallthru
      _
    // Predicated region
    $region14: #{forward.1} parent=1 // pred_check
      _
    $region15: #{forward.1} parent=1 // pred_check_branch
      %83 = sbr.rel (0) target = $region17
    $region16: #{forward.1} parent=1 // pred_region
      %s85 = ssub.s32 256, 256
      %86 = vsyncadd [#allocation4], %s85
      %s87 = sshll.u32 [#allocation3], 4
      %s88 = int_to_ptr.vmem [resolvable:$true] %s87
      %93 = dma.hbm_to_vmem [thread:$0]  %s7, 256, %s88, [#allocation4], 128, 128, 8
    $region17: #{forward.1} parent=1 // pred_fallthru
      _
    // Predicated region
    $region18: #{forward.1} parent=1 // pred_check
      _
    $region19: #{forward.1} parent=1 // pred_check_branch
      %95 = sbr.rel (0) target = $region21
    $region20: #{forward.1} parent=1 // pred_region
      _
    $region21: #{forward.1} parent=1 // pred_fallthru
      _
    // Predicated region
    $region22: #{forward.1} parent=1 // pred_check
      _
    $region23: #{forward.1} parent=1 // pred_check_branch
      %97 = sbr.rel (0) target = $region25
    $region24: #{forward.1} parent=1 // pred_region
      %s99 = ssub.s32 128, 128
      %100 = vsyncadd [#allocation6], %s99
      %s102 = sshll.u32 [#allocation5], 4
      %s103 = int_to_ptr.vmem [resolvable:$true] %s102
      %105 = dma.hbm_to_vmem [thread:$0]  %s11, 128, %s103, [#allocation6]
    $region25: #{forward.1} parent=1 // pred_fallthru
      _
    // Predicated region
    $region26: #{forward.1} parent=1 // pred_check
      _
    $region27: #{forward.1} parent=1 // pred_check_branch
      %107 = sbr.rel (0) target = $region29
    $region28: #{forward.1} parent=1 // pred_region
      _
    $region29: #{forward.1} parent=1 // pred_fallthru
      _
    // Predicated region
    $region30: #{forward.1} parent=1 // pred_check
      _
    $region31: #{forward.1} parent=1 // pred_check_branch
      %109 = sbr.rel (0) target = $region33
    $region32: #{forward.1} parent=1 // pred_region
      %s111 = ssub.s32 128, 128
      %112 = vsyncadd [#allocation6], %s111
      %s114 = sshll.u32 [#allocation7], 4
      %s115 = int_to_ptr.vmem [resolvable:$true] %s114
      %117 = dma.hbm_to_vmem [thread:$0]  %s15, 128, %s115, [#allocation6]
    $region33: #{forward.1} parent=1 // pred_fallthru
      _
    // Predicated region
    $region34: #{forward.1} parent=1 // pred_check
      _
    $region35: #{forward.1} parent=1 // pred_check_branch
      %119 = sbr.rel (0) target = $region37
    $region36: #{forward.1} parent=1 // pred_region
      _
    $region37: #{forward.1} parent=1 // pred_fallthru
      _
    // Predicated region
    $region38: #{forward.1} parent=1 // pred_check
      _
    $region39: #{forward.1} parent=1 // pred_check_branch
      %121 = sbr.rel (0) target = $region41
    $region40: #{forward.1} parent=1 // pred_region
      %s123 = ssub.s32 128, 128
      %124 = vsyncadd [#allocation9], %s123
      %s126 = sshll.u32 [#allocation8], 4
      %s127 = int_to_ptr.vmem [resolvable:$true] %s126
      %129 = dma.hbm_to_vmem [thread:$0]  %s19, 128, %s127, [#allocation9]
    $region41: #{forward.1} parent=1 // pred_fallthru
      _
    // Predicated region
    $region42: #{forward.1} parent=1 // pred_check
      _
    $region43: #{forward.1} parent=1 // pred_check_branch
      %131 = sbr.rel (0) target = $region45
    $region44: #{forward.1} parent=1 // pred_region
      _
    $region45: #{forward.1} parent=1 // pred_fallthru
      _
    // Predicated region
    $region46: #{forward.1} parent=1 // pred_check
      _
    $region47: #{forward.1} parent=1 // pred_check_branch
      %133 = sbr.rel (0) target = $region49
    $region48: #{forward.1} parent=1 // pred_region
      _
    $region49: #{forward.1} parent=1 // pred_fallthru
      _
    // Predicated region
    $region50: #{forward.1} parent=1 // pred_check
      _
    $region51: #{forward.1} parent=1 // pred_check_branch
      %135 = sbr.rel (0) target = $region53
    $region52: #{forward.1} parent=1 // pred_region
      _
    $region53: #{forward.1} parent=1 // pred_fallthru
      _
    // Predicated region
    $region54: #{forward.1} parent=1 // pred_check
      _
    $region55: #{forward.1} parent=1 // pred_check_branch
      %137 = sbr.rel (0) target = $region57
    $region56: #{forward.1} parent=1 // pred_region
      _
    $region57: #{forward.1} parent=1 // pred_fallthru
      _
    // Predicated region
    $region58: #{forward.1} parent=1 // pred_check
      _
    $region59: #{forward.1} parent=1 // pred_check_branch
      %139 = sbr.rel (0) target = $region61
    $region60: #{forward.1} parent=1 // pred_region
      %s141 = ssub.s32 16, 16
      %142 = vsyncadd [#allocation9], %s141
      %s144 = sshll.u32 [#allocation10], 4
      %s145 = int_to_ptr.vmem [resolvable:$true] %s144
      %147 = dma.hbm_to_vmem [thread:$0]  %s29, 16, %s145, [#allocation9]
    $region61: #{forward.1} parent=1 // pred_fallthru
      _
    // Predicated region
    $region62: #{forward.1} parent=1 // pred_check
      _
    $region63: #{forward.1} parent=1 // pred_check_branch
      %149 = sbr.rel (0) target = $region65
    $region64: #{forward.1} parent=1 // pred_region
      _
    $region65: #{forward.1} parent=1 // pred_fallthru
      _
    // Predicated region
    $region66: #{forward.1} parent=1 // pred_check
      _
    $region67: #{forward.1} parent=1 // pred_check_branch
      %151 = sbr.rel (0) target = $region69
    $region68: #{forward.1} parent=1 // pred_region
      %s153 = ssub.s32 256, 256
      %154 = vsyncadd [#allocation12], %s153
      %s155 = sshll.u32 [#allocation11], 4
      %s156 = int_to_ptr.vmem [resolvable:$true] %s155
      %161 = dma.hbm_to_vmem [thread:$0]  %s33, 256, %s156, [#allocation12], 128, 128, 8
    $region69: #{forward.1} parent=1 // pred_fallthru
      _
    // Predicated region
    $region70: #{forward.1} parent=1 // pred_check
      _
    $region71: #{forward.1} parent=1 // pred_check_branch
      %163 = sbr.rel (0) target = $region73
    $region72: #{forward.1} parent=1 // pred_region
      _
    $region73: #{forward.1} parent=1 // pred_fallthru
      _
    // Predicated region
    $region74: #{forward.1} parent=1 // pred_check
      _
    $region75: #{forward.1} parent=1 // pred_check_branch
      %165 = sbr.rel (0) target = $region77
    $region76: #{forward.1} parent=1 // pred_region
      %s167 = ssub.s32 32, 32
      %168 = vsyncadd [#allocation12], %s167
      %s170 = sshll.u32 [#allocation13], 4
      %s171 = int_to_ptr.vmem [resolvable:$true] %s170
      %173 = dma.hbm_to_vmem [thread:$0]  %s37, 32, %s171, [#allocation12]
    $region77: #{forward.1} parent=1 // pred_fallthru
      _
    // Predicated region
    $region78: #{forward.1} parent=1 // pred_check
      _
    $region79: #{forward.1} parent=1 // pred_check_branch
      %175 = sbr.rel (0) target = $region81
    $region80: #{forward.1} parent=1 // pred_region
      _
    $region81: #{forward.1} parent=1 // pred_fallthru
      _
    // Predicated region
    $region82: #{forward.1} parent=1 // pred_check
      _
    $region83: #{forward.1} parent=1 // pred_check_branch
      %177 = sbr.rel (0) target = $region85
    $region84: #{forward.1} parent=1 // pred_region
      _
    $region85: #{forward.1} parent=1 // pred_fallthru
      _
    // Predicated region
    $region86: #{forward.1} parent=1 // pred_check
      _
    $region87: #{forward.1} parent=1 // pred_check_branch
      %179 = sbr.rel (0) target = $region89
    $region88: #{forward.1} parent=1 // pred_region
      _
    $region89: #{forward.1} parent=1 // pred_fallthru
      _
    // Predicated region
    $region90: #{forward.1} parent=1 // pred_check
      _
    $region91: #{forward.1} parent=1 // pred_check_branch
      %181 = sbr.rel (0) target = $region93
    $region92: #{forward.1} parent=1 // pred_region
      %s183 = ssub.s32 16, 16
      %184 = vsyncadd [#allocation15], %s183
      %s186 = sshll.u32 [#allocation14], 4
      %s187 = int_to_ptr.vmem [resolvable:$true] %s186
      %189 = dma.hbm_to_vmem [thread:$0]  %s45, 16, %s187, [#allocation15]
    $region93: #{forward.1} parent=1 // pred_fallthru
      _
    // Predicated region
    $region94: #{forward.1} parent=1 // pred_check
      _
    $region95: #{forward.1} parent=1 // pred_check_branch
      %191 = sbr.rel (0) target = $region97
    $region96: #{forward.1} parent=1 // pred_region
      %s193 = ssub.s32 256, 256
      %194 = vsyncadd [#allocation15], %s193
      %s195 = sshll.u32 [#allocation16], 4
      %s196 = int_to_ptr.vmem [resolvable:$true] %s195
      %201 = dma.hbm_to_vmem [thread:$0]  %s47, 256, %s196, [#allocation15], 128, 128, 8
    $region97: #{forward.1} parent=1 // pred_fallthru
      _
    // Predicated region
    $region98: #{forward.1} parent=1 // pred_check
      _
    $region99: #{forward.1} parent=1 // pred_check_branch
      %203 = sbr.rel (0) target = $region101
    $region100: #{forward.1} parent=1 // pred_region
      %s205 = ssub.s32 256, 256
      %206 = vsyncadd [#allocation18], %s205
      %s207 = sshll.u32 [#allocation17], 4
      %s208 = int_to_ptr.vmem [resolvable:$true] %s207
      %213 = dma.hbm_to_vmem [thread:$0]  %s49, 256, %s208, [#allocation18], 128, 128, 8
    $region101: #{forward.1} parent=1 // pred_fallthru
      _
    // Predicated region
    $region102: #{forward.1} parent=1 // pred_check
      _
    $region103: #{forward.1} parent=1 // pred_check_branch
      %215 = sbr.rel (0) target = $region105
    $region104: #{forward.1} parent=1 // pred_region
      _
    $region105: #{forward.1} parent=1 // pred_fallthru
      _
    // Predicated region
    $region106: #{forward.1} parent=1 // pred_check
      _
    $region107: #{forward.1} parent=1 // pred_check_branch
      %217 = sbr.rel (0) target = $region109
    $region108: #{forward.1} parent=1 // pred_region
      _
    $region109: #{forward.1} parent=1 // pred_fallthru
      _
    // Predicated region
    $region110: #{forward.1} parent=1 // pred_check
      _
    $region111: #{forward.1} parent=1 // pred_check_branch
      %219 = sbr.rel (0) target = $region113
    $region112: #{forward.1} parent=1 // pred_region
      _
    $region113: #{forward.1} parent=1 // pred_fallthru
      _
    // Predicated region
    $region114: #{forward.1} parent=1 // pred_check
      _
    $region115: #{forward.1} parent=1 // pred_check_branch
      %221 = sbr.rel (0) target = $region117
    $region116: #{forward.1} parent=1 // pred_region
      _
    $region117: #{forward.1} parent=1 // pred_fallthru
      _
    // Predicated region
    $region118: #{forward.1} parent=1 // pred_check
      _
    $region119: #{forward.1} parent=1 // pred_check_branch
      %223 = sbr.rel (0) target = $region121
    $region120: #{forward.1} parent=1 // pred_region
      _
    $region121: #{forward.1} parent=1 // pred_fallthru
      _
    // Predicated region
    $region122: #{forward.1} parent=1 // pred_check
      _
    $region123: #{forward.1} parent=1 // pred_check_branch
      %225 = sbr.rel (0) target = $region125
    $region124: #{forward.1} parent=1 // pred_region
      _
    $region125: #{forward.1} parent=1 // pred_fallthru
      _
    // Predicated region
    $region126: #{forward.1} parent=1 // pred_check
      _
    $region127: #{forward.1} parent=1 // pred_check_branch
      %227 = sbr.rel (0) target = $region129
    $region128: #{forward.1} parent=1 // pred_region
      %228 = dma.done [#allocation4], 256
    $region129: #{forward.1} parent=1 // pred_fallthru
      _
    // Predicated region
    $region130: #{forward.1} parent=1 // pred_check
      _
    $region131: #{forward.1} parent=1 // pred_check_branch
      %230 = sbr.rel (0) target = $region133
    $region132: #{forward.1} parent=1 // pred_region
      %231 = dma.done [#allocation6], 128
    $region133: #{forward.1} parent=1 // pred_fallthru
      _
    // Predicated region
    $region134: #{forward.1} parent=1 // pred_check
      _
    $region135: #{forward.1} parent=1 // pred_check_branch
      %233 = sbr.rel (0) target = $region137
    $region136: #{forward.1} parent=1 // pred_region
      %234 = dma.done [#allocation6], 128
    $region137: #{forward.1} parent=1 // pred_fallthru
      _
    // Predicated region
    $region138: #{forward.1} parent=1 // pred_check
      _
    $region139: #{forward.1} parent=1 // pred_check_branch
      %236 = sbr.rel (0) target = $region141
    $region140: #{forward.1} parent=1 // pred_region
      %237 = dma.done [#allocation9], 128
    $region141: #{forward.1} parent=1 // pred_fallthru
      _
    // Predicated region
    $region142: #{forward.1} parent=1 // pred_check
      _
    $region143: #{forward.1} parent=1 // pred_check_branch
      %239 = sbr.rel (0) target = $region145
    $region144: #{forward.1} parent=1 // pred_region
      %240 = dma.done [#allocation9], 16
    $region145: #{forward.1} parent=1 // pred_fallthru
      _
    // Predicated region
    $region146: #{forward.1} parent=1 // pred_check
      _
    $region147: #{forward.1} parent=1 // pred_check_branch
      %242 = sbr.rel (0) target = $region149
    $region148: #{forward.1} parent=1 // pred_region
      %243 = dma.done [#allocation12], 256
    $region149: #{forward.1} parent=1 // pred_fallthru
      _
    // Predicated region
    $region150: #{forward.1} parent=1 // pred_check
      _
    $region151: #{forward.1} parent=1 // pred_check_branch
      %245 = sbr.rel (0) target = $region153
    $region152: #{forward.1} parent=1 // pred_region
      %246 = dma.done [#allocation12], 32
    $region153: #{forward.1} parent=1 // pred_fallthru
      _
    // Predicated region
    $region154: #{forward.1} parent=1 // pred_check
      _
    $region155: #{forward.1} parent=1 // pred_check_branch
      %248 = sbr.rel (0) target = $region157
    $region156: #{forward.1} parent=1 // pred_region
      %249 = dma.done [#allocation15], 16
    $region157: #{forward.1} parent=1 // pred_fallthru
      _
    // Predicated region
    $region158: #{forward.1} parent=1 // pred_check
      _
    $region159: #{forward.1} parent=1 // pred_check_branch
      %251 = sbr.rel (0) target = $region161
    $region160: #{forward.1} parent=1 // pred_region
      %252 = dma.done [#allocation15], 256
    $region161: #{forward.1} parent=1 // pred_fallthru
      _
    // Predicated region
    $region162: #{forward.1} parent=1 // pred_check
      _
    $region163: #{forward.1} parent=1 // pred_check_branch
      %254 = sbr.rel (0) target = $region165
    $region164: #{forward.1} parent=1 // pred_region
      %255 = dma.done [#allocation18], 256
    $region165: #{forward.1} parent=1 // pred_fallthru
      _
    %v256 = vld [vmem:[%s5] sm:$0xff]
    %v257 = vld [vmem:[%s1] sm:$0x1f]
    %vm258 = vcmask 64512
    %v260 = vsel %vm258, %v257, 0
    %262 = vmatprep.subr.mxu0 0.0
    %263 = vmatpush1.msra.mxu0 0.0
    %264 = vmatprep.subr.mxu0 0.0
    %265 = vmatpush1.msra.mxu0 0.0
    %266 = vmatprep.subr.mxu0 0.0
    %267 = vmatpush1.msra.mxu0 0.0
    %268 = vmatprep.subr.mxu0 0.0
    %269 = vmatpush1.msra.mxu0 0.0
    %270 = vmatprep.subr.mxu0 0.0
    %271 = vmatpush1.msra.mxu0 0.0
    %272 = vmatprep.subr.mxu0 0.0
    %273 = vmatpush1.msra.mxu0 0.0
    %274 = vmatprep.subr.mxu0 0.0
    %275 = vmatpush1.msra.mxu0 0.0
    %276 = vmatprep.subr.mxu0 0.0
    %277 = vmatpush1.msra.mxu0 0.0
    %278 = vmatprep.subr.mxu0 0.0
    %279 = vmatpush1.msra.mxu0 0.0
    %280 = vmatprep.subr.mxu0 0.0
    %281 = vmatpush1.msra.mxu0 0.0
    %282 = vmatprep.subr.mxu0 0.0
    %283 = vmatpush1.msra.mxu0 0.0
    %284 = vmatprep.subr.mxu0 0.0
    %285 = vmatpush1.msra.mxu0 0.0
    %286 = vmatprep.subr.mxu0 0.0
    %287 = vmatpush1.msra.mxu0 0.0
    %288 = vmatprep.subr.mxu0 0.0
    %289 = vmatpush1.msra.mxu0 0.0
    %290 = vmatprep.subr.mxu0 0.0
    %291 = vmatpush1.msra.mxu0 0.0
    %292 = vmatprep.subr.mxu0 0.0
    %293 = vmatpush1.msra.mxu0 %v256
    %294 = vmatprep.subr.mxu0 0.0
    %295 = vmatpush2.msra.mxu0 0.0
    %296 = vmatprep.subr.mxu0 0.0
    %297 = vmatpush2.msra.mxu0 0.0
    %298 = vmatprep.subr.mxu0 0.0
    %299 = vmatpush2.msra.mxu0 0.0
    %300 = vmatprep.subr.mxu0 0.0
    %301 = vmatpush2.msra.mxu0 0.0
    %302 = vmatprep.subr.mxu0 0.0
    %303 = vmatpush2.msra.mxu0 0.0
    %304 = vmatprep.subr.mxu0 0.0
    %305 = vmatpush2.msra.mxu0 0.0
    %306 = vmatprep.subr.mxu0 0.0
    %307 = vmatpush2.msra.mxu0 0.0
    %308 = vmatprep.subr.mxu0 0.0
    %309 = vmatpush2.msra.mxu0 0.0
    %310 = vmatprep.subr.mxu0 0.0
    %311 = vmatpush2.msra.mxu0 0.0
    %312 = vmatprep.subr.mxu0 0.0
    %313 = vmatpush2.msra.mxu0 0.0
    %314 = vmatprep.subr.mxu0 0.0
    %315 = vmatpush2.msra.mxu0 0.0
    %316 = vmatprep.subr.mxu0 0.0
    %317 = vmatpush2.msra.mxu0 0.0
    %318 = vmatprep.subr.mxu0 0.0
    %319 = vmatpush2.msra.mxu0 0.0
    %320 = vmatprep.subr.mxu0 0.0
    %321 = vmatpush2.msra.mxu0 0.0
    %322 = vmatprep.subr.mxu0 0.0
    %323 = vmatpush2.msra.mxu0 0.0
    %324 = vmatprep.subr.mxu0 0.0
    %325 = vmatpush2.msra.mxu0 0.0
    %326 = vmatprep.mubr.f32.mxu0 0.0
    %327 = vmatmul.mubr.f32.gmra.mxu0 %v260
    %v328 = vpop.f32.mrf.mxu0
    %v329 = vadd.f32 0.0, %v328
    %v330 = vpop.f32.mrf.mxu0
    %331 = vdwg.mxu0
    %v332 = vld [vmem:[%s3] sm:$0x1f]
    %v334 = vsel %vm258, %v332, 0
    %336 = vmatprep.subr.mxu0 0.0
    %337 = vmatpush1.msra.mxu0 0.0
    %338 = vmatprep.subr.mxu0 0.0
    %339 = vmatpush1.msra.mxu0 0.0
    %340 = vmatprep.subr.mxu0 0.0
    %341 = vmatpush1.msra.mxu0 0.0
    %342 = vmatprep.subr.mxu0 0.0
    %343 = vmatpush1.msra.mxu0 0.0
    %344 = vmatprep.subr.mxu0 0.0
    %345 = vmatpush1.msra.mxu0 0.0
    %346 = vmatprep.subr.mxu0 0.0
    %347 = vmatpush1.msra.mxu0 0.0
    %348 = vmatprep.subr.mxu0 0.0
    %349 = vmatpush1.msra.mxu0 0.0
    %350 = vmatprep.subr.mxu0 0.0
    %351 = vmatpush1.msra.mxu0 0.0
    %352 = vmatprep.subr.mxu0 0.0
    %353 = vmatpush1.msra.mxu0 0.0
    %354 = vmatprep.subr.mxu0 0.0
    %355 = vmatpush1.msra.mxu0 0.0
    %356 = vmatprep.subr.mxu0 0.0
    %357 = vmatpush1.msra.mxu0 0.0
    %358 = vmatprep.subr.mxu0 0.0
    %359 = vmatpush1.msra.mxu0 0.0
    %360 = vmatprep.subr.mxu0 0.0
    %361 = vmatpush1.msra.mxu0 0.0
    %362 = vmatprep.subr.mxu0 0.0
    %363 = vmatpush1.msra.mxu0 0.0
    %364 = vmatprep.subr.mxu0 0.0
    %365 = vmatpush1.msra.mxu0 0.0
    %366 = vmatprep.subr.mxu0 0.0
    %367 = vmatpush1.msra.mxu0 %v256
    %368 = vmatprep.subr.mxu0 0.0
    %369 = vmatpush2.msra.mxu0 0.0
    %370 = vmatprep.subr.mxu0 0.0
    %371 = vmatpush2.msra.mxu0 0.0
    %372 = vmatprep.subr.mxu0 0.0
    %373 = vmatpush2.msra.mxu0 0.0
    %374 = vmatprep.subr.mxu0 0.0
    %375 = vmatpush2.msra.mxu0 0.0
    %376 = vmatprep.subr.mxu0 0.0
    %377 = vmatpush2.msra.mxu0 0.0
    %378 = vmatprep.subr.mxu0 0.0
    %379 = vmatpush2.msra.mxu0 0.0
    %380 = vmatprep.subr.mxu0 0.0
    %381 = vmatpush2.msra.mxu0 0.0
    %382 = vmatprep.subr.mxu0 0.0
    %383 = vmatpush2.msra.mxu0 0.0
    %384 = vmatprep.subr.mxu0 0.0
    %385 = vmatpush2.msra.mxu0 0.0
    %386 = vmatprep.subr.mxu0 0.0
    %387 = vmatpush2.msra.mxu0 0.0
    %388 = vmatprep.subr.mxu0 0.0
    %389 = vmatpush2.msra.mxu0 0.0
    %390 = vmatprep.subr.mxu0 0.0
    %391 = vmatpush2.msra.mxu0 0.0
    %392 = vmatprep.subr.mxu0 0.0
    %393 = vmatpush2.msra.mxu0 0.0
    %394 = vmatprep.subr.mxu0 0.0
    %395 = vmatpush2.msra.mxu0 0.0
    %396 = vmatprep.subr.mxu0 0.0
    %397 = vmatpush2.msra.mxu0 0.0
    %398 = vmatprep.subr.mxu0 0.0
    %399 = vmatpush2.msra.mxu0 0.0
    %400 = vmatprep.mubr.f32.mxu0 0.0
    %401 = vmatmul.mubr.f32.gmra.mxu0 %v334
    %v402 = vpop.f32.mrf.mxu0
    %v403 = vadd.f32 0.0, %v402
    %v404 = vpop.f32.mrf.mxu0
    %405 = vdwg.mxu0
    %v406 = vmul.f32 %v329, %v329
    %v407 = vmul.f32 %v403, %v403
    %v408 = vadd.f32 %v406, %v407
    %v409 = vrsqrt.pop %v408
    %v410 = vmul.f32 %v408, %v409
    %vm411 = vcmp.eq.f32.partialorder %v408, inf
    %v412 = vsel %vm411, %v408, %v410
    %vm413 = vcmp.eq.f32.partialorder %v408, 0.0
    %v414 = vand.u32 %v408, 2147483648
    %v415 = vsel %vm413, %v414, %v412
    %vm416 = vcmask 143360
    %v417 = vsel %vm416, %v415, 0.0
    %418 = vadd.xlane.f32.xlu0 %v417
    %v419 = vpop.xlane.xlu0 %418
    %v420 = vrcp.pop 18.0
    %v421 = vmul.f32 %v419, %v420
    %v422 = vsub.f32 %v415, %v421
    %v423 = vmul.f32 %v422, %v422
    %v424 = vsel %vm416, %v423, 0.0
    %425 = vadd.xlane.f32.xlu0 %v424
    %v426 = vpop.xlane.xlu0 %425
    %v427 = vrsqrt.pop %v426
    %v428 = vmul.f32 %v422, %v427
    %vm429 = vcmask 146432
    %v431 = vsel %vm429, %v428, 0
    %433 = vmatprep.subr.mxu0 0.0
    %434 = vmatpush1.xpose.msra.mxu0 0.0
    %435 = vmatprep.subr.mxu0 0.0
    %436 = vmatpush1.xpose.msra.mxu0 0.0
    %437 = vmatprep.subr.mxu0 0.0
    %438 = vmatpush1.xpose.msra.mxu0 0.0
    %439 = vmatprep.subr.mxu0 0.0
    %440 = vmatpush1.xpose.msra.mxu0 0.0
    %441 = vmatprep.subr.mxu0 0.0
    %442 = vmatpush1.xpose.msra.mxu0 0.0
    %443 = vmatprep.subr.mxu0 0.0
    %444 = vmatpush1.xpose.msra.mxu0 0.0
    %445 = vmatprep.subr.mxu0 0.0
    %446 = vmatpush1.xpose.msra.mxu0 0.0
    %447 = vmatprep.subr.mxu0 0.0
    %448 = vmatpush1.xpose.msra.mxu0 0.0
    %449 = vmatprep.subr.mxu0 0.0
    %450 = vmatpush1.xpose.msra.mxu0 0.0
    %451 = vmatprep.subr.mxu0 0.0
    %452 = vmatpush1.xpose.msra.mxu0 0.0
    %453 = vmatprep.subr.mxu0 0.0
    %454 = vmatpush1.xpose.msra.mxu0 0.0
    %455 = vmatprep.subr.mxu0 0.0
    %456 = vmatpush1.xpose.msra.mxu0 0.0
    %457 = vmatprep.subr.mxu0 0.0
    %458 = vmatpush1.xpose.msra.mxu0 0.0
    %459 = vmatprep.subr.mxu0 0.0
    %460 = vmatpush1.xpose.msra.mxu0 0.0
    %461 = vmatprep.subr.mxu0 0.0
    %462 = vmatpush1.xpose.msra.mxu0 0.0
    %463 = vmatprep.subr.mxu0 0.0
    %464 = vmatpush1.xpose.msra.mxu0 %v431
    %465 = vmatprep.subr.mxu0 0.0
    %466 = vmatpush2.xpose.msra.mxu0 0.0
    %467 = vmatprep.subr.mxu0 0.0
    %468 = vmatpush2.xpose.msra.mxu0 0.0
    %469 = vmatprep.subr.mxu0 0.0
    %470 = vmatpush2.xpose.msra.mxu0 0.0
    %471 = vmatprep.subr.mxu0 0.0
    %472 = vmatpush2.xpose.msra.mxu0 0.0
    %473 = vmatprep.subr.mxu0 0.0
    %474 = vmatpush2.xpose.msra.mxu0 0.0
    %475 = vmatprep.subr.mxu0 0.0
    %476 = vmatpush2.xpose.msra.mxu0 0.0
    %477 = vmatprep.subr.mxu0 0.0
    %478 = vmatpush2.xpose.msra.mxu0 0.0
    %479 = vmatprep.subr.mxu0 0.0
    %480 = vmatpush2.xpose.msra.mxu0 0.0
    %481 = vmatprep.subr.mxu0 0.0
    %482 = vmatpush2.xpose.msra.mxu0 0.0
    %483 = vmatprep.subr.mxu0 0.0
    %484 = vmatpush2.xpose.msra.mxu0 0.0
    %485 = vmatprep.subr.mxu0 0.0
    %486 = vmatpush2.xpose.msra.mxu0 0.0
    %487 = vmatprep.subr.mxu0 0.0
    %488 = vmatpush2.xpose.msra.mxu0 0.0
    %489 = vmatprep.subr.mxu0 0.0
    %490 = vmatpush2.xpose.msra.mxu0 0.0
    %491 = vmatprep.subr.mxu0 0.0
    %492 = vmatpush2.xpose.msra.mxu0 0.0
    %493 = vmatprep.subr.mxu0 0.0
    %494 = vmatpush2.xpose.msra.mxu0 0.0
    %495 = vmatprep.subr.mxu0 0.0
    %496 = vmatpush2.xpose.msra.mxu0 0.0
    %497 = vmatprep.mubr.f32.mxu0 0.0
    %498 = vmatmul.mubr.f32.gmra.mxu0 %v431
    %v499 = vpop.f32.mrf.mxu0
    %v500 = vadd.f32 0.0, %v499
    %v501 = vpop.f32.mrf.mxu0
    %502 = vdwg.mxu0
    %504 = vrot.lane.b32.xlu0 %v415, 110
    %v505 = vpop.permute.xlu0 %504
    %v507 = vsel %vm416, %v505, 0.0
    %508 = vadd.xlane.f32.xlu0 %v507
    %v509 = vpop.xlane.xlu0 %508
    %v510 = vmul.f32 %v509, %v420
    %v511 = vsub.f32 %v415, %v510
    %v512 = vmul.f32 %v511, %v511
    %514 = vrot.lane.b32.xlu0 %v512, 110
    %v515 = vpop.permute.xlu0 %514
    %v517 = vsel %vm416, %v515, 0.0
    %518 = vadd.xlane.f32.xlu0 %v517
    %v519 = vpop.xlane.xlu0 %518
    %v520 = vrsqrt.pop %v519
    %v521 = vmul.f32 %v511, %v520
    %523 = vrot.lane.b32.xlu0 %v521, 110
    %v524 = vpop.permute.xlu0 %523
    %v525 = vsel %vm429, %v524, 0
    %527 = vmatprep.subr.mxu0 0.0
    %528 = vmatpush1.xpose.msra.mxu0 0.0
    %529 = vmatprep.subr.mxu0 0.0
    %530 = vmatpush1.xpose.msra.mxu0 0.0
    %531 = vmatprep.subr.mxu0 0.0
    %532 = vmatpush1.xpose.msra.mxu0 0.0
    %533 = vmatprep.subr.mxu0 0.0
    %534 = vmatpush1.xpose.msra.mxu0 0.0
    %535 = vmatprep.subr.mxu0 0.0
    %536 = vmatpush1.xpose.msra.mxu0 0.0
    %537 = vmatprep.subr.mxu0 0.0
    %538 = vmatpush1.xpose.msra.mxu0 0.0
    %539 = vmatprep.subr.mxu0 0.0
    %540 = vmatpush1.xpose.msra.mxu0 0.0
    %541 = vmatprep.subr.mxu0 0.0
    %542 = vmatpush1.xpose.msra.mxu0 0.0
    %543 = vmatprep.subr.mxu0 0.0
    %544 = vmatpush1.xpose.msra.mxu0 0.0
    %545 = vmatprep.subr.mxu0 0.0
    %546 = vmatpush1.xpose.msra.mxu0 0.0
    %547 = vmatprep.subr.mxu0 0.0
    %548 = vmatpush1.xpose.msra.mxu0 0.0
    %549 = vmatprep.subr.mxu0 0.0
    %550 = vmatpush1.xpose.msra.mxu0 0.0
    %551 = vmatprep.subr.mxu0 0.0
    %552 = vmatpush1.xpose.msra.mxu0 0.0
    %553 = vmatprep.subr.mxu0 0.0
    %554 = vmatpush1.xpose.msra.mxu0 0.0
    %555 = vmatprep.subr.mxu0 0.0
    %556 = vmatpush1.xpose.msra.mxu0 0.0
    %557 = vmatprep.subr.mxu0 0.0
    %558 = vmatpush1.xpose.msra.mxu0 %v525
    %559 = vmatprep.subr.mxu0 0.0
    %560 = vmatpush2.xpose.msra.mxu0 0.0
    %561 = vmatprep.subr.mxu0 0.0
    %562 = vmatpush2.xpose.msra.mxu0 0.0
    %563 = vmatprep.subr.mxu0 0.0
    %564 = vmatpush2.xpose.msra.mxu0 0.0
    %565 = vmatprep.subr.mxu0 0.0
    %566 = vmatpush2.xpose.msra.mxu0 0.0
    %567 = vmatprep.subr.mxu0 0.0
    %568 = vmatpush2.xpose.msra.mxu0 0.0
    %569 = vmatprep.subr.mxu0 0.0
    %570 = vmatpush2.xpose.msra.mxu0 0.0
    %571 = vmatprep.subr.mxu0 0.0
    %572 = vmatpush2.xpose.msra.mxu0 0.0
    %573 = vmatprep.subr.mxu0 0.0
    %574 = vmatpush2.xpose.msra.mxu0 0.0
    %575 = vmatprep.subr.mxu0 0.0
    %576 = vmatpush2.xpose.msra.mxu0 0.0
    %577 = vmatprep.subr.mxu0 0.0
    %578 = vmatpush2.xpose.msra.mxu0 0.0
    %579 = vmatprep.subr.mxu0 0.0
    %580 = vmatpush2.xpose.msra.mxu0 0.0
    %581 = vmatprep.subr.mxu0 0.0
    %582 = vmatpush2.xpose.msra.mxu0 0.0
    %583 = vmatprep.subr.mxu0 0.0
    %584 = vmatpush2.xpose.msra.mxu0 0.0
    %585 = vmatprep.subr.mxu0 0.0
    %586 = vmatpush2.xpose.msra.mxu0 0.0
    %587 = vmatprep.subr.mxu0 0.0
    %588 = vmatpush2.xpose.msra.mxu0 0.0
    %589 = vmatprep.subr.mxu0 0.0
    %590 = vmatpush2.xpose.msra.mxu0 0.0
    %591 = vmatprep.mubr.f32.mxu0 0.0
    %592 = vmatmul.mubr.f32.gmra.mxu0 %v525
    %v593 = vpop.f32.mrf.mxu0
    %v594 = vadd.f32 0.0, %v593
    %v595 = vpop.f32.mrf.mxu0
    %596 = vdwg.mxu0
    %v597 = vlaneseq
    %v598 = vshrl.u32 %v597, 7
    %v599 = vlaneseq
    %v600 = vand.u32 %v599, 127
    %vm601 = vcmp.eq.s32.totalorder %v598, %v600
    %v602 = vsel %vm601, 1, 0
    %v603 = vcvt.s32.f32 %v602
    %v604 = vmul.f32 %v603, 1e+08
    %v605 = vld [vmem:[#allocation3] sm:$0xff]
    %v606 = vld [vmem:[#allocation3 + $0x8] sm:$0x1]
    %v607 = vld [vmem:[%s9] sm:$0x1]
    %v608 = vld [vmem:[#allocation5] sm:$0x1f]
    %v609 = vld [vmem:[%s13] sm:$0x1]
    %v610 = vld [vmem:[#allocation7] sm:$0x1f]
    %v611 = vld [vmem:[%s17] sm:$0x1]
    %v612 = vld [vmem:[#allocation8] sm:$0x1f]
    %v613 = vld [vmem:[%s21] sm:$0x1]
    %v614 = vld [vmem:[%s23] sm:$0xff]
    %v615 = vld [vmem:[%s23 + $0x8] sm:$0xff]
    %v616 = vld [vmem:[%s23 + $0x10] sm:$0x3]
    %v617 = vld [vmem:[%s25] sm:$0x1]
    %v619 = vlaneseq
    %v620 = vshrl.u32 %v619, 7
    %v621 = vsub.s32 0, %v620
    %v622 = vrot.slane %v607, %v621
    %vm624 = vcmask 72704
    %v625 = vsel %vm624, %v415, 0
    %vm627 = vcmask 1040384
    %v629 = vsel %vm627, %v606, 0
    %631 = vmatprep.subr.mxu0 0.0
    %632 = vmatpush1.msra.mxu0 0.0
    %633 = vmatprep.subr.mxu0 0.0
    %634 = vmatpush1.msra.mxu0 0.0
    %635 = vmatprep.subr.mxu0 0.0
    %636 = vmatpush1.msra.mxu0 0.0
    %637 = vmatprep.subr.mxu0 0.0
    %638 = vmatpush1.msra.mxu0 0.0
    %639 = vmatprep.subr.mxu0 0.0
    %640 = vmatpush1.msra.mxu0 0.0
    %641 = vmatprep.subr.mxu0 0.0
    %642 = vmatpush1.msra.mxu0 0.0
    %643 = vmatprep.subr.mxu0 0.0
    %644 = vmatpush1.msra.mxu0 0.0
    %645 = vmatprep.subr.mxu0 0.0
    %646 = vmatpush1.msra.mxu0 0.0
    %647 = vmatprep.subr.mxu0 0.0
    %648 = vmatpush1.msra.mxu0 0.0
    %649 = vmatprep.subr.mxu0 0.0
    %650 = vmatpush1.msra.mxu0 0.0
    %651 = vmatprep.subr.mxu0 0.0
    %652 = vmatpush1.msra.mxu0 0.0
    %653 = vmatprep.subr.mxu0 0.0
    %654 = vmatpush1.msra.mxu0 0.0
    %655 = vmatprep.subr.mxu0 0.0
    %656 = vmatpush1.msra.mxu0 0.0
    %657 = vmatprep.subr.mxu0 0.0
    %658 = vmatpush1.msra.mxu0 0.0
    %659 = vmatprep.subr.mxu0 0.0
    %660 = vmatpush1.msra.mxu0 %v629
    %661 = vmatprep.subr.mxu0 0.0
    %662 = vmatpush1.msra.mxu0 %v605
    %663 = vmatprep.subr.mxu0 0.0
    %664 = vmatpush2.msra.mxu0 0.0
    %665 = vmatprep.subr.mxu0 0.0
    %666 = vmatpush2.msra.mxu0 0.0
    %667 = vmatprep.subr.mxu0 0.0
    %668 = vmatpush2.msra.mxu0 0.0
    %669 = vmatprep.subr.mxu0 0.0
    %670 = vmatpush2.msra.mxu0 0.0
    %671 = vmatprep.subr.mxu0 0.0
    %672 = vmatpush2.msra.mxu0 0.0
    %673 = vmatprep.subr.mxu0 0.0
    %674 = vmatpush2.msra.mxu0 0.0
    %675 = vmatprep.subr.mxu0 0.0
    %676 = vmatpush2.msra.mxu0 0.0
    %677 = vmatprep.subr.mxu0 0.0
    %678 = vmatpush2.msra.mxu0 0.0
    %679 = vmatprep.subr.mxu0 0.0
    %680 = vmatpush2.msra.mxu0 0.0
    %681 = vmatprep.subr.mxu0 0.0
    %682 = vmatpush2.msra.mxu0 0.0
    %683 = vmatprep.subr.mxu0 0.0
    %684 = vmatpush2.msra.mxu0 0.0
    %685 = vmatprep.subr.mxu0 0.0
    %686 = vmatpush2.msra.mxu0 0.0
    %687 = vmatprep.subr.mxu0 0.0
    %688 = vmatpush2.msra.mxu0 0.0
    %689 = vmatprep.subr.mxu0 0.0
    %690 = vmatpush2.msra.mxu0 0.0
    %691 = vmatprep.subr.mxu0 0.0
    %692 = vmatpush2.msra.mxu0 0.0
    %693 = vmatprep.subr.mxu0 0.0
    %694 = vmatpush2.msra.mxu0 0.0
    %695 = vmatprep.mubr.f32.mxu0 0.0
    %696 = vmatmul.mubr.f32.gmra.mxu0 %v625
    %v697 = vpop.f32.mrf.mxu0
    %v698 = vadd.f32 %v622, %v697
    %v699 = vpop.f32.mrf.mxu0
    %700 = vdwg.mxu0
    %v702 = vsel %vm429, %v698, 0
    %704 = vmatprep.subr.mxu0 0.0
    %705 = vmatpush1.xpose.msra.mxu0 0.0
    %706 = vmatprep.subr.mxu0 0.0
    %707 = vmatpush1.xpose.msra.mxu0 0.0
    %708 = vmatprep.subr.mxu0 0.0
    %709 = vmatpush1.xpose.msra.mxu0 0.0
    %710 = vmatprep.subr.mxu0 0.0
    %711 = vmatpush1.xpose.msra.mxu0 0.0
    %712 = vmatprep.subr.mxu0 0.0
    %713 = vmatpush1.xpose.msra.mxu0 0.0
    %714 = vmatprep.subr.mxu0 0.0
    %715 = vmatpush1.xpose.msra.mxu0 0.0
    %716 = vmatprep.subr.mxu0 0.0
    %717 = vmatpush1.xpose.msra.mxu0 0.0
    %718 = vmatprep.subr.mxu0 0.0
    %719 = vmatpush1.xpose.msra.mxu0 0.0
    %720 = vmatprep.subr.mxu0 0.0
    %721 = vmatpush1.xpose.msra.mxu0 0.0
    %722 = vmatprep.subr.mxu0 0.0
    %723 = vmatpush1.xpose.msra.mxu0 0.0
    %724 = vmatprep.subr.mxu0 0.0
    %725 = vmatpush1.xpose.msra.mxu0 0.0
    %726 = vmatprep.subr.mxu0 0.0
    %727 = vmatpush1.xpose.msra.mxu0 0.0
    %728 = vmatprep.subr.mxu0 0.0
    %729 = vmatpush1.xpose.msra.mxu0 0.0
    %730 = vmatprep.subr.mxu0 0.0
    %731 = vmatpush1.xpose.msra.mxu0 0.0
    %732 = vmatprep.subr.mxu0 0.0
    %733 = vmatpush1.xpose.msra.mxu0 0.0
    %734 = vmatprep.subr.mxu0 0.0
    %735 = vmatpush1.xpose.msra.mxu0 %v702
    %736 = vmatprep.subr.mxu0 0.0
    %737 = vmatpush2.xpose.msra.mxu0 0.0
    %738 = vmatprep.subr.mxu0 0.0
    %739 = vmatpush2.xpose.msra.mxu0 0.0
    %740 = vmatprep.subr.mxu0 0.0
    %741 = vmatpush2.xpose.msra.mxu0 0.0
    %742 = vmatprep.subr.mxu0 0.0
    %743 = vmatpush2.xpose.msra.mxu0 0.0
    %744 = vmatprep.subr.mxu0 0.0
    %745 = vmatpush2.xpose.msra.mxu0 0.0
    %746 = vmatprep.subr.mxu0 0.0
    %747 = vmatpush2.xpose.msra.mxu0 0.0
    %748 = vmatprep.subr.mxu0 0.0
    %749 = vmatpush2.xpose.msra.mxu0 0.0
    %750 = vmatprep.subr.mxu0 0.0
    %751 = vmatpush2.xpose.msra.mxu0 0.0
    %752 = vmatprep.subr.mxu0 0.0
    %753 = vmatpush2.xpose.msra.mxu0 0.0
    %754 = vmatprep.subr.mxu0 0.0
    %755 = vmatpush2.xpose.msra.mxu0 0.0
    %756 = vmatprep.subr.mxu0 0.0
    %757 = vmatpush2.xpose.msra.mxu0 0.0
    %758 = vmatprep.subr.mxu0 0.0
    %759 = vmatpush2.xpose.msra.mxu0 0.0
    %760 = vmatprep.subr.mxu0 0.0
    %761 = vmatpush2.xpose.msra.mxu0 0.0
    %762 = vmatprep.subr.mxu0 0.0
    %763 = vmatpush2.xpose.msra.mxu0 0.0
    %764 = vmatprep.subr.mxu0 0.0
    %765 = vmatpush2.xpose.msra.mxu0 0.0
    %766 = vmatprep.subr.mxu0 0.0
    %767 = vmatpush2.xpose.msra.mxu0 0.0
    %768 = vmatprep.mubr.f32.mxu0 0.0
    %769 = vmatmul.mubr.f32.gmra.mxu0 %v702
    %v770 = vpop.f32.mrf.mxu0
    %v771 = vadd.f32 0.0, %v770
    %v772 = vpop.f32.mrf.mxu0
    %773 = vdwg.mxu0
    %v774 = vsub.f32 %v771, %v604
    %vm775 = vcmp.ge.f32.partialorder %v774, 0.0
    %v776 = vmul.f32 %v774, 0.01
    %v777 = vsel %vm775, %v774, %v776
    %vm778 = vcmask 36864
    %v779 = vsel %vm778, %v777, -inf
    %780 = vmax.xlane.f32.xlu0 %v779
    %v781 = vpop.xlane.xlu0 %780
    %v782 = vsub.f32 %v777, %v781
    %v783 = vmul.f32 %v782, 1.442695
    %v784 = vpow.pop %v783
    %v785 = vsel %vm778, %v784, 0.0
    %786 = vadd.xlane.f32.xlu0 %v785
    %v787 = vpop.xlane.xlu0 %786
    %v788 = vrcp.pop %v787
    %v789 = vmul.f32 %v784, %v788
    %v790 = vadd.f32 %v789, %v603
    %v792 = vlaneseq
    %v793 = vshrl.u32 %v792, 7
    %v794 = vsub.s32 0, %v793
    %v795 = vrot.slane %v609, %v794
    %vm797 = vcmask 39936
    %v799 = vsel %vm797, %v790, 0
    %vm801 = vcmask 1044480
    %v803 = vsel %vm801, %v608, 0
    %805 = vmatprep.subr.mxu0 0.0
    %806 = vmatpush1.msra.mxu0 0.0
    %807 = vmatprep.subr.mxu0 0.0
    %808 = vmatpush1.msra.mxu0 0.0
    %809 = vmatprep.subr.mxu0 0.0
    %810 = vmatpush1.msra.mxu0 0.0
    %811 = vmatprep.subr.mxu0 0.0
    %812 = vmatpush1.msra.mxu0 0.0
    %813 = vmatprep.subr.mxu0 0.0
    %814 = vmatpush1.msra.mxu0 0.0
    %815 = vmatprep.subr.mxu0 0.0
    %816 = vmatpush1.msra.mxu0 0.0
    %817 = vmatprep.subr.mxu0 0.0
    %818 = vmatpush1.msra.mxu0 0.0
    %819 = vmatprep.subr.mxu0 0.0
    %820 = vmatpush1.msra.mxu0 0.0
    %821 = vmatprep.subr.mxu0 0.0
    %822 = vmatpush1.msra.mxu0 0.0
    %823 = vmatprep.subr.mxu0 0.0
    %824 = vmatpush1.msra.mxu0 0.0
    %825 = vmatprep.subr.mxu0 0.0
    %826 = vmatpush1.msra.mxu0 0.0
    %827 = vmatprep.subr.mxu0 0.0
    %828 = vmatpush1.msra.mxu0 0.0
    %829 = vmatprep.subr.mxu0 0.0
    %830 = vmatpush1.msra.mxu0 0.0
    %831 = vmatprep.subr.mxu0 0.0
    %832 = vmatpush1.msra.mxu0 0.0
    %833 = vmatprep.subr.mxu0 0.0
    %834 = vmatpush1.msra.mxu0 0.0
    %835 = vmatprep.subr.mxu0 0.0
    %836 = vmatpush1.msra.mxu0 %v803
    %837 = vmatprep.subr.mxu0 0.0
    %838 = vmatpush2.msra.mxu0 0.0
    %839 = vmatprep.subr.mxu0 0.0
    %840 = vmatpush2.msra.mxu0 0.0
    %841 = vmatprep.subr.mxu0 0.0
    %842 = vmatpush2.msra.mxu0 0.0
    %843 = vmatprep.subr.mxu0 0.0
    %844 = vmatpush2.msra.mxu0 0.0
    %845 = vmatprep.subr.mxu0 0.0
    %846 = vmatpush2.msra.mxu0 0.0
    %847 = vmatprep.subr.mxu0 0.0
    %848 = vmatpush2.msra.mxu0 0.0
    %849 = vmatprep.subr.mxu0 0.0
    %850 = vmatpush2.msra.mxu0 0.0
    %851 = vmatprep.subr.mxu0 0.0
    %852 = vmatpush2.msra.mxu0 0.0
    %853 = vmatprep.subr.mxu0 0.0
    %854 = vmatpush2.msra.mxu0 0.0
    %855 = vmatprep.subr.mxu0 0.0
    %856 = vmatpush2.msra.mxu0 0.0
    %857 = vmatprep.subr.mxu0 0.0
    %858 = vmatpush2.msra.mxu0 0.0
    %859 = vmatprep.subr.mxu0 0.0
    %860 = vmatpush2.msra.mxu0 0.0
    %861 = vmatprep.subr.mxu0 0.0
    %862 = vmatpush2.msra.mxu0 0.0
    %863 = vmatprep.subr.mxu0 0.0
    %864 = vmatpush2.msra.mxu0 0.0
    %865 = vmatprep.subr.mxu0 0.0
    %866 = vmatpush2.msra.mxu0 0.0
    %867 = vmatprep.subr.mxu0 0.0
    %868 = vmatpush2.msra.mxu0 0.0
    %869 = vmatprep.mubr.f32.mxu0 0.0
    %870 = vmatmul.mubr.f32.gmra.mxu0 %v799
    %v871 = vpop.f32.mrf.mxu0
    %v872 = vadd.f32 %v795, %v871
    %v873 = vpop.f32.mrf.mxu0
    %874 = vdwg.mxu0
    %v876 = vlaneseq
    %v877 = vshrl.u32 %v876, 7
    %v878 = vsub.s32 0, %v877
    %v879 = vrot.slane %v611, %v878
    %v882 = vsel %vm797, %v500, 0
    %v885 = vsel %vm801, %v610, 0
    %887 = vmatprep.subr.mxu0 0.0
    %888 = vmatpush1.msra.mxu0 0.0
    %889 = vmatprep.subr.mxu0 0.0
    %890 = vmatpush1.msra.mxu0 0.0
    %891 = vmatprep.subr.mxu0 0.0
    %892 = vmatpush1.msra.mxu0 0.0
    %893 = vmatprep.subr.mxu0 0.0
    %894 = vmatpush1.msra.mxu0 0.0
    %895 = vmatprep.subr.mxu0 0.0
    %896 = vmatpush1.msra.mxu0 0.0
    %897 = vmatprep.subr.mxu0 0.0
    %898 = vmatpush1.msra.mxu0 0.0
    %899 = vmatprep.subr.mxu0 0.0
    %900 = vmatpush1.msra.mxu0 0.0
    %901 = vmatprep.subr.mxu0 0.0
    %902 = vmatpush1.msra.mxu0 0.0
    %903 = vmatprep.subr.mxu0 0.0
    %904 = vmatpush1.msra.mxu0 0.0
    %905 = vmatprep.subr.mxu0 0.0
    %906 = vmatpush1.msra.mxu0 0.0
    %907 = vmatprep.subr.mxu0 0.0
    %908 = vmatpush1.msra.mxu0 0.0
    %909 = vmatprep.subr.mxu0 0.0
    %910 = vmatpush1.msra.mxu0 0.0
    %911 = vmatprep.subr.mxu0 0.0
    %912 = vmatpush1.msra.mxu0 0.0
    %913 = vmatprep.subr.mxu0 0.0
    %914 = vmatpush1.msra.mxu0 0.0
    %915 = vmatprep.subr.mxu0 0.0
    %916 = vmatpush1.msra.mxu0 0.0
    %917 = vmatprep.subr.mxu0 0.0
    %918 = vmatpush1.msra.mxu0 %v885
    %919 = vmatprep.subr.mxu0 0.0
    %920 = vmatpush2.msra.mxu0 0.0
    %921 = vmatprep.subr.mxu0 0.0
    %922 = vmatpush2.msra.mxu0 0.0
    %923 = vmatprep.subr.mxu0 0.0
    %924 = vmatpush2.msra.mxu0 0.0
    %925 = vmatprep.subr.mxu0 0.0
    %926 = vmatpush2.msra.mxu0 0.0
    %927 = vmatprep.subr.mxu0 0.0
    %928 = vmatpush2.msra.mxu0 0.0
    %929 = vmatprep.subr.mxu0 0.0
    %930 = vmatpush2.msra.mxu0 0.0
    %931 = vmatprep.subr.mxu0 0.0
    %932 = vmatpush2.msra.mxu0 0.0
    %933 = vmatprep.subr.mxu0 0.0
    %934 = vmatpush2.msra.mxu0 0.0
    %935 = vmatprep.subr.mxu0 0.0
    %936 = vmatpush2.msra.mxu0 0.0
    %937 = vmatprep.subr.mxu0 0.0
    %938 = vmatpush2.msra.mxu0 0.0
    %939 = vmatprep.subr.mxu0 0.0
    %940 = vmatpush2.msra.mxu0 0.0
    %941 = vmatprep.subr.mxu0 0.0
    %942 = vmatpush2.msra.mxu0 0.0
    %943 = vmatprep.subr.mxu0 0.0
    %944 = vmatpush2.msra.mxu0 0.0
    %945 = vmatprep.subr.mxu0 0.0
    %946 = vmatpush2.msra.mxu0 0.0
    %947 = vmatprep.subr.mxu0 0.0
    %948 = vmatpush2.msra.mxu0 0.0
    %949 = vmatprep.subr.mxu0 0.0
    %950 = vmatpush2.msra.mxu0 0.0
    %951 = vmatprep.mubr.f32.mxu0 0.0
    %952 = vmatmul.mubr.f32.gmra.mxu0 %v882
    %v953 = vpop.f32.mrf.mxu0
    %v954 = vadd.f32 %v879, %v953
    %v955 = vpop.f32.mrf.mxu0
    %956 = vdwg.mxu0
    %v957 = vadd.f32 %v872, %v954
    %v958 = vmul.f32 %v957, 0.5
    %v959 = vtanh.pop %v958
    %v960 = vmul.f32 %v959, 0.5
    %v961 = vadd.f32 %v960, 0.5
    %963 = vrot.lane.b32.xlu0 %v961, 123
    %v964 = vpop.permute.xlu0 %963
    %v965 = vsel %vm797, %v964, 0
    %v968 = vsel %vm801, %v612, 0
    %970 = vmatprep.subr.mxu0 0.0
    %971 = vmatpush1.msra.mxu0 0.0
    %972 = vmatprep.subr.mxu0 0.0
    %973 = vmatpush1.msra.mxu0 0.0
    %974 = vmatprep.subr.mxu0 0.0
    %975 = vmatpush1.msra.mxu0 0.0
    %976 = vmatprep.subr.mxu0 0.0
    %977 = vmatpush1.msra.mxu0 0.0
    %978 = vmatprep.subr.mxu0 0.0
    %979 = vmatpush1.msra.mxu0 0.0
    %980 = vmatprep.subr.mxu0 0.0
    %981 = vmatpush1.msra.mxu0 0.0
    %982 = vmatprep.subr.mxu0 0.0
    %983 = vmatpush1.msra.mxu0 0.0
    %984 = vmatprep.subr.mxu0 0.0
    %985 = vmatpush1.msra.mxu0 0.0
    %986 = vmatprep.subr.mxu0 0.0
    %987 = vmatpush1.msra.mxu0 0.0
    %988 = vmatprep.subr.mxu0 0.0
    %989 = vmatpush1.msra.mxu0 0.0
    %990 = vmatprep.subr.mxu0 0.0
    %991 = vmatpush1.msra.mxu0 0.0
    %992 = vmatprep.subr.mxu0 0.0
    %993 = vmatpush1.msra.mxu0 0.0
    %994 = vmatprep.subr.mxu0 0.0
    %995 = vmatpush1.msra.mxu0 0.0
    %996 = vmatprep.subr.mxu0 0.0
    %997 = vmatpush1.msra.mxu0 0.0
    %998 = vmatprep.subr.mxu0 0.0
    %999 = vmatpush1.msra.mxu0 0.0
    %1000 = vmatprep.subr.mxu0 0.0
    %1001 = vmatpush1.msra.mxu0 %v968
    %1002 = vmatprep.subr.mxu0 0.0
    %1003 = vmatpush2.msra.mxu0 0.0
    %1004 = vmatprep.subr.mxu0 0.0
    %1005 = vmatpush2.msra.mxu0 0.0
    %1006 = vmatprep.subr.mxu0 0.0
    %1007 = vmatpush2.msra.mxu0 0.0
    %1008 = vmatprep.subr.mxu0 0.0
    %1009 = vmatpush2.msra.mxu0 0.0
    %1010 = vmatprep.subr.mxu0 0.0
    %1011 = vmatpush2.msra.mxu0 0.0
    %1012 = vmatprep.subr.mxu0 0.0
    %1013 = vmatpush2.msra.mxu0 0.0
    %1014 = vmatprep.subr.mxu0 0.0
    %1015 = vmatpush2.msra.mxu0 0.0
    %1016 = vmatprep.subr.mxu0 0.0
    %1017 = vmatpush2.msra.mxu0 0.0
    %1018 = vmatprep.subr.mxu0 0.0
    %1019 = vmatpush2.msra.mxu0 0.0
    %1020 = vmatprep.subr.mxu0 0.0
    %1021 = vmatpush2.msra.mxu0 0.0
    %1022 = vmatprep.subr.mxu0 0.0
    %1023 = vmatpush2.msra.mxu0 0.0
    %1024 = vmatprep.subr.mxu0 0.0
    %1025 = vmatpush2.msra.mxu0 0.0
    %1026 = vmatprep.subr.mxu0 0.0
    %1027 = vmatpush2.msra.mxu0 0.0
    %1028 = vmatprep.subr.mxu0 0.0
    %1029 = vmatpush2.msra.mxu0 0.0
    %1030 = vmatprep.subr.mxu0 0.0
    %1031 = vmatpush2.msra.mxu0 0.0
    %1032 = vmatprep.subr.mxu0 0.0
    %1033 = vmatpush2.msra.mxu0 0.0
    %1034 = vmatprep.mubr.f32.mxu0 0.0
    %1035 = vmatmul.mubr.f32.gmra.mxu0 %v965
    %v1036 = vpop.f32.mrf.mxu0
    %v1037 = vadd.f32 0.0, %v1036
    %v1038 = vpop.f32.mrf.mxu0
    %1039 = vdwg.mxu0
    %1041 = vrot.lane.b32.xlu0 %v1037, 10
    %v1042 = vpop.permute.xlu0 %1041
    %v1044 = vadd.f32 %v954, %v1042
    %v1046 = vlaneseq
    %v1047 = vshrl.u32 %v1046, 7
    %v1048 = vsub.s32 0, %v1047
    %v1049 = vrot.slane %v613, %v1048
    %1050 = vrot.lane.b32.xlu0 %v1049, 10
    %v1051 = vpop.permute.xlu0 %1050
    %v1053 = vadd.f32 %v1044, %v1051
    %v1054 = vtanh.pop %v1053
    %v1055 = vsub.f32 1.0, %v961
    %v1056 = vmul.f32 %v1055, %v790
    %1058 = vrot.lane.b32.xlu0 %v1054, 118
    %v1059 = vpop.permute.xlu0 %1058
    %v1061 = vmul.f32 %v961, %v1059
    %v1062 = vadd.f32 %v1056, %v1061
    %v1063 = vsub.f32 %v1062, %v604
    %v1064 = vsel %vm778, %v1063, -inf
    %1065 = vmax.xlane.f32.xlu0 %v1064
    %v1066 = vpop.xlane.xlu0 %1065
    %v1067 = vsub.f32 %v1063, %v1066
    %v1068 = vmul.f32 %v1067, 1.442695
    %v1069 = vpow.pop %v1068
    %v1070 = vsel %vm778, %v1069, 0.0
    %1071 = vadd.xlane.f32.xlu0 %v1070
    %v1072 = vpop.xlane.xlu0 %1071
    %v1073 = vrcp.pop %v1072
    %v1074 = vmul.f32 %v1069, %v1073
    %v1075 = vadd.f32 %v1074, %v603
    %v1077 = vsel %vm797, %v1075, 0
    %v1079 = vsel %vm801, %v698, 0
    %1081 = vmatprep.subr.mxu0 0.0
    %1082 = vmatpush1.msra.mxu0 0.0
    %1083 = vmatprep.subr.mxu0 0.0
    %1084 = vmatpush1.msra.mxu0 0.0
    %1085 = vmatprep.subr.mxu0 0.0
    %1086 = vmatpush1.msra.mxu0 0.0
    %1087 = vmatprep.subr.mxu0 0.0
    %1088 = vmatpush1.msra.mxu0 0.0
    %1089 = vmatprep.subr.mxu0 0.0
    %1090 = vmatpush1.msra.mxu0 0.0
    %1091 = vmatprep.subr.mxu0 0.0
    %1092 = vmatpush1.msra.mxu0 0.0
    %1093 = vmatprep.subr.mxu0 0.0
    %1094 = vmatpush1.msra.mxu0 0.0
    %1095 = vmatprep.subr.mxu0 0.0
    %1096 = vmatpush1.msra.mxu0 0.0
    %1097 = vmatprep.subr.mxu0 0.0
    %1098 = vmatpush1.msra.mxu0 0.0
    %1099 = vmatprep.subr.mxu0 0.0
    %1100 = vmatpush1.msra.mxu0 0.0
    %1101 = vmatprep.subr.mxu0 0.0
    %1102 = vmatpush1.msra.mxu0 0.0
    %1103 = vmatprep.subr.mxu0 0.0
    %1104 = vmatpush1.msra.mxu0 0.0
    %1105 = vmatprep.subr.mxu0 0.0
    %1106 = vmatpush1.msra.mxu0 0.0
    %1107 = vmatprep.subr.mxu0 0.0
    %1108 = vmatpush1.msra.mxu0 0.0
    %1109 = vmatprep.subr.mxu0 0.0
    %1110 = vmatpush1.msra.mxu0 0.0
    %1111 = vmatprep.subr.mxu0 0.0
    %1112 = vmatpush1.msra.mxu0 %v1079
    %1113 = vmatprep.subr.mxu0 0.0
    %1114 = vmatpush2.msra.mxu0 0.0
    %1115 = vmatprep.subr.mxu0 0.0
    %1116 = vmatpush2.msra.mxu0 0.0
    %1117 = vmatprep.subr.mxu0 0.0
    %1118 = vmatpush2.msra.mxu0 0.0
    %1119 = vmatprep.subr.mxu0 0.0
    %1120 = vmatpush2.msra.mxu0 0.0
    %1121 = vmatprep.subr.mxu0 0.0
    %1122 = vmatpush2.msra.mxu0 0.0
    %1123 = vmatprep.subr.mxu0 0.0
    %1124 = vmatpush2.msra.mxu0 0.0
    %1125 = vmatprep.subr.mxu0 0.0
    %1126 = vmatpush2.msra.mxu0 0.0
    %1127 = vmatprep.subr.mxu0 0.0
    %1128 = vmatpush2.msra.mxu0 0.0
    %1129 = vmatprep.subr.mxu0 0.0
    %1130 = vmatpush2.msra.mxu0 0.0
    %1131 = vmatprep.subr.mxu0 0.0
    %1132 = vmatpush2.msra.mxu0 0.0
    %1133 = vmatprep.subr.mxu0 0.0
    %1134 = vmatpush2.msra.mxu0 0.0
    %1135 = vmatprep.subr.mxu0 0.0
    %1136 = vmatpush2.msra.mxu0 0.0
    %1137 = vmatprep.subr.mxu0 0.0
    %1138 = vmatpush2.msra.mxu0 0.0
    %1139 = vmatprep.subr.mxu0 0.0
    %1140 = vmatpush2.msra.mxu0 0.0
    %1141 = vmatprep.subr.mxu0 0.0
    %1142 = vmatpush2.msra.mxu0 0.0
    %1143 = vmatprep.subr.mxu0 0.0
    %1144 = vmatpush2.msra.mxu0 0.0
    %1145 = vmatprep.mubr.f32.mxu0 0.0
    %1146 = vmatmul.mubr.f32.gmra.mxu0 %v1077
    %v1147 = vpop.f32.mrf.mxu0
    %v1148 = vadd.f32 0.0, %v1147
    %v1149 = vpop.f32.mrf.mxu0
    %1150 = vdwg.mxu0
    %v1152 = vlaneseq
    %v1153 = vshrl.u32 %v1152, 7
    %v1154 = vsub.s32 0, %v1153
    %v1155 = vrot.slane %v617, %v1154
    %v1158 = vsel %vm429, %v1148, 0
    %vm1160 = vcmask 1041408
    %v1162 = vsel %vm1160, %v616, 0
    %1164 = vmatprep.subr.mxu0 0.0
    %1165 = vmatpush1.msra.mxu0 0.0
    %1166 = vmatprep.subr.mxu0 0.0
    %1167 = vmatpush1.msra.mxu0 0.0
    %1168 = vmatprep.subr.mxu0 0.0
    %1169 = vmatpush1.msra.mxu0 0.0
    %1170 = vmatprep.subr.mxu0 0.0
    %1171 = vmatpush1.msra.mxu0 0.0
    %1172 = vmatprep.subr.mxu0 0.0
    %1173 = vmatpush1.msra.mxu0 0.0
    %1174 = vmatprep.subr.mxu0 0.0
    %1175 = vmatpush1.msra.mxu0 0.0
    %1176 = vmatprep.subr.mxu0 0.0
    %1177 = vmatpush1.msra.mxu0 0.0
    %1178 = vmatprep.subr.mxu0 0.0
    %1179 = vmatpush1.msra.mxu0 0.0
    %1180 = vmatprep.subr.mxu0 0.0
    %1181 = vmatpush1.msra.mxu0 0.0
    %1182 = vmatprep.subr.mxu0 0.0
    %1183 = vmatpush1.msra.mxu0 0.0
    %1184 = vmatprep.subr.mxu0 0.0
    %1185 = vmatpush1.msra.mxu0 0.0
    %1186 = vmatprep.subr.mxu0 0.0
    %1187 = vmatpush1.msra.mxu0 0.0
    %1188 = vmatprep.subr.mxu0 0.0
    %1189 = vmatpush1.msra.mxu0 0.0
    %1190 = vmatprep.subr.mxu0 0.0
    %1191 = vmatpush1.msra.mxu0 %v1162
    %1192 = vmatprep.subr.mxu0 0.0
    %1193 = vmatpush1.msra.mxu0 %v615
    %1194 = vmatprep.subr.mxu0 0.0
    %1195 = vmatpush1.msra.mxu0 %v614
    %1196 = vmatprep.subr.mxu0 0.0
    %1197 = vmatpush2.msra.mxu0 0.0
    %1198 = vmatprep.subr.mxu0 0.0
    %1199 = vmatpush2.msra.mxu0 0.0
    %1200 = vmatprep.subr.mxu0 0.0
    %1201 = vmatpush2.msra.mxu0 0.0
    %1202 = vmatprep.subr.mxu0 0.0
    %1203 = vmatpush2.msra.mxu0 0.0
    %1204 = vmatprep.subr.mxu0 0.0
    %1205 = vmatpush2.msra.mxu0 0.0
    %1206 = vmatprep.subr.mxu0 0.0
    %1207 = vmatpush2.msra.mxu0 0.0
    %1208 = vmatprep.subr.mxu0 0.0
    %1209 = vmatpush2.msra.mxu0 0.0
    %1210 = vmatprep.subr.mxu0 0.0
    %1211 = vmatpush2.msra.mxu0 0.0
    %1212 = vmatprep.subr.mxu0 0.0
    %1213 = vmatpush2.msra.mxu0 0.0
    %1214 = vmatprep.subr.mxu0 0.0
    %1215 = vmatpush2.msra.mxu0 0.0
    %1216 = vmatprep.subr.mxu0 0.0
    %1217 = vmatpush2.msra.mxu0 0.0
    %1218 = vmatprep.subr.mxu0 0.0
    %1219 = vmatpush2.msra.mxu0 0.0
    %1220 = vmatprep.subr.mxu0 0.0
    %1221 = vmatpush2.msra.mxu0 0.0
    %1222 = vmatprep.subr.mxu0 0.0
    %1223 = vmatpush2.msra.mxu0 0.0
    %1224 = vmatprep.subr.mxu0 0.0
    %1225 = vmatpush2.msra.mxu0 0.0
    %1226 = vmatprep.subr.mxu0 0.0
    %1227 = vmatpush2.msra.mxu0 0.0
    %1228 = vmatprep.mubr.f32.mxu0 0.0
    %1229 = vmatmul.mubr.f32.gmra.mxu0 %v1158
    %v1230 = vpop.f32.mrf.mxu0
    %v1231 = vadd.f32 %v1155, %v1230
    %v1232 = vpop.f32.mrf.mxu0
    %1233 = vdwg.mxu0
    %vm1234 = vcmp.ge.f32.partialorder %v1231, 0.0
    %v1235 = vmul.f32 %v1231, 0.01
    %v1236 = vsel %vm1234, %v1231, %v1235
    %1237 = vrot.lane.b32.xlu0 %v415, 119
    %v1238 = vpop.permute.xlu0 %1237
    %v1239 = vsel %vm624, %v1238, 0
    %1241 = vmatprep.subr.mxu0 0.0
    %1242 = vmatpush1.msra.mxu0 0.0
    %1243 = vmatprep.subr.mxu0 0.0
    %1244 = vmatpush1.msra.mxu0 0.0
    %1245 = vmatprep.subr.mxu0 0.0
    %1246 = vmatpush1.msra.mxu0 0.0
    %1247 = vmatprep.subr.mxu0 0.0
    %1248 = vmatpush1.msra.mxu0 0.0
    %1249 = vmatprep.subr.mxu0 0.0
    %1250 = vmatpush1.msra.mxu0 0.0
    %1251 = vmatprep.subr.mxu0 0.0
    %1252 = vmatpush1.msra.mxu0 0.0
    %1253 = vmatprep.subr.mxu0 0.0
    %1254 = vmatpush1.msra.mxu0 0.0
    %1255 = vmatprep.subr.mxu0 0.0
    %1256 = vmatpush1.msra.mxu0 0.0
    %1257 = vmatprep.subr.mxu0 0.0
    %1258 = vmatpush1.msra.mxu0 0.0
    %1259 = vmatprep.subr.mxu0 0.0
    %1260 = vmatpush1.msra.mxu0 0.0
    %1261 = vmatprep.subr.mxu0 0.0
    %1262 = vmatpush1.msra.mxu0 0.0
    %1263 = vmatprep.subr.mxu0 0.0
    %1264 = vmatpush1.msra.mxu0 0.0
    %1265 = vmatprep.subr.mxu0 0.0
    %1266 = vmatpush1.msra.mxu0 0.0
    %1267 = vmatprep.subr.mxu0 0.0
    %1268 = vmatpush1.msra.mxu0 0.0
    %1269 = vmatprep.subr.mxu0 0.0
    %1270 = vmatpush1.msra.mxu0 %v629
    %1271 = vmatprep.subr.mxu0 0.0
    %1272 = vmatpush1.msra.mxu0 %v605
    %1273 = vmatprep.subr.mxu0 0.0
    %1274 = vmatpush2.msra.mxu0 0.0
    %1275 = vmatprep.subr.mxu0 0.0
    %1276 = vmatpush2.msra.mxu0 0.0
    %1277 = vmatprep.subr.mxu0 0.0
    %1278 = vmatpush2.msra.mxu0 0.0
    %1279 = vmatprep.subr.mxu0 0.0
    %1280 = vmatpush2.msra.mxu0 0.0
    %1281 = vmatprep.subr.mxu0 0.0
    %1282 = vmatpush2.msra.mxu0 0.0
    %1283 = vmatprep.subr.mxu0 0.0
    %1284 = vmatpush2.msra.mxu0 0.0
    %1285 = vmatprep.subr.mxu0 0.0
    %1286 = vmatpush2.msra.mxu0 0.0
    %1287 = vmatprep.subr.mxu0 0.0
    %1288 = vmatpush2.msra.mxu0 0.0
    %1289 = vmatprep.subr.mxu0 0.0
    %1290 = vmatpush2.msra.mxu0 0.0
    %1291 = vmatprep.subr.mxu0 0.0
    %1292 = vmatpush2.msra.mxu0 0.0
    %1293 = vmatprep.subr.mxu0 0.0
    %1294 = vmatpush2.msra.mxu0 0.0
    %1295 = vmatprep.subr.mxu0 0.0
    %1296 = vmatpush2.msra.mxu0 0.0
    %1297 = vmatprep.subr.mxu0 0.0
    %1298 = vmatpush2.msra.mxu0 0.0
    %1299 = vmatprep.subr.mxu0 0.0
    %1300 = vmatpush2.msra.mxu0 0.0
    %1301 = vmatprep.subr.mxu0 0.0
    %1302 = vmatpush2.msra.mxu0 0.0
    %1303 = vmatprep.subr.mxu0 0.0
    %1304 = vmatpush2.msra.mxu0 0.0
    %1305 = vmatprep.mubr.f32.mxu0 0.0
    %1306 = vmatmul.mubr.f32.gmra.mxu0 %v1239
    %v1307 = vpop.f32.mrf.mxu0
    %v1308 = vadd.f32 %v622, %v1307
    %v1309 = vpop.f32.mrf.mxu0
    %1310 = vdwg.mxu0
    %v1312 = vsel %vm429, %v1308, 0
    %1314 = vmatprep.subr.mxu0 0.0
    %1315 = vmatpush1.xpose.msra.mxu0 0.0
    %1316 = vmatprep.subr.mxu0 0.0
    %1317 = vmatpush1.xpose.msra.mxu0 0.0
    %1318 = vmatprep.subr.mxu0 0.0
    %1319 = vmatpush1.xpose.msra.mxu0 0.0
    %1320 = vmatprep.subr.mxu0 0.0
    %1321 = vmatpush1.xpose.msra.mxu0 0.0
    %1322 = vmatprep.subr.mxu0 0.0
    %1323 = vmatpush1.xpose.msra.mxu0 0.0
    %1324 = vmatprep.subr.mxu0 0.0
    %1325 = vmatpush1.xpose.msra.mxu0 0.0
    %1326 = vmatprep.subr.mxu0 0.0
    %1327 = vmatpush1.xpose.msra.mxu0 0.0
    %1328 = vmatprep.subr.mxu0 0.0
    %1329 = vmatpush1.xpose.msra.mxu0 0.0
    %1330 = vmatprep.subr.mxu0 0.0
    %1331 = vmatpush1.xpose.msra.mxu0 0.0
    %1332 = vmatprep.subr.mxu0 0.0
    %1333 = vmatpush1.xpose.msra.mxu0 0.0
    %1334 = vmatprep.subr.mxu0 0.0
    %1335 = vmatpush1.xpose.msra.mxu0 0.0
    %1336 = vmatprep.subr.mxu0 0.0
    %1337 = vmatpush1.xpose.msra.mxu0 0.0
    %1338 = vmatprep.subr.mxu0 0.0
    %1339 = vmatpush1.xpose.msra.mxu0 0.0
    %1340 = vmatprep.subr.mxu0 0.0
    %1341 = vmatpush1.xpose.msra.mxu0 0.0
    %1342 = vmatprep.subr.mxu0 0.0
    %1343 = vmatpush1.xpose.msra.mxu0 0.0
    %1344 = vmatprep.subr.mxu0 0.0
    %1345 = vmatpush1.xpose.msra.mxu0 %v1312
    %1346 = vmatprep.subr.mxu0 0.0
    %1347 = vmatpush2.xpose.msra.mxu0 0.0
    %1348 = vmatprep.subr.mxu0 0.0
    %1349 = vmatpush2.xpose.msra.mxu0 0.0
    %1350 = vmatprep.subr.mxu0 0.0
    %1351 = vmatpush2.xpose.msra.mxu0 0.0
    %1352 = vmatprep.subr.mxu0 0.0
    %1353 = vmatpush2.xpose.msra.mxu0 0.0
    %1354 = vmatprep.subr.mxu0 0.0
    %1355 = vmatpush2.xpose.msra.mxu0 0.0
    %1356 = vmatprep.subr.mxu0 0.0
    %1357 = vmatpush2.xpose.msra.mxu0 0.0
    %1358 = vmatprep.subr.mxu0 0.0
    %1359 = vmatpush2.xpose.msra.mxu0 0.0
    %1360 = vmatprep.subr.mxu0 0.0
    %1361 = vmatpush2.xpose.msra.mxu0 0.0
    %1362 = vmatprep.subr.mxu0 0.0
    %1363 = vmatpush2.xpose.msra.mxu0 0.0
    %1364 = vmatprep.subr.mxu0 0.0
    %1365 = vmatpush2.xpose.msra.mxu0 0.0
    %1366 = vmatprep.subr.mxu0 0.0
    %1367 = vmatpush2.xpose.msra.mxu0 0.0
    %1368 = vmatprep.subr.mxu0 0.0
    %1369 = vmatpush2.xpose.msra.mxu0 0.0
    %1370 = vmatprep.subr.mxu0 0.0
    %1371 = vmatpush2.xpose.msra.mxu0 0.0
    %1372 = vmatprep.subr.mxu0 0.0
    %1373 = vmatpush2.xpose.msra.mxu0 0.0
    %1374 = vmatprep.subr.mxu0 0.0
    %1375 = vmatpush2.xpose.msra.mxu0 0.0
    %1376 = vmatprep.subr.mxu0 0.0
    %1377 = vmatpush2.xpose.msra.mxu0 0.0
    %1378 = vmatprep.mubr.f32.mxu0 0.0
    %1379 = vmatmul.mubr.f32.gmra.mxu0 %v1312
    %v1380 = vpop.f32.mrf.mxu0
    %v1381 = vadd.f32 0.0, %v1380
    %v1382 = vpop.f32.mrf.mxu0
    %1383 = vdwg.mxu0
    %v1384 = vsub.f32 %v1381, %v604
    %vm1385 = vcmp.ge.f32.partialorder %v1384, 0.0
    %v1386 = vmul.f32 %v1384, 0.01
    %v1387 = vsel %vm1385, %v1384, %v1386
    %v1388 = vsel %vm778, %v1387, -inf
    %1389 = vmax.xlane.f32.xlu0 %v1388
    %v1390 = vpop.xlane.xlu0 %1389
    %v1391 = vsub.f32 %v1387, %v1390
    %v1392 = vmul.f32 %v1391, 1.442695
    %v1393 = vpow.pop %v1392
    %v1394 = vsel %vm778, %v1393, 0.0
    %1395 = vadd.xlane.f32.xlu0 %v1394
    %v1396 = vpop.xlane.xlu0 %1395
    %v1397 = vrcp.pop %v1396
    %v1398 = vmul.f32 %v1393, %v1397
    %v1399 = vadd.f32 %v1398, %v603
    %v1401 = vsel %vm797, %v1399, 0
    %1403 = vmatprep.subr.mxu0 0.0
    %1404 = vmatpush1.msra.mxu0 0.0
    %1405 = vmatprep.subr.mxu0 0.0
    %1406 = vmatpush1.msra.mxu0 0.0
    %1407 = vmatprep.subr.mxu0 0.0
    %1408 = vmatpush1.msra.mxu0 0.0
    %1409 = vmatprep.subr.mxu0 0.0
    %1410 = vmatpush1.msra.mxu0 0.0
    %1411 = vmatprep.subr.mxu0 0.0
    %1412 = vmatpush1.msra.mxu0 0.0
    %1413 = vmatprep.subr.mxu0 0.0
    %1414 = vmatpush1.msra.mxu0 0.0
    %1415 = vmatprep.subr.mxu0 0.0
    %1416 = vmatpush1.msra.mxu0 0.0
    %1417 = vmatprep.subr.mxu0 0.0
    %1418 = vmatpush1.msra.mxu0 0.0
    %1419 = vmatprep.subr.mxu0 0.0
    %1420 = vmatpush1.msra.mxu0 0.0
    %1421 = vmatprep.subr.mxu0 0.0
    %1422 = vmatpush1.msra.mxu0 0.0
    %1423 = vmatprep.subr.mxu0 0.0
    %1424 = vmatpush1.msra.mxu0 0.0
    %1425 = vmatprep.subr.mxu0 0.0
    %1426 = vmatpush1.msra.mxu0 0.0
    %1427 = vmatprep.subr.mxu0 0.0
    %1428 = vmatpush1.msra.mxu0 0.0
    %1429 = vmatprep.subr.mxu0 0.0
    %1430 = vmatpush1.msra.mxu0 0.0
    %1431 = vmatprep.subr.mxu0 0.0
    %1432 = vmatpush1.msra.mxu0 0.0
    %1433 = vmatprep.subr.mxu0 0.0
    %1434 = vmatpush1.msra.mxu0 %v803
    %1435 = vmatprep.subr.mxu0 0.0
    %1436 = vmatpush2.msra.mxu0 0.0
    %1437 = vmatprep.subr.mxu0 0.0
    %1438 = vmatpush2.msra.mxu0 0.0
    %1439 = vmatprep.subr.mxu0 0.0
    %1440 = vmatpush2.msra.mxu0 0.0
    %1441 = vmatprep.subr.mxu0 0.0
    %1442 = vmatpush2.msra.mxu0 0.0
    %1443 = vmatprep.subr.mxu0 0.0
    %1444 = vmatpush2.msra.mxu0 0.0
    %1445 = vmatprep.subr.mxu0 0.0
    %1446 = vmatpush2.msra.mxu0 0.0
    %1447 = vmatprep.subr.mxu0 0.0
    %1448 = vmatpush2.msra.mxu0 0.0
    %1449 = vmatprep.subr.mxu0 0.0
    %1450 = vmatpush2.msra.mxu0 0.0
    %1451 = vmatprep.subr.mxu0 0.0
    %1452 = vmatpush2.msra.mxu0 0.0
    %1453 = vmatprep.subr.mxu0 0.0
    %1454 = vmatpush2.msra.mxu0 0.0
    %1455 = vmatprep.subr.mxu0 0.0
    %1456 = vmatpush2.msra.mxu0 0.0
    %1457 = vmatprep.subr.mxu0 0.0
    %1458 = vmatpush2.msra.mxu0 0.0
    %1459 = vmatprep.subr.mxu0 0.0
    %1460 = vmatpush2.msra.mxu0 0.0
    %1461 = vmatprep.subr.mxu0 0.0
    %1462 = vmatpush2.msra.mxu0 0.0
    %1463 = vmatprep.subr.mxu0 0.0
    %1464 = vmatpush2.msra.mxu0 0.0
    %1465 = vmatprep.subr.mxu0 0.0
    %1466 = vmatpush2.msra.mxu0 0.0
    %1467 = vmatprep.mubr.f32.mxu0 0.0
    %1468 = vmatmul.mubr.f32.gmra.mxu0 %v1401
    %v1469 = vpop.f32.mrf.mxu0
    %v1470 = vadd.f32 %v795, %v1469
    %v1471 = vpop.f32.mrf.mxu0
    %1472 = vdwg.mxu0
    %v1473 = vadd.f32 %v1470, %v954
    %v1474 = vmul.f32 %v1473, 0.5
    %v1475 = vtanh.pop %v1474
    %v1476 = vmul.f32 %v1475, 0.5
    %v1477 = vadd.f32 %v1476, 0.5
    %1479 = vrot.lane.b32.xlu0 %v1477, 123
    %v1480 = vpop.permute.xlu0 %1479
    %v1481 = vsel %vm797, %v1480, 0
    %1483 = vmatprep.subr.mxu0 0.0
    %1484 = vmatpush1.msra.mxu0 0.0
    %1485 = vmatprep.subr.mxu0 0.0
    %1486 = vmatpush1.msra.mxu0 0.0
    %1487 = vmatprep.subr.mxu0 0.0
    %1488 = vmatpush1.msra.mxu0 0.0
    %1489 = vmatprep.subr.mxu0 0.0
    %1490 = vmatpush1.msra.mxu0 0.0
    %1491 = vmatprep.subr.mxu0 0.0
    %1492 = vmatpush1.msra.mxu0 0.0
    %1493 = vmatprep.subr.mxu0 0.0
    %1494 = vmatpush1.msra.mxu0 0.0
    %1495 = vmatprep.subr.mxu0 0.0
    %1496 = vmatpush1.msra.mxu0 0.0
    %1497 = vmatprep.subr.mxu0 0.0
    %1498 = vmatpush1.msra.mxu0 0.0
    %1499 = vmatprep.subr.mxu0 0.0
    %1500 = vmatpush1.msra.mxu0 0.0
    %1501 = vmatprep.subr.mxu0 0.0
    %1502 = vmatpush1.msra.mxu0 0.0
    %1503 = vmatprep.subr.mxu0 0.0
    %1504 = vmatpush1.msra.mxu0 0.0
    %1505 = vmatprep.subr.mxu0 0.0
    %1506 = vmatpush1.msra.mxu0 0.0
    %1507 = vmatprep.subr.mxu0 0.0
    %1508 = vmatpush1.msra.mxu0 0.0
    %1509 = vmatprep.subr.mxu0 0.0
    %1510 = vmatpush1.msra.mxu0 0.0
    %1511 = vmatprep.subr.mxu0 0.0
    %1512 = vmatpush1.msra.mxu0 0.0
    %1513 = vmatprep.subr.mxu0 0.0
    %1514 = vmatpush1.msra.mxu0 %v968
    %1515 = vmatprep.subr.mxu0 0.0
    %1516 = vmatpush2.msra.mxu0 0.0
    %1517 = vmatprep.subr.mxu0 0.0
    %1518 = vmatpush2.msra.mxu0 0.0
    %1519 = vmatprep.subr.mxu0 0.0
    %1520 = vmatpush2.msra.mxu0 0.0
    %1521 = vmatprep.subr.mxu0 0.0
    %1522 = vmatpush2.msra.mxu0 0.0
    %1523 = vmatprep.subr.mxu0 0.0
    %1524 = vmatpush2.msra.mxu0 0.0
    %1525 = vmatprep.subr.mxu0 0.0
    %1526 = vmatpush2.msra.mxu0 0.0
    %1527 = vmatprep.subr.mxu0 0.0
    %1528 = vmatpush2.msra.mxu0 0.0
    %1529 = vmatprep.subr.mxu0 0.0
    %1530 = vmatpush2.msra.mxu0 0.0
    %1531 = vmatprep.subr.mxu0 0.0
    %1532 = vmatpush2.msra.mxu0 0.0
    %1533 = vmatprep.subr.mxu0 0.0
    %1534 = vmatpush2.msra.mxu0 0.0
    %1535 = vmatprep.subr.mxu0 0.0
    %1536 = vmatpush2.msra.mxu0 0.0
    %1537 = vmatprep.subr.mxu0 0.0
    %1538 = vmatpush2.msra.mxu0 0.0
    %1539 = vmatprep.subr.mxu0 0.0
    %1540 = vmatpush2.msra.mxu0 0.0
    %1541 = vmatprep.subr.mxu0 0.0
    %1542 = vmatpush2.msra.mxu0 0.0
    %1543 = vmatprep.subr.mxu0 0.0
    %1544 = vmatpush2.msra.mxu0 0.0
    %1545 = vmatprep.subr.mxu0 0.0
    %1546 = vmatpush2.msra.mxu0 0.0
    %1547 = vmatprep.mubr.f32.mxu0 0.0
    %1548 = vmatmul.mubr.f32.gmra.mxu0 %v1481
    %v1549 = vpop.f32.mrf.mxu0
    %v1550 = vadd.f32 0.0, %v1549
    %v1551 = vpop.f32.mrf.mxu0
    %1552 = vdwg.mxu0
    %1554 = vrot.lane.b32.xlu0 %v1550, 10
    %v1555 = vpop.permute.xlu0 %1554
    %v1557 = vadd.f32 %v954, %v1555
    %v1558 = vadd.f32 %v1557, %v1051
    %v1559 = vtanh.pop %v1558
    %v1560 = vsub.f32 1.0, %v1477
    %v1561 = vmul.f32 %v1560, %v1399
    %1563 = vrot.lane.b32.xlu0 %v1559, 118
    %v1564 = vpop.permute.xlu0 %1563
    %v1566 = vmul.f32 %v1477, %v1564
    %v1567 = vadd.f32 %v1561, %v1566
    %v1568 = vsub.f32 %v1567, %v604
    %v1569 = vsel %vm778, %v1568, -inf
    %1570 = vmax.xlane.f32.xlu0 %v1569
    %v1571 = vpop.xlane.xlu0 %1570
    %v1572 = vsub.f32 %v1568, %v1571
    %v1573 = vmul.f32 %v1572, 1.442695
    %v1574 = vpow.pop %v1573
    %v1575 = vsel %vm778, %v1574, 0.0
    %1576 = vadd.xlane.f32.xlu0 %v1575
    %v1577 = vpop.xlane.xlu0 %1576
    %v1578 = vrcp.pop %v1577
    %v1579 = vmul.f32 %v1574, %v1578
    %v1580 = vadd.f32 %v1579, %v603
    %v1582 = vsel %vm797, %v1580, 0
    %v1584 = vsel %vm801, %v1308, 0
    %1586 = vmatprep.subr.mxu0 0.0
    %1587 = vmatpush1.msra.mxu0 0.0
    %1588 = vmatprep.subr.mxu0 0.0
    %1589 = vmatpush1.msra.mxu0 0.0
    %1590 = vmatprep.subr.mxu0 0.0
    %1591 = vmatpush1.msra.mxu0 0.0
    %1592 = vmatprep.subr.mxu0 0.0
    %1593 = vmatpush1.msra.mxu0 0.0
    %1594 = vmatprep.subr.mxu0 0.0
    %1595 = vmatpush1.msra.mxu0 0.0
    %1596 = vmatprep.subr.mxu0 0.0
    %1597 = vmatpush1.msra.mxu0 0.0
    %1598 = vmatprep.subr.mxu0 0.0
    %1599 = vmatpush1.msra.mxu0 0.0
    %1600 = vmatprep.subr.mxu0 0.0
    %1601 = vmatpush1.msra.mxu0 0.0
    %1602 = vmatprep.subr.mxu0 0.0
    %1603 = vmatpush1.msra.mxu0 0.0
    %1604 = vmatprep.subr.mxu0 0.0
    %1605 = vmatpush1.msra.mxu0 0.0
    %1606 = vmatprep.subr.mxu0 0.0
    %1607 = vmatpush1.msra.mxu0 0.0
    %1608 = vmatprep.subr.mxu0 0.0
    %1609 = vmatpush1.msra.mxu0 0.0
    %1610 = vmatprep.subr.mxu0 0.0
    %1611 = vmatpush1.msra.mxu0 0.0
    %1612 = vmatprep.subr.mxu0 0.0
    %1613 = vmatpush1.msra.mxu0 0.0
    %1614 = vmatprep.subr.mxu0 0.0
    %1615 = vmatpush1.msra.mxu0 0.0
    %1616 = vmatprep.subr.mxu0 0.0
    %1617 = vmatpush1.msra.mxu0 %v1584
    %1618 = vmatprep.subr.mxu0 0.0
    %1619 = vmatpush2.msra.mxu0 0.0
    %1620 = vmatprep.subr.mxu0 0.0
    %1621 = vmatpush2.msra.mxu0 0.0
    %1622 = vmatprep.subr.mxu0 0.0
    %1623 = vmatpush2.msra.mxu0 0.0
    %1624 = vmatprep.subr.mxu0 0.0
    %1625 = vmatpush2.msra.mxu0 0.0
    %1626 = vmatprep.subr.mxu0 0.0
    %1627 = vmatpush2.msra.mxu0 0.0
    %1628 = vmatprep.subr.mxu0 0.0
    %1629 = vmatpush2.msra.mxu0 0.0
    %1630 = vmatprep.subr.mxu0 0.0
    %1631 = vmatpush2.msra.mxu0 0.0
    %1632 = vmatprep.subr.mxu0 0.0
    %1633 = vmatpush2.msra.mxu0 0.0
    %1634 = vmatprep.subr.mxu0 0.0
    %1635 = vmatpush2.msra.mxu0 0.0
    %1636 = vmatprep.subr.mxu0 0.0
    %1637 = vmatpush2.msra.mxu0 0.0
    %1638 = vmatprep.subr.mxu0 0.0
    %1639 = vmatpush2.msra.mxu0 0.0
    %1640 = vmatprep.subr.mxu0 0.0
    %1641 = vmatpush2.msra.mxu0 0.0
    %1642 = vmatprep.subr.mxu0 0.0
    %1643 = vmatpush2.msra.mxu0 0.0
    %1644 = vmatprep.subr.mxu0 0.0
    %1645 = vmatpush2.msra.mxu0 0.0
    %1646 = vmatprep.subr.mxu0 0.0
    %1647 = vmatpush2.msra.mxu0 0.0
    %1648 = vmatprep.subr.mxu0 0.0
    %1649 = vmatpush2.msra.mxu0 0.0
    %1650 = vmatprep.mubr.f32.mxu0 0.0
    %1651 = vmatmul.mubr.f32.gmra.mxu0 %v1582
    %v1652 = vpop.f32.mrf.mxu0
    %v1653 = vadd.f32 0.0, %v1652
    %v1654 = vpop.f32.mrf.mxu0
    %1655 = vdwg.mxu0
    %v1657 = vsel %vm429, %v1653, 0
    %1659 = vmatprep.subr.mxu0 0.0
    %1660 = vmatpush1.msra.mxu0 0.0
    %1661 = vmatprep.subr.mxu0 0.0
    %1662 = vmatpush1.msra.mxu0 0.0
    %1663 = vmatprep.subr.mxu0 0.0
    %1664 = vmatpush1.msra.mxu0 0.0
    %1665 = vmatprep.subr.mxu0 0.0
    %1666 = vmatpush1.msra.mxu0 0.0
    %1667 = vmatprep.subr.mxu0 0.0
    %1668 = vmatpush1.msra.mxu0 0.0
    %1669 = vmatprep.subr.mxu0 0.0
    %1670 = vmatpush1.msra.mxu0 0.0
    %1671 = vmatprep.subr.mxu0 0.0
    %1672 = vmatpush1.msra.mxu0 0.0
    %1673 = vmatprep.subr.mxu0 0.0
    %1674 = vmatpush1.msra.mxu0 0.0
    %1675 = vmatprep.subr.mxu0 0.0
    %1676 = vmatpush1.msra.mxu0 0.0
    %1677 = vmatprep.subr.mxu0 0.0
    %1678 = vmatpush1.msra.mxu0 0.0
    %1679 = vmatprep.subr.mxu0 0.0
    %1680 = vmatpush1.msra.mxu0 0.0
    %1681 = vmatprep.subr.mxu0 0.0
    %1682 = vmatpush1.msra.mxu0 0.0
    %1683 = vmatprep.subr.mxu0 0.0
    %1684 = vmatpush1.msra.mxu0 0.0
    %1685 = vmatprep.subr.mxu0 0.0
    %1686 = vmatpush1.msra.mxu0 %v1162
    %1687 = vmatprep.subr.mxu0 0.0
    %1688 = vmatpush1.msra.mxu0 %v615
    %1689 = vmatprep.subr.mxu0 0.0
    %1690 = vmatpush1.msra.mxu0 %v614
    %1691 = vmatprep.subr.mxu0 0.0
    %1692 = vmatpush2.msra.mxu0 0.0
    %1693 = vmatprep.subr.mxu0 0.0
    %1694 = vmatpush2.msra.mxu0 0.0
    %1695 = vmatprep.subr.mxu0 0.0
    %1696 = vmatpush2.msra.mxu0 0.0
    %1697 = vmatprep.subr.mxu0 0.0
    %1698 = vmatpush2.msra.mxu0 0.0
    %1699 = vmatprep.subr.mxu0 0.0
    %1700 = vmatpush2.msra.mxu0 0.0
    %1701 = vmatprep.subr.mxu0 0.0
    %1702 = vmatpush2.msra.mxu0 0.0
    %1703 = vmatprep.subr.mxu0 0.0
    %1704 = vmatpush2.msra.mxu0 0.0
    %1705 = vmatprep.subr.mxu0 0.0
    %1706 = vmatpush2.msra.mxu0 0.0
    %1707 = vmatprep.subr.mxu0 0.0
    %1708 = vmatpush2.msra.mxu0 0.0
    %1709 = vmatprep.subr.mxu0 0.0
    %1710 = vmatpush2.msra.mxu0 0.0
    %1711 = vmatprep.subr.mxu0 0.0
    %1712 = vmatpush2.msra.mxu0 0.0
    %1713 = vmatprep.subr.mxu0 0.0
    %1714 = vmatpush2.msra.mxu0 0.0
    %1715 = vmatprep.subr.mxu0 0.0
    %1716 = vmatpush2.msra.mxu0 0.0
    %1717 = vmatprep.subr.mxu0 0.0
    %1718 = vmatpush2.msra.mxu0 0.0
    %1719 = vmatprep.subr.mxu0 0.0
    %1720 = vmatpush2.msra.mxu0 0.0
    %1721 = vmatprep.subr.mxu0 0.0
    %1722 = vmatpush2.msra.mxu0 0.0
    %1723 = vmatprep.mubr.f32.mxu0 0.0
    %1724 = vmatmul.mubr.f32.gmra.mxu0 %v1657
    %v1725 = vpop.f32.mrf.mxu0
    %v1726 = vadd.f32 %v1155, %v1725
    %v1727 = vpop.f32.mrf.mxu0
    %1728 = vdwg.mxu0
    %vm1729 = vcmp.ge.f32.partialorder %v1726, 0.0
    %v1730 = vmul.f32 %v1726, 0.01
    %v1731 = vsel %vm1729, %v1726, %v1730
    %v1732 = vsel %vm624, %v505, 0
    %1734 = vmatprep.subr.mxu0 0.0
    %1735 = vmatpush1.msra.mxu0 0.0
    %1736 = vmatprep.subr.mxu0 0.0
    %1737 = vmatpush1.msra.mxu0 0.0
    %1738 = vmatprep.subr.mxu0 0.0
    %1739 = vmatpush1.msra.mxu0 0.0
    %1740 = vmatprep.subr.mxu0 0.0
    %1741 = vmatpush1.msra.mxu0 0.0
    %1742 = vmatprep.subr.mxu0 0.0
    %1743 = vmatpush1.msra.mxu0 0.0
    %1744 = vmatprep.subr.mxu0 0.0
    %1745 = vmatpush1.msra.mxu0 0.0
    %1746 = vmatprep.subr.mxu0 0.0
    %1747 = vmatpush1.msra.mxu0 0.0
    %1748 = vmatprep.subr.mxu0 0.0
    %1749 = vmatpush1.msra.mxu0 0.0
    %1750 = vmatprep.subr.mxu0 0.0
    %1751 = vmatpush1.msra.mxu0 0.0
    %1752 = vmatprep.subr.mxu0 0.0
    %1753 = vmatpush1.msra.mxu0 0.0
    %1754 = vmatprep.subr.mxu0 0.0
    %1755 = vmatpush1.msra.mxu0 0.0
    %1756 = vmatprep.subr.mxu0 0.0
    %1757 = vmatpush1.msra.mxu0 0.0
    %1758 = vmatprep.subr.mxu0 0.0
    %1759 = vmatpush1.msra.mxu0 0.0
    %1760 = vmatprep.subr.mxu0 0.0
    %1761 = vmatpush1.msra.mxu0 0.0
    %1762 = vmatprep.subr.mxu0 0.0
    %1763 = vmatpush1.msra.mxu0 %v629
    %1764 = vmatprep.subr.mxu0 0.0
    %1765 = vmatpush1.msra.mxu0 %v605
    %1766 = vmatprep.subr.mxu0 0.0
    %1767 = vmatpush2.msra.mxu0 0.0
    %1768 = vmatprep.subr.mxu0 0.0
    %1769 = vmatpush2.msra.mxu0 0.0
    %1770 = vmatprep.subr.mxu0 0.0
    %1771 = vmatpush2.msra.mxu0 0.0
    %1772 = vmatprep.subr.mxu0 0.0
    %1773 = vmatpush2.msra.mxu0 0.0
    %1774 = vmatprep.subr.mxu0 0.0
    %1775 = vmatpush2.msra.mxu0 0.0
    %1776 = vmatprep.subr.mxu0 0.0
    %1777 = vmatpush2.msra.mxu0 0.0
    %1778 = vmatprep.subr.mxu0 0.0
    %1779 = vmatpush2.msra.mxu0 0.0
    %1780 = vmatprep.subr.mxu0 0.0
    %1781 = vmatpush2.msra.mxu0 0.0
    %1782 = vmatprep.subr.mxu0 0.0
    %1783 = vmatpush2.msra.mxu0 0.0
    %1784 = vmatprep.subr.mxu0 0.0
    %1785 = vmatpush2.msra.mxu0 0.0
    %1786 = vmatprep.subr.mxu0 0.0
    %1787 = vmatpush2.msra.mxu0 0.0
    %1788 = vmatprep.subr.mxu0 0.0
    %1789 = vmatpush2.msra.mxu0 0.0
    %1790 = vmatprep.subr.mxu0 0.0
    %1791 = vmatpush2.msra.mxu0 0.0
    %1792 = vmatprep.subr.mxu0 0.0
    %1793 = vmatpush2.msra.mxu0 0.0
    %1794 = vmatprep.subr.mxu0 0.0
    %1795 = vmatpush2.msra.mxu0 0.0
    %1796 = vmatprep.subr.mxu0 0.0
    %1797 = vmatpush2.msra.mxu0 0.0
    %1798 = vmatprep.mubr.f32.mxu0 0.0
    %1799 = vmatmul.mubr.f32.gmra.mxu0 %v1732
    %v1800 = vpop.f32.mrf.mxu0
    %v1801 = vadd.f32 %v622, %v1800
    %v1802 = vpop.f32.mrf.mxu0
    %1803 = vdwg.mxu0
    %v1805 = vsel %vm429, %v1801, 0
    %1807 = vmatprep.subr.mxu0 0.0
    %1808 = vmatpush1.xpose.msra.mxu0 0.0
    %1809 = vmatprep.subr.mxu0 0.0
    %1810 = vmatpush1.xpose.msra.mxu0 0.0
    %1811 = vmatprep.subr.mxu0 0.0
    %1812 = vmatpush1.xpose.msra.mxu0 0.0
    %1813 = vmatprep.subr.mxu0 0.0
    %1814 = vmatpush1.xpose.msra.mxu0 0.0
    %1815 = vmatprep.subr.mxu0 0.0
    %1816 = vmatpush1.xpose.msra.mxu0 0.0
    %1817 = vmatprep.subr.mxu0 0.0
    %1818 = vmatpush1.xpose.msra.mxu0 0.0
    %1819 = vmatprep.subr.mxu0 0.0
    %1820 = vmatpush1.xpose.msra.mxu0 0.0
    %1821 = vmatprep.subr.mxu0 0.0
    %1822 = vmatpush1.xpose.msra.mxu0 0.0
    %1823 = vmatprep.subr.mxu0 0.0
    %1824 = vmatpush1.xpose.msra.mxu0 0.0
    %1825 = vmatprep.subr.mxu0 0.0
    %1826 = vmatpush1.xpose.msra.mxu0 0.0
    %1827 = vmatprep.subr.mxu0 0.0
    %1828 = vmatpush1.xpose.msra.mxu0 0.0
    %1829 = vmatprep.subr.mxu0 0.0
    %1830 = vmatpush1.xpose.msra.mxu0 0.0
    %1831 = vmatprep.subr.mxu0 0.0
    %1832 = vmatpush1.xpose.msra.mxu0 0.0
    %1833 = vmatprep.subr.mxu0 0.0
    %1834 = vmatpush1.xpose.msra.mxu0 0.0
    %1835 = vmatprep.subr.mxu0 0.0
    %1836 = vmatpush1.xpose.msra.mxu0 0.0
    %1837 = vmatprep.subr.mxu0 0.0
    %1838 = vmatpush1.xpose.msra.mxu0 %v1805
    %1839 = vmatprep.subr.mxu0 0.0
    %1840 = vmatpush2.xpose.msra.mxu0 0.0
    %1841 = vmatprep.subr.mxu0 0.0
    %1842 = vmatpush2.xpose.msra.mxu0 0.0
    %1843 = vmatprep.subr.mxu0 0.0
    %1844 = vmatpush2.xpose.msra.mxu0 0.0
    %1845 = vmatprep.subr.mxu0 0.0
    %1846 = vmatpush2.xpose.msra.mxu0 0.0
    %1847 = vmatprep.subr.mxu0 0.0
    %1848 = vmatpush2.xpose.msra.mxu0 0.0
    %1849 = vmatprep.subr.mxu0 0.0
    %1850 = vmatpush2.xpose.msra.mxu0 0.0
    %1851 = vmatprep.subr.mxu0 0.0
    %1852 = vmatpush2.xpose.msra.mxu0 0.0
    %1853 = vmatprep.subr.mxu0 0.0
    %1854 = vmatpush2.xpose.msra.mxu0 0.0
    %1855 = vmatprep.subr.mxu0 0.0
    %1856 = vmatpush2.xpose.msra.mxu0 0.0
    %1857 = vmatprep.subr.mxu0 0.0
    %1858 = vmatpush2.xpose.msra.mxu0 0.0
    %1859 = vmatprep.subr.mxu0 0.0
    %1860 = vmatpush2.xpose.msra.mxu0 0.0
    %1861 = vmatprep.subr.mxu0 0.0
    %1862 = vmatpush2.xpose.msra.mxu0 0.0
    %1863 = vmatprep.subr.mxu0 0.0
    %1864 = vmatpush2.xpose.msra.mxu0 0.0
    %1865 = vmatprep.subr.mxu0 0.0
    %1866 = vmatpush2.xpose.msra.mxu0 0.0
    %1867 = vmatprep.subr.mxu0 0.0
    %1868 = vmatpush2.xpose.msra.mxu0 0.0
    %1869 = vmatprep.subr.mxu0 0.0
    %1870 = vmatpush2.xpose.msra.mxu0 0.0
    %1871 = vmatprep.mubr.f32.mxu0 0.0
    %1872 = vmatmul.mubr.f32.gmra.mxu0 %v1805
    %v1873 = vpop.f32.mrf.mxu0
    %v1874 = vadd.f32 0.0, %v1873
    %v1875 = vpop.f32.mrf.mxu0
    %1876 = vdwg.mxu0
    %v1877 = vsub.f32 %v1874, %v604
    %vm1878 = vcmp.ge.f32.partialorder %v1877, 0.0
    %v1879 = vmul.f32 %v1877, 0.01
    %v1880 = vsel %vm1878, %v1877, %v1879
    %v1881 = vsel %vm778, %v1880, -inf
    %1882 = vmax.xlane.f32.xlu0 %v1881
    %v1883 = vpop.xlane.xlu0 %1882
    %v1884 = vsub.f32 %v1880, %v1883
    %v1885 = vmul.f32 %v1884, 1.442695
    %v1886 = vpow.pop %v1885
    %v1887 = vsel %vm778, %v1886, 0.0
    %1888 = vadd.xlane.f32.xlu0 %v1887
    %v1889 = vpop.xlane.xlu0 %1888
    %v1890 = vrcp.pop %v1889
    %v1891 = vmul.f32 %v1886, %v1890
    %v1892 = vadd.f32 %v1891, %v603
    %v1894 = vsel %vm797, %v1892, 0
    %1896 = vmatprep.subr.mxu0 0.0
    %1897 = vmatpush1.msra.mxu0 0.0
    %1898 = vmatprep.subr.mxu0 0.0
    %1899 = vmatpush1.msra.mxu0 0.0
    %1900 = vmatprep.subr.mxu0 0.0
    %1901 = vmatpush1.msra.mxu0 0.0
    %1902 = vmatprep.subr.mxu0 0.0
    %1903 = vmatpush1.msra.mxu0 0.0
    %1904 = vmatprep.subr.mxu0 0.0
    %1905 = vmatpush1.msra.mxu0 0.0
    %1906 = vmatprep.subr.mxu0 0.0
    %1907 = vmatpush1.msra.mxu0 0.0
    %1908 = vmatprep.subr.mxu0 0.0
    %1909 = vmatpush1.msra.mxu0 0.0
    %1910 = vmatprep.subr.mxu0 0.0
    %1911 = vmatpush1.msra.mxu0 0.0
    %1912 = vmatprep.subr.mxu0 0.0
    %1913 = vmatpush1.msra.mxu0 0.0
    %1914 = vmatprep.subr.mxu0 0.0
    %1915 = vmatpush1.msra.mxu0 0.0
    %1916 = vmatprep.subr.mxu0 0.0
    %1917 = vmatpush1.msra.mxu0 0.0
    %1918 = vmatprep.subr.mxu0 0.0
    %1919 = vmatpush1.msra.mxu0 0.0
    %1920 = vmatprep.subr.mxu0 0.0
    %1921 = vmatpush1.msra.mxu0 0.0
    %1922 = vmatprep.subr.mxu0 0.0
    %1923 = vmatpush1.msra.mxu0 0.0
    %1924 = vmatprep.subr.mxu0 0.0
    %1925 = vmatpush1.msra.mxu0 0.0
    %1926 = vmatprep.subr.mxu0 0.0
    %1927 = vmatpush1.msra.mxu0 %v803
    %1928 = vmatprep.subr.mxu0 0.0
    %1929 = vmatpush2.msra.mxu0 0.0
    %1930 = vmatprep.subr.mxu0 0.0
    %1931 = vmatpush2.msra.mxu0 0.0
    %1932 = vmatprep.subr.mxu0 0.0
    %1933 = vmatpush2.msra.mxu0 0.0
    %1934 = vmatprep.subr.mxu0 0.0
    %1935 = vmatpush2.msra.mxu0 0.0
    %1936 = vmatprep.subr.mxu0 0.0
    %1937 = vmatpush2.msra.mxu0 0.0
    %1938 = vmatprep.subr.mxu0 0.0
    %1939 = vmatpush2.msra.mxu0 0.0
    %1940 = vmatprep.subr.mxu0 0.0
    %1941 = vmatpush2.msra.mxu0 0.0
    %1942 = vmatprep.subr.mxu0 0.0
    %1943 = vmatpush2.msra.mxu0 0.0
    %1944 = vmatprep.subr.mxu0 0.0
    %1945 = vmatpush2.msra.mxu0 0.0
    %1946 = vmatprep.subr.mxu0 0.0
    %1947 = vmatpush2.msra.mxu0 0.0
    %1948 = vmatprep.subr.mxu0 0.0
    %1949 = vmatpush2.msra.mxu0 0.0
    %1950 = vmatprep.subr.mxu0 0.0
    %1951 = vmatpush2.msra.mxu0 0.0
    %1952 = vmatprep.subr.mxu0 0.0
    %1953 = vmatpush2.msra.mxu0 0.0
    %1954 = vmatprep.subr.mxu0 0.0
    %1955 = vmatpush2.msra.mxu0 0.0
    %1956 = vmatprep.subr.mxu0 0.0
    %1957 = vmatpush2.msra.mxu0 0.0
    %1958 = vmatprep.subr.mxu0 0.0
    %1959 = vmatpush2.msra.mxu0 0.0
    %1960 = vmatprep.mubr.f32.mxu0 0.0
    %1961 = vmatmul.mubr.f32.gmra.mxu0 %v1894
    %v1962 = vpop.f32.mrf.mxu0
    %v1963 = vadd.f32 %v795, %v1962
    %v1964 = vpop.f32.mrf.mxu0
    %1965 = vdwg.mxu0
    %v1967 = vsel %vm797, %v594, 0
    %1969 = vmatprep.subr.mxu0 0.0
    %1970 = vmatpush1.msra.mxu0 0.0
    %1971 = vmatprep.subr.mxu0 0.0
    %1972 = vmatpush1.msra.mxu0 0.0
    %1973 = vmatprep.subr.mxu0 0.0
    %1974 = vmatpush1.msra.mxu0 0.0
    %1975 = vmatprep.subr.mxu0 0.0
    %1976 = vmatpush1.msra.mxu0 0.0
    %1977 = vmatprep.subr.mxu0 0.0
    %1978 = vmatpush1.msra.mxu0 0.0
    %1979 = vmatprep.subr.mxu0 0.0
    %1980 = vmatpush1.msra.mxu0 0.0
    %1981 = vmatprep.subr.mxu0 0.0
    %1982 = vmatpush1.msra.mxu0 0.0
    %1983 = vmatprep.subr.mxu0 0.0
    %1984 = vmatpush1.msra.mxu0 0.0
    %1985 = vmatprep.subr.mxu0 0.0
    %1986 = vmatpush1.msra.mxu0 0.0
    %1987 = vmatprep.subr.mxu0 0.0
    %1988 = vmatpush1.msra.mxu0 0.0
    %1989 = vmatprep.subr.mxu0 0.0
    %1990 = vmatpush1.msra.mxu0 0.0
    %1991 = vmatprep.subr.mxu0 0.0
    %1992 = vmatpush1.msra.mxu0 0.0
    %1993 = vmatprep.subr.mxu0 0.0
    %1994 = vmatpush1.msra.mxu0 0.0
    %1995 = vmatprep.subr.mxu0 0.0
    %1996 = vmatpush1.msra.mxu0 0.0
    %1997 = vmatprep.subr.mxu0 0.0
    %1998 = vmatpush1.msra.mxu0 0.0
    %1999 = vmatprep.subr.mxu0 0.0
    %2000 = vmatpush1.msra.mxu0 %v885
    %2001 = vmatprep.subr.mxu0 0.0
    %2002 = vmatpush2.msra.mxu0 0.0
    %2003 = vmatprep.subr.mxu0 0.0
    %2004 = vmatpush2.msra.mxu0 0.0
    %2005 = vmatprep.subr.mxu0 0.0
    %2006 = vmatpush2.msra.mxu0 0.0
    %2007 = vmatprep.subr.mxu0 0.0
    %2008 = vmatpush2.msra.mxu0 0.0
    %2009 = vmatprep.subr.mxu0 0.0
    %2010 = vmatpush2.msra.mxu0 0.0
    %2011 = vmatprep.subr.mxu0 0.0
    %2012 = vmatpush2.msra.mxu0 0.0
    %2013 = vmatprep.subr.mxu0 0.0
    %2014 = vmatpush2.msra.mxu0 0.0
    %2015 = vmatprep.subr.mxu0 0.0
    %2016 = vmatpush2.msra.mxu0 0.0
    %2017 = vmatprep.subr.mxu0 0.0
    %2018 = vmatpush2.msra.mxu0 0.0
    %2019 = vmatprep.subr.mxu0 0.0
    %2020 = vmatpush2.msra.mxu0 0.0
    %2021 = vmatprep.subr.mxu0 0.0
    %2022 = vmatpush2.msra.mxu0 0.0
    %2023 = vmatprep.subr.mxu0 0.0
    %2024 = vmatpush2.msra.mxu0 0.0
    %2025 = vmatprep.subr.mxu0 0.0
    %2026 = vmatpush2.msra.mxu0 0.0
    %2027 = vmatprep.subr.mxu0 0.0
    %2028 = vmatpush2.msra.mxu0 0.0
    %2029 = vmatprep.subr.mxu0 0.0
    %2030 = vmatpush2.msra.mxu0 0.0
    %2031 = vmatprep.subr.mxu0 0.0
    %2032 = vmatpush2.msra.mxu0 0.0
    %2033 = vmatprep.mubr.f32.mxu0 0.0
    %2034 = vmatmul.mubr.f32.gmra.mxu0 %v1967
    %v2035 = vpop.f32.mrf.mxu0
    %v2036 = vadd.f32 %v879, %v2035
    %v2037 = vpop.f32.mrf.mxu0
    %2038 = vdwg.mxu0
    %v2039 = vadd.f32 %v1963, %v2036
    %v2040 = vmul.f32 %v2039, 0.5
    %v2041 = vtanh.pop %v2040
    %v2042 = vmul.f32 %v2041, 0.5
    %v2043 = vadd.f32 %v2042, 0.5
    %2045 = vrot.lane.b32.xlu0 %v2043, 123
    %v2046 = vpop.permute.xlu0 %2045
    %v2047 = vsel %vm797, %v2046, 0
    %2049 = vmatprep.subr.mxu0 0.0
    %2050 = vmatpush1.msra.mxu0 0.0
    %2051 = vmatprep.subr.mxu0 0.0
    %2052 = vmatpush1.msra.mxu0 0.0
    %2053 = vmatprep.subr.mxu0 0.0
    %2054 = vmatpush1.msra.mxu0 0.0
    %2055 = vmatprep.subr.mxu0 0.0
    %2056 = vmatpush1.msra.mxu0 0.0
    %2057 = vmatprep.subr.mxu0 0.0
    %2058 = vmatpush1.msra.mxu0 0.0
    %2059 = vmatprep.subr.mxu0 0.0
    %2060 = vmatpush1.msra.mxu0 0.0
    %2061 = vmatprep.subr.mxu0 0.0
    %2062 = vmatpush1.msra.mxu0 0.0
    %2063 = vmatprep.subr.mxu0 0.0
    %2064 = vmatpush1.msra.mxu0 0.0
    %2065 = vmatprep.subr.mxu0 0.0
    %2066 = vmatpush1.msra.mxu0 0.0
    %2067 = vmatprep.subr.mxu0 0.0
    %2068 = vmatpush1.msra.mxu0 0.0
    %2069 = vmatprep.subr.mxu0 0.0
    %2070 = vmatpush1.msra.mxu0 0.0
    %2071 = vmatprep.subr.mxu0 0.0
    %2072 = vmatpush1.msra.mxu0 0.0
    %2073 = vmatprep.subr.mxu0 0.0
    %2074 = vmatpush1.msra.mxu0 0.0
    %2075 = vmatprep.subr.mxu0 0.0
    %2076 = vmatpush1.msra.mxu0 0.0
    %2077 = vmatprep.subr.mxu0 0.0
    %2078 = vmatpush1.msra.mxu0 0.0
    %2079 = vmatprep.subr.mxu0 0.0
    %2080 = vmatpush1.msra.mxu0 %v968
    %2081 = vmatprep.subr.mxu0 0.0
    %2082 = vmatpush2.msra.mxu0 0.0
    %2083 = vmatprep.subr.mxu0 0.0
    %2084 = vmatpush2.msra.mxu0 0.0
    %2085 = vmatprep.subr.mxu0 0.0
    %2086 = vmatpush2.msra.mxu0 0.0
    %2087 = vmatprep.subr.mxu0 0.0
    %2088 = vmatpush2.msra.mxu0 0.0
    %2089 = vmatprep.subr.mxu0 0.0
    %2090 = vmatpush2.msra.mxu0 0.0
    %2091 = vmatprep.subr.mxu0 0.0
    %2092 = vmatpush2.msra.mxu0 0.0
    %2093 = vmatprep.subr.mxu0 0.0
    %2094 = vmatpush2.msra.mxu0 0.0
    %2095 = vmatprep.subr.mxu0 0.0
    %2096 = vmatpush2.msra.mxu0 0.0
    %2097 = vmatprep.subr.mxu0 0.0
    %2098 = vmatpush2.msra.mxu0 0.0
    %2099 = vmatprep.subr.mxu0 0.0
    %2100 = vmatpush2.msra.mxu0 0.0
    %2101 = vmatprep.subr.mxu0 0.0
    %2102 = vmatpush2.msra.mxu0 0.0
    %2103 = vmatprep.subr.mxu0 0.0
    %2104 = vmatpush2.msra.mxu0 0.0
    %2105 = vmatprep.subr.mxu0 0.0
    %2106 = vmatpush2.msra.mxu0 0.0
    %2107 = vmatprep.subr.mxu0 0.0
    %2108 = vmatpush2.msra.mxu0 0.0
    %2109 = vmatprep.subr.mxu0 0.0
    %2110 = vmatpush2.msra.mxu0 0.0
    %2111 = vmatprep.subr.mxu0 0.0
    %2112 = vmatpush2.msra.mxu0 0.0
    %2113 = vmatprep.mubr.f32.mxu0 0.0
    %2114 = vmatmul.mubr.f32.gmra.mxu0 %v2047
    %v2115 = vpop.f32.mrf.mxu0
    %v2116 = vadd.f32 0.0, %v2115
    %v2117 = vpop.f32.mrf.mxu0
    %2118 = vdwg.mxu0
    %2120 = vrot.lane.b32.xlu0 %v2116, 10
    %v2121 = vpop.permute.xlu0 %2120
    %v2123 = vadd.f32 %v2036, %v2121
    %v2124 = vadd.f32 %v2123, %v1051
    %v2125 = vtanh.pop %v2124
    %v2126 = vsub.f32 1.0, %v2043
    %v2127 = vmul.f32 %v2126, %v1892
    %2129 = vrot.lane.b32.xlu0 %v2125, 118
    %v2130 = vpop.permute.xlu0 %2129
    %v2132 = vmul.f32 %v2043, %v2130
    %v2133 = vadd.f32 %v2127, %v2132
    %v2134 = vsub.f32 %v2133, %v604
    %v2135 = vsel %vm778, %v2134, -inf
    %2136 = vmax.xlane.f32.xlu0 %v2135
    %v2137 = vpop.xlane.xlu0 %2136
    %v2138 = vsub.f32 %v2134, %v2137
    %v2139 = vmul.f32 %v2138, 1.442695
    %v2140 = vpow.pop %v2139
    %v2141 = vsel %vm778, %v2140, 0.0
    %2142 = vadd.xlane.f32.xlu0 %v2141
    %v2143 = vpop.xlane.xlu0 %2142
    %v2144 = vrcp.pop %v2143
    %v2145 = vmul.f32 %v2140, %v2144
    %v2146 = vadd.f32 %v2145, %v603
    %v2148 = vsel %vm797, %v2146, 0
    %v2150 = vsel %vm801, %v1801, 0
    %2152 = vmatprep.subr.mxu0 0.0
    %2153 = vmatpush1.msra.mxu0 0.0
    %2154 = vmatprep.subr.mxu0 0.0
    %2155 = vmatpush1.msra.mxu0 0.0
    %2156 = vmatprep.subr.mxu0 0.0
    %2157 = vmatpush1.msra.mxu0 0.0
    %2158 = vmatprep.subr.mxu0 0.0
    %2159 = vmatpush1.msra.mxu0 0.0
    %2160 = vmatprep.subr.mxu0 0.0
    %2161 = vmatpush1.msra.mxu0 0.0
    %2162 = vmatprep.subr.mxu0 0.0
    %2163 = vmatpush1.msra.mxu0 0.0
    %2164 = vmatprep.subr.mxu0 0.0
    %2165 = vmatpush1.msra.mxu0 0.0
    %2166 = vmatprep.subr.mxu0 0.0
    %2167 = vmatpush1.msra.mxu0 0.0
    %2168 = vmatprep.subr.mxu0 0.0
    %2169 = vmatpush1.msra.mxu0 0.0
    %2170 = vmatprep.subr.mxu0 0.0
    %2171 = vmatpush1.msra.mxu0 0.0
    %2172 = vmatprep.subr.mxu0 0.0
    %2173 = vmatpush1.msra.mxu0 0.0
    %2174 = vmatprep.subr.mxu0 0.0
    %2175 = vmatpush1.msra.mxu0 0.0
    %2176 = vmatprep.subr.mxu0 0.0
    %2177 = vmatpush1.msra.mxu0 0.0
    %2178 = vmatprep.subr.mxu0 0.0
    %2179 = vmatpush1.msra.mxu0 0.0
    %2180 = vmatprep.subr.mxu0 0.0
    %2181 = vmatpush1.msra.mxu0 0.0
    %2182 = vmatprep.subr.mxu0 0.0
    %2183 = vmatpush1.msra.mxu0 %v2150
    %2184 = vmatprep.subr.mxu0 0.0
    %2185 = vmatpush2.msra.mxu0 0.0
    %2186 = vmatprep.subr.mxu0 0.0
    %2187 = vmatpush2.msra.mxu0 0.0
    %2188 = vmatprep.subr.mxu0 0.0
    %2189 = vmatpush2.msra.mxu0 0.0
    %2190 = vmatprep.subr.mxu0 0.0
    %2191 = vmatpush2.msra.mxu0 0.0
    %2192 = vmatprep.subr.mxu0 0.0
    %2193 = vmatpush2.msra.mxu0 0.0
    %2194 = vmatprep.subr.mxu0 0.0
    %2195 = vmatpush2.msra.mxu0 0.0
    %2196 = vmatprep.subr.mxu0 0.0
    %2197 = vmatpush2.msra.mxu0 0.0
    %2198 = vmatprep.subr.mxu0 0.0
    %2199 = vmatpush2.msra.mxu0 0.0
    %2200 = vmatprep.subr.mxu0 0.0
    %2201 = vmatpush2.msra.mxu0 0.0
    %2202 = vmatprep.subr.mxu0 0.0
    %2203 = vmatpush2.msra.mxu0 0.0
    %2204 = vmatprep.subr.mxu0 0.0
    %2205 = vmatpush2.msra.mxu0 0.0
    %2206 = vmatprep.subr.mxu0 0.0
    %2207 = vmatpush2.msra.mxu0 0.0
    %2208 = vmatprep.subr.mxu0 0.0
    %2209 = vmatpush2.msra.mxu0 0.0
    %2210 = vmatprep.subr.mxu0 0.0
    %2211 = vmatpush2.msra.mxu0 0.0
    %2212 = vmatprep.subr.mxu0 0.0
    %2213 = vmatpush2.msra.mxu0 0.0
    %2214 = vmatprep.subr.mxu0 0.0
    %2215 = vmatpush2.msra.mxu0 0.0
    %2216 = vmatprep.mubr.f32.mxu0 0.0
    %2217 = vmatmul.mubr.f32.gmra.mxu0 %v2148
    %v2218 = vpop.f32.mrf.mxu0
    %v2219 = vadd.f32 0.0, %v2218
    %v2220 = vpop.f32.mrf.mxu0
    %2221 = vdwg.mxu0
    %v2223 = vsel %vm429, %v2219, 0
    %2225 = vmatprep.subr.mxu0 0.0
    %2226 = vmatpush1.msra.mxu0 0.0
    %2227 = vmatprep.subr.mxu0 0.0
    %2228 = vmatpush1.msra.mxu0 0.0
    %2229 = vmatprep.subr.mxu0 0.0
    %2230 = vmatpush1.msra.mxu0 0.0
    %2231 = vmatprep.subr.mxu0 0.0
    %2232 = vmatpush1.msra.mxu0 0.0
    %2233 = vmatprep.subr.mxu0 0.0
    %2234 = vmatpush1.msra.mxu0 0.0
    %2235 = vmatprep.subr.mxu0 0.0
    %2236 = vmatpush1.msra.mxu0 0.0
    %2237 = vmatprep.subr.mxu0 0.0
    %2238 = vmatpush1.msra.mxu0 0.0
    %2239 = vmatprep.subr.mxu0 0.0
    %2240 = vmatpush1.msra.mxu0 0.0
    %2241 = vmatprep.subr.mxu0 0.0
    %2242 = vmatpush1.msra.mxu0 0.0
    %2243 = vmatprep.subr.mxu0 0.0
    %2244 = vmatpush1.msra.mxu0 0.0
    %2245 = vmatprep.subr.mxu0 0.0
    %2246 = vmatpush1.msra.mxu0 0.0
    %2247 = vmatprep.subr.mxu0 0.0
    %2248 = vmatpush1.msra.mxu0 0.0
    %2249 = vmatprep.subr.mxu0 0.0
    %2250 = vmatpush1.msra.mxu0 0.0
    %2251 = vmatprep.subr.mxu0 0.0
    %2252 = vmatpush1.msra.mxu0 %v1162
    %2253 = vmatprep.subr.mxu0 0.0
    %2254 = vmatpush1.msra.mxu0 %v615
    %2255 = vmatprep.subr.mxu0 0.0
    %2256 = vmatpush1.msra.mxu0 %v614
    %2257 = vmatprep.subr.mxu0 0.0
    %2258 = vmatpush2.msra.mxu0 0.0
    %2259 = vmatprep.subr.mxu0 0.0
    %2260 = vmatpush2.msra.mxu0 0.0
    %2261 = vmatprep.subr.mxu0 0.0
    %2262 = vmatpush2.msra.mxu0 0.0
    %2263 = vmatprep.subr.mxu0 0.0
    %2264 = vmatpush2.msra.mxu0 0.0
    %2265 = vmatprep.subr.mxu0 0.0
    %2266 = vmatpush2.msra.mxu0 0.0
    %2267 = vmatprep.subr.mxu0 0.0
    %2268 = vmatpush2.msra.mxu0 0.0
    %2269 = vmatprep.subr.mxu0 0.0
    %2270 = vmatpush2.msra.mxu0 0.0
    %2271 = vmatprep.subr.mxu0 0.0
    %2272 = vmatpush2.msra.mxu0 0.0
    %2273 = vmatprep.subr.mxu0 0.0
    %2274 = vmatpush2.msra.mxu0 0.0
    %2275 = vmatprep.subr.mxu0 0.0
    %2276 = vmatpush2.msra.mxu0 0.0
    %2277 = vmatprep.subr.mxu0 0.0
    %2278 = vmatpush2.msra.mxu0 0.0
    %2279 = vmatprep.subr.mxu0 0.0
    %2280 = vmatpush2.msra.mxu0 0.0
    %2281 = vmatprep.subr.mxu0 0.0
    %2282 = vmatpush2.msra.mxu0 0.0
    %2283 = vmatprep.subr.mxu0 0.0
    %2284 = vmatpush2.msra.mxu0 0.0
    %2285 = vmatprep.subr.mxu0 0.0
    %2286 = vmatpush2.msra.mxu0 0.0
    %2287 = vmatprep.subr.mxu0 0.0
    %2288 = vmatpush2.msra.mxu0 0.0
    %2289 = vmatprep.mubr.f32.mxu0 0.0
    %2290 = vmatmul.mubr.f32.gmra.mxu0 %v2223
    %v2291 = vpop.f32.mrf.mxu0
    %v2292 = vadd.f32 %v1155, %v2291
    %v2293 = vpop.f32.mrf.mxu0
    %2294 = vdwg.mxu0
    %vm2295 = vcmp.ge.f32.partialorder %v2292, 0.0
    %v2296 = vmul.f32 %v2292, 0.01
    %v2297 = vsel %vm2295, %v2292, %v2296
    %2298 = vrot.lane.b32.xlu0 %v415, 101
    %v2299 = vpop.permute.xlu0 %2298
    %v2300 = vsel %vm624, %v2299, 0
    %2302 = vmatprep.subr.mxu0 0.0
    %2303 = vmatpush1.msra.mxu0 0.0
    %2304 = vmatprep.subr.mxu0 0.0
    %2305 = vmatpush1.msra.mxu0 0.0
    %2306 = vmatprep.subr.mxu0 0.0
    %2307 = vmatpush1.msra.mxu0 0.0
    %2308 = vmatprep.subr.mxu0 0.0
    %2309 = vmatpush1.msra.mxu0 0.0
    %2310 = vmatprep.subr.mxu0 0.0
    %2311 = vmatpush1.msra.mxu0 0.0
    %2312 = vmatprep.subr.mxu0 0.0
    %2313 = vmatpush1.msra.mxu0 0.0
    %2314 = vmatprep.subr.mxu0 0.0
    %2315 = vmatpush1.msra.mxu0 0.0
    %2316 = vmatprep.subr.mxu0 0.0
    %2317 = vmatpush1.msra.mxu0 0.0
    %2318 = vmatprep.subr.mxu0 0.0
    %2319 = vmatpush1.msra.mxu0 0.0
    %2320 = vmatprep.subr.mxu0 0.0
    %2321 = vmatpush1.msra.mxu0 0.0
    %2322 = vmatprep.subr.mxu0 0.0
    %2323 = vmatpush1.msra.mxu0 0.0
    %2324 = vmatprep.subr.mxu0 0.0
    %2325 = vmatpush1.msra.mxu0 0.0
    %2326 = vmatprep.subr.mxu0 0.0
    %2327 = vmatpush1.msra.mxu0 0.0
    %2328 = vmatprep.subr.mxu0 0.0
    %2329 = vmatpush1.msra.mxu0 0.0
    %2330 = vmatprep.subr.mxu0 0.0
    %2331 = vmatpush1.msra.mxu0 %v629
    %2332 = vmatprep.subr.mxu0 0.0
    %2333 = vmatpush1.msra.mxu0 %v605
    %2334 = vmatprep.subr.mxu0 0.0
    %2335 = vmatpush2.msra.mxu0 0.0
    %2336 = vmatprep.subr.mxu0 0.0
    %2337 = vmatpush2.msra.mxu0 0.0
    %2338 = vmatprep.subr.mxu0 0.0
    %2339 = vmatpush2.msra.mxu0 0.0
    %2340 = vmatprep.subr.mxu0 0.0
    %2341 = vmatpush2.msra.mxu0 0.0
    %2342 = vmatprep.subr.mxu0 0.0
    %2343 = vmatpush2.msra.mxu0 0.0
    %2344 = vmatprep.subr.mxu0 0.0
    %2345 = vmatpush2.msra.mxu0 0.0
    %2346 = vmatprep.subr.mxu0 0.0
    %2347 = vmatpush2.msra.mxu0 0.0
    %2348 = vmatprep.subr.mxu0 0.0
    %2349 = vmatpush2.msra.mxu0 0.0
    %2350 = vmatprep.subr.mxu0 0.0
    %2351 = vmatpush2.msra.mxu0 0.0
    %2352 = vmatprep.subr.mxu0 0.0
    %2353 = vmatpush2.msra.mxu0 0.0
    %2354 = vmatprep.subr.mxu0 0.0
    %2355 = vmatpush2.msra.mxu0 0.0
    %2356 = vmatprep.subr.mxu0 0.0
    %2357 = vmatpush2.msra.mxu0 0.0
    %2358 = vmatprep.subr.mxu0 0.0
    %2359 = vmatpush2.msra.mxu0 0.0
    %2360 = vmatprep.subr.mxu0 0.0
    %2361 = vmatpush2.msra.mxu0 0.0
    %2362 = vmatprep.subr.mxu0 0.0
    %2363 = vmatpush2.msra.mxu0 0.0
    %2364 = vmatprep.subr.mxu0 0.0
    %2365 = vmatpush2.msra.mxu0 0.0
    %2366 = vmatprep.mubr.f32.mxu0 0.0
    %2367 = vmatmul.mubr.f32.gmra.mxu0 %v2300
    %v2368 = vpop.f32.mrf.mxu0
    %v2369 = vadd.f32 %v622, %v2368
    %v2370 = vpop.f32.mrf.mxu0
    %2371 = vdwg.mxu0
    %v2373 = vsel %vm429, %v2369, 0
    %2375 = vmatprep.subr.mxu0 0.0
    %2376 = vmatpush1.xpose.msra.mxu0 0.0
    %2377 = vmatprep.subr.mxu0 0.0
    %2378 = vmatpush1.xpose.msra.mxu0 0.0
    %2379 = vmatprep.subr.mxu0 0.0
    %2380 = vmatpush1.xpose.msra.mxu0 0.0
    %2381 = vmatprep.subr.mxu0 0.0
    %2382 = vmatpush1.xpose.msra.mxu0 0.0
    %2383 = vmatprep.subr.mxu0 0.0
    %2384 = vmatpush1.xpose.msra.mxu0 0.0
    %2385 = vmatprep.subr.mxu0 0.0
    %2386 = vmatpush1.xpose.msra.mxu0 0.0
    %2387 = vmatprep.subr.mxu0 0.0
    %2388 = vmatpush1.xpose.msra.mxu0 0.0
    %2389 = vmatprep.subr.mxu0 0.0
    %2390 = vmatpush1.xpose.msra.mxu0 0.0
    %2391 = vmatprep.subr.mxu0 0.0
    %2392 = vmatpush1.xpose.msra.mxu0 0.0
    %2393 = vmatprep.subr.mxu0 0.0
    %2394 = vmatpush1.xpose.msra.mxu0 0.0
    %2395 = vmatprep.subr.mxu0 0.0
    %2396 = vmatpush1.xpose.msra.mxu0 0.0
    %2397 = vmatprep.subr.mxu0 0.0
    %2398 = vmatpush1.xpose.msra.mxu0 0.0
    %2399 = vmatprep.subr.mxu0 0.0
    %2400 = vmatpush1.xpose.msra.mxu0 0.0
    %2401 = vmatprep.subr.mxu0 0.0
    %2402 = vmatpush1.xpose.msra.mxu0 0.0
    %2403 = vmatprep.subr.mxu0 0.0
    %2404 = vmatpush1.xpose.msra.mxu0 0.0
    %2405 = vmatprep.subr.mxu0 0.0
    %2406 = vmatpush1.xpose.msra.mxu0 %v2373
    %2407 = vmatprep.subr.mxu0 0.0
    %2408 = vmatpush2.xpose.msra.mxu0 0.0
    %2409 = vmatprep.subr.mxu0 0.0
    %2410 = vmatpush2.xpose.msra.mxu0 0.0
    %2411 = vmatprep.subr.mxu0 0.0
    %2412 = vmatpush2.xpose.msra.mxu0 0.0
    %2413 = vmatprep.subr.mxu0 0.0
    %2414 = vmatpush2.xpose.msra.mxu0 0.0
    %2415 = vmatprep.subr.mxu0 0.0
    %2416 = vmatpush2.xpose.msra.mxu0 0.0
    %2417 = vmatprep.subr.mxu0 0.0
    %2418 = vmatpush2.xpose.msra.mxu0 0.0
    %2419 = vmatprep.subr.mxu0 0.0
    %2420 = vmatpush2.xpose.msra.mxu0 0.0
    %2421 = vmatprep.subr.mxu0 0.0
    %2422 = vmatpush2.xpose.msra.mxu0 0.0
    %2423 = vmatprep.subr.mxu0 0.0
    %2424 = vmatpush2.xpose.msra.mxu0 0.0
    %2425 = vmatprep.subr.mxu0 0.0
    %2426 = vmatpush2.xpose.msra.mxu0 0.0
    %2427 = vmatprep.subr.mxu0 0.0
    %2428 = vmatpush2.xpose.msra.mxu0 0.0
    %2429 = vmatprep.subr.mxu0 0.0
    %2430 = vmatpush2.xpose.msra.mxu0 0.0
    %2431 = vmatprep.subr.mxu0 0.0
    %2432 = vmatpush2.xpose.msra.mxu0 0.0
    %2433 = vmatprep.subr.mxu0 0.0
    %2434 = vmatpush2.xpose.msra.mxu0 0.0
    %2435 = vmatprep.subr.mxu0 0.0
    %2436 = vmatpush2.xpose.msra.mxu0 0.0
    %2437 = vmatprep.subr.mxu0 0.0
    %2438 = vmatpush2.xpose.msra.mxu0 0.0
    %2439 = vmatprep.mubr.f32.mxu0 0.0
    %2440 = vmatmul.mubr.f32.gmra.mxu0 %v2373
    %v2441 = vpop.f32.mrf.mxu0
    %v2442 = vadd.f32 0.0, %v2441
    %v2443 = vpop.f32.mrf.mxu0
    %2444 = vdwg.mxu0
    %v2445 = vsub.f32 %v2442, %v604
    %vm2446 = vcmp.ge.f32.partialorder %v2445, 0.0
    %v2447 = vmul.f32 %v2445, 0.01
    %v2448 = vsel %vm2446, %v2445, %v2447
    %v2449 = vsel %vm778, %v2448, -inf
    %2450 = vmax.xlane.f32.xlu0 %v2449
    %v2451 = vpop.xlane.xlu0 %2450
    %v2452 = vsub.f32 %v2448, %v2451
    %v2453 = vmul.f32 %v2452, 1.442695
    %v2454 = vpow.pop %v2453
    %v2455 = vsel %vm778, %v2454, 0.0
    %2456 = vadd.xlane.f32.xlu0 %v2455
    %v2457 = vpop.xlane.xlu0 %2456
    %v2458 = vrcp.pop %v2457
    %v2459 = vmul.f32 %v2454, %v2458
    %v2460 = vadd.f32 %v2459, %v603
    %v2462 = vsel %vm797, %v2460, 0
    %2464 = vmatprep.subr.mxu0 0.0
    %2465 = vmatpush1.msra.mxu0 0.0
    %2466 = vmatprep.subr.mxu0 0.0
    %2467 = vmatpush1.msra.mxu0 0.0
    %2468 = vmatprep.subr.mxu0 0.0
    %2469 = vmatpush1.msra.mxu0 0.0
    %2470 = vmatprep.subr.mxu0 0.0
    %2471 = vmatpush1.msra.mxu0 0.0
    %2472 = vmatprep.subr.mxu0 0.0
    %2473 = vmatpush1.msra.mxu0 0.0
    %2474 = vmatprep.subr.mxu0 0.0
    %2475 = vmatpush1.msra.mxu0 0.0
    %2476 = vmatprep.subr.mxu0 0.0
    %2477 = vmatpush1.msra.mxu0 0.0
    %2478 = vmatprep.subr.mxu0 0.0
    %2479 = vmatpush1.msra.mxu0 0.0
    %2480 = vmatprep.subr.mxu0 0.0
    %2481 = vmatpush1.msra.mxu0 0.0
    %2482 = vmatprep.subr.mxu0 0.0
    %2483 = vmatpush1.msra.mxu0 0.0
    %2484 = vmatprep.subr.mxu0 0.0
    %2485 = vmatpush1.msra.mxu0 0.0
    %2486 = vmatprep.subr.mxu0 0.0
    %2487 = vmatpush1.msra.mxu0 0.0
    %2488 = vmatprep.subr.mxu0 0.0
    %2489 = vmatpush1.msra.mxu0 0.0
    %2490 = vmatprep.subr.mxu0 0.0
    %2491 = vmatpush1.msra.mxu0 0.0
    %2492 = vmatprep.subr.mxu0 0.0
    %2493 = vmatpush1.msra.mxu0 0.0
    %2494 = vmatprep.subr.mxu0 0.0
    %2495 = vmatpush1.msra.mxu0 %v803
    %2496 = vmatprep.subr.mxu0 0.0
    %2497 = vmatpush2.msra.mxu0 0.0
    %2498 = vmatprep.subr.mxu0 0.0
    %2499 = vmatpush2.msra.mxu0 0.0
    %2500 = vmatprep.subr.mxu0 0.0
    %2501 = vmatpush2.msra.mxu0 0.0
    %2502 = vmatprep.subr.mxu0 0.0
    %2503 = vmatpush2.msra.mxu0 0.0
    %2504 = vmatprep.subr.mxu0 0.0
    %2505 = vmatpush2.msra.mxu0 0.0
    %2506 = vmatprep.subr.mxu0 0.0
    %2507 = vmatpush2.msra.mxu0 0.0
    %2508 = vmatprep.subr.mxu0 0.0
    %2509 = vmatpush2.msra.mxu0 0.0
    %2510 = vmatprep.subr.mxu0 0.0
    %2511 = vmatpush2.msra.mxu0 0.0
    %2512 = vmatprep.subr.mxu0 0.0
    %2513 = vmatpush2.msra.mxu0 0.0
    %2514 = vmatprep.subr.mxu0 0.0
    %2515 = vmatpush2.msra.mxu0 0.0
    %2516 = vmatprep.subr.mxu0 0.0
    %2517 = vmatpush2.msra.mxu0 0.0
    %2518 = vmatprep.subr.mxu0 0.0
    %2519 = vmatpush2.msra.mxu0 0.0
    %2520 = vmatprep.subr.mxu0 0.0
    %2521 = vmatpush2.msra.mxu0 0.0
    %2522 = vmatprep.subr.mxu0 0.0
    %2523 = vmatpush2.msra.mxu0 0.0
    %2524 = vmatprep.subr.mxu0 0.0
    %2525 = vmatpush2.msra.mxu0 0.0
    %2526 = vmatprep.subr.mxu0 0.0
    %2527 = vmatpush2.msra.mxu0 0.0
    %2528 = vmatprep.mubr.f32.mxu0 0.0
    %2529 = vmatmul.mubr.f32.gmra.mxu0 %v2462
    %v2530 = vpop.f32.mrf.mxu0
    %v2531 = vadd.f32 %v795, %v2530
    %v2532 = vpop.f32.mrf.mxu0
    %2533 = vdwg.mxu0
    %v2534 = vadd.f32 %v2531, %v2036
    %v2535 = vmul.f32 %v2534, 0.5
    %v2536 = vtanh.pop %v2535
    %v2537 = vmul.f32 %v2536, 0.5
    %v2538 = vadd.f32 %v2537, 0.5
    %2540 = vrot.lane.b32.xlu0 %v2538, 123
    %v2541 = vpop.permute.xlu0 %2540
    %v2542 = vsel %vm797, %v2541, 0
    %2544 = vmatprep.subr.mxu0 0.0
    %2545 = vmatpush1.msra.mxu0 0.0
    %2546 = vmatprep.subr.mxu0 0.0
    %2547 = vmatpush1.msra.mxu0 0.0
    %2548 = vmatprep.subr.mxu0 0.0
    %2549 = vmatpush1.msra.mxu0 0.0
    %2550 = vmatprep.subr.mxu0 0.0
    %2551 = vmatpush1.msra.mxu0 0.0
    %2552 = vmatprep.subr.mxu0 0.0
    %2553 = vmatpush1.msra.mxu0 0.0
    %2554 = vmatprep.subr.mxu0 0.0
    %2555 = vmatpush1.msra.mxu0 0.0
    %2556 = vmatprep.subr.mxu0 0.0
    %2557 = vmatpush1.msra.mxu0 0.0
    %2558 = vmatprep.subr.mxu0 0.0
    %2559 = vmatpush1.msra.mxu0 0.0
    %2560 = vmatprep.subr.mxu0 0.0
    %2561 = vmatpush1.msra.mxu0 0.0
    %2562 = vmatprep.subr.mxu0 0.0
    %2563 = vmatpush1.msra.mxu0 0.0
    %2564 = vmatprep.subr.mxu0 0.0
    %2565 = vmatpush1.msra.mxu0 0.0
    %2566 = vmatprep.subr.mxu0 0.0
    %2567 = vmatpush1.msra.mxu0 0.0
    %2568 = vmatprep.subr.mxu0 0.0
    %2569 = vmatpush1.msra.mxu0 0.0
    %2570 = vmatprep.subr.mxu0 0.0
    %2571 = vmatpush1.msra.mxu0 0.0
    %2572 = vmatprep.subr.mxu0 0.0
    %2573 = vmatpush1.msra.mxu0 0.0
    %2574 = vmatprep.subr.mxu0 0.0
    %2575 = vmatpush1.msra.mxu0 %v968
    %2576 = vmatprep.subr.mxu0 0.0
    %2577 = vmatpush2.msra.mxu0 0.0
    %2578 = vmatprep.subr.mxu0 0.0
    %2579 = vmatpush2.msra.mxu0 0.0
    %2580 = vmatprep.subr.mxu0 0.0
    %2581 = vmatpush2.msra.mxu0 0.0
    %2582 = vmatprep.subr.mxu0 0.0
    %2583 = vmatpush2.msra.mxu0 0.0
    %2584 = vmatprep.subr.mxu0 0.0
    %2585 = vmatpush2.msra.mxu0 0.0
    %2586 = vmatprep.subr.mxu0 0.0
    %2587 = vmatpush2.msra.mxu0 0.0
    %2588 = vmatprep.subr.mxu0 0.0
    %2589 = vmatpush2.msra.mxu0 0.0
    %2590 = vmatprep.subr.mxu0 0.0
    %2591 = vmatpush2.msra.mxu0 0.0
    %2592 = vmatprep.subr.mxu0 0.0
    %2593 = vmatpush2.msra.mxu0 0.0
    %2594 = vmatprep.subr.mxu0 0.0
    %2595 = vmatpush2.msra.mxu0 0.0
    %2596 = vmatprep.subr.mxu0 0.0
    %2597 = vmatpush2.msra.mxu0 0.0
    %2598 = vmatprep.subr.mxu0 0.0
    %2599 = vmatpush2.msra.mxu0 0.0
    %2600 = vmatprep.subr.mxu0 0.0
    %2601 = vmatpush2.msra.mxu0 0.0
    %2602 = vmatprep.subr.mxu0 0.0
    %2603 = vmatpush2.msra.mxu0 0.0
    %2604 = vmatprep.subr.mxu0 0.0
    %2605 = vmatpush2.msra.mxu0 0.0
    %2606 = vmatprep.subr.mxu0 0.0
    %2607 = vmatpush2.msra.mxu0 0.0
    %2608 = vmatprep.mubr.f32.mxu0 0.0
    %2609 = vmatmul.mubr.f32.gmra.mxu0 %v2542
    %v2610 = vpop.f32.mrf.mxu0
    %v2611 = vadd.f32 0.0, %v2610
    %v2612 = vpop.f32.mrf.mxu0
    %2613 = vdwg.mxu0
    %2615 = vrot.lane.b32.xlu0 %v2611, 10
    %v2616 = vpop.permute.xlu0 %2615
    %v2618 = vadd.f32 %v2036, %v2616
    %v2619 = vadd.f32 %v2618, %v1051
    %v2620 = vtanh.pop %v2619
    %v2621 = vsub.f32 1.0, %v2538
    %v2622 = vmul.f32 %v2621, %v2460
    %2624 = vrot.lane.b32.xlu0 %v2620, 118
    %v2625 = vpop.permute.xlu0 %2624
    %v2627 = vmul.f32 %v2538, %v2625
    %v2628 = vadd.f32 %v2622, %v2627
    %v2629 = vsub.f32 %v2628, %v604
    %v2630 = vsel %vm778, %v2629, -inf
    %2631 = vmax.xlane.f32.xlu0 %v2630
    %v2632 = vpop.xlane.xlu0 %2631
    %v2633 = vsub.f32 %v2629, %v2632
    %v2634 = vmul.f32 %v2633, 1.442695
    %v2635 = vpow.pop %v2634
    %v2636 = vsel %vm778, %v2635, 0.0
    %2637 = vadd.xlane.f32.xlu0 %v2636
    %v2638 = vpop.xlane.xlu0 %2637
    %v2639 = vrcp.pop %v2638
    %v2640 = vmul.f32 %v2635, %v2639
    %v2641 = vadd.f32 %v2640, %v603
    %v2643 = vsel %vm797, %v2641, 0
    %v2645 = vsel %vm801, %v2369, 0
    %2647 = vmatprep.subr.mxu0 0.0
    %2648 = vmatpush1.msra.mxu0 0.0
    %2649 = vmatprep.subr.mxu0 0.0
    %2650 = vmatpush1.msra.mxu0 0.0
    %2651 = vmatprep.subr.mxu0 0.0
    %2652 = vmatpush1.msra.mxu0 0.0
    %2653 = vmatprep.subr.mxu0 0.0
    %2654 = vmatpush1.msra.mxu0 0.0
    %2655 = vmatprep.subr.mxu0 0.0
    %2656 = vmatpush1.msra.mxu0 0.0
    %2657 = vmatprep.subr.mxu0 0.0
    %2658 = vmatpush1.msra.mxu0 0.0
    %2659 = vmatprep.subr.mxu0 0.0
    %2660 = vmatpush1.msra.mxu0 0.0
    %2661 = vmatprep.subr.mxu0 0.0
    %2662 = vmatpush1.msra.mxu0 0.0
    %2663 = vmatprep.subr.mxu0 0.0
    %2664 = vmatpush1.msra.mxu0 0.0
    %2665 = vmatprep.subr.mxu0 0.0
    %2666 = vmatpush1.msra.mxu0 0.0
    %2667 = vmatprep.subr.mxu0 0.0
    %2668 = vmatpush1.msra.mxu0 0.0
    %2669 = vmatprep.subr.mxu0 0.0
    %2670 = vmatpush1.msra.mxu0 0.0
    %2671 = vmatprep.subr.mxu0 0.0
    %2672 = vmatpush1.msra.mxu0 0.0
    %2673 = vmatprep.subr.mxu0 0.0
    %2674 = vmatpush1.msra.mxu0 0.0
    %2675 = vmatprep.subr.mxu0 0.0
    %2676 = vmatpush1.msra.mxu0 0.0
    %2677 = vmatprep.subr.mxu0 0.0
    %2678 = vmatpush1.msra.mxu0 %v2645
    %2679 = vmatprep.subr.mxu0 0.0
    %2680 = vmatpush2.msra.mxu0 0.0
    %2681 = vmatprep.subr.mxu0 0.0
    %2682 = vmatpush2.msra.mxu0 0.0
    %2683 = vmatprep.subr.mxu0 0.0
    %2684 = vmatpush2.msra.mxu0 0.0
    %2685 = vmatprep.subr.mxu0 0.0
    %2686 = vmatpush2.msra.mxu0 0.0
    %2687 = vmatprep.subr.mxu0 0.0
    %2688 = vmatpush2.msra.mxu0 0.0
    %2689 = vmatprep.subr.mxu0 0.0
    %2690 = vmatpush2.msra.mxu0 0.0
    %2691 = vmatprep.subr.mxu0 0.0
    %2692 = vmatpush2.msra.mxu0 0.0
    %2693 = vmatprep.subr.mxu0 0.0
    %2694 = vmatpush2.msra.mxu0 0.0
    %2695 = vmatprep.subr.mxu0 0.0
    %2696 = vmatpush2.msra.mxu0 0.0
    %2697 = vmatprep.subr.mxu0 0.0
    %2698 = vmatpush2.msra.mxu0 0.0
    %2699 = vmatprep.subr.mxu0 0.0
    %2700 = vmatpush2.msra.mxu0 0.0
    %2701 = vmatprep.subr.mxu0 0.0
    %2702 = vmatpush2.msra.mxu0 0.0
    %2703 = vmatprep.subr.mxu0 0.0
    %2704 = vmatpush2.msra.mxu0 0.0
    %2705 = vmatprep.subr.mxu0 0.0
    %2706 = vmatpush2.msra.mxu0 0.0
    %2707 = vmatprep.subr.mxu0 0.0
    %2708 = vmatpush2.msra.mxu0 0.0
    %2709 = vmatprep.subr.mxu0 0.0
    %2710 = vmatpush2.msra.mxu0 0.0
    %2711 = vmatprep.mubr.f32.mxu0 0.0
    %2712 = vmatmul.mubr.f32.gmra.mxu0 %v2643
    %v2713 = vpop.f32.mrf.mxu0
    %v2714 = vadd.f32 0.0, %v2713
    %v2715 = vpop.f32.mrf.mxu0
    %2716 = vdwg.mxu0
    %v2718 = vsel %vm429, %v2714, 0
    %2720 = vmatprep.subr.mxu0 0.0
    %2721 = vmatpush1.msra.mxu0 0.0
    %2722 = vmatprep.subr.mxu0 0.0
    %2723 = vmatpush1.msra.mxu0 0.0
    %2724 = vmatprep.subr.mxu0 0.0
    %2725 = vmatpush1.msra.mxu0 0.0
    %2726 = vmatprep.subr.mxu0 0.0
    %2727 = vmatpush1.msra.mxu0 0.0
    %2728 = vmatprep.subr.mxu0 0.0
    %2729 = vmatpush1.msra.mxu0 0.0
    %2730 = vmatprep.subr.mxu0 0.0
    %2731 = vmatpush1.msra.mxu0 0.0
    %2732 = vmatprep.subr.mxu0 0.0
    %2733 = vmatpush1.msra.mxu0 0.0
    %2734 = vmatprep.subr.mxu0 0.0
    %2735 = vmatpush1.msra.mxu0 0.0
    %2736 = vmatprep.subr.mxu0 0.0
    %2737 = vmatpush1.msra.mxu0 0.0
    %2738 = vmatprep.subr.mxu0 0.0
    %2739 = vmatpush1.msra.mxu0 0.0
    %2740 = vmatprep.subr.mxu0 0.0
    %2741 = vmatpush1.msra.mxu0 0.0
    %2742 = vmatprep.subr.mxu0 0.0
    %2743 = vmatpush1.msra.mxu0 0.0
    %2744 = vmatprep.subr.mxu0 0.0
    %2745 = vmatpush1.msra.mxu0 0.0
    %2746 = vmatprep.subr.mxu0 0.0
    %2747 = vmatpush1.msra.mxu0 %v1162
    %2748 = vmatprep.subr.mxu0 0.0
    %2749 = vmatpush1.msra.mxu0 %v615
    %2750 = vmatprep.subr.mxu0 0.0
    %2751 = vmatpush1.msra.mxu0 %v614
    %2752 = vmatprep.subr.mxu0 0.0
    %2753 = vmatpush2.msra.mxu0 0.0
    %2754 = vmatprep.subr.mxu0 0.0
    %2755 = vmatpush2.msra.mxu0 0.0
    %2756 = vmatprep.subr.mxu0 0.0
    %2757 = vmatpush2.msra.mxu0 0.0
    %2758 = vmatprep.subr.mxu0 0.0
    %2759 = vmatpush2.msra.mxu0 0.0
    %2760 = vmatprep.subr.mxu0 0.0
    %2761 = vmatpush2.msra.mxu0 0.0
    %2762 = vmatprep.subr.mxu0 0.0
    %2763 = vmatpush2.msra.mxu0 0.0
    %2764 = vmatprep.subr.mxu0 0.0
    %2765 = vmatpush2.msra.mxu0 0.0
    %2766 = vmatprep.subr.mxu0 0.0
    %2767 = vmatpush2.msra.mxu0 0.0
    %2768 = vmatprep.subr.mxu0 0.0
    %2769 = vmatpush2.msra.mxu0 0.0
    %2770 = vmatprep.subr.mxu0 0.0
    %2771 = vmatpush2.msra.mxu0 0.0
    %2772 = vmatprep.subr.mxu0 0.0
    %2773 = vmatpush2.msra.mxu0 0.0
    %2774 = vmatprep.subr.mxu0 0.0
    %2775 = vmatpush2.msra.mxu0 0.0
    %2776 = vmatprep.subr.mxu0 0.0
    %2777 = vmatpush2.msra.mxu0 0.0
    %2778 = vmatprep.subr.mxu0 0.0
    %2779 = vmatpush2.msra.mxu0 0.0
    %2780 = vmatprep.subr.mxu0 0.0
    %2781 = vmatpush2.msra.mxu0 0.0
    %2782 = vmatprep.subr.mxu0 0.0
    %2783 = vmatpush2.msra.mxu0 0.0
    %2784 = vmatprep.mubr.f32.mxu0 0.0
    %2785 = vmatmul.mubr.f32.gmra.mxu0 %v2718
    %v2786 = vpop.f32.mrf.mxu0
    %v2787 = vadd.f32 %v1155, %v2786
    %v2788 = vpop.f32.mrf.mxu0
    %2789 = vdwg.mxu0
    %vm2790 = vcmp.ge.f32.partialorder %v2787, 0.0
    %v2791 = vmul.f32 %v2787, 0.01
    %v2792 = vsel %vm2790, %v2787, %v2791
    %v2793 = vld [vmem:[%s27] sm:$0xff]
    %v2794 = vld [vmem:[%s27 + $0x8] sm:$0xff]
    %v2795 = vld [vmem:[%s27 + $0x10] sm:$0xff]
    %v2796 = vld [vmem:[%s27 + $0x18] sm:$0x7]
    %v2797 = vld [vmem:[#allocation10] sm:$0x1]
    %v2798 = vld [vmem:[%s31] sm:$0xff]
    %v2799 = vld [vmem:[%s31 + $0x8] sm:$0xf]
    %v2800 = vld [vmem:[#allocation11] sm:$0xff]
    %v2801 = vld [vmem:[#allocation11 + $0x8] sm:$0xf]
    %v2802 = vld [vmem:[%s35] sm:$0xff]
    %v2803 = vld [vmem:[%s35 + $0x8] sm:$0xff]
    %v2804 = vld [vmem:[%s35 + $0x10] sm:$0xf]
    %v2805 = vld [vmem:[%s35 + $0x18] sm:$0xf]
    %v2806 = vld [vmem:[#allocation13] sm:$0x3]
    %v2807 = vld [vmem:[%s39] sm:$0xff]
    %v2808 = vld [vmem:[%s39 + $0x8] sm:$0xff]
    %v2809 = vld [vmem:[%s39 + $0x10] sm:$0xff]
    %v2810 = vld [vmem:[%s41] sm:$0xff]
    %v2811 = vld [vmem:[%s41 + $0x8] sm:$0xff]
    %v2812 = vld [vmem:[%s41 + $0x10] sm:$0xff]
    %v2813 = vld [vmem:[%s43] sm:$0xff]
    %v2814 = vld [vmem:[%s43 + $0x8] sm:$0xff]
    %v2815 = vld [vmem:[%s43 + $0x10] sm:$0xff]
    %v2816 = vld [vmem:[#allocation14] sm:$0x1]
    %v2817 = vld [vmem:[#allocation16] sm:$0xff]
    %v2818 = vld [vmem:[#allocation16 + $0x8] sm:$0xf]
    %v2819 = vld [vmem:[#allocation17] sm:$0xff]
    %v2820 = vld [vmem:[#allocation17 + $0x8] sm:$0xf]
    %v2822 = vlaneseq
    %v2823 = vshrl.u32 %v2822, 7
    %v2824 = vsub.s32 0, %v2823
    %v2825 = vrot.slane %v2797, %v2824
    %vm2827 = vcmask 220160
    %v2829 = vsel %vm2827, %v1236, 0
    %vm2831 = vcmask 1042432
    %v2833 = vsel %vm2831, %v2796, 0
    %2835 = vmatprep.subr.mxu0 0.0
    %2836 = vmatpush1.msra.mxu0 0.0
    %2837 = vmatprep.subr.mxu0 0.0
    %2838 = vmatpush1.msra.mxu0 0.0
    %2839 = vmatprep.subr.mxu0 0.0
    %2840 = vmatpush1.msra.mxu0 0.0
    %2841 = vmatprep.subr.mxu0 0.0
    %2842 = vmatpush1.msra.mxu0 0.0
    %2843 = vmatprep.subr.mxu0 0.0
    %2844 = vmatpush1.msra.mxu0 0.0
    %2845 = vmatprep.subr.mxu0 0.0
    %2846 = vmatpush1.msra.mxu0 0.0
    %2847 = vmatprep.subr.mxu0 0.0
    %2848 = vmatpush1.msra.mxu0 0.0
    %2849 = vmatprep.subr.mxu0 0.0
    %2850 = vmatpush1.msra.mxu0 0.0
    %2851 = vmatprep.subr.mxu0 0.0
    %2852 = vmatpush1.msra.mxu0 0.0
    %2853 = vmatprep.subr.mxu0 0.0
    %2854 = vmatpush1.msra.mxu0 0.0
    %2855 = vmatprep.subr.mxu0 0.0
    %2856 = vmatpush1.msra.mxu0 0.0
    %2857 = vmatprep.subr.mxu0 0.0
    %2858 = vmatpush1.msra.mxu0 0.0
    %2859 = vmatprep.subr.mxu0 0.0
    %2860 = vmatpush1.msra.mxu0 %v2833
    %2861 = vmatprep.subr.mxu0 0.0
    %2862 = vmatpush1.msra.mxu0 %v2795
    %2863 = vmatprep.subr.mxu0 0.0
    %2864 = vmatpush1.msra.mxu0 %v2794
    %2865 = vmatprep.subr.mxu0 0.0
    %2866 = vmatpush1.msra.mxu0 %v2793
    %2867 = vmatprep.subr.mxu0 0.0
    %2868 = vmatpush2.msra.mxu0 0.0
    %2869 = vmatprep.subr.mxu0 0.0
    %2870 = vmatpush2.msra.mxu0 0.0
    %2871 = vmatprep.subr.mxu0 0.0
    %2872 = vmatpush2.msra.mxu0 0.0
    %2873 = vmatprep.subr.mxu0 0.0
    %2874 = vmatpush2.msra.mxu0 0.0
    %2875 = vmatprep.subr.mxu0 0.0
    %2876 = vmatpush2.msra.mxu0 0.0
    %2877 = vmatprep.subr.mxu0 0.0
    %2878 = vmatpush2.msra.mxu0 0.0
    %2879 = vmatprep.subr.mxu0 0.0
    %2880 = vmatpush2.msra.mxu0 0.0
    %2881 = vmatprep.subr.mxu0 0.0
    %2882 = vmatpush2.msra.mxu0 0.0
    %2883 = vmatprep.subr.mxu0 0.0
    %2884 = vmatpush2.msra.mxu0 0.0
    %2885 = vmatprep.subr.mxu0 0.0
    %2886 = vmatpush2.msra.mxu0 0.0
    %2887 = vmatprep.subr.mxu0 0.0
    %2888 = vmatpush2.msra.mxu0 0.0
    %2889 = vmatprep.subr.mxu0 0.0
    %2890 = vmatpush2.msra.mxu0 0.0
    %2891 = vmatprep.subr.mxu0 0.0
    %2892 = vmatpush2.msra.mxu0 0.0
    %2893 = vmatprep.subr.mxu0 0.0
    %2894 = vmatpush2.msra.mxu0 0.0
    %2895 = vmatprep.subr.mxu0 0.0
    %2896 = vmatpush2.msra.mxu0 0.0
    %2897 = vmatprep.subr.mxu0 0.0
    %2898 = vmatpush2.msra.mxu0 0.0
    %2899 = vmatprep.mubr.f32.mxu0 0.0
    %2900 = vmatmul.mubr.f32.gmra.mxu0 %v2829
    %v2901 = vpop.f32.mrf.mxu0
    %v2902 = vadd.f32 %v2825, %v2901
    %v2903 = vpop.f32.mrf.mxu0
    %2904 = vdwg.mxu0
    %v2906 = vsel %vm2827, %v2297, 0
    %2908 = vmatprep.subr.mxu0 0.0
    %2909 = vmatpush1.msra.mxu0 0.0
    %2910 = vmatprep.subr.mxu0 0.0
    %2911 = vmatpush1.msra.mxu0 0.0
    %2912 = vmatprep.subr.mxu0 0.0
    %2913 = vmatpush1.msra.mxu0 0.0
    %2914 = vmatprep.subr.mxu0 0.0
    %2915 = vmatpush1.msra.mxu0 0.0
    %2916 = vmatprep.subr.mxu0 0.0
    %2917 = vmatpush1.msra.mxu0 0.0
    %2918 = vmatprep.subr.mxu0 0.0
    %2919 = vmatpush1.msra.mxu0 0.0
    %2920 = vmatprep.subr.mxu0 0.0
    %2921 = vmatpush1.msra.mxu0 0.0
    %2922 = vmatprep.subr.mxu0 0.0
    %2923 = vmatpush1.msra.mxu0 0.0
    %2924 = vmatprep.subr.mxu0 0.0
    %2925 = vmatpush1.msra.mxu0 0.0
    %2926 = vmatprep.subr.mxu0 0.0
    %2927 = vmatpush1.msra.mxu0 0.0
    %2928 = vmatprep.subr.mxu0 0.0
    %2929 = vmatpush1.msra.mxu0 0.0
    %2930 = vmatprep.subr.mxu0 0.0
    %2931 = vmatpush1.msra.mxu0 0.0
    %2932 = vmatprep.subr.mxu0 0.0
    %2933 = vmatpush1.msra.mxu0 %v2833
    %2934 = vmatprep.subr.mxu0 0.0
    %2935 = vmatpush1.msra.mxu0 %v2795
    %2936 = vmatprep.subr.mxu0 0.0
    %2937 = vmatpush1.msra.mxu0 %v2794
    %2938 = vmatprep.subr.mxu0 0.0
    %2939 = vmatpush1.msra.mxu0 %v2793
    %2940 = vmatprep.subr.mxu0 0.0
    %2941 = vmatpush2.msra.mxu0 0.0
    %2942 = vmatprep.subr.mxu0 0.0
    %2943 = vmatpush2.msra.mxu0 0.0
    %2944 = vmatprep.subr.mxu0 0.0
    %2945 = vmatpush2.msra.mxu0 0.0
    %2946 = vmatprep.subr.mxu0 0.0
    %2947 = vmatpush2.msra.mxu0 0.0
    %2948 = vmatprep.subr.mxu0 0.0
    %2949 = vmatpush2.msra.mxu0 0.0
    %2950 = vmatprep.subr.mxu0 0.0
    %2951 = vmatpush2.msra.mxu0 0.0
    %2952 = vmatprep.subr.mxu0 0.0
    %2953 = vmatpush2.msra.mxu0 0.0
    %2954 = vmatprep.subr.mxu0 0.0
    %2955 = vmatpush2.msra.mxu0 0.0
    %2956 = vmatprep.subr.mxu0 0.0
    %2957 = vmatpush2.msra.mxu0 0.0
    %2958 = vmatprep.subr.mxu0 0.0
    %2959 = vmatpush2.msra.mxu0 0.0
    %2960 = vmatprep.subr.mxu0 0.0
    %2961 = vmatpush2.msra.mxu0 0.0
    %2962 = vmatprep.subr.mxu0 0.0
    %2963 = vmatpush2.msra.mxu0 0.0
    %2964 = vmatprep.subr.mxu0 0.0
    %2965 = vmatpush2.msra.mxu0 0.0
    %2966 = vmatprep.subr.mxu0 0.0
    %2967 = vmatpush2.msra.mxu0 0.0
    %2968 = vmatprep.subr.mxu0 0.0
    %2969 = vmatpush2.msra.mxu0 0.0
    %2970 = vmatprep.subr.mxu0 0.0
    %2971 = vmatpush2.msra.mxu0 0.0
    %2972 = vmatprep.mubr.f32.mxu0 0.0
    %2973 = vmatmul.mubr.f32.gmra.mxu0 %v2906
    %v2974 = vpop.f32.mrf.mxu0
    %v2975 = vadd.f32 %v2825, %v2974
    %v2976 = vpop.f32.mrf.mxu0
    %2977 = vdwg.mxu0
    %vm2978 = vcmask 97280
    %v2980 = vsel %vm2978, 0.0, 0
    %vm2982 = vcmask 1043456
    %v2984 = vsel %vm2982, %v2799, 0
    %2986 = vmatprep.subr.mxu0 0.0
    %2987 = vmatpush1.msra.mxu0 0.0
    %2988 = vmatprep.subr.mxu0 0.0
    %2989 = vmatpush1.msra.mxu0 0.0
    %2990 = vmatprep.subr.mxu0 0.0
    %2991 = vmatpush1.msra.mxu0 0.0
    %2992 = vmatprep.subr.mxu0 0.0
    %2993 = vmatpush1.msra.mxu0 0.0
    %2994 = vmatprep.subr.mxu0 0.0
    %2995 = vmatpush1.msra.mxu0 0.0
    %2996 = vmatprep.subr.mxu0 0.0
    %2997 = vmatpush1.msra.mxu0 0.0
    %2998 = vmatprep.subr.mxu0 0.0
    %2999 = vmatpush1.msra.mxu0 0.0
    %3000 = vmatprep.subr.mxu0 0.0
    %3001 = vmatpush1.msra.mxu0 0.0
    %3002 = vmatprep.subr.mxu0 0.0
    %3003 = vmatpush1.msra.mxu0 0.0
    %3004 = vmatprep.subr.mxu0 0.0
    %3005 = vmatpush1.msra.mxu0 0.0
    %3006 = vmatprep.subr.mxu0 0.0
    %3007 = vmatpush1.msra.mxu0 0.0
    %3008 = vmatprep.subr.mxu0 0.0
    %3009 = vmatpush1.msra.mxu0 0.0
    %3010 = vmatprep.subr.mxu0 0.0
    %3011 = vmatpush1.msra.mxu0 0.0
    %3012 = vmatprep.subr.mxu0 0.0
    %3013 = vmatpush1.msra.mxu0 0.0
    %3014 = vmatprep.subr.mxu0 0.0
    %3015 = vmatpush1.msra.mxu0 %v2984
    %3016 = vmatprep.subr.mxu0 0.0
    %3017 = vmatpush1.msra.mxu0 %v2798
    %3018 = vmatprep.subr.mxu0 0.0
    %3019 = vmatpush2.msra.mxu0 0.0
    %3020 = vmatprep.subr.mxu0 0.0
    %3021 = vmatpush2.msra.mxu0 0.0
    %3022 = vmatprep.subr.mxu0 0.0
    %3023 = vmatpush2.msra.mxu0 0.0
    %3024 = vmatprep.subr.mxu0 0.0
    %3025 = vmatpush2.msra.mxu0 0.0
    %3026 = vmatprep.subr.mxu0 0.0
    %3027 = vmatpush2.msra.mxu0 0.0
    %3028 = vmatprep.subr.mxu0 0.0
    %3029 = vmatpush2.msra.mxu0 0.0
    %3030 = vmatprep.subr.mxu0 0.0
    %3031 = vmatpush2.msra.mxu0 0.0
    %3032 = vmatprep.subr.mxu0 0.0
    %3033 = vmatpush2.msra.mxu0 0.0
    %3034 = vmatprep.subr.mxu0 0.0
    %3035 = vmatpush2.msra.mxu0 0.0
    %3036 = vmatprep.subr.mxu0 0.0
    %3037 = vmatpush2.msra.mxu0 0.0
    %3038 = vmatprep.subr.mxu0 0.0
    %3039 = vmatpush2.msra.mxu0 0.0
    %3040 = vmatprep.subr.mxu0 0.0
    %3041 = vmatpush2.msra.mxu0 0.0
    %3042 = vmatprep.subr.mxu0 0.0
    %3043 = vmatpush2.msra.mxu0 0.0
    %3044 = vmatprep.subr.mxu0 0.0
    %3045 = vmatpush2.msra.mxu0 0.0
    %3046 = vmatprep.subr.mxu0 0.0
    %3047 = vmatpush2.msra.mxu0 0.0
    %3048 = vmatprep.subr.mxu0 0.0
    %3049 = vmatpush2.msra.mxu0 0.0
    %3050 = vmatprep.mubr.f32.mxu0 0.0
    %3051 = vmatmul.mubr.f32.gmra.mxu0 %v2980
    %v3052 = vpop.f32.mrf.mxu0
    %v3053 = vadd.f32 0.0, %v3052
    %v3054 = vpop.f32.mrf.mxu0
    %3055 = vdwg.mxu0
    %v3056 = vadd.f32 %v2902, %v3053
    %v3057 = vmul.f32 %v3056, 0.5
    %v3058 = vtanh.pop %v3057
    %v3059 = vmul.f32 %v3058, 0.5
    %v3060 = vadd.f32 %v3059, 0.5
    %v3061 = vtanh.pop %v3056
    %v3062 = vmul.f32 %v3060, 0.0
    %3064 = vrot.lane.b32.xlu0 %v3061, 104
    %v3065 = vpop.permute.xlu0 %3064
    %v3067 = vmul.f32 %v3060, %v3065
    %3069 = vrot.lane.b32.xlu0 %v3067, 12
    %v3070 = vpop.permute.xlu0 %3069
    %v3072 = vadd.f32 %v3062, %v3070
    %v3073 = vtanh.pop %v3072
    %3075 = vrot.lane.b32.xlu0 %v3073, 24
    %v3076 = vpop.permute.xlu0 %3075
    %v3078 = vmul.f32 %v3060, %v3076
    %3080 = vrot.lane.b32.xlu0 %v3078, 92
    %v3081 = vpop.permute.xlu0 %3080
    %v3082 = vsel %vm2978, %v3081, 0
    %3084 = vmatprep.subr.mxu0 0.0
    %3085 = vmatpush1.msra.mxu0 0.0
    %3086 = vmatprep.subr.mxu0 0.0
    %3087 = vmatpush1.msra.mxu0 0.0
    %3088 = vmatprep.subr.mxu0 0.0
    %3089 = vmatpush1.msra.mxu0 0.0
    %3090 = vmatprep.subr.mxu0 0.0
    %3091 = vmatpush1.msra.mxu0 0.0
    %3092 = vmatprep.subr.mxu0 0.0
    %3093 = vmatpush1.msra.mxu0 0.0
    %3094 = vmatprep.subr.mxu0 0.0
    %3095 = vmatpush1.msra.mxu0 0.0
    %3096 = vmatprep.subr.mxu0 0.0
    %3097 = vmatpush1.msra.mxu0 0.0
    %3098 = vmatprep.subr.mxu0 0.0
    %3099 = vmatpush1.msra.mxu0 0.0
    %3100 = vmatprep.subr.mxu0 0.0
    %3101 = vmatpush1.msra.mxu0 0.0
    %3102 = vmatprep.subr.mxu0 0.0
    %3103 = vmatpush1.msra.mxu0 0.0
    %3104 = vmatprep.subr.mxu0 0.0
    %3105 = vmatpush1.msra.mxu0 0.0
    %3106 = vmatprep.subr.mxu0 0.0
    %3107 = vmatpush1.msra.mxu0 0.0
    %3108 = vmatprep.subr.mxu0 0.0
    %3109 = vmatpush1.msra.mxu0 0.0
    %3110 = vmatprep.subr.mxu0 0.0
    %3111 = vmatpush1.msra.mxu0 0.0
    %3112 = vmatprep.subr.mxu0 0.0
    %3113 = vmatpush1.msra.mxu0 %v2984
    %3114 = vmatprep.subr.mxu0 0.0
    %3115 = vmatpush1.msra.mxu0 %v2798
    %3116 = vmatprep.subr.mxu0 0.0
    %3117 = vmatpush2.msra.mxu0 0.0
    %3118 = vmatprep.subr.mxu0 0.0
    %3119 = vmatpush2.msra.mxu0 0.0
    %3120 = vmatprep.subr.mxu0 0.0
    %3121 = vmatpush2.msra.mxu0 0.0
    %3122 = vmatprep.subr.mxu0 0.0
    %3123 = vmatpush2.msra.mxu0 0.0
    %3124 = vmatprep.subr.mxu0 0.0
    %3125 = vmatpush2.msra.mxu0 0.0
    %3126 = vmatprep.subr.mxu0 0.0
    %3127 = vmatpush2.msra.mxu0 0.0
    %3128 = vmatprep.subr.mxu0 0.0
    %3129 = vmatpush2.msra.mxu0 0.0
    %3130 = vmatprep.subr.mxu0 0.0
    %3131 = vmatpush2.msra.mxu0 0.0
    %3132 = vmatprep.subr.mxu0 0.0
    %3133 = vmatpush2.msra.mxu0 0.0
    %3134 = vmatprep.subr.mxu0 0.0
    %3135 = vmatpush2.msra.mxu0 0.0
    %3136 = vmatprep.subr.mxu0 0.0
    %3137 = vmatpush2.msra.mxu0 0.0
    %3138 = vmatprep.subr.mxu0 0.0
    %3139 = vmatpush2.msra.mxu0 0.0
    %3140 = vmatprep.subr.mxu0 0.0
    %3141 = vmatpush2.msra.mxu0 0.0
    %3142 = vmatprep.subr.mxu0 0.0
    %3143 = vmatpush2.msra.mxu0 0.0
    %3144 = vmatprep.subr.mxu0 0.0
    %3145 = vmatpush2.msra.mxu0 0.0
    %3146 = vmatprep.subr.mxu0 0.0
    %3147 = vmatpush2.msra.mxu0 0.0
    %3148 = vmatprep.mubr.f32.mxu0 0.0
    %3149 = vmatmul.mubr.f32.gmra.mxu0 %v3082
    %v3150 = vpop.f32.mrf.mxu0
    %v3151 = vadd.f32 0.0, %v3150
    %v3152 = vpop.f32.mrf.mxu0
    %3153 = vdwg.mxu0
    %v3154 = vadd.f32 %v2975, %v3151
    %v3155 = vmul.f32 %v3154, 0.5
    %v3156 = vtanh.pop %v3155
    %v3157 = vmul.f32 %v3156, 0.5
    %v3158 = vadd.f32 %v3157, 0.5
    %v3159 = vtanh.pop %v3154
    %v3160 = vmul.f32 %v3158, %v3072
    %3162 = vrot.lane.b32.xlu0 %v3159, 104
    %v3163 = vpop.permute.xlu0 %3162
    %v3165 = vmul.f32 %v3158, %v3163
    %3167 = vrot.lane.b32.xlu0 %v3165, 12
    %v3168 = vpop.permute.xlu0 %3167
    %v3170 = vadd.f32 %v3160, %v3168
    %v3171 = vtanh.pop %v3170
    %3173 = vrot.lane.b32.xlu0 %v3171, 24
    %v3174 = vpop.permute.xlu0 %3173
    %v3176 = vmul.f32 %v3158, %v3174
    %v3178 = vsel %vm2982, %v2801, 0
    %3180 = vmatprep.subr.mxu0 0.0
    %3181 = vmatpush1.msra.mxu0 0.0
    %3182 = vmatprep.subr.mxu0 0.0
    %3183 = vmatpush1.msra.mxu0 0.0
    %3184 = vmatprep.subr.mxu0 0.0
    %3185 = vmatpush1.msra.mxu0 0.0
    %3186 = vmatprep.subr.mxu0 0.0
    %3187 = vmatpush1.msra.mxu0 0.0
    %3188 = vmatprep.subr.mxu0 0.0
    %3189 = vmatpush1.msra.mxu0 0.0
    %3190 = vmatprep.subr.mxu0 0.0
    %3191 = vmatpush1.msra.mxu0 0.0
    %3192 = vmatprep.subr.mxu0 0.0
    %3193 = vmatpush1.msra.mxu0 0.0
    %3194 = vmatprep.subr.mxu0 0.0
    %3195 = vmatpush1.msra.mxu0 0.0
    %3196 = vmatprep.subr.mxu0 0.0
    %3197 = vmatpush1.msra.mxu0 0.0
    %3198 = vmatprep.subr.mxu0 0.0
    %3199 = vmatpush1.msra.mxu0 0.0
    %3200 = vmatprep.subr.mxu0 0.0
    %3201 = vmatpush1.msra.mxu0 0.0
    %3202 = vmatprep.subr.mxu0 0.0
    %3203 = vmatpush1.msra.mxu0 0.0
    %3204 = vmatprep.subr.mxu0 0.0
    %3205 = vmatpush1.msra.mxu0 0.0
    %3206 = vmatprep.subr.mxu0 0.0
    %3207 = vmatpush1.msra.mxu0 0.0
    %3208 = vmatprep.subr.mxu0 0.0
    %3209 = vmatpush1.msra.mxu0 %v3178
    %3210 = vmatprep.subr.mxu0 0.0
    %3211 = vmatpush1.msra.mxu0 %v2800
    %3212 = vmatprep.subr.mxu0 0.0
    %3213 = vmatpush2.msra.mxu0 0.0
    %3214 = vmatprep.subr.mxu0 0.0
    %3215 = vmatpush2.msra.mxu0 0.0
    %3216 = vmatprep.subr.mxu0 0.0
    %3217 = vmatpush2.msra.mxu0 0.0
    %3218 = vmatprep.subr.mxu0 0.0
    %3219 = vmatpush2.msra.mxu0 0.0
    %3220 = vmatprep.subr.mxu0 0.0
    %3221 = vmatpush2.msra.mxu0 0.0
    %3222 = vmatprep.subr.mxu0 0.0
    %3223 = vmatpush2.msra.mxu0 0.0
    %3224 = vmatprep.subr.mxu0 0.0
    %3225 = vmatpush2.msra.mxu0 0.0
    %3226 = vmatprep.subr.mxu0 0.0
    %3227 = vmatpush2.msra.mxu0 0.0
    %3228 = vmatprep.subr.mxu0 0.0
    %3229 = vmatpush2.msra.mxu0 0.0
    %3230 = vmatprep.subr.mxu0 0.0
    %3231 = vmatpush2.msra.mxu0 0.0
    %3232 = vmatprep.subr.mxu0 0.0
    %3233 = vmatpush2.msra.mxu0 0.0
    %3234 = vmatprep.subr.mxu0 0.0
    %3235 = vmatpush2.msra.mxu0 0.0
    %3236 = vmatprep.subr.mxu0 0.0
    %3237 = vmatpush2.msra.mxu0 0.0
    %3238 = vmatprep.subr.mxu0 0.0
    %3239 = vmatpush2.msra.mxu0 0.0
    %3240 = vmatprep.subr.mxu0 0.0
    %3241 = vmatpush2.msra.mxu0 0.0
    %3242 = vmatprep.subr.mxu0 0.0
    %3243 = vmatpush2.msra.mxu0 0.0
    %3244 = vmatprep.mubr.f32.mxu0 0.0
    %3245 = vmatmul.mubr.f32.gmra.mxu0 %v2980
    %v3246 = vpop.f32.mrf.mxu0
    %v3247 = vadd.f32 0.0, %v3246
    %v3248 = vpop.f32.mrf.mxu0
    %3249 = vdwg.mxu0
    %3251 = vrot.lane.b32.xlu0 %v3247, 48
    %v3252 = vpop.permute.xlu0 %3251
    %v3254 = vadd.f32 %v2975, %v3252
    %v3255 = vmul.f32 %v3254, 0.5
    %v3256 = vtanh.pop %v3255
    %v3257 = vmul.f32 %v3256, 0.5
    %v3258 = vadd.f32 %v3257, 0.5
    %v3259 = vtanh.pop %v3254
    %v3260 = vmul.f32 %v3258, 0.0
    %3262 = vrot.lane.b32.xlu0 %v3259, 104
    %v3263 = vpop.permute.xlu0 %3262
    %v3265 = vmul.f32 %v3258, %v3263
    %3267 = vrot.lane.b32.xlu0 %v3265, 12
    %v3268 = vpop.permute.xlu0 %3267
    %v3270 = vadd.f32 %v3260, %v3268
    %v3271 = vtanh.pop %v3270
    %3273 = vrot.lane.b32.xlu0 %v3271, 24
    %v3274 = vpop.permute.xlu0 %3273
    %v3276 = vmul.f32 %v3258, %v3274
    %3278 = vrot.lane.b32.xlu0 %v3276, 44
    %v3279 = vpop.permute.xlu0 %3278
    %v3280 = vsel %vm2978, %v3279, 0
    %3282 = vmatprep.subr.mxu0 0.0
    %3283 = vmatpush1.msra.mxu0 0.0
    %3284 = vmatprep.subr.mxu0 0.0
    %3285 = vmatpush1.msra.mxu0 0.0
    %3286 = vmatprep.subr.mxu0 0.0
    %3287 = vmatpush1.msra.mxu0 0.0
    %3288 = vmatprep.subr.mxu0 0.0
    %3289 = vmatpush1.msra.mxu0 0.0
    %3290 = vmatprep.subr.mxu0 0.0
    %3291 = vmatpush1.msra.mxu0 0.0
    %3292 = vmatprep.subr.mxu0 0.0
    %3293 = vmatpush1.msra.mxu0 0.0
    %3294 = vmatprep.subr.mxu0 0.0
    %3295 = vmatpush1.msra.mxu0 0.0
    %3296 = vmatprep.subr.mxu0 0.0
    %3297 = vmatpush1.msra.mxu0 0.0
    %3298 = vmatprep.subr.mxu0 0.0
    %3299 = vmatpush1.msra.mxu0 0.0
    %3300 = vmatprep.subr.mxu0 0.0
    %3301 = vmatpush1.msra.mxu0 0.0
    %3302 = vmatprep.subr.mxu0 0.0
    %3303 = vmatpush1.msra.mxu0 0.0
    %3304 = vmatprep.subr.mxu0 0.0
    %3305 = vmatpush1.msra.mxu0 0.0
    %3306 = vmatprep.subr.mxu0 0.0
    %3307 = vmatpush1.msra.mxu0 0.0
    %3308 = vmatprep.subr.mxu0 0.0
    %3309 = vmatpush1.msra.mxu0 0.0
    %3310 = vmatprep.subr.mxu0 0.0
    %3311 = vmatpush1.msra.mxu0 %v3178
    %3312 = vmatprep.subr.mxu0 0.0
    %3313 = vmatpush1.msra.mxu0 %v2800
    %3314 = vmatprep.subr.mxu0 0.0
    %3315 = vmatpush2.msra.mxu0 0.0
    %3316 = vmatprep.subr.mxu0 0.0
    %3317 = vmatpush2.msra.mxu0 0.0
    %3318 = vmatprep.subr.mxu0 0.0
    %3319 = vmatpush2.msra.mxu0 0.0
    %3320 = vmatprep.subr.mxu0 0.0
    %3321 = vmatpush2.msra.mxu0 0.0
    %3322 = vmatprep.subr.mxu0 0.0
    %3323 = vmatpush2.msra.mxu0 0.0
    %3324 = vmatprep.subr.mxu0 0.0
    %3325 = vmatpush2.msra.mxu0 0.0
    %3326 = vmatprep.subr.mxu0 0.0
    %3327 = vmatpush2.msra.mxu0 0.0
    %3328 = vmatprep.subr.mxu0 0.0
    %3329 = vmatpush2.msra.mxu0 0.0
    %3330 = vmatprep.subr.mxu0 0.0
    %3331 = vmatpush2.msra.mxu0 0.0
    %3332 = vmatprep.subr.mxu0 0.0
    %3333 = vmatpush2.msra.mxu0 0.0
    %3334 = vmatprep.subr.mxu0 0.0
    %3335 = vmatpush2.msra.mxu0 0.0
    %3336 = vmatprep.subr.mxu0 0.0
    %3337 = vmatpush2.msra.mxu0 0.0
    %3338 = vmatprep.subr.mxu0 0.0
    %3339 = vmatpush2.msra.mxu0 0.0
    %3340 = vmatprep.subr.mxu0 0.0
    %3341 = vmatpush2.msra.mxu0 0.0
    %3342 = vmatprep.subr.mxu0 0.0
    %3343 = vmatpush2.msra.mxu0 0.0
    %3344 = vmatprep.subr.mxu0 0.0
    %3345 = vmatpush2.msra.mxu0 0.0
    %3346 = vmatprep.mubr.f32.mxu0 0.0
    %3347 = vmatmul.mubr.f32.gmra.mxu0 %v3280
    %v3348 = vpop.f32.mrf.mxu0
    %v3349 = vadd.f32 0.0, %v3348
    %v3350 = vpop.f32.mrf.mxu0
    %3351 = vdwg.mxu0
    %3353 = vrot.lane.b32.xlu0 %v3349, 48
    %v3354 = vpop.permute.xlu0 %3353
    %v3356 = vadd.f32 %v2902, %v3354
    %v3357 = vmul.f32 %v3356, 0.5
    %v3358 = vtanh.pop %v3357
    %v3359 = vmul.f32 %v3358, 0.5
    %v3360 = vadd.f32 %v3359, 0.5
    %v3361 = vtanh.pop %v3356
    %v3362 = vmul.f32 %v3360, %v3270
    %3364 = vrot.lane.b32.xlu0 %v3361, 104
    %v3365 = vpop.permute.xlu0 %3364
    %v3367 = vmul.f32 %v3360, %v3365
    %3369 = vrot.lane.b32.xlu0 %v3367, 12
    %v3370 = vpop.permute.xlu0 %3369
    %v3372 = vadd.f32 %v3362, %v3370
    %v3373 = vtanh.pop %v3372
    %3375 = vrot.lane.b32.xlu0 %v3373, 24
    %v3376 = vpop.permute.xlu0 %3375
    %v3378 = vmul.f32 %v3360, %v3376
    %3380 = vrot.lane.b32.xlu0 %v3378, 80
    %v3381 = vpop.permute.xlu0 %3380
    %v3383 = vadd.f32 %v3078, %v3381
    %3384 = vrot.lane.b32.xlu0 %v3276, 80
    %v3385 = vpop.permute.xlu0 %3384
    %v3387 = vadd.f32 %v3176, %v3385
    %v3389 = vlaneseq
    %v3390 = vshrl.u32 %v3389, 7
    %v3391 = vsub.s32 0, %v3390
    %v3392 = vrot.slane %v2806, %v3391
    %v3393 = vlaneseq
    %v3394 = vshrl.u32 %v3393, 7
    %v3395 = vsub.s32 1, %v3394
    %v3396 = vrot.slane %v2806, %v3395
    %3400 = vrot.lane.b32.xlu0 %v3383, 92
    %v3401 = vpop.permute.xlu0 %3400
    %v3402 = vsel %vm2978, %v3401, 0
    %v3405 = vsel %vm2982, %v2804, 0
    %v3408 = vsel %vm2982, %v2805, 0
    %3410 = vmatprep.subr.mxu0 0.0
    %3411 = vmatpush1.msra.mxu0 0.0
    %3412 = vmatprep.subr.mxu0 0.0
    %3413 = vmatpush1.msra.mxu0 0.0
    %3414 = vmatprep.subr.mxu0 0.0
    %3415 = vmatpush1.msra.mxu0 0.0
    %3416 = vmatprep.subr.mxu0 0.0
    %3417 = vmatpush1.msra.mxu0 0.0
    %3418 = vmatprep.subr.mxu0 0.0
    %3419 = vmatpush1.msra.mxu0 0.0
    %3420 = vmatprep.subr.mxu0 0.0
    %3421 = vmatpush1.msra.mxu0 0.0
    %3422 = vmatprep.subr.mxu0 0.0
    %3423 = vmatpush1.msra.mxu0 0.0
    %3424 = vmatprep.subr.mxu0 0.0
    %3425 = vmatpush1.msra.mxu0 0.0
    %3426 = vmatprep.subr.mxu0 0.0
    %3427 = vmatpush1.msra.mxu0 0.0
    %3428 = vmatprep.subr.mxu0 0.0
    %3429 = vmatpush1.msra.mxu0 0.0
    %3430 = vmatprep.subr.mxu0 0.0
    %3431 = vmatpush1.msra.mxu0 0.0
    %3432 = vmatprep.subr.mxu0 0.0
    %3433 = vmatpush1.msra.mxu0 0.0
    %3434 = vmatprep.subr.mxu0 0.0
    %3435 = vmatpush1.msra.mxu0 0.0
    %3436 = vmatprep.subr.mxu0 0.0
    %3437 = vmatpush1.msra.mxu0 0.0
    %3438 = vmatprep.subr.mxu0 %v3408
    %3439 = vmatpush1.msra.mxu0 %v3405
    %3440 = vmatprep.subr.mxu0 %v2803
    %3441 = vmatpush1.msra.mxu0 %v2802
    %3442 = vmatprep.subr.mxu0 0.0
    %3443 = vmatpush2.msra.mxu0 0.0
    %3444 = vmatprep.subr.mxu0 0.0
    %3445 = vmatpush2.msra.mxu0 0.0
    %3446 = vmatprep.subr.mxu0 0.0
    %3447 = vmatpush2.msra.mxu0 0.0
    %3448 = vmatprep.subr.mxu0 0.0
    %3449 = vmatpush2.msra.mxu0 0.0
    %3450 = vmatprep.subr.mxu0 0.0
    %3451 = vmatpush2.msra.mxu0 0.0
    %3452 = vmatprep.subr.mxu0 0.0
    %3453 = vmatpush2.msra.mxu0 0.0
    %3454 = vmatprep.subr.mxu0 0.0
    %3455 = vmatpush2.msra.mxu0 0.0
    %3456 = vmatprep.subr.mxu0 0.0
    %3457 = vmatpush2.msra.mxu0 0.0
    %3458 = vmatprep.subr.mxu0 0.0
    %3459 = vmatpush2.msra.mxu0 0.0
    %3460 = vmatprep.subr.mxu0 0.0
    %3461 = vmatpush2.msra.mxu0 0.0
    %3462 = vmatprep.subr.mxu0 0.0
    %3463 = vmatpush2.msra.mxu0 0.0
    %3464 = vmatprep.subr.mxu0 0.0
    %3465 = vmatpush2.msra.mxu0 0.0
    %3466 = vmatprep.subr.mxu0 0.0
    %3467 = vmatpush2.msra.mxu0 0.0
    %3468 = vmatprep.subr.mxu0 0.0
    %3469 = vmatpush2.msra.mxu0 0.0
    %3470 = vmatprep.subr.mxu0 0.0
    %3471 = vmatpush2.msra.mxu0 0.0
    %3472 = vmatprep.subr.mxu0 0.0
    %3473 = vmatpush2.msra.mxu0 0.0
    %3474 = vmatprep.mubr.f32.mxu0 0.0
    %3475 = vmatmul.mubr.f32.gmra.mxu0 %v3402
    %v3476 = vpop.f32.mrf.mxu0
    %v3477 = vadd.f32 %v3392, %v3476
    %v3478 = vpop.f32.mrf.mxu0
    %v3479 = vadd.f32 %v3396, %v3478
    %3480 = vdwg.mxu0
    %3482 = vrot.lane.b32.xlu0 %v3387, 92
    %v3483 = vpop.permute.xlu0 %3482
    %v3484 = vsel %vm2978, %v3483, 0
    %3486 = vmatprep.subr.mxu0 0.0
    %3487 = vmatpush1.msra.mxu0 0.0
    %3488 = vmatprep.subr.mxu0 0.0
    %3489 = vmatpush1.msra.mxu0 0.0
    %3490 = vmatprep.subr.mxu0 0.0
    %3491 = vmatpush1.msra.mxu0 0.0
    %3492 = vmatprep.subr.mxu0 0.0
    %3493 = vmatpush1.msra.mxu0 0.0
    %3494 = vmatprep.subr.mxu0 0.0
    %3495 = vmatpush1.msra.mxu0 0.0
    %3496 = vmatprep.subr.mxu0 0.0
    %3497 = vmatpush1.msra.mxu0 0.0
    %3498 = vmatprep.subr.mxu0 0.0
    %3499 = vmatpush1.msra.mxu0 0.0
    %3500 = vmatprep.subr.mxu0 0.0
    %3501 = vmatpush1.msra.mxu0 0.0
    %3502 = vmatprep.subr.mxu0 0.0
    %3503 = vmatpush1.msra.mxu0 0.0
    %3504 = vmatprep.subr.mxu0 0.0
    %3505 = vmatpush1.msra.mxu0 0.0
    %3506 = vmatprep.subr.mxu0 0.0
    %3507 = vmatpush1.msra.mxu0 0.0
    %3508 = vmatprep.subr.mxu0 0.0
    %3509 = vmatpush1.msra.mxu0 0.0
    %3510 = vmatprep.subr.mxu0 0.0
    %3511 = vmatpush1.msra.mxu0 0.0
    %3512 = vmatprep.subr.mxu0 0.0
    %3513 = vmatpush1.msra.mxu0 0.0
    %3514 = vmatprep.subr.mxu0 %v3408
    %3515 = vmatpush1.msra.mxu0 %v3405
    %3516 = vmatprep.subr.mxu0 %v2803
    %3517 = vmatpush1.msra.mxu0 %v2802
    %3518 = vmatprep.subr.mxu0 0.0
    %3519 = vmatpush2.msra.mxu0 0.0
    %3520 = vmatprep.subr.mxu0 0.0
    %3521 = vmatpush2.msra.mxu0 0.0
    %3522 = vmatprep.subr.mxu0 0.0
    %3523 = vmatpush2.msra.mxu0 0.0
    %3524 = vmatprep.subr.mxu0 0.0
    %3525 = vmatpush2.msra.mxu0 0.0
    %3526 = vmatprep.subr.mxu0 0.0
    %3527 = vmatpush2.msra.mxu0 0.0
    %3528 = vmatprep.subr.mxu0 0.0
    %3529 = vmatpush2.msra.mxu0 0.0
    %3530 = vmatprep.subr.mxu0 0.0
    %3531 = vmatpush2.msra.mxu0 0.0
    %3532 = vmatprep.subr.mxu0 0.0
    %3533 = vmatpush2.msra.mxu0 0.0
    %3534 = vmatprep.subr.mxu0 0.0
    %3535 = vmatpush2.msra.mxu0 0.0
    %3536 = vmatprep.subr.mxu0 0.0
    %3537 = vmatpush2.msra.mxu0 0.0
    %3538 = vmatprep.subr.mxu0 0.0
    %3539 = vmatpush2.msra.mxu0 0.0
    %3540 = vmatprep.subr.mxu0 0.0
    %3541 = vmatpush2.msra.mxu0 0.0
    %3542 = vmatprep.subr.mxu0 0.0
    %3543 = vmatpush2.msra.mxu0 0.0
    %3544 = vmatprep.subr.mxu0 0.0
    %3545 = vmatpush2.msra.mxu0 0.0
    %3546 = vmatprep.subr.mxu0 0.0
    %3547 = vmatpush2.msra.mxu0 0.0
    %3548 = vmatprep.subr.mxu0 0.0
    %3549 = vmatpush2.msra.mxu0 0.0
    %3550 = vmatprep.mubr.f32.mxu0 0.0
    %3551 = vmatmul.mubr.f32.gmra.mxu0 %v3484
    %v3552 = vpop.f32.mrf.mxu0
    %v3553 = vadd.f32 %v3392, %v3552
    %v3554 = vpop.f32.mrf.mxu0
    %v3555 = vadd.f32 %v3396, %v3554
    %3556 = vdwg.mxu0
    %vm3557 = vcmask 195584
    %v3558 = vsel %vm3557, 0.0, 0
    %3560 = vmatprep.subr.mxu0 0.0
    %3561 = vmatpush1.msra.mxu0 0.0
    %3562 = vmatprep.subr.mxu0 0.0
    %3563 = vmatpush1.msra.mxu0 0.0
    %3564 = vmatprep.subr.mxu0 0.0
    %3565 = vmatpush1.msra.mxu0 0.0
    %3566 = vmatprep.subr.mxu0 0.0
    %3567 = vmatpush1.msra.mxu0 0.0
    %3568 = vmatprep.subr.mxu0 0.0
    %3569 = vmatpush1.msra.mxu0 0.0
    %3570 = vmatprep.subr.mxu0 0.0
    %3571 = vmatpush1.msra.mxu0 0.0
    %3572 = vmatprep.subr.mxu0 0.0
    %3573 = vmatpush1.msra.mxu0 0.0
    %3574 = vmatprep.subr.mxu0 0.0
    %3575 = vmatpush1.msra.mxu0 0.0
    %3576 = vmatprep.subr.mxu0 0.0
    %3577 = vmatpush1.msra.mxu0 0.0
    %3578 = vmatprep.subr.mxu0 0.0
    %3579 = vmatpush1.msra.mxu0 0.0
    %3580 = vmatprep.subr.mxu0 0.0
    %3581 = vmatpush1.msra.mxu0 0.0
    %3582 = vmatprep.subr.mxu0 0.0
    %3583 = vmatpush1.msra.mxu0 0.0
    %3584 = vmatprep.subr.mxu0 0.0
    %3585 = vmatpush1.msra.mxu0 0.0
    %3586 = vmatprep.subr.mxu0 0.0
    %3587 = vmatpush1.msra.mxu0 %v2809
    %3588 = vmatprep.subr.mxu0 0.0
    %3589 = vmatpush1.msra.mxu0 %v2808
    %3590 = vmatprep.subr.mxu0 0.0
    %3591 = vmatpush1.msra.mxu0 %v2807
    %3592 = vmatprep.subr.mxu0 0.0
    %3593 = vmatpush2.msra.mxu0 0.0
    %3594 = vmatprep.subr.mxu0 0.0
    %3595 = vmatpush2.msra.mxu0 0.0
    %3596 = vmatprep.subr.mxu0 0.0
    %3597 = vmatpush2.msra.mxu0 0.0
    %3598 = vmatprep.subr.mxu0 0.0
    %3599 = vmatpush2.msra.mxu0 0.0
    %3600 = vmatprep.subr.mxu0 0.0
    %3601 = vmatpush2.msra.mxu0 0.0
    %3602 = vmatprep.subr.mxu0 0.0
    %3603 = vmatpush2.msra.mxu0 0.0
    %3604 = vmatprep.subr.mxu0 0.0
    %3605 = vmatpush2.msra.mxu0 0.0
    %3606 = vmatprep.subr.mxu0 0.0
    %3607 = vmatpush2.msra.mxu0 0.0
    %3608 = vmatprep.subr.mxu0 0.0
    %3609 = vmatpush2.msra.mxu0 0.0
    %3610 = vmatprep.subr.mxu0 0.0
    %3611 = vmatpush2.msra.mxu0 0.0
    %3612 = vmatprep.subr.mxu0 0.0
    %3613 = vmatpush2.msra.mxu0 0.0
    %3614 = vmatprep.subr.mxu0 0.0
    %3615 = vmatpush2.msra.mxu0 0.0
    %3616 = vmatprep.subr.mxu0 0.0
    %3617 = vmatpush2.msra.mxu0 0.0
    %3618 = vmatprep.subr.mxu0 0.0
    %3619 = vmatpush2.msra.mxu0 0.0
    %3620 = vmatprep.subr.mxu0 0.0
    %3621 = vmatpush2.msra.mxu0 0.0
    %3622 = vmatprep.subr.mxu0 0.0
    %3623 = vmatpush2.msra.mxu0 0.0
    %3624 = vmatprep.mubr.f32.mxu0 0.0
    %3625 = vmatmul.mubr.f32.gmra.mxu0 %v3558
    %v3626 = vpop.f32.mrf.mxu0
    %v3627 = vadd.f32 0.0, %v3626
    %v3628 = vpop.f32.mrf.mxu0
    %3629 = vdwg.mxu0
    %v3630 = vadd.f32 %v3477, %v3627
    %v3631 = vmul.f32 %v3630, 0.5
    %v3632 = vtanh.pop %v3631
    %v3633 = vmul.f32 %v3632, 0.5
    %v3634 = vadd.f32 %v3633, 0.5
    %v3635 = vtanh.pop %v3630
    %v3636 = vmul.f32 %v3634, 0.0
    %3638 = vrot.lane.b32.xlu0 %v3635, 80
    %v3639 = vpop.permute.xlu0 %3638
    %v3641 = vmul.f32 %v3634, %v3639
    %3643 = vrot.lane.b32.xlu0 %v3641, 24
    %v3644 = vpop.permute.xlu0 %3643
    %v3646 = vadd.f32 %v3636, %v3644
    %v3647 = vtanh.pop %v3646
    %3649 = vrot.lane.b32.xlu0 %v3647, 48
    %v3650 = vpop.permute.xlu0 %3649
    %v3652 = vmul.f32 %v3634, %v3650
    %3654 = vrot.lane.b32.xlu0 %v3652, 56
    %v3655 = vpop.permute.xlu0 %3654
    %v3656 = vsel %vm3557, %v3655, 0
    %3658 = vmatprep.subr.mxu0 0.0
    %3659 = vmatpush1.msra.mxu0 0.0
    %3660 = vmatprep.subr.mxu0 0.0
    %3661 = vmatpush1.msra.mxu0 0.0
    %3662 = vmatprep.subr.mxu0 0.0
    %3663 = vmatpush1.msra.mxu0 0.0
    %3664 = vmatprep.subr.mxu0 0.0
    %3665 = vmatpush1.msra.mxu0 0.0
    %3666 = vmatprep.subr.mxu0 0.0
    %3667 = vmatpush1.msra.mxu0 0.0
    %3668 = vmatprep.subr.mxu0 0.0
    %3669 = vmatpush1.msra.mxu0 0.0
    %3670 = vmatprep.subr.mxu0 0.0
    %3671 = vmatpush1.msra.mxu0 0.0
    %3672 = vmatprep.subr.mxu0 0.0
    %3673 = vmatpush1.msra.mxu0 0.0
    %3674 = vmatprep.subr.mxu0 0.0
    %3675 = vmatpush1.msra.mxu0 0.0
    %3676 = vmatprep.subr.mxu0 0.0
    %3677 = vmatpush1.msra.mxu0 0.0
    %3678 = vmatprep.subr.mxu0 0.0
    %3679 = vmatpush1.msra.mxu0 0.0
    %3680 = vmatprep.subr.mxu0 0.0
    %3681 = vmatpush1.msra.mxu0 0.0
    %3682 = vmatprep.subr.mxu0 0.0
    %3683 = vmatpush1.msra.mxu0 0.0
    %3684 = vmatprep.subr.mxu0 0.0
    %3685 = vmatpush1.msra.mxu0 %v2809
    %3686 = vmatprep.subr.mxu0 0.0
    %3687 = vmatpush1.msra.mxu0 %v2808
    %3688 = vmatprep.subr.mxu0 0.0
    %3689 = vmatpush1.msra.mxu0 %v2807
    %3690 = vmatprep.subr.mxu0 0.0
    %3691 = vmatpush2.msra.mxu0 0.0
    %3692 = vmatprep.subr.mxu0 0.0
    %3693 = vmatpush2.msra.mxu0 0.0
    %3694 = vmatprep.subr.mxu0 0.0
    %3695 = vmatpush2.msra.mxu0 0.0
    %3696 = vmatprep.subr.mxu0 0.0
    %3697 = vmatpush2.msra.mxu0 0.0
    %3698 = vmatprep.subr.mxu0 0.0
    %3699 = vmatpush2.msra.mxu0 0.0
    %3700 = vmatprep.subr.mxu0 0.0
    %3701 = vmatpush2.msra.mxu0 0.0
    %3702 = vmatprep.subr.mxu0 0.0
    %3703 = vmatpush2.msra.mxu0 0.0
    %3704 = vmatprep.subr.mxu0 0.0
    %3705 = vmatpush2.msra.mxu0 0.0
    %3706 = vmatprep.subr.mxu0 0.0
    %3707 = vmatpush2.msra.mxu0 0.0
    %3708 = vmatprep.subr.mxu0 0.0
    %3709 = vmatpush2.msra.mxu0 0.0
    %3710 = vmatprep.subr.mxu0 0.0
    %3711 = vmatpush2.msra.mxu0 0.0
    %3712 = vmatprep.subr.mxu0 0.0
    %3713 = vmatpush2.msra.mxu0 0.0
    %3714 = vmatprep.subr.mxu0 0.0
    %3715 = vmatpush2.msra.mxu0 0.0
    %3716 = vmatprep.subr.mxu0 0.0
    %3717 = vmatpush2.msra.mxu0 0.0
    %3718 = vmatprep.subr.mxu0 0.0
    %3719 = vmatpush2.msra.mxu0 0.0
    %3720 = vmatprep.subr.mxu0 0.0
    %3721 = vmatpush2.msra.mxu0 0.0
    %3722 = vmatprep.mubr.f32.mxu0 0.0
    %3723 = vmatmul.mubr.f32.gmra.mxu0 %v3656
    %v3724 = vpop.f32.mrf.mxu0
    %v3725 = vadd.f32 0.0, %v3724
    %v3726 = vpop.f32.mrf.mxu0
    %3727 = vdwg.mxu0
    %v3728 = vadd.f32 %v3553, %v3725
    %v3729 = vmul.f32 %v3728, 0.5
    %v3730 = vtanh.pop %v3729
    %v3731 = vmul.f32 %v3730, 0.5
    %v3732 = vadd.f32 %v3731, 0.5
    %v3733 = vtanh.pop %v3728
    %v3734 = vmul.f32 %v3732, %v3646
    %3736 = vrot.lane.b32.xlu0 %v3733, 80
    %v3737 = vpop.permute.xlu0 %3736
    %v3739 = vmul.f32 %v3732, %v3737
    %3741 = vrot.lane.b32.xlu0 %v3739, 24
    %v3742 = vpop.permute.xlu0 %3741
    %v3744 = vadd.f32 %v3734, %v3742
    %v3745 = vtanh.pop %v3744
    %3747 = vrot.lane.b32.xlu0 %v3745, 48
    %v3748 = vpop.permute.xlu0 %3747
    %v3750 = vmul.f32 %v3732, %v3748
    %3751 = vmatprep.subr.mxu0 0.0
    %3752 = vmatpush1.msra.mxu0 0.0
    %3753 = vmatprep.subr.mxu0 0.0
    %3754 = vmatpush1.msra.mxu0 0.0
    %3755 = vmatprep.subr.mxu0 0.0
    %3756 = vmatpush1.msra.mxu0 0.0
    %3757 = vmatprep.subr.mxu0 0.0
    %3758 = vmatpush1.msra.mxu0 0.0
    %3759 = vmatprep.subr.mxu0 0.0
    %3760 = vmatpush1.msra.mxu0 0.0
    %3761 = vmatprep.subr.mxu0 0.0
    %3762 = vmatpush1.msra.mxu0 0.0
    %3763 = vmatprep.subr.mxu0 0.0
    %3764 = vmatpush1.msra.mxu0 0.0
    %3765 = vmatprep.subr.mxu0 0.0
    %3766 = vmatpush1.msra.mxu0 0.0
    %3767 = vmatprep.subr.mxu0 0.0
    %3768 = vmatpush1.msra.mxu0 0.0
    %3769 = vmatprep.subr.mxu0 0.0
    %3770 = vmatpush1.msra.mxu0 0.0
    %3771 = vmatprep.subr.mxu0 0.0
    %3772 = vmatpush1.msra.mxu0 0.0
    %3773 = vmatprep.subr.mxu0 0.0
    %3774 = vmatpush1.msra.mxu0 0.0
    %3775 = vmatprep.subr.mxu0 0.0
    %3776 = vmatpush1.msra.mxu0 0.0
    %3777 = vmatprep.subr.mxu0 0.0
    %3778 = vmatpush1.msra.mxu0 %v2812
    %3779 = vmatprep.subr.mxu0 0.0
    %3780 = vmatpush1.msra.mxu0 %v2811
    %3781 = vmatprep.subr.mxu0 0.0
    %3782 = vmatpush1.msra.mxu0 %v2810
    %3783 = vmatprep.subr.mxu0 0.0
    %3784 = vmatpush2.msra.mxu0 0.0
    %3785 = vmatprep.subr.mxu0 0.0
    %3786 = vmatpush2.msra.mxu0 0.0
    %3787 = vmatprep.subr.mxu0 0.0
    %3788 = vmatpush2.msra.mxu0 0.0
    %3789 = vmatprep.subr.mxu0 0.0
    %3790 = vmatpush2.msra.mxu0 0.0
    %3791 = vmatprep.subr.mxu0 0.0
    %3792 = vmatpush2.msra.mxu0 0.0
    %3793 = vmatprep.subr.mxu0 0.0
    %3794 = vmatpush2.msra.mxu0 0.0
    %3795 = vmatprep.subr.mxu0 0.0
    %3796 = vmatpush2.msra.mxu0 0.0
    %3797 = vmatprep.subr.mxu0 0.0
    %3798 = vmatpush2.msra.mxu0 0.0
    %3799 = vmatprep.subr.mxu0 0.0
    %3800 = vmatpush2.msra.mxu0 0.0
    %3801 = vmatprep.subr.mxu0 0.0
    %3802 = vmatpush2.msra.mxu0 0.0
    %3803 = vmatprep.subr.mxu0 0.0
    %3804 = vmatpush2.msra.mxu0 0.0
    %3805 = vmatprep.subr.mxu0 0.0
    %3806 = vmatpush2.msra.mxu0 0.0
    %3807 = vmatprep.subr.mxu0 0.0
    %3808 = vmatpush2.msra.mxu0 0.0
    %3809 = vmatprep.subr.mxu0 0.0
    %3810 = vmatpush2.msra.mxu0 0.0
    %3811 = vmatprep.subr.mxu0 0.0
    %3812 = vmatpush2.msra.mxu0 0.0
    %3813 = vmatprep.subr.mxu0 0.0
    %3814 = vmatpush2.msra.mxu0 0.0
    %3815 = vmatprep.mubr.f32.mxu0 0.0
    %3816 = vmatmul.mubr.f32.gmra.mxu0 %v3558
    %v3817 = vpop.f32.mrf.mxu0
    %v3818 = vadd.f32 0.0, %v3817
    %v3819 = vpop.f32.mrf.mxu0
    %3820 = vdwg.mxu0
    %3822 = vrot.lane.b32.xlu0 %v3818, 96
    %v3823 = vpop.permute.xlu0 %3822
    %v3825 = vadd.f32 %v3553, %v3823
    %v3826 = vadd.f32 %v3555, %v3823
    %v3827 = vmul.f32 %v3825, 0.5
    %v3828 = vtanh.pop %v3827
    %v3829 = vmul.f32 %v3828, 0.5
    %v3830 = vadd.f32 %v3829, 0.5
    %v3831 = vmul.f32 %v3826, 0.5
    %v3832 = vtanh.pop %v3831
    %v3833 = vmul.f32 %v3832, 0.5
    %v3834 = vadd.f32 %v3833, 0.5
    %v3835 = vtanh.pop %v3826
    %v3836 = vmul.f32 %v3830, 0.0
    %v3837 = vmul.f32 %v3834, 0.0
    %3839 = vrot.lane.b32.xlu0 %v3835, 80
    %v3840 = vpop.permute.xlu0 %3839
    %v3842 = vmul.f32 %v3830, %v3840
    %3844 = vrot.lane.b32.xlu0 %v3842, 24
    %v3845 = vpop.permute.xlu0 %3844
    %v3847 = vadd.f32 %v3836, %v3845
    %v3848 = vadd.f32 %v3837, %v3845
    %v3849 = vtanh.pop %v3847
    %v3850 = vtanh.pop %v3848
    %3853 = vrot.lane.b32.xlu0 %v3849, 48
    %v3854 = vpop.permute.xlu0 %3853
    %3855 = vrot.lane.b32.xlu0 %v3850, 48
    %v3856 = vpop.permute.xlu0 %3855
    %vm3857 = vcmask 392192
    %v3858 = vsel %vm3857, %v3854, %v3856
    %v3860 = vmul.f32 %v3834, %v3858
    %3862 = vrot.lane.b32.xlu0 %v3860, 88
    %v3863 = vpop.permute.xlu0 %3862
    %v3864 = vsel %vm3557, %v3863, 0
    %3866 = vmatprep.subr.mxu0 0.0
    %3867 = vmatpush1.msra.mxu0 0.0
    %3868 = vmatprep.subr.mxu0 0.0
    %3869 = vmatpush1.msra.mxu0 0.0
    %3870 = vmatprep.subr.mxu0 0.0
    %3871 = vmatpush1.msra.mxu0 0.0
    %3872 = vmatprep.subr.mxu0 0.0
    %3873 = vmatpush1.msra.mxu0 0.0
    %3874 = vmatprep.subr.mxu0 0.0
    %3875 = vmatpush1.msra.mxu0 0.0
    %3876 = vmatprep.subr.mxu0 0.0
    %3877 = vmatpush1.msra.mxu0 0.0
    %3878 = vmatprep.subr.mxu0 0.0
    %3879 = vmatpush1.msra.mxu0 0.0
    %3880 = vmatprep.subr.mxu0 0.0
    %3881 = vmatpush1.msra.mxu0 0.0
    %3882 = vmatprep.subr.mxu0 0.0
    %3883 = vmatpush1.msra.mxu0 0.0
    %3884 = vmatprep.subr.mxu0 0.0
    %3885 = vmatpush1.msra.mxu0 0.0
    %3886 = vmatprep.subr.mxu0 0.0
    %3887 = vmatpush1.msra.mxu0 0.0
    %3888 = vmatprep.subr.mxu0 0.0
    %3889 = vmatpush1.msra.mxu0 0.0
    %3890 = vmatprep.subr.mxu0 0.0
    %3891 = vmatpush1.msra.mxu0 0.0
    %3892 = vmatprep.subr.mxu0 0.0
    %3893 = vmatpush1.msra.mxu0 %v2812
    %3894 = vmatprep.subr.mxu0 0.0
    %3895 = vmatpush1.msra.mxu0 %v2811
    %3896 = vmatprep.subr.mxu0 0.0
    %3897 = vmatpush1.msra.mxu0 %v2810
    %3898 = vmatprep.subr.mxu0 0.0
    %3899 = vmatpush2.msra.mxu0 0.0
    %3900 = vmatprep.subr.mxu0 0.0
    %3901 = vmatpush2.msra.mxu0 0.0
    %3902 = vmatprep.subr.mxu0 0.0
    %3903 = vmatpush2.msra.mxu0 0.0
    %3904 = vmatprep.subr.mxu0 0.0
    %3905 = vmatpush2.msra.mxu0 0.0
    %3906 = vmatprep.subr.mxu0 0.0
    %3907 = vmatpush2.msra.mxu0 0.0
    %3908 = vmatprep.subr.mxu0 0.0
    %3909 = vmatpush2.msra.mxu0 0.0
    %3910 = vmatprep.subr.mxu0 0.0
    %3911 = vmatpush2.msra.mxu0 0.0
    %3912 = vmatprep.subr.mxu0 0.0
    %3913 = vmatpush2.msra.mxu0 0.0
    %3914 = vmatprep.subr.mxu0 0.0
    %3915 = vmatpush2.msra.mxu0 0.0
    %3916 = vmatprep.subr.mxu0 0.0
    %3917 = vmatpush2.msra.mxu0 0.0
    %3918 = vmatprep.subr.mxu0 0.0
    %3919 = vmatpush2.msra.mxu0 0.0
    %3920 = vmatprep.subr.mxu0 0.0
    %3921 = vmatpush2.msra.mxu0 0.0
    %3922 = vmatprep.subr.mxu0 0.0
    %3923 = vmatpush2.msra.mxu0 0.0
    %3924 = vmatprep.subr.mxu0 0.0
    %3925 = vmatpush2.msra.mxu0 0.0
    %3926 = vmatprep.subr.mxu0 0.0
    %3927 = vmatpush2.msra.mxu0 0.0
    %3928 = vmatprep.subr.mxu0 0.0
    %3929 = vmatpush2.msra.mxu0 0.0
    %3930 = vmatprep.mubr.f32.mxu0 0.0
    %3931 = vmatmul.mubr.f32.gmra.mxu0 %v3864
    %v3932 = vpop.f32.mrf.mxu0
    %v3933 = vadd.f32 0.0, %v3932
    %v3934 = vpop.f32.mrf.mxu0
    %3935 = vdwg.mxu0
    %3937 = vrot.lane.b32.xlu0 %v3933, 96
    %v3938 = vpop.permute.xlu0 %3937
    %v3940 = vadd.f32 %v3477, %v3938
    %v3941 = vadd.f32 %v3479, %v3938
    %v3942 = vmul.f32 %v3940, 0.5
    %v3943 = vtanh.pop %v3942
    %v3944 = vmul.f32 %v3943, 0.5
    %v3945 = vadd.f32 %v3944, 0.5
    %v3946 = vmul.f32 %v3941, 0.5
    %v3947 = vtanh.pop %v3946
    %v3948 = vmul.f32 %v3947, 0.5
    %v3949 = vadd.f32 %v3948, 0.5
    %v3950 = vtanh.pop %v3941
    %v3951 = vmul.f32 %v3945, %v3847
    %v3952 = vmul.f32 %v3949, %v3848
    %3954 = vrot.lane.b32.xlu0 %v3950, 80
    %v3955 = vpop.permute.xlu0 %3954
    %v3957 = vmul.f32 %v3945, %v3955
    %3959 = vrot.lane.b32.xlu0 %v3957, 24
    %v3960 = vpop.permute.xlu0 %3959
    %v3962 = vadd.f32 %v3951, %v3960
    %v3963 = vadd.f32 %v3952, %v3960
    %v3964 = vtanh.pop %v3962
    %v3965 = vtanh.pop %v3963
    %3968 = vrot.lane.b32.xlu0 %v3964, 48
    %v3969 = vpop.permute.xlu0 %3968
    %3970 = vrot.lane.b32.xlu0 %v3965, 48
    %v3971 = vpop.permute.xlu0 %3970
    %v3972 = vsel %vm3857, %v3969, %v3971
    %v3974 = vmul.f32 %v3949, %v3972
    %3976 = vrot.lane.b32.xlu0 %v3974, 32
    %v3977 = vpop.permute.xlu0 %3976
    %v3979 = vadd.f32 %v3652, %v3977
    %3980 = vrot.lane.b32.xlu0 %v3860, 32
    %v3981 = vpop.permute.xlu0 %3980
    %v3983 = vadd.f32 %v3750, %v3981
    %v3985 = vlaneseq
    %v3986 = vshrl.u32 %v3985, 7
    %v3987 = vsub.s32 0, %v3986
    %v3988 = vrot.slane %v2816, %v3987
    %3991 = vrot.lane.b32.xlu0 %v3979, 56
    %v3992 = vpop.permute.xlu0 %3991
    %v3993 = vsel %vm3557, %v3992, 0
    %3995 = vmatprep.subr.mxu0 0.0
    %3996 = vmatpush1.msra.mxu0 0.0
    %3997 = vmatprep.subr.mxu0 0.0
    %3998 = vmatpush1.msra.mxu0 0.0
    %3999 = vmatprep.subr.mxu0 0.0
    %4000 = vmatpush1.msra.mxu0 0.0
    %4001 = vmatprep.subr.mxu0 0.0
    %4002 = vmatpush1.msra.mxu0 0.0
    %4003 = vmatprep.subr.mxu0 0.0
    %4004 = vmatpush1.msra.mxu0 0.0
    %4005 = vmatprep.subr.mxu0 0.0
    %4006 = vmatpush1.msra.mxu0 0.0
    %4007 = vmatprep.subr.mxu0 0.0
    %4008 = vmatpush1.msra.mxu0 0.0
    %4009 = vmatprep.subr.mxu0 0.0
    %4010 = vmatpush1.msra.mxu0 0.0
    %4011 = vmatprep.subr.mxu0 0.0
    %4012 = vmatpush1.msra.mxu0 0.0
    %4013 = vmatprep.subr.mxu0 0.0
    %4014 = vmatpush1.msra.mxu0 0.0
    %4015 = vmatprep.subr.mxu0 0.0
    %4016 = vmatpush1.msra.mxu0 0.0
    %4017 = vmatprep.subr.mxu0 0.0
    %4018 = vmatpush1.msra.mxu0 0.0
    %4019 = vmatprep.subr.mxu0 0.0
    %4020 = vmatpush1.msra.mxu0 0.0
    %4021 = vmatprep.subr.mxu0 0.0
    %4022 = vmatpush1.msra.mxu0 %v2815
    %4023 = vmatprep.subr.mxu0 0.0
    %4024 = vmatpush1.msra.mxu0 %v2814
    %4025 = vmatprep.subr.mxu0 0.0
    %4026 = vmatpush1.msra.mxu0 %v2813
    %4027 = vmatprep.subr.mxu0 0.0
    %4028 = vmatpush2.msra.mxu0 0.0
    %4029 = vmatprep.subr.mxu0 0.0
    %4030 = vmatpush2.msra.mxu0 0.0
    %4031 = vmatprep.subr.mxu0 0.0
    %4032 = vmatpush2.msra.mxu0 0.0
    %4033 = vmatprep.subr.mxu0 0.0
    %4034 = vmatpush2.msra.mxu0 0.0
    %4035 = vmatprep.subr.mxu0 0.0
    %4036 = vmatpush2.msra.mxu0 0.0
    %4037 = vmatprep.subr.mxu0 0.0
    %4038 = vmatpush2.msra.mxu0 0.0
    %4039 = vmatprep.subr.mxu0 0.0
    %4040 = vmatpush2.msra.mxu0 0.0
    %4041 = vmatprep.subr.mxu0 0.0
    %4042 = vmatpush2.msra.mxu0 0.0
    %4043 = vmatprep.subr.mxu0 0.0
    %4044 = vmatpush2.msra.mxu0 0.0
    %4045 = vmatprep.subr.mxu0 0.0
    %4046 = vmatpush2.msra.mxu0 0.0
    %4047 = vmatprep.subr.mxu0 0.0
    %4048 = vmatpush2.msra.mxu0 0.0
    %4049 = vmatprep.subr.mxu0 0.0
    %4050 = vmatpush2.msra.mxu0 0.0
    %4051 = vmatprep.subr.mxu0 0.0
    %4052 = vmatpush2.msra.mxu0 0.0
    %4053 = vmatprep.subr.mxu0 0.0
    %4054 = vmatpush2.msra.mxu0 0.0
    %4055 = vmatprep.subr.mxu0 0.0
    %4056 = vmatpush2.msra.mxu0 0.0
    %4057 = vmatprep.subr.mxu0 0.0
    %4058 = vmatpush2.msra.mxu0 0.0
    %4059 = vmatprep.mubr.f32.mxu0 0.0
    %4060 = vmatmul.mubr.f32.gmra.mxu0 %v3993
    %v4061 = vpop.f32.mrf.mxu0
    %v4062 = vadd.f32 %v3988, %v4061
    %v4063 = vpop.f32.mrf.mxu0
    %4064 = vdwg.mxu0
    %4066 = vrot.lane.b32.xlu0 %v3983, 56
    %v4067 = vpop.permute.xlu0 %4066
    %v4068 = vsel %vm3557, %v4067, 0
    %4070 = vmatprep.subr.mxu0 0.0
    %4071 = vmatpush1.msra.mxu0 0.0
    %4072 = vmatprep.subr.mxu0 0.0
    %4073 = vmatpush1.msra.mxu0 0.0
    %4074 = vmatprep.subr.mxu0 0.0
    %4075 = vmatpush1.msra.mxu0 0.0
    %4076 = vmatprep.subr.mxu0 0.0
    %4077 = vmatpush1.msra.mxu0 0.0
    %4078 = vmatprep.subr.mxu0 0.0
    %4079 = vmatpush1.msra.mxu0 0.0
    %4080 = vmatprep.subr.mxu0 0.0
    %4081 = vmatpush1.msra.mxu0 0.0
    %4082 = vmatprep.subr.mxu0 0.0
    %4083 = vmatpush1.msra.mxu0 0.0
    %4084 = vmatprep.subr.mxu0 0.0
    %4085 = vmatpush1.msra.mxu0 0.0
    %4086 = vmatprep.subr.mxu0 0.0
    %4087 = vmatpush1.msra.mxu0 0.0
    %4088 = vmatprep.subr.mxu0 0.0
    %4089 = vmatpush1.msra.mxu0 0.0
    %4090 = vmatprep.subr.mxu0 0.0
    %4091 = vmatpush1.msra.mxu0 0.0
    %4092 = vmatprep.subr.mxu0 0.0
    %4093 = vmatpush1.msra.mxu0 0.0
    %4094 = vmatprep.subr.mxu0 0.0
    %4095 = vmatpush1.msra.mxu0 0.0
    %4096 = vmatprep.subr.mxu0 0.0
    %4097 = vmatpush1.msra.mxu0 %v2815
    %4098 = vmatprep.subr.mxu0 0.0
    %4099 = vmatpush1.msra.mxu0 %v2814
    %4100 = vmatprep.subr.mxu0 0.0
    %4101 = vmatpush1.msra.mxu0 %v2813
    %4102 = vmatprep.subr.mxu0 0.0
    %4103 = vmatpush2.msra.mxu0 0.0
    %4104 = vmatprep.subr.mxu0 0.0
    %4105 = vmatpush2.msra.mxu0 0.0
    %4106 = vmatprep.subr.mxu0 0.0
    %4107 = vmatpush2.msra.mxu0 0.0
    %4108 = vmatprep.subr.mxu0 0.0
    %4109 = vmatpush2.msra.mxu0 0.0
    %4110 = vmatprep.subr.mxu0 0.0
    %4111 = vmatpush2.msra.mxu0 0.0
    %4112 = vmatprep.subr.mxu0 0.0
    %4113 = vmatpush2.msra.mxu0 0.0
    %4114 = vmatprep.subr.mxu0 0.0
    %4115 = vmatpush2.msra.mxu0 0.0
    %4116 = vmatprep.subr.mxu0 0.0
    %4117 = vmatpush2.msra.mxu0 0.0
    %4118 = vmatprep.subr.mxu0 0.0
    %4119 = vmatpush2.msra.mxu0 0.0
    %4120 = vmatprep.subr.mxu0 0.0
    %4121 = vmatpush2.msra.mxu0 0.0
    %4122 = vmatprep.subr.mxu0 0.0
    %4123 = vmatpush2.msra.mxu0 0.0
    %4124 = vmatprep.subr.mxu0 0.0
    %4125 = vmatpush2.msra.mxu0 0.0
    %4126 = vmatprep.subr.mxu0 0.0
    %4127 = vmatpush2.msra.mxu0 0.0
    %4128 = vmatprep.subr.mxu0 0.0
    %4129 = vmatpush2.msra.mxu0 0.0
    %4130 = vmatprep.subr.mxu0 0.0
    %4131 = vmatpush2.msra.mxu0 0.0
    %4132 = vmatprep.subr.mxu0 0.0
    %4133 = vmatpush2.msra.mxu0 0.0
    %4134 = vmatprep.mubr.f32.mxu0 0.0
    %4135 = vmatmul.mubr.f32.gmra.mxu0 %v4068
    %v4136 = vpop.f32.mrf.mxu0
    %v4137 = vadd.f32 %v3988, %v4136
    %v4138 = vpop.f32.mrf.mxu0
    %4139 = vdwg.mxu0
    %v4141 = vsel %vm2982, %v2818, 0
    %4143 = vmatprep.subr.mxu0 0.0
    %4144 = vmatpush1.msra.mxu0 0.0
    %4145 = vmatprep.subr.mxu0 0.0
    %4146 = vmatpush1.msra.mxu0 0.0
    %4147 = vmatprep.subr.mxu0 0.0
    %4148 = vmatpush1.msra.mxu0 0.0
    %4149 = vmatprep.subr.mxu0 0.0
    %4150 = vmatpush1.msra.mxu0 0.0
    %4151 = vmatprep.subr.mxu0 0.0
    %4152 = vmatpush1.msra.mxu0 0.0
    %4153 = vmatprep.subr.mxu0 0.0
    %4154 = vmatpush1.msra.mxu0 0.0
    %4155 = vmatprep.subr.mxu0 0.0
    %4156 = vmatpush1.msra.mxu0 0.0
    %4157 = vmatprep.subr.mxu0 0.0
    %4158 = vmatpush1.msra.mxu0 0.0
    %4159 = vmatprep.subr.mxu0 0.0
    %4160 = vmatpush1.msra.mxu0 0.0
    %4161 = vmatprep.subr.mxu0 0.0
    %4162 = vmatpush1.msra.mxu0 0.0
    %4163 = vmatprep.subr.mxu0 0.0
    %4164 = vmatpush1.msra.mxu0 0.0
    %4165 = vmatprep.subr.mxu0 0.0
    %4166 = vmatpush1.msra.mxu0 0.0
    %4167 = vmatprep.subr.mxu0 0.0
    %4168 = vmatpush1.msra.mxu0 0.0
    %4169 = vmatprep.subr.mxu0 0.0
    %4170 = vmatpush1.msra.mxu0 0.0
    %4171 = vmatprep.subr.mxu0 0.0
    %4172 = vmatpush1.msra.mxu0 %v4141
    %4173 = vmatprep.subr.mxu0 0.0
    %4174 = vmatpush1.msra.mxu0 %v2817
    %4175 = vmatprep.subr.mxu0 0.0
    %4176 = vmatpush2.msra.mxu0 0.0
    %4177 = vmatprep.subr.mxu0 0.0
    %4178 = vmatpush2.msra.mxu0 0.0
    %4179 = vmatprep.subr.mxu0 0.0
    %4180 = vmatpush2.msra.mxu0 0.0
    %4181 = vmatprep.subr.mxu0 0.0
    %4182 = vmatpush2.msra.mxu0 0.0
    %4183 = vmatprep.subr.mxu0 0.0
    %4184 = vmatpush2.msra.mxu0 0.0
    %4185 = vmatprep.subr.mxu0 0.0
    %4186 = vmatpush2.msra.mxu0 0.0
    %4187 = vmatprep.subr.mxu0 0.0
    %4188 = vmatpush2.msra.mxu0 0.0
    %4189 = vmatprep.subr.mxu0 0.0
    %4190 = vmatpush2.msra.mxu0 0.0
    %4191 = vmatprep.subr.mxu0 0.0
    %4192 = vmatpush2.msra.mxu0 0.0
    %4193 = vmatprep.subr.mxu0 0.0
    %4194 = vmatpush2.msra.mxu0 0.0
    %4195 = vmatprep.subr.mxu0 0.0
    %4196 = vmatpush2.msra.mxu0 0.0
    %4197 = vmatprep.subr.mxu0 0.0
    %4198 = vmatpush2.msra.mxu0 0.0
    %4199 = vmatprep.subr.mxu0 0.0
    %4200 = vmatpush2.msra.mxu0 0.0
    %4201 = vmatprep.subr.mxu0 0.0
    %4202 = vmatpush2.msra.mxu0 0.0
    %4203 = vmatprep.subr.mxu0 0.0
    %4204 = vmatpush2.msra.mxu0 0.0
    %4205 = vmatprep.subr.mxu0 0.0
    %4206 = vmatpush2.msra.mxu0 0.0
    %4207 = vmatprep.mubr.f32.mxu0 0.0
    %4208 = vmatmul.mubr.f32.gmra.mxu0 %v2980
    %v4209 = vpop.f32.mrf.mxu0
    %v4210 = vadd.f32 0.0, %v4209
    %v4211 = vpop.f32.mrf.mxu0
    %4212 = vdwg.mxu0
    %v4213 = vadd.f32 %v4062, %v4210
    %v4214 = vmul.f32 %v4213, 0.5
    %v4215 = vtanh.pop %v4214
    %v4216 = vmul.f32 %v4215, 0.5
    %v4217 = vadd.f32 %v4216, 0.5
    %v4218 = vtanh.pop %v4213
    %v4219 = vmul.f32 %v4217, 0.0
    %4221 = vrot.lane.b32.xlu0 %v4218, 104
    %v4222 = vpop.permute.xlu0 %4221
    %v4224 = vmul.f32 %v4217, %v4222
    %4226 = vrot.lane.b32.xlu0 %v4224, 12
    %v4227 = vpop.permute.xlu0 %4226
    %v4229 = vadd.f32 %v4219, %v4227
    %v4230 = vtanh.pop %v4229
    %4232 = vrot.lane.b32.xlu0 %v4230, 24
    %v4233 = vpop.permute.xlu0 %4232
    %v4235 = vmul.f32 %v4217, %v4233
    %4237 = vrot.lane.b32.xlu0 %v4235, 92
    %v4238 = vpop.permute.xlu0 %4237
    %v4239 = vsel %vm2978, %v4238, 0
    %4241 = vmatprep.subr.mxu0 0.0
    %4242 = vmatpush1.msra.mxu0 0.0
    %4243 = vmatprep.subr.mxu0 0.0
    %4244 = vmatpush1.msra.mxu0 0.0
    %4245 = vmatprep.subr.mxu0 0.0
    %4246 = vmatpush1.msra.mxu0 0.0
    %4247 = vmatprep.subr.mxu0 0.0
    %4248 = vmatpush1.msra.mxu0 0.0
    %4249 = vmatprep.subr.mxu0 0.0
    %4250 = vmatpush1.msra.mxu0 0.0
    %4251 = vmatprep.subr.mxu0 0.0
    %4252 = vmatpush1.msra.mxu0 0.0
    %4253 = vmatprep.subr.mxu0 0.0
    %4254 = vmatpush1.msra.mxu0 0.0
    %4255 = vmatprep.subr.mxu0 0.0
    %4256 = vmatpush1.msra.mxu0 0.0
    %4257 = vmatprep.subr.mxu0 0.0
    %4258 = vmatpush1.msra.mxu0 0.0
    %4259 = vmatprep.subr.mxu0 0.0
    %4260 = vmatpush1.msra.mxu0 0.0
    %4261 = vmatprep.subr.mxu0 0.0
    %4262 = vmatpush1.msra.mxu0 0.0
    %4263 = vmatprep.subr.mxu0 0.0
    %4264 = vmatpush1.msra.mxu0 0.0
    %4265 = vmatprep.subr.mxu0 0.0
    %4266 = vmatpush1.msra.mxu0 0.0
    %4267 = vmatprep.subr.mxu0 0.0
    %4268 = vmatpush1.msra.mxu0 0.0
    %4269 = vmatprep.subr.mxu0 0.0
    %4270 = vmatpush1.msra.mxu0 %v4141
    %4271 = vmatprep.subr.mxu0 0.0
    %4272 = vmatpush1.msra.mxu0 %v2817
    %4273 = vmatprep.subr.mxu0 0.0
    %4274 = vmatpush2.msra.mxu0 0.0
    %4275 = vmatprep.subr.mxu0 0.0
    %4276 = vmatpush2.msra.mxu0 0.0
    %4277 = vmatprep.subr.mxu0 0.0
    %4278 = vmatpush2.msra.mxu0 0.0
    %4279 = vmatprep.subr.mxu0 0.0
    %4280 = vmatpush2.msra.mxu0 0.0
    %4281 = vmatprep.subr.mxu0 0.0
    %4282 = vmatpush2.msra.mxu0 0.0
    %4283 = vmatprep.subr.mxu0 0.0
    %4284 = vmatpush2.msra.mxu0 0.0
    %4285 = vmatprep.subr.mxu0 0.0
    %4286 = vmatpush2.msra.mxu0 0.0
    %4287 = vmatprep.subr.mxu0 0.0
    %4288 = vmatpush2.msra.mxu0 0.0
    %4289 = vmatprep.subr.mxu0 0.0
    %4290 = vmatpush2.msra.mxu0 0.0
    %4291 = vmatprep.subr.mxu0 0.0
    %4292 = vmatpush2.msra.mxu0 0.0
    %4293 = vmatprep.subr.mxu0 0.0
    %4294 = vmatpush2.msra.mxu0 0.0
    %4295 = vmatprep.subr.mxu0 0.0
    %4296 = vmatpush2.msra.mxu0 0.0
    %4297 = vmatprep.subr.mxu0 0.0
    %4298 = vmatpush2.msra.mxu0 0.0
    %4299 = vmatprep.subr.mxu0 0.0
    %4300 = vmatpush2.msra.mxu0 0.0
    %4301 = vmatprep.subr.mxu0 0.0
    %4302 = vmatpush2.msra.mxu0 0.0
    %4303 = vmatprep.subr.mxu0 0.0
    %4304 = vmatpush2.msra.mxu0 0.0
    %4305 = vmatprep.mubr.f32.mxu0 0.0
    %4306 = vmatmul.mubr.f32.gmra.mxu0 %v4239
    %v4307 = vpop.f32.mrf.mxu0
    %v4308 = vadd.f32 0.0, %v4307
    %v4309 = vpop.f32.mrf.mxu0
    %4310 = vdwg.mxu0
    %v4311 = vadd.f32 %v4137, %v4308
    %v4312 = vmul.f32 %v4311, 0.5
    %v4313 = vtanh.pop %v4312
    %v4314 = vmul.f32 %v4313, 0.5
    %v4315 = vadd.f32 %v4314, 0.5
    %v4316 = vtanh.pop %v4311
    %v4317 = vmul.f32 %v4315, %v4229
    %4319 = vrot.lane.b32.xlu0 %v4316, 104
    %v4320 = vpop.permute.xlu0 %4319
    %v4322 = vmul.f32 %v4315, %v4320
    %4324 = vrot.lane.b32.xlu0 %v4322, 12
    %v4325 = vpop.permute.xlu0 %4324
    %v4327 = vadd.f32 %v4317, %v4325
    %v4328 = vtanh.pop %v4327
    %4330 = vrot.lane.b32.xlu0 %v4328, 24
    %v4331 = vpop.permute.xlu0 %4330
    %v4333 = vmul.f32 %v4315, %v4331
    %v4335 = vsel %vm2982, %v2820, 0
    %4337 = vmatprep.subr.mxu0 0.0
    %4338 = vmatpush1.msra.mxu0 0.0
    %4339 = vmatprep.subr.mxu0 0.0
    %4340 = vmatpush1.msra.mxu0 0.0
    %4341 = vmatprep.subr.mxu0 0.0
    %4342 = vmatpush1.msra.mxu0 0.0
    %4343 = vmatprep.subr.mxu0 0.0
    %4344 = vmatpush1.msra.mxu0 0.0
    %4345 = vmatprep.subr.mxu0 0.0
    %4346 = vmatpush1.msra.mxu0 0.0
    %4347 = vmatprep.subr.mxu0 0.0
    %4348 = vmatpush1.msra.mxu0 0.0
    %4349 = vmatprep.subr.mxu0 0.0
    %4350 = vmatpush1.msra.mxu0 0.0
    %4351 = vmatprep.subr.mxu0 0.0
    %4352 = vmatpush1.msra.mxu0 0.0
    %4353 = vmatprep.subr.mxu0 0.0
    %4354 = vmatpush1.msra.mxu0 0.0
    %4355 = vmatprep.subr.mxu0 0.0
    %4356 = vmatpush1.msra.mxu0 0.0
    %4357 = vmatprep.subr.mxu0 0.0
    %4358 = vmatpush1.msra.mxu0 0.0
    %4359 = vmatprep.subr.mxu0 0.0
    %4360 = vmatpush1.msra.mxu0 0.0
    %4361 = vmatprep.subr.mxu0 0.0
    %4362 = vmatpush1.msra.mxu0 0.0
    %4363 = vmatprep.subr.mxu0 0.0
    %4364 = vmatpush1.msra.mxu0 0.0
    %4365 = vmatprep.subr.mxu0 0.0
    %4366 = vmatpush1.msra.mxu0 %v4335
    %4367 = vmatprep.subr.mxu0 0.0
    %4368 = vmatpush1.msra.mxu0 %v2819
    %4369 = vmatprep.subr.mxu0 0.0
    %4370 = vmatpush2.msra.mxu0 0.0
    %4371 = vmatprep.subr.mxu0 0.0
    %4372 = vmatpush2.msra.mxu0 0.0
    %4373 = vmatprep.subr.mxu0 0.0
    %4374 = vmatpush2.msra.mxu0 0.0
    %4375 = vmatprep.subr.mxu0 0.0
    %4376 = vmatpush2.msra.mxu0 0.0
    %4377 = vmatprep.subr.mxu0 0.0
    %4378 = vmatpush2.msra.mxu0 0.0
    %4379 = vmatprep.subr.mxu0 0.0
    %4380 = vmatpush2.msra.mxu0 0.0
    %4381 = vmatprep.subr.mxu0 0.0
    %4382 = vmatpush2.msra.mxu0 0.0
    %4383 = vmatprep.subr.mxu0 0.0
    %4384 = vmatpush2.msra.mxu0 0.0
    %4385 = vmatprep.subr.mxu0 0.0
    %4386 = vmatpush2.msra.mxu0 0.0
    %4387 = vmatprep.subr.mxu0 0.0
    %4388 = vmatpush2.msra.mxu0 0.0
    %4389 = vmatprep.subr.mxu0 0.0
    %4390 = vmatpush2.msra.mxu0 0.0
    %4391 = vmatprep.subr.mxu0 0.0
    %4392 = vmatpush2.msra.mxu0 0.0
    %4393 = vmatprep.subr.mxu0 0.0
    %4394 = vmatpush2.msra.mxu0 0.0
    %4395 = vmatprep.subr.mxu0 0.0
    %4396 = vmatpush2.msra.mxu0 0.0
    %4397 = vmatprep.subr.mxu0 0.0
    %4398 = vmatpush2.msra.mxu0 0.0
    %4399 = vmatprep.subr.mxu0 0.0
    %4400 = vmatpush2.msra.mxu0 0.0
    %4401 = vmatprep.mubr.f32.mxu0 0.0
    %4402 = vmatmul.mubr.f32.gmra.mxu0 %v2980
    %v4403 = vpop.f32.mrf.mxu0
    %v4404 = vadd.f32 0.0, %v4403
    %v4405 = vpop.f32.mrf.mxu0
    %4406 = vdwg.mxu0
    %4408 = vrot.lane.b32.xlu0 %v4404, 48
    %v4409 = vpop.permute.xlu0 %4408
    %v4411 = vadd.f32 %v4137, %v4409
    %v4412 = vmul.f32 %v4411, 0.5
    %v4413 = vtanh.pop %v4412
    %v4414 = vmul.f32 %v4413, 0.5
    %v4415 = vadd.f32 %v4414, 0.5
    %v4416 = vtanh.pop %v4411
    %v4417 = vmul.f32 %v4415, 0.0
    %4419 = vrot.lane.b32.xlu0 %v4416, 104
    %v4420 = vpop.permute.xlu0 %4419
    %v4422 = vmul.f32 %v4415, %v4420
    %4424 = vrot.lane.b32.xlu0 %v4422, 12
    %v4425 = vpop.permute.xlu0 %4424
    %v4427 = vadd.f32 %v4417, %v4425
    %v4428 = vtanh.pop %v4427
    %4430 = vrot.lane.b32.xlu0 %v4428, 24
    %v4431 = vpop.permute.xlu0 %4430
    %v4433 = vmul.f32 %v4415, %v4431
    %4435 = vrot.lane.b32.xlu0 %v4433, 44
    %v4436 = vpop.permute.xlu0 %4435
    %v4437 = vsel %vm2978, %v4436, 0
    %4439 = vmatprep.subr.mxu0 0.0
    %4440 = vmatpush1.msra.mxu0 0.0
    %4441 = vmatprep.subr.mxu0 0.0
    %4442 = vmatpush1.msra.mxu0 0.0
    %4443 = vmatprep.subr.mxu0 0.0
    %4444 = vmatpush1.msra.mxu0 0.0
    %4445 = vmatprep.subr.mxu0 0.0
    %4446 = vmatpush1.msra.mxu0 0.0
    %4447 = vmatprep.subr.mxu0 0.0
    %4448 = vmatpush1.msra.mxu0 0.0
    %4449 = vmatprep.subr.mxu0 0.0
    %4450 = vmatpush1.msra.mxu0 0.0
    %4451 = vmatprep.subr.mxu0 0.0
    %4452 = vmatpush1.msra.mxu0 0.0
    %4453 = vmatprep.subr.mxu0 0.0
    %4454 = vmatpush1.msra.mxu0 0.0
    %4455 = vmatprep.subr.mxu0 0.0
    %4456 = vmatpush1.msra.mxu0 0.0
    %4457 = vmatprep.subr.mxu0 0.0
    %4458 = vmatpush1.msra.mxu0 0.0
    %4459 = vmatprep.subr.mxu0 0.0
    %4460 = vmatpush1.msra.mxu0 0.0
    %4461 = vmatprep.subr.mxu0 0.0
    %4462 = vmatpush1.msra.mxu0 0.0
    %4463 = vmatprep.subr.mxu0 0.0
    %4464 = vmatpush1.msra.mxu0 0.0
    %4465 = vmatprep.subr.mxu0 0.0
    %4466 = vmatpush1.msra.mxu0 0.0
    %4467 = vmatprep.subr.mxu0 0.0
    %4468 = vmatpush1.msra.mxu0 %v4335
    %4469 = vmatprep.subr.mxu0 0.0
    %4470 = vmatpush1.msra.mxu0 %v2819
    %4471 = vmatprep.subr.mxu0 0.0
    %4472 = vmatpush2.msra.mxu0 0.0
    %4473 = vmatprep.subr.mxu0 0.0
    %4474 = vmatpush2.msra.mxu0 0.0
    %4475 = vmatprep.subr.mxu0 0.0
    %4476 = vmatpush2.msra.mxu0 0.0
    %4477 = vmatprep.subr.mxu0 0.0
    %4478 = vmatpush2.msra.mxu0 0.0
    %4479 = vmatprep.subr.mxu0 0.0
    %4480 = vmatpush2.msra.mxu0 0.0
    %4481 = vmatprep.subr.mxu0 0.0
    %4482 = vmatpush2.msra.mxu0 0.0
    %4483 = vmatprep.subr.mxu0 0.0
    %4484 = vmatpush2.msra.mxu0 0.0
    %4485 = vmatprep.subr.mxu0 0.0
    %4486 = vmatpush2.msra.mxu0 0.0
    %4487 = vmatprep.subr.mxu0 0.0
    %4488 = vmatpush2.msra.mxu0 0.0
    %4489 = vmatprep.subr.mxu0 0.0
    %4490 = vmatpush2.msra.mxu0 0.0
    %4491 = vmatprep.subr.mxu0 0.0
    %4492 = vmatpush2.msra.mxu0 0.0
    %4493 = vmatprep.subr.mxu0 0.0
    %4494 = vmatpush2.msra.mxu0 0.0
    %4495 = vmatprep.subr.mxu0 0.0
    %4496 = vmatpush2.msra.mxu0 0.0
    %4497 = vmatprep.subr.mxu0 0.0
    %4498 = vmatpush2.msra.mxu0 0.0
    %4499 = vmatprep.subr.mxu0 0.0
    %4500 = vmatpush2.msra.mxu0 0.0
    %4501 = vmatprep.subr.mxu0 0.0
    %4502 = vmatpush2.msra.mxu0 0.0
    %4503 = vmatprep.mubr.f32.mxu0 0.0
    %4504 = vmatmul.mubr.f32.gmra.mxu0 %v4437
    %v4505 = vpop.f32.mrf.mxu0
    %v4506 = vadd.f32 0.0, %v4505
    %v4507 = vpop.f32.mrf.mxu0
    %4508 = vdwg.mxu0
    %4510 = vrot.lane.b32.xlu0 %v4506, 48
    %v4511 = vpop.permute.xlu0 %4510
    %v4513 = vadd.f32 %v4062, %v4511
    %v4514 = vmul.f32 %v4513, 0.5
    %v4515 = vtanh.pop %v4514
    %v4516 = vmul.f32 %v4515, 0.5
    %v4517 = vadd.f32 %v4516, 0.5
    %v4518 = vtanh.pop %v4513
    %v4519 = vmul.f32 %v4517, %v4427
    %4521 = vrot.lane.b32.xlu0 %v4518, 104
    %v4522 = vpop.permute.xlu0 %4521
    %v4524 = vmul.f32 %v4517, %v4522
    %4526 = vrot.lane.b32.xlu0 %v4524, 12
    %v4527 = vpop.permute.xlu0 %4526
    %v4529 = vadd.f32 %v4519, %v4527
    %v4530 = vtanh.pop %v4529
    %4532 = vrot.lane.b32.xlu0 %v4530, 24
    %v4533 = vpop.permute.xlu0 %4532
    %v4535 = vmul.f32 %v4517, %v4533
    %4537 = vrot.lane.b32.xlu0 %v4535, 80
    %v4538 = vpop.permute.xlu0 %4537
    %v4540 = vadd.f32 %v4235, %v4538
    %4541 = vrot.lane.b32.xlu0 %v4433, 80
    %v4542 = vpop.permute.xlu0 %4541
    %v4544 = vadd.f32 %v4333, %v4542
    %v4546 = vsel %vm2827, %v1731, 0
    %4548 = vmatprep.subr.mxu0 0.0
    %4549 = vmatpush1.msra.mxu0 0.0
    %4550 = vmatprep.subr.mxu0 0.0
    %4551 = vmatpush1.msra.mxu0 0.0
    %4552 = vmatprep.subr.mxu0 0.0
    %4553 = vmatpush1.msra.mxu0 0.0
    %4554 = vmatprep.subr.mxu0 0.0
    %4555 = vmatpush1.msra.mxu0 0.0
    %4556 = vmatprep.subr.mxu0 0.0
    %4557 = vmatpush1.msra.mxu0 0.0
    %4558 = vmatprep.subr.mxu0 0.0
    %4559 = vmatpush1.msra.mxu0 0.0
    %4560 = vmatprep.subr.mxu0 0.0
    %4561 = vmatpush1.msra.mxu0 0.0
    %4562 = vmatprep.subr.mxu0 0.0
    %4563 = vmatpush1.msra.mxu0 0.0
    %4564 = vmatprep.subr.mxu0 0.0
    %4565 = vmatpush1.msra.mxu0 0.0
    %4566 = vmatprep.subr.mxu0 0.0
    %4567 = vmatpush1.msra.mxu0 0.0
    %4568 = vmatprep.subr.mxu0 0.0
    %4569 = vmatpush1.msra.mxu0 0.0
    %4570 = vmatprep.subr.mxu0 0.0
    %4571 = vmatpush1.msra.mxu0 0.0
    %4572 = vmatprep.subr.mxu0 0.0
    %4573 = vmatpush1.msra.mxu0 %v2833
    %4574 = vmatprep.subr.mxu0 0.0
    %4575 = vmatpush1.msra.mxu0 %v2795
    %4576 = vmatprep.subr.mxu0 0.0
    %4577 = vmatpush1.msra.mxu0 %v2794
    %4578 = vmatprep.subr.mxu0 0.0
    %4579 = vmatpush1.msra.mxu0 %v2793
    %4580 = vmatprep.subr.mxu0 0.0
    %4581 = vmatpush2.msra.mxu0 0.0
    %4582 = vmatprep.subr.mxu0 0.0
    %4583 = vmatpush2.msra.mxu0 0.0
    %4584 = vmatprep.subr.mxu0 0.0
    %4585 = vmatpush2.msra.mxu0 0.0
    %4586 = vmatprep.subr.mxu0 0.0
    %4587 = vmatpush2.msra.mxu0 0.0
    %4588 = vmatprep.subr.mxu0 0.0
    %4589 = vmatpush2.msra.mxu0 0.0
    %4590 = vmatprep.subr.mxu0 0.0
    %4591 = vmatpush2.msra.mxu0 0.0
    %4592 = vmatprep.subr.mxu0 0.0
    %4593 = vmatpush2.msra.mxu0 0.0
    %4594 = vmatprep.subr.mxu0 0.0
    %4595 = vmatpush2.msra.mxu0 0.0
    %4596 = vmatprep.subr.mxu0 0.0
    %4597 = vmatpush2.msra.mxu0 0.0
    %4598 = vmatprep.subr.mxu0 0.0
    %4599 = vmatpush2.msra.mxu0 0.0
    %4600 = vmatprep.subr.mxu0 0.0
    %4601 = vmatpush2.msra.mxu0 0.0
    %4602 = vmatprep.subr.mxu0 0.0
    %4603 = vmatpush2.msra.mxu0 0.0
    %4604 = vmatprep.subr.mxu0 0.0
    %4605 = vmatpush2.msra.mxu0 0.0
    %4606 = vmatprep.subr.mxu0 0.0
    %4607 = vmatpush2.msra.mxu0 0.0
    %4608 = vmatprep.subr.mxu0 0.0
    %4609 = vmatpush2.msra.mxu0 0.0
    %4610 = vmatprep.subr.mxu0 0.0
    %4611 = vmatpush2.msra.mxu0 0.0
    %4612 = vmatprep.mubr.f32.mxu0 0.0
    %4613 = vmatmul.mubr.f32.gmra.mxu0 %v4546
    %v4614 = vpop.f32.mrf.mxu0
    %v4615 = vadd.f32 %v2825, %v4614
    %v4616 = vpop.f32.mrf.mxu0
    %4617 = vdwg.mxu0
    %v4619 = vsel %vm2827, %v2792, 0
    %4621 = vmatprep.subr.mxu0 0.0
    %4622 = vmatpush1.msra.mxu0 0.0
    %4623 = vmatprep.subr.mxu0 0.0
    %4624 = vmatpush1.msra.mxu0 0.0
    %4625 = vmatprep.subr.mxu0 0.0
    %4626 = vmatpush1.msra.mxu0 0.0
    %4627 = vmatprep.subr.mxu0 0.0
    %4628 = vmatpush1.msra.mxu0 0.0
    %4629 = vmatprep.subr.mxu0 0.0
    %4630 = vmatpush1.msra.mxu0 0.0
    %4631 = vmatprep.subr.mxu0 0.0
    %4632 = vmatpush1.msra.mxu0 0.0
    %4633 = vmatprep.subr.mxu0 0.0
    %4634 = vmatpush1.msra.mxu0 0.0
    %4635 = vmatprep.subr.mxu0 0.0
    %4636 = vmatpush1.msra.mxu0 0.0
    %4637 = vmatprep.subr.mxu0 0.0
    %4638 = vmatpush1.msra.mxu0 0.0
    %4639 = vmatprep.subr.mxu0 0.0
    %4640 = vmatpush1.msra.mxu0 0.0
    %4641 = vmatprep.subr.mxu0 0.0
    %4642 = vmatpush1.msra.mxu0 0.0
    %4643 = vmatprep.subr.mxu0 0.0
    %4644 = vmatpush1.msra.mxu0 0.0
    %4645 = vmatprep.subr.mxu0 0.0
    %4646 = vmatpush1.msra.mxu0 %v2833
    %4647 = vmatprep.subr.mxu0 0.0
    %4648 = vmatpush1.msra.mxu0 %v2795
    %4649 = vmatprep.subr.mxu0 0.0
    %4650 = vmatpush1.msra.mxu0 %v2794
    %4651 = vmatprep.subr.mxu0 0.0
    %4652 = vmatpush1.msra.mxu0 %v2793
    %4653 = vmatprep.subr.mxu0 0.0
    %4654 = vmatpush2.msra.mxu0 0.0
    %4655 = vmatprep.subr.mxu0 0.0
    %4656 = vmatpush2.msra.mxu0 0.0
    %4657 = vmatprep.subr.mxu0 0.0
    %4658 = vmatpush2.msra.mxu0 0.0
    %4659 = vmatprep.subr.mxu0 0.0
    %4660 = vmatpush2.msra.mxu0 0.0
    %4661 = vmatprep.subr.mxu0 0.0
    %4662 = vmatpush2.msra.mxu0 0.0
    %4663 = vmatprep.subr.mxu0 0.0
    %4664 = vmatpush2.msra.mxu0 0.0
    %4665 = vmatprep.subr.mxu0 0.0
    %4666 = vmatpush2.msra.mxu0 0.0
    %4667 = vmatprep.subr.mxu0 0.0
    %4668 = vmatpush2.msra.mxu0 0.0
    %4669 = vmatprep.subr.mxu0 0.0
    %4670 = vmatpush2.msra.mxu0 0.0
    %4671 = vmatprep.subr.mxu0 0.0
    %4672 = vmatpush2.msra.mxu0 0.0
    %4673 = vmatprep.subr.mxu0 0.0
    %4674 = vmatpush2.msra.mxu0 0.0
    %4675 = vmatprep.subr.mxu0 0.0
    %4676 = vmatpush2.msra.mxu0 0.0
    %4677 = vmatprep.subr.mxu0 0.0
    %4678 = vmatpush2.msra.mxu0 0.0
    %4679 = vmatprep.subr.mxu0 0.0
    %4680 = vmatpush2.msra.mxu0 0.0
    %4681 = vmatprep.subr.mxu0 0.0
    %4682 = vmatpush2.msra.mxu0 0.0
    %4683 = vmatprep.subr.mxu0 0.0
    %4684 = vmatpush2.msra.mxu0 0.0
    %4685 = vmatprep.mubr.f32.mxu0 0.0
    %4686 = vmatmul.mubr.f32.gmra.mxu0 %v4619
    %v4687 = vpop.f32.mrf.mxu0
    %v4688 = vadd.f32 %v2825, %v4687
    %v4689 = vpop.f32.mrf.mxu0
    %4690 = vdwg.mxu0
    %v4691 = vadd.f32 %v4615, %v3053
    %v4692 = vmul.f32 %v4691, 0.5
    %v4693 = vtanh.pop %v4692
    %v4694 = vmul.f32 %v4693, 0.5
    %v4695 = vadd.f32 %v4694, 0.5
    %v4696 = vtanh.pop %v4691
    %v4697 = vmul.f32 %v4695, 0.0
    %4699 = vrot.lane.b32.xlu0 %v4696, 104
    %v4700 = vpop.permute.xlu0 %4699
    %v4702 = vmul.f32 %v4695, %v4700
    %4704 = vrot.lane.b32.xlu0 %v4702, 12
    %v4705 = vpop.permute.xlu0 %4704
    %v4707 = vadd.f32 %v4697, %v4705
    %v4708 = vtanh.pop %v4707
    %4710 = vrot.lane.b32.xlu0 %v4708, 24
    %v4711 = vpop.permute.xlu0 %4710
    %v4713 = vmul.f32 %v4695, %v4711
    %4715 = vrot.lane.b32.xlu0 %v4713, 92
    %v4716 = vpop.permute.xlu0 %4715
    %v4717 = vsel %vm2978, %v4716, 0
    %4719 = vmatprep.subr.mxu0 0.0
    %4720 = vmatpush1.msra.mxu0 0.0
    %4721 = vmatprep.subr.mxu0 0.0
    %4722 = vmatpush1.msra.mxu0 0.0
    %4723 = vmatprep.subr.mxu0 0.0
    %4724 = vmatpush1.msra.mxu0 0.0
    %4725 = vmatprep.subr.mxu0 0.0
    %4726 = vmatpush1.msra.mxu0 0.0
    %4727 = vmatprep.subr.mxu0 0.0
    %4728 = vmatpush1.msra.mxu0 0.0
    %4729 = vmatprep.subr.mxu0 0.0
    %4730 = vmatpush1.msra.mxu0 0.0
    %4731 = vmatprep.subr.mxu0 0.0
    %4732 = vmatpush1.msra.mxu0 0.0
    %4733 = vmatprep.subr.mxu0 0.0
    %4734 = vmatpush1.msra.mxu0 0.0
    %4735 = vmatprep.subr.mxu0 0.0
    %4736 = vmatpush1.msra.mxu0 0.0
    %4737 = vmatprep.subr.mxu0 0.0
    %4738 = vmatpush1.msra.mxu0 0.0
    %4739 = vmatprep.subr.mxu0 0.0
    %4740 = vmatpush1.msra.mxu0 0.0
    %4741 = vmatprep.subr.mxu0 0.0
    %4742 = vmatpush1.msra.mxu0 0.0
    %4743 = vmatprep.subr.mxu0 0.0
    %4744 = vmatpush1.msra.mxu0 0.0
    %4745 = vmatprep.subr.mxu0 0.0
    %4746 = vmatpush1.msra.mxu0 0.0
    %4747 = vmatprep.subr.mxu0 0.0
    %4748 = vmatpush1.msra.mxu0 %v2984
    %4749 = vmatprep.subr.mxu0 0.0
    %4750 = vmatpush1.msra.mxu0 %v2798
    %4751 = vmatprep.subr.mxu0 0.0
    %4752 = vmatpush2.msra.mxu0 0.0
    %4753 = vmatprep.subr.mxu0 0.0
    %4754 = vmatpush2.msra.mxu0 0.0
    %4755 = vmatprep.subr.mxu0 0.0
    %4756 = vmatpush2.msra.mxu0 0.0
    %4757 = vmatprep.subr.mxu0 0.0
    %4758 = vmatpush2.msra.mxu0 0.0
    %4759 = vmatprep.subr.mxu0 0.0
    %4760 = vmatpush2.msra.mxu0 0.0
    %4761 = vmatprep.subr.mxu0 0.0
    %4762 = vmatpush2.msra.mxu0 0.0
    %4763 = vmatprep.subr.mxu0 0.0
    %4764 = vmatpush2.msra.mxu0 0.0
    %4765 = vmatprep.subr.mxu0 0.0
    %4766 = vmatpush2.msra.mxu0 0.0
    %4767 = vmatprep.subr.mxu0 0.0
    %4768 = vmatpush2.msra.mxu0 0.0
    %4769 = vmatprep.subr.mxu0 0.0
    %4770 = vmatpush2.msra.mxu0 0.0
    %4771 = vmatprep.subr.mxu0 0.0
    %4772 = vmatpush2.msra.mxu0 0.0
    %4773 = vmatprep.subr.mxu0 0.0
    %4774 = vmatpush2.msra.mxu0 0.0
    %4775 = vmatprep.subr.mxu0 0.0
    %4776 = vmatpush2.msra.mxu0 0.0
    %4777 = vmatprep.subr.mxu0 0.0
    %4778 = vmatpush2.msra.mxu0 0.0
    %4779 = vmatprep.subr.mxu0 0.0
    %4780 = vmatpush2.msra.mxu0 0.0
    %4781 = vmatprep.subr.mxu0 0.0
    %4782 = vmatpush2.msra.mxu0 0.0
    %4783 = vmatprep.mubr.f32.mxu0 0.0
    %4784 = vmatmul.mubr.f32.gmra.mxu0 %v4717
    %v4785 = vpop.f32.mrf.mxu0
    %v4786 = vadd.f32 0.0, %v4785
    %v4787 = vpop.f32.mrf.mxu0
    %4788 = vdwg.mxu0
    %v4789 = vadd.f32 %v4688, %v4786
    %v4790 = vmul.f32 %v4789, 0.5
    %v4791 = vtanh.pop %v4790
    %v4792 = vmul.f32 %v4791, 0.5
    %v4793 = vadd.f32 %v4792, 0.5
    %v4794 = vtanh.pop %v4789
    %v4795 = vmul.f32 %v4793, %v4707
    %4797 = vrot.lane.b32.xlu0 %v4794, 104
    %v4798 = vpop.permute.xlu0 %4797
    %v4800 = vmul.f32 %v4793, %v4798
    %4802 = vrot.lane.b32.xlu0 %v4800, 12
    %v4803 = vpop.permute.xlu0 %4802
    %v4805 = vadd.f32 %v4795, %v4803
    %v4806 = vtanh.pop %v4805
    %4808 = vrot.lane.b32.xlu0 %v4806, 24
    %v4809 = vpop.permute.xlu0 %4808
    %v4811 = vmul.f32 %v4793, %v4809
    %v4812 = vadd.f32 %v4688, %v3252
    %v4813 = vmul.f32 %v4812, 0.5
    %v4814 = vtanh.pop %v4813
    %v4815 = vmul.f32 %v4814, 0.5
    %v4816 = vadd.f32 %v4815, 0.5
    %v4817 = vtanh.pop %v4812
    %v4818 = vmul.f32 %v4816, 0.0
    %4820 = vrot.lane.b32.xlu0 %v4817, 104
    %v4821 = vpop.permute.xlu0 %4820
    %v4823 = vmul.f32 %v4816, %v4821
    %4825 = vrot.lane.b32.xlu0 %v4823, 12
    %v4826 = vpop.permute.xlu0 %4825
    %v4828 = vadd.f32 %v4818, %v4826
    %v4829 = vtanh.pop %v4828
    %4831 = vrot.lane.b32.xlu0 %v4829, 24
    %v4832 = vpop.permute.xlu0 %4831
    %v4834 = vmul.f32 %v4816, %v4832
    %4836 = vrot.lane.b32.xlu0 %v4834, 44
    %v4837 = vpop.permute.xlu0 %4836
    %v4838 = vsel %vm2978, %v4837, 0
    %4840 = vmatprep.subr.mxu0 0.0
    %4841 = vmatpush1.msra.mxu0 0.0
    %4842 = vmatprep.subr.mxu0 0.0
    %4843 = vmatpush1.msra.mxu0 0.0
    %4844 = vmatprep.subr.mxu0 0.0
    %4845 = vmatpush1.msra.mxu0 0.0
    %4846 = vmatprep.subr.mxu0 0.0
    %4847 = vmatpush1.msra.mxu0 0.0
    %4848 = vmatprep.subr.mxu0 0.0
    %4849 = vmatpush1.msra.mxu0 0.0
    %4850 = vmatprep.subr.mxu0 0.0
    %4851 = vmatpush1.msra.mxu0 0.0
    %4852 = vmatprep.subr.mxu0 0.0
    %4853 = vmatpush1.msra.mxu0 0.0
    %4854 = vmatprep.subr.mxu0 0.0
    %4855 = vmatpush1.msra.mxu0 0.0
    %4856 = vmatprep.subr.mxu0 0.0
    %4857 = vmatpush1.msra.mxu0 0.0
    %4858 = vmatprep.subr.mxu0 0.0
    %4859 = vmatpush1.msra.mxu0 0.0
    %4860 = vmatprep.subr.mxu0 0.0
    %4861 = vmatpush1.msra.mxu0 0.0
    %4862 = vmatprep.subr.mxu0 0.0
    %4863 = vmatpush1.msra.mxu0 0.0
    %4864 = vmatprep.subr.mxu0 0.0
    %4865 = vmatpush1.msra.mxu0 0.0
    %4866 = vmatprep.subr.mxu0 0.0
    %4867 = vmatpush1.msra.mxu0 0.0
    %4868 = vmatprep.subr.mxu0 0.0
    %4869 = vmatpush1.msra.mxu0 %v3178
    %4870 = vmatprep.subr.mxu0 0.0
    %4871 = vmatpush1.msra.mxu0 %v2800
    %4872 = vmatprep.subr.mxu0 0.0
    %4873 = vmatpush2.msra.mxu0 0.0
    %4874 = vmatprep.subr.mxu0 0.0
    %4875 = vmatpush2.msra.mxu0 0.0
    %4876 = vmatprep.subr.mxu0 0.0
    %4877 = vmatpush2.msra.mxu0 0.0
    %4878 = vmatprep.subr.mxu0 0.0
    %4879 = vmatpush2.msra.mxu0 0.0
    %4880 = vmatprep.subr.mxu0 0.0
    %4881 = vmatpush2.msra.mxu0 0.0
    %4882 = vmatprep.subr.mxu0 0.0
    %4883 = vmatpush2.msra.mxu0 0.0
    %4884 = vmatprep.subr.mxu0 0.0
    %4885 = vmatpush2.msra.mxu0 0.0
    %4886 = vmatprep.subr.mxu0 0.0
    %4887 = vmatpush2.msra.mxu0 0.0
    %4888 = vmatprep.subr.mxu0 0.0
    %4889 = vmatpush2.msra.mxu0 0.0
    %4890 = vmatprep.subr.mxu0 0.0
    %4891 = vmatpush2.msra.mxu0 0.0
    %4892 = vmatprep.subr.mxu0 0.0
    %4893 = vmatpush2.msra.mxu0 0.0
    %4894 = vmatprep.subr.mxu0 0.0
    %4895 = vmatpush2.msra.mxu0 0.0
    %4896 = vmatprep.subr.mxu0 0.0
    %4897 = vmatpush2.msra.mxu0 0.0
    %4898 = vmatprep.subr.mxu0 0.0
    %4899 = vmatpush2.msra.mxu0 0.0
    %4900 = vmatprep.subr.mxu0 0.0
    %4901 = vmatpush2.msra.mxu0 0.0
    %4902 = vmatprep.subr.mxu0 0.0
    %4903 = vmatpush2.msra.mxu0 0.0
    %4904 = vmatprep.mubr.f32.mxu0 0.0
    %4905 = vmatmul.mubr.f32.gmra.mxu0 %v4838
    %v4906 = vpop.f32.mrf.mxu0
    %v4907 = vadd.f32 0.0, %v4906
    %v4908 = vpop.f32.mrf.mxu0
    %4909 = vdwg.mxu0
    %4911 = vrot.lane.b32.xlu0 %v4907, 48
    %v4912 = vpop.permute.xlu0 %4911
    %v4914 = vadd.f32 %v4615, %v4912
    %v4915 = vmul.f32 %v4914, 0.5
    %v4916 = vtanh.pop %v4915
    %v4917 = vmul.f32 %v4916, 0.5
    %v4918 = vadd.f32 %v4917, 0.5
    %v4919 = vtanh.pop %v4914
    %v4920 = vmul.f32 %v4918, %v4828
    %4922 = vrot.lane.b32.xlu0 %v4919, 104
    %v4923 = vpop.permute.xlu0 %4922
    %v4925 = vmul.f32 %v4918, %v4923
    %4927 = vrot.lane.b32.xlu0 %v4925, 12
    %v4928 = vpop.permute.xlu0 %4927
    %v4930 = vadd.f32 %v4920, %v4928
    %v4931 = vtanh.pop %v4930
    %4933 = vrot.lane.b32.xlu0 %v4931, 24
    %v4934 = vpop.permute.xlu0 %4933
    %v4936 = vmul.f32 %v4918, %v4934
    %4938 = vrot.lane.b32.xlu0 %v4936, 80
    %v4939 = vpop.permute.xlu0 %4938
    %v4941 = vadd.f32 %v4713, %v4939
    %4942 = vrot.lane.b32.xlu0 %v4834, 80
    %v4943 = vpop.permute.xlu0 %4942
    %v4945 = vadd.f32 %v4811, %v4943
    %4947 = vrot.lane.b32.xlu0 %v4941, 92
    %v4948 = vpop.permute.xlu0 %4947
    %v4949 = vsel %vm2978, %v4948, 0
    %4951 = vmatprep.subr.mxu0 0.0
    %4952 = vmatpush1.msra.mxu0 0.0
    %4953 = vmatprep.subr.mxu0 0.0
    %4954 = vmatpush1.msra.mxu0 0.0
    %4955 = vmatprep.subr.mxu0 0.0
    %4956 = vmatpush1.msra.mxu0 0.0
    %4957 = vmatprep.subr.mxu0 0.0
    %4958 = vmatpush1.msra.mxu0 0.0
    %4959 = vmatprep.subr.mxu0 0.0
    %4960 = vmatpush1.msra.mxu0 0.0
    %4961 = vmatprep.subr.mxu0 0.0
    %4962 = vmatpush1.msra.mxu0 0.0
    %4963 = vmatprep.subr.mxu0 0.0
    %4964 = vmatpush1.msra.mxu0 0.0
    %4965 = vmatprep.subr.mxu0 0.0
    %4966 = vmatpush1.msra.mxu0 0.0
    %4967 = vmatprep.subr.mxu0 0.0
    %4968 = vmatpush1.msra.mxu0 0.0
    %4969 = vmatprep.subr.mxu0 0.0
    %4970 = vmatpush1.msra.mxu0 0.0
    %4971 = vmatprep.subr.mxu0 0.0
    %4972 = vmatpush1.msra.mxu0 0.0
    %4973 = vmatprep.subr.mxu0 0.0
    %4974 = vmatpush1.msra.mxu0 0.0
    %4975 = vmatprep.subr.mxu0 0.0
    %4976 = vmatpush1.msra.mxu0 0.0
    %4977 = vmatprep.subr.mxu0 0.0
    %4978 = vmatpush1.msra.mxu0 0.0
    %4979 = vmatprep.subr.mxu0 %v3408
    %4980 = vmatpush1.msra.mxu0 %v3405
    %4981 = vmatprep.subr.mxu0 %v2803
    %4982 = vmatpush1.msra.mxu0 %v2802
    %4983 = vmatprep.subr.mxu0 0.0
    %4984 = vmatpush2.msra.mxu0 0.0
    %4985 = vmatprep.subr.mxu0 0.0
    %4986 = vmatpush2.msra.mxu0 0.0
    %4987 = vmatprep.subr.mxu0 0.0
    %4988 = vmatpush2.msra.mxu0 0.0
    %4989 = vmatprep.subr.mxu0 0.0
    %4990 = vmatpush2.msra.mxu0 0.0
    %4991 = vmatprep.subr.mxu0 0.0
    %4992 = vmatpush2.msra.mxu0 0.0
    %4993 = vmatprep.subr.mxu0 0.0
    %4994 = vmatpush2.msra.mxu0 0.0
    %4995 = vmatprep.subr.mxu0 0.0
    %4996 = vmatpush2.msra.mxu0 0.0
    %4997 = vmatprep.subr.mxu0 0.0
    %4998 = vmatpush2.msra.mxu0 0.0
    %4999 = vmatprep.subr.mxu0 0.0
    %5000 = vmatpush2.msra.mxu0 0.0
    %5001 = vmatprep.subr.mxu0 0.0
    %5002 = vmatpush2.msra.mxu0 0.0
    %5003 = vmatprep.subr.mxu0 0.0
    %5004 = vmatpush2.msra.mxu0 0.0
    %5005 = vmatprep.subr.mxu0 0.0
    %5006 = vmatpush2.msra.mxu0 0.0
    %5007 = vmatprep.subr.mxu0 0.0
    %5008 = vmatpush2.msra.mxu0 0.0
    %5009 = vmatprep.subr.mxu0 0.0
    %5010 = vmatpush2.msra.mxu0 0.0
    %5011 = vmatprep.subr.mxu0 0.0
    %5012 = vmatpush2.msra.mxu0 0.0
    %5013 = vmatprep.subr.mxu0 0.0
    %5014 = vmatpush2.msra.mxu0 0.0
    %5015 = vmatprep.mubr.f32.mxu0 0.0
    %5016 = vmatmul.mubr.f32.gmra.mxu0 %v4949
    %v5017 = vpop.f32.mrf.mxu0
    %v5018 = vadd.f32 %v3392, %v5017
    %v5019 = vpop.f32.mrf.mxu0
    %v5020 = vadd.f32 %v3396, %v5019
    %5021 = vdwg.mxu0
    %5023 = vrot.lane.b32.xlu0 %v4945, 92
    %v5024 = vpop.permute.xlu0 %5023
    %v5025 = vsel %vm2978, %v5024, 0
    %5027 = vmatprep.subr.mxu0 0.0
    %5028 = vmatpush1.msra.mxu0 0.0
    %5029 = vmatprep.subr.mxu0 0.0
    %5030 = vmatpush1.msra.mxu0 0.0
    %5031 = vmatprep.subr.mxu0 0.0
    %5032 = vmatpush1.msra.mxu0 0.0
    %5033 = vmatprep.subr.mxu0 0.0
    %5034 = vmatpush1.msra.mxu0 0.0
    %5035 = vmatprep.subr.mxu0 0.0
    %5036 = vmatpush1.msra.mxu0 0.0
    %5037 = vmatprep.subr.mxu0 0.0
    %5038 = vmatpush1.msra.mxu0 0.0
    %5039 = vmatprep.subr.mxu0 0.0
    %5040 = vmatpush1.msra.mxu0 0.0
    %5041 = vmatprep.subr.mxu0 0.0
    %5042 = vmatpush1.msra.mxu0 0.0
    %5043 = vmatprep.subr.mxu0 0.0
    %5044 = vmatpush1.msra.mxu0 0.0
    %5045 = vmatprep.subr.mxu0 0.0
    %5046 = vmatpush1.msra.mxu0 0.0
    %5047 = vmatprep.subr.mxu0 0.0
    %5048 = vmatpush1.msra.mxu0 0.0
    %5049 = vmatprep.subr.mxu0 0.0
    %5050 = vmatpush1.msra.mxu0 0.0
    %5051 = vmatprep.subr.mxu0 0.0
    %5052 = vmatpush1.msra.mxu0 0.0
    %5053 = vmatprep.subr.mxu0 0.0
    %5054 = vmatpush1.msra.mxu0 0.0
    %5055 = vmatprep.subr.mxu0 %v3408
    %5056 = vmatpush1.msra.mxu0 %v3405
    %5057 = vmatprep.subr.mxu0 %v2803
    %5058 = vmatpush1.msra.mxu0 %v2802
    %5059 = vmatprep.subr.mxu0 0.0
    %5060 = vmatpush2.msra.mxu0 0.0
    %5061 = vmatprep.subr.mxu0 0.0
    %5062 = vmatpush2.msra.mxu0 0.0
    %5063 = vmatprep.subr.mxu0 0.0
    %5064 = vmatpush2.msra.mxu0 0.0
    %5065 = vmatprep.subr.mxu0 0.0
    %5066 = vmatpush2.msra.mxu0 0.0
    %5067 = vmatprep.subr.mxu0 0.0
    %5068 = vmatpush2.msra.mxu0 0.0
    %5069 = vmatprep.subr.mxu0 0.0
    %5070 = vmatpush2.msra.mxu0 0.0
    %5071 = vmatprep.subr.mxu0 0.0
    %5072 = vmatpush2.msra.mxu0 0.0
    %5073 = vmatprep.subr.mxu0 0.0
    %5074 = vmatpush2.msra.mxu0 0.0
    %5075 = vmatprep.subr.mxu0 0.0
    %5076 = vmatpush2.msra.mxu0 0.0
    %5077 = vmatprep.subr.mxu0 0.0
    %5078 = vmatpush2.msra.mxu0 0.0
    %5079 = vmatprep.subr.mxu0 0.0
    %5080 = vmatpush2.msra.mxu0 0.0
    %5081 = vmatprep.subr.mxu0 0.0
    %5082 = vmatpush2.msra.mxu0 0.0
    %5083 = vmatprep.subr.mxu0 0.0
    %5084 = vmatpush2.msra.mxu0 0.0
    %5085 = vmatprep.subr.mxu0 0.0
    %5086 = vmatpush2.msra.mxu0 0.0
    %5087 = vmatprep.subr.mxu0 0.0
    %5088 = vmatpush2.msra.mxu0 0.0
    %5089 = vmatprep.subr.mxu0 0.0
    %5090 = vmatpush2.msra.mxu0 0.0
    %5091 = vmatprep.mubr.f32.mxu0 0.0
    %5092 = vmatmul.mubr.f32.gmra.mxu0 %v5025
    %v5093 = vpop.f32.mrf.mxu0
    %v5094 = vadd.f32 %v3392, %v5093
    %v5095 = vpop.f32.mrf.mxu0
    %v5096 = vadd.f32 %v3396, %v5095
    %5097 = vdwg.mxu0
    %v5098 = vadd.f32 %v5018, %v3627
    %v5099 = vmul.f32 %v5098, 0.5
    %v5100 = vtanh.pop %v5099
    %v5101 = vmul.f32 %v5100, 0.5
    %v5102 = vadd.f32 %v5101, 0.5
    %v5103 = vtanh.pop %v5098
    %v5104 = vmul.f32 %v5102, 0.0
    %5106 = vrot.lane.b32.xlu0 %v5103, 80
    %v5107 = vpop.permute.xlu0 %5106
    %v5109 = vmul.f32 %v5102, %v5107
    %5111 = vrot.lane.b32.xlu0 %v5109, 24
    %v5112 = vpop.permute.xlu0 %5111
    %v5114 = vadd.f32 %v5104, %v5112
    %v5115 = vtanh.pop %v5114
    %5117 = vrot.lane.b32.xlu0 %v5115, 48
    %v5118 = vpop.permute.xlu0 %5117
    %v5120 = vmul.f32 %v5102, %v5118
    %5122 = vrot.lane.b32.xlu0 %v5120, 56
    %v5123 = vpop.permute.xlu0 %5122
    %v5124 = vsel %vm3557, %v5123, 0
    %5126 = vmatprep.subr.mxu0 0.0
    %5127 = vmatpush1.msra.mxu0 0.0
    %5128 = vmatprep.subr.mxu0 0.0
    %5129 = vmatpush1.msra.mxu0 0.0
    %5130 = vmatprep.subr.mxu0 0.0
    %5131 = vmatpush1.msra.mxu0 0.0
    %5132 = vmatprep.subr.mxu0 0.0
    %5133 = vmatpush1.msra.mxu0 0.0
    %5134 = vmatprep.subr.mxu0 0.0
    %5135 = vmatpush1.msra.mxu0 0.0
    %5136 = vmatprep.subr.mxu0 0.0
    %5137 = vmatpush1.msra.mxu0 0.0
    %5138 = vmatprep.subr.mxu0 0.0
    %5139 = vmatpush1.msra.mxu0 0.0
    %5140 = vmatprep.subr.mxu0 0.0
    %5141 = vmatpush1.msra.mxu0 0.0
    %5142 = vmatprep.subr.mxu0 0.0
    %5143 = vmatpush1.msra.mxu0 0.0
    %5144 = vmatprep.subr.mxu0 0.0
    %5145 = vmatpush1.msra.mxu0 0.0
    %5146 = vmatprep.subr.mxu0 0.0
    %5147 = vmatpush1.msra.mxu0 0.0
    %5148 = vmatprep.subr.mxu0 0.0
    %5149 = vmatpush1.msra.mxu0 0.0
    %5150 = vmatprep.subr.mxu0 0.0
    %5151 = vmatpush1.msra.mxu0 0.0
    %5152 = vmatprep.subr.mxu0 0.0
    %5153 = vmatpush1.msra.mxu0 %v2809
    %5154 = vmatprep.subr.mxu0 0.0
    %5155 = vmatpush1.msra.mxu0 %v2808
    %5156 = vmatprep.subr.mxu0 0.0
    %5157 = vmatpush1.msra.mxu0 %v2807
    %5158 = vmatprep.subr.mxu0 0.0
    %5159 = vmatpush2.msra.mxu0 0.0
    %5160 = vmatprep.subr.mxu0 0.0
    %5161 = vmatpush2.msra.mxu0 0.0
    %5162 = vmatprep.subr.mxu0 0.0
    %5163 = vmatpush2.msra.mxu0 0.0
    %5164 = vmatprep.subr.mxu0 0.0
    %5165 = vmatpush2.msra.mxu0 0.0
    %5166 = vmatprep.subr.mxu0 0.0
    %5167 = vmatpush2.msra.mxu0 0.0
    %5168 = vmatprep.subr.mxu0 0.0
    %5169 = vmatpush2.msra.mxu0 0.0
    %5170 = vmatprep.subr.mxu0 0.0
    %5171 = vmatpush2.msra.mxu0 0.0
    %5172 = vmatprep.subr.mxu0 0.0
    %5173 = vmatpush2.msra.mxu0 0.0
    %5174 = vmatprep.subr.mxu0 0.0
    %5175 = vmatpush2.msra.mxu0 0.0
    %5176 = vmatprep.subr.mxu0 0.0
    %5177 = vmatpush2.msra.mxu0 0.0
    %5178 = vmatprep.subr.mxu0 0.0
    %5179 = vmatpush2.msra.mxu0 0.0
    %5180 = vmatprep.subr.mxu0 0.0
    %5181 = vmatpush2.msra.mxu0 0.0
    %5182 = vmatprep.subr.mxu0 0.0
    %5183 = vmatpush2.msra.mxu0 0.0
    %5184 = vmatprep.subr.mxu0 0.0
    %5185 = vmatpush2.msra.mxu0 0.0
    %5186 = vmatprep.subr.mxu0 0.0
    %5187 = vmatpush2.msra.mxu0 0.0
    %5188 = vmatprep.subr.mxu0 0.0
    %5189 = vmatpush2.msra.mxu0 0.0
    %5190 = vmatprep.mubr.f32.mxu0 0.0
    %5191 = vmatmul.mubr.f32.gmra.mxu0 %v5124
    %v5192 = vpop.f32.mrf.mxu0
    %v5193 = vadd.f32 0.0, %v5192
    %v5194 = vpop.f32.mrf.mxu0
    %5195 = vdwg.mxu0
    %v5196 = vadd.f32 %v5094, %v5193
    %v5197 = vmul.f32 %v5196, 0.5
    %v5198 = vtanh.pop %v5197
    %v5199 = vmul.f32 %v5198, 0.5
    %v5200 = vadd.f32 %v5199, 0.5
    %v5201 = vtanh.pop %v5196
    %v5202 = vmul.f32 %v5200, %v5114
    %5204 = vrot.lane.b32.xlu0 %v5201, 80
    %v5205 = vpop.permute.xlu0 %5204
    %v5207 = vmul.f32 %v5200, %v5205
    %5209 = vrot.lane.b32.xlu0 %v5207, 24
    %v5210 = vpop.permute.xlu0 %5209
    %v5212 = vadd.f32 %v5202, %v5210
    %v5213 = vtanh.pop %v5212
    %5215 = vrot.lane.b32.xlu0 %v5213, 48
    %v5216 = vpop.permute.xlu0 %5215
    %v5218 = vmul.f32 %v5200, %v5216
    %v5219 = vadd.f32 %v5094, %v3823
    %v5220 = vadd.f32 %v5096, %v3823
    %v5221 = vmul.f32 %v5219, 0.5
    %v5222 = vtanh.pop %v5221
    %v5223 = vmul.f32 %v5222, 0.5
    %v5224 = vadd.f32 %v5223, 0.5
    %v5225 = vmul.f32 %v5220, 0.5
    %v5226 = vtanh.pop %v5225
    %v5227 = vmul.f32 %v5226, 0.5
    %v5228 = vadd.f32 %v5227, 0.5
    %v5229 = vtanh.pop %v5220
    %v5230 = vmul.f32 %v5224, 0.0
    %v5231 = vmul.f32 %v5228, 0.0
    %5233 = vrot.lane.b32.xlu0 %v5229, 80
    %v5234 = vpop.permute.xlu0 %5233
    %v5236 = vmul.f32 %v5224, %v5234
    %5238 = vrot.lane.b32.xlu0 %v5236, 24
    %v5239 = vpop.permute.xlu0 %5238
    %v5241 = vadd.f32 %v5230, %v5239
    %v5242 = vadd.f32 %v5231, %v5239
    %v5243 = vtanh.pop %v5241
    %v5244 = vtanh.pop %v5242
    %5247 = vrot.lane.b32.xlu0 %v5243, 48
    %v5248 = vpop.permute.xlu0 %5247
    %5249 = vrot.lane.b32.xlu0 %v5244, 48
    %v5250 = vpop.permute.xlu0 %5249
    %v5251 = vsel %vm3857, %v5248, %v5250
    %v5253 = vmul.f32 %v5228, %v5251
    %5255 = vrot.lane.b32.xlu0 %v5253, 88
    %v5256 = vpop.permute.xlu0 %5255
    %v5257 = vsel %vm3557, %v5256, 0
    %5259 = vmatprep.subr.mxu0 0.0
    %5260 = vmatpush1.msra.mxu0 0.0
    %5261 = vmatprep.subr.mxu0 0.0
    %5262 = vmatpush1.msra.mxu0 0.0
    %5263 = vmatprep.subr.mxu0 0.0
    %5264 = vmatpush1.msra.mxu0 0.0
    %5265 = vmatprep.subr.mxu0 0.0
    %5266 = vmatpush1.msra.mxu0 0.0
    %5267 = vmatprep.subr.mxu0 0.0
    %5268 = vmatpush1.msra.mxu0 0.0
    %5269 = vmatprep.subr.mxu0 0.0
    %5270 = vmatpush1.msra.mxu0 0.0
    %5271 = vmatprep.subr.mxu0 0.0
    %5272 = vmatpush1.msra.mxu0 0.0
    %5273 = vmatprep.subr.mxu0 0.0
    %5274 = vmatpush1.msra.mxu0 0.0
    %5275 = vmatprep.subr.mxu0 0.0
    %5276 = vmatpush1.msra.mxu0 0.0
    %5277 = vmatprep.subr.mxu0 0.0
    %5278 = vmatpush1.msra.mxu0 0.0
    %5279 = vmatprep.subr.mxu0 0.0
    %5280 = vmatpush1.msra.mxu0 0.0
    %5281 = vmatprep.subr.mxu0 0.0
    %5282 = vmatpush1.msra.mxu0 0.0
    %5283 = vmatprep.subr.mxu0 0.0
    %5284 = vmatpush1.msra.mxu0 0.0
    %5285 = vmatprep.subr.mxu0 0.0
    %5286 = vmatpush1.msra.mxu0 %v2812
    %5287 = vmatprep.subr.mxu0 0.0
    %5288 = vmatpush1.msra.mxu0 %v2811
    %5289 = vmatprep.subr.mxu0 0.0
    %5290 = vmatpush1.msra.mxu0 %v2810
    %5291 = vmatprep.subr.mxu0 0.0
    %5292 = vmatpush2.msra.mxu0 0.0
    %5293 = vmatprep.subr.mxu0 0.0
    %5294 = vmatpush2.msra.mxu0 0.0
    %5295 = vmatprep.subr.mxu0 0.0
    %5296 = vmatpush2.msra.mxu0 0.0
    %5297 = vmatprep.subr.mxu0 0.0
    %5298 = vmatpush2.msra.mxu0 0.0
    %5299 = vmatprep.subr.mxu0 0.0
    %5300 = vmatpush2.msra.mxu0 0.0
    %5301 = vmatprep.subr.mxu0 0.0
    %5302 = vmatpush2.msra.mxu0 0.0
    %5303 = vmatprep.subr.mxu0 0.0
    %5304 = vmatpush2.msra.mxu0 0.0
    %5305 = vmatprep.subr.mxu0 0.0
    %5306 = vmatpush2.msra.mxu0 0.0
    %5307 = vmatprep.subr.mxu0 0.0
    %5308 = vmatpush2.msra.mxu0 0.0
    %5309 = vmatprep.subr.mxu0 0.0
    %5310 = vmatpush2.msra.mxu0 0.0
    %5311 = vmatprep.subr.mxu0 0.0
    %5312 = vmatpush2.msra.mxu0 0.0
    %5313 = vmatprep.subr.mxu0 0.0
    %5314 = vmatpush2.msra.mxu0 0.0
    %5315 = vmatprep.subr.mxu0 0.0
    %5316 = vmatpush2.msra.mxu0 0.0
    %5317 = vmatprep.subr.mxu0 0.0
    %5318 = vmatpush2.msra.mxu0 0.0
    %5319 = vmatprep.subr.mxu0 0.0
    %5320 = vmatpush2.msra.mxu0 0.0
    %5321 = vmatprep.subr.mxu0 0.0
    %5322 = vmatpush2.msra.mxu0 0.0
    %5323 = vmatprep.mubr.f32.mxu0 0.0
    %5324 = vmatmul.mubr.f32.gmra.mxu0 %v5257
    %v5325 = vpop.f32.mrf.mxu0
    %v5326 = vadd.f32 0.0, %v5325
    %v5327 = vpop.f32.mrf.mxu0
    %5328 = vdwg.mxu0
    %5330 = vrot.lane.b32.xlu0 %v5326, 96
    %v5331 = vpop.permute.xlu0 %5330
    %v5333 = vadd.f32 %v5018, %v5331
    %v5334 = vadd.f32 %v5020, %v5331
    %v5335 = vmul.f32 %v5333, 0.5
    %v5336 = vtanh.pop %v5335
    %v5337 = vmul.f32 %v5336, 0.5
    %v5338 = vadd.f32 %v5337, 0.5
    %v5339 = vmul.f32 %v5334, 0.5
    %v5340 = vtanh.pop %v5339
    %v5341 = vmul.f32 %v5340, 0.5
    %v5342 = vadd.f32 %v5341, 0.5
    %v5343 = vtanh.pop %v5334
    %v5344 = vmul.f32 %v5338, %v5241
    %v5345 = vmul.f32 %v5342, %v5242
    %5347 = vrot.lane.b32.xlu0 %v5343, 80
    %v5348 = vpop.permute.xlu0 %5347
    %v5350 = vmul.f32 %v5338, %v5348
    %5352 = vrot.lane.b32.xlu0 %v5350, 24
    %v5353 = vpop.permute.xlu0 %5352
    %v5355 = vadd.f32 %v5344, %v5353
    %v5356 = vadd.f32 %v5345, %v5353
    %v5357 = vtanh.pop %v5355
    %v5358 = vtanh.pop %v5356
    %5361 = vrot.lane.b32.xlu0 %v5357, 48
    %v5362 = vpop.permute.xlu0 %5361
    %5363 = vrot.lane.b32.xlu0 %v5358, 48
    %v5364 = vpop.permute.xlu0 %5363
    %v5365 = vsel %vm3857, %v5362, %v5364
    %v5367 = vmul.f32 %v5342, %v5365
    %5369 = vrot.lane.b32.xlu0 %v5367, 32
    %v5370 = vpop.permute.xlu0 %5369
    %v5372 = vadd.f32 %v5120, %v5370
    %5373 = vrot.lane.b32.xlu0 %v5253, 32
    %v5374 = vpop.permute.xlu0 %5373
    %v5376 = vadd.f32 %v5218, %v5374
    %5378 = vrot.lane.b32.xlu0 %v5372, 56
    %v5379 = vpop.permute.xlu0 %5378
    %v5380 = vsel %vm3557, %v5379, 0
    %5382 = vmatprep.subr.mxu0 0.0
    %5383 = vmatpush1.msra.mxu0 0.0
    %5384 = vmatprep.subr.mxu0 0.0
    %5385 = vmatpush1.msra.mxu0 0.0
    %5386 = vmatprep.subr.mxu0 0.0
    %5387 = vmatpush1.msra.mxu0 0.0
    %5388 = vmatprep.subr.mxu0 0.0
    %5389 = vmatpush1.msra.mxu0 0.0
    %5390 = vmatprep.subr.mxu0 0.0
    %5391 = vmatpush1.msra.mxu0 0.0
    %5392 = vmatprep.subr.mxu0 0.0
    %5393 = vmatpush1.msra.mxu0 0.0
    %5394 = vmatprep.subr.mxu0 0.0
    %5395 = vmatpush1.msra.mxu0 0.0
    %5396 = vmatprep.subr.mxu0 0.0
    %5397 = vmatpush1.msra.mxu0 0.0
    %5398 = vmatprep.subr.mxu0 0.0
    %5399 = vmatpush1.msra.mxu0 0.0
    %5400 = vmatprep.subr.mxu0 0.0
    %5401 = vmatpush1.msra.mxu0 0.0
    %5402 = vmatprep.subr.mxu0 0.0
    %5403 = vmatpush1.msra.mxu0 0.0
    %5404 = vmatprep.subr.mxu0 0.0
    %5405 = vmatpush1.msra.mxu0 0.0
    %5406 = vmatprep.subr.mxu0 0.0
    %5407 = vmatpush1.msra.mxu0 0.0
    %5408 = vmatprep.subr.mxu0 0.0
    %5409 = vmatpush1.msra.mxu0 %v2815
    %5410 = vmatprep.subr.mxu0 0.0
    %5411 = vmatpush1.msra.mxu0 %v2814
    %5412 = vmatprep.subr.mxu0 0.0
    %5413 = vmatpush1.msra.mxu0 %v2813
    %5414 = vmatprep.subr.mxu0 0.0
    %5415 = vmatpush2.msra.mxu0 0.0
    %5416 = vmatprep.subr.mxu0 0.0
    %5417 = vmatpush2.msra.mxu0 0.0
    %5418 = vmatprep.subr.mxu0 0.0
    %5419 = vmatpush2.msra.mxu0 0.0
    %5420 = vmatprep.subr.mxu0 0.0
    %5421 = vmatpush2.msra.mxu0 0.0
    %5422 = vmatprep.subr.mxu0 0.0
    %5423 = vmatpush2.msra.mxu0 0.0
    %5424 = vmatprep.subr.mxu0 0.0
    %5425 = vmatpush2.msra.mxu0 0.0
    %5426 = vmatprep.subr.mxu0 0.0
    %5427 = vmatpush2.msra.mxu0 0.0
    %5428 = vmatprep.subr.mxu0 0.0
    %5429 = vmatpush2.msra.mxu0 0.0
    %5430 = vmatprep.subr.mxu0 0.0
    %5431 = vmatpush2.msra.mxu0 0.0
    %5432 = vmatprep.subr.mxu0 0.0
    %5433 = vmatpush2.msra.mxu0 0.0
    %5434 = vmatprep.subr.mxu0 0.0
    %5435 = vmatpush2.msra.mxu0 0.0
    %5436 = vmatprep.subr.mxu0 0.0
    %5437 = vmatpush2.msra.mxu0 0.0
    %5438 = vmatprep.subr.mxu0 0.0
    %5439 = vmatpush2.msra.mxu0 0.0
    %5440 = vmatprep.subr.mxu0 0.0
    %5441 = vmatpush2.msra.mxu0 0.0
    %5442 = vmatprep.subr.mxu0 0.0
    %5443 = vmatpush2.msra.mxu0 0.0
    %5444 = vmatprep.subr.mxu0 0.0
    %5445 = vmatpush2.msra.mxu0 0.0
    %5446 = vmatprep.mubr.f32.mxu0 0.0
    %5447 = vmatmul.mubr.f32.gmra.mxu0 %v5380
    %v5448 = vpop.f32.mrf.mxu0
    %v5449 = vadd.f32 %v3988, %v5448
    %v5450 = vpop.f32.mrf.mxu0
    %5451 = vdwg.mxu0
    %5453 = vrot.lane.b32.xlu0 %v5376, 56
    %v5454 = vpop.permute.xlu0 %5453
    %v5455 = vsel %vm3557, %v5454, 0
    %5457 = vmatprep.subr.mxu0 0.0
    %5458 = vmatpush1.msra.mxu0 0.0
    %5459 = vmatprep.subr.mxu0 0.0
    %5460 = vmatpush1.msra.mxu0 0.0
    %5461 = vmatprep.subr.mxu0 0.0
    %5462 = vmatpush1.msra.mxu0 0.0
    %5463 = vmatprep.subr.mxu0 0.0
    %5464 = vmatpush1.msra.mxu0 0.0
    %5465 = vmatprep.subr.mxu0 0.0
    %5466 = vmatpush1.msra.mxu0 0.0
    %5467 = vmatprep.subr.mxu0 0.0
    %5468 = vmatpush1.msra.mxu0 0.0
    %5469 = vmatprep.subr.mxu0 0.0
    %5470 = vmatpush1.msra.mxu0 0.0
    %5471 = vmatprep.subr.mxu0 0.0
    %5472 = vmatpush1.msra.mxu0 0.0
    %5473 = vmatprep.subr.mxu0 0.0
    %5474 = vmatpush1.msra.mxu0 0.0
    %5475 = vmatprep.subr.mxu0 0.0
    %5476 = vmatpush1.msra.mxu0 0.0
    %5477 = vmatprep.subr.mxu0 0.0
    %5478 = vmatpush1.msra.mxu0 0.0
    %5479 = vmatprep.subr.mxu0 0.0
    %5480 = vmatpush1.msra.mxu0 0.0
    %5481 = vmatprep.subr.mxu0 0.0
    %5482 = vmatpush1.msra.mxu0 0.0
    %5483 = vmatprep.subr.mxu0 0.0
    %5484 = vmatpush1.msra.mxu0 %v2815
    %5485 = vmatprep.subr.mxu0 0.0
    %5486 = vmatpush1.msra.mxu0 %v2814
    %5487 = vmatprep.subr.mxu0 0.0
    %5488 = vmatpush1.msra.mxu0 %v2813
    %5489 = vmatprep.subr.mxu0 0.0
    %5490 = vmatpush2.msra.mxu0 0.0
    %5491 = vmatprep.subr.mxu0 0.0
    %5492 = vmatpush2.msra.mxu0 0.0
    %5493 = vmatprep.subr.mxu0 0.0
    %5494 = vmatpush2.msra.mxu0 0.0
    %5495 = vmatprep.subr.mxu0 0.0
    %5496 = vmatpush2.msra.mxu0 0.0
    %5497 = vmatprep.subr.mxu0 0.0
    %5498 = vmatpush2.msra.mxu0 0.0
    %5499 = vmatprep.subr.mxu0 0.0
    %5500 = vmatpush2.msra.mxu0 0.0
    %5501 = vmatprep.subr.mxu0 0.0
    %5502 = vmatpush2.msra.mxu0 0.0
    %5503 = vmatprep.subr.mxu0 0.0
    %5504 = vmatpush2.msra.mxu0 0.0
    %5505 = vmatprep.subr.mxu0 0.0
    %5506 = vmatpush2.msra.mxu0 0.0
    %5507 = vmatprep.subr.mxu0 0.0
    %5508 = vmatpush2.msra.mxu0 0.0
    %5509 = vmatprep.subr.mxu0 0.0
    %5510 = vmatpush2.msra.mxu0 0.0
    %5511 = vmatprep.subr.mxu0 0.0
    %5512 = vmatpush2.msra.mxu0 0.0
    %5513 = vmatprep.subr.mxu0 0.0
    %5514 = vmatpush2.msra.mxu0 0.0
    %5515 = vmatprep.subr.mxu0 0.0
    %5516 = vmatpush2.msra.mxu0 0.0
    %5517 = vmatprep.subr.mxu0 0.0
    %5518 = vmatpush2.msra.mxu0 0.0
    %5519 = vmatprep.subr.mxu0 0.0
    %5520 = vmatpush2.msra.mxu0 0.0
    %5521 = vmatprep.mubr.f32.mxu0 0.0
    %5522 = vmatmul.mubr.f32.gmra.mxu0 %v5455
    %v5523 = vpop.f32.mrf.mxu0
    %v5524 = vadd.f32 %v3988, %v5523
    %v5525 = vpop.f32.mrf.mxu0
    %5526 = vdwg.mxu0
    %v5527 = vadd.f32 %v5449, %v4210
    %v5528 = vmul.f32 %v5527, 0.5
    %v5529 = vtanh.pop %v5528
    %v5530 = vmul.f32 %v5529, 0.5
    %v5531 = vadd.f32 %v5530, 0.5
    %v5532 = vtanh.pop %v5527
    %v5533 = vmul.f32 %v5531, 0.0
    %5535 = vrot.lane.b32.xlu0 %v5532, 104
    %v5536 = vpop.permute.xlu0 %5535
    %v5538 = vmul.f32 %v5531, %v5536
    %5540 = vrot.lane.b32.xlu0 %v5538, 12
    %v5541 = vpop.permute.xlu0 %5540
    %v5543 = vadd.f32 %v5533, %v5541
    %v5544 = vtanh.pop %v5543
    %5546 = vrot.lane.b32.xlu0 %v5544, 24
    %v5547 = vpop.permute.xlu0 %5546
    %v5549 = vmul.f32 %v5531, %v5547
    %5551 = vrot.lane.b32.xlu0 %v5549, 92
    %v5552 = vpop.permute.xlu0 %5551
    %v5553 = vsel %vm2978, %v5552, 0
    %5555 = vmatprep.subr.mxu0 0.0
    %5556 = vmatpush1.msra.mxu0 0.0
    %5557 = vmatprep.subr.mxu0 0.0
    %5558 = vmatpush1.msra.mxu0 0.0
    %5559 = vmatprep.subr.mxu0 0.0
    %5560 = vmatpush1.msra.mxu0 0.0
    %5561 = vmatprep.subr.mxu0 0.0
    %5562 = vmatpush1.msra.mxu0 0.0
    %5563 = vmatprep.subr.mxu0 0.0
    %5564 = vmatpush1.msra.mxu0 0.0
    %5565 = vmatprep.subr.mxu0 0.0
    %5566 = vmatpush1.msra.mxu0 0.0
    %5567 = vmatprep.subr.mxu0 0.0
    %5568 = vmatpush1.msra.mxu0 0.0
    %5569 = vmatprep.subr.mxu0 0.0
    %5570 = vmatpush1.msra.mxu0 0.0
    %5571 = vmatprep.subr.mxu0 0.0
    %5572 = vmatpush1.msra.mxu0 0.0
    %5573 = vmatprep.subr.mxu0 0.0
    %5574 = vmatpush1.msra.mxu0 0.0
    %5575 = vmatprep.subr.mxu0 0.0
    %5576 = vmatpush1.msra.mxu0 0.0
    %5577 = vmatprep.subr.mxu0 0.0
    %5578 = vmatpush1.msra.mxu0 0.0
    %5579 = vmatprep.subr.mxu0 0.0
    %5580 = vmatpush1.msra.mxu0 0.0
    %5581 = vmatprep.subr.mxu0 0.0
    %5582 = vmatpush1.msra.mxu0 0.0
    %5583 = vmatprep.subr.mxu0 0.0
    %5584 = vmatpush1.msra.mxu0 %v4141
    %5585 = vmatprep.subr.mxu0 0.0
    %5586 = vmatpush1.msra.mxu0 %v2817
    %5587 = vmatprep.subr.mxu0 0.0
    %5588 = vmatpush2.msra.mxu0 0.0
    %5589 = vmatprep.subr.mxu0 0.0
    %5590 = vmatpush2.msra.mxu0 0.0
    %5591 = vmatprep.subr.mxu0 0.0
    %5592 = vmatpush2.msra.mxu0 0.0
    %5593 = vmatprep.subr.mxu0 0.0
    %5594 = vmatpush2.msra.mxu0 0.0
    %5595 = vmatprep.subr.mxu0 0.0
    %5596 = vmatpush2.msra.mxu0 0.0
    %5597 = vmatprep.subr.mxu0 0.0
    %5598 = vmatpush2.msra.mxu0 0.0
    %5599 = vmatprep.subr.mxu0 0.0
    %5600 = vmatpush2.msra.mxu0 0.0
    %5601 = vmatprep.subr.mxu0 0.0
    %5602 = vmatpush2.msra.mxu0 0.0
    %5603 = vmatprep.subr.mxu0 0.0
    %5604 = vmatpush2.msra.mxu0 0.0
    %5605 = vmatprep.subr.mxu0 0.0
    %5606 = vmatpush2.msra.mxu0 0.0
    %5607 = vmatprep.subr.mxu0 0.0
    %5608 = vmatpush2.msra.mxu0 0.0
    %5609 = vmatprep.subr.mxu0 0.0
    %5610 = vmatpush2.msra.mxu0 0.0
    %5611 = vmatprep.subr.mxu0 0.0
    %5612 = vmatpush2.msra.mxu0 0.0
    %5613 = vmatprep.subr.mxu0 0.0
    %5614 = vmatpush2.msra.mxu0 0.0
    %5615 = vmatprep.subr.mxu0 0.0
    %5616 = vmatpush2.msra.mxu0 0.0
    %5617 = vmatprep.subr.mxu0 0.0
    %5618 = vmatpush2.msra.mxu0 0.0
    %5619 = vmatprep.mubr.f32.mxu0 0.0
    %5620 = vmatmul.mubr.f32.gmra.mxu0 %v5553
    %v5621 = vpop.f32.mrf.mxu0
    %v5622 = vadd.f32 0.0, %v5621
    %v5623 = vpop.f32.mrf.mxu0
    %5624 = vdwg.mxu0
    %v5625 = vadd.f32 %v5524, %v5622
    %v5626 = vmul.f32 %v5625, 0.5
    %v5627 = vtanh.pop %v5626
    %v5628 = vmul.f32 %v5627, 0.5
    %v5629 = vadd.f32 %v5628, 0.5
    %v5630 = vtanh.pop %v5625
    %v5631 = vmul.f32 %v5629, %v5543
    %5633 = vrot.lane.b32.xlu0 %v5630, 104
    %v5634 = vpop.permute.xlu0 %5633
    %v5636 = vmul.f32 %v5629, %v5634
    %5638 = vrot.lane.b32.xlu0 %v5636, 12
    %v5639 = vpop.permute.xlu0 %5638
    %v5641 = vadd.f32 %v5631, %v5639
    %v5642 = vtanh.pop %v5641
    %5644 = vrot.lane.b32.xlu0 %v5642, 24
    %v5645 = vpop.permute.xlu0 %5644
    %v5647 = vmul.f32 %v5629, %v5645
    %v5648 = vadd.f32 %v5524, %v4409
    %v5649 = vmul.f32 %v5648, 0.5
    %v5650 = vtanh.pop %v5649
    %v5651 = vmul.f32 %v5650, 0.5
    %v5652 = vadd.f32 %v5651, 0.5
    %v5653 = vtanh.pop %v5648
    %v5654 = vmul.f32 %v5652, 0.0
    %5656 = vrot.lane.b32.xlu0 %v5653, 104
    %v5657 = vpop.permute.xlu0 %5656
    %v5659 = vmul.f32 %v5652, %v5657
    %5661 = vrot.lane.b32.xlu0 %v5659, 12
    %v5662 = vpop.permute.xlu0 %5661
    %v5664 = vadd.f32 %v5654, %v5662
    %v5665 = vtanh.pop %v5664
    %5667 = vrot.lane.b32.xlu0 %v5665, 24
    %v5668 = vpop.permute.xlu0 %5667
    %v5670 = vmul.f32 %v5652, %v5668
    %5672 = vrot.lane.b32.xlu0 %v5670, 44
    %v5673 = vpop.permute.xlu0 %5672
    %v5674 = vsel %vm2978, %v5673, 0
    %5676 = vmatprep.subr.mxu0 0.0
    %5677 = vmatpush1.msra.mxu0 0.0
    %5678 = vmatprep.subr.mxu0 0.0
    %5679 = vmatpush1.msra.mxu0 0.0
    %5680 = vmatprep.subr.mxu0 0.0
    %5681 = vmatpush1.msra.mxu0 0.0
    %5682 = vmatprep.subr.mxu0 0.0
    %5683 = vmatpush1.msra.mxu0 0.0
    %5684 = vmatprep.subr.mxu0 0.0
    %5685 = vmatpush1.msra.mxu0 0.0
    %5686 = vmatprep.subr.mxu0 0.0
    %5687 = vmatpush1.msra.mxu0 0.0
    %5688 = vmatprep.subr.mxu0 0.0
    %5689 = vmatpush1.msra.mxu0 0.0
    %5690 = vmatprep.subr.mxu0 0.0
    %5691 = vmatpush1.msra.mxu0 0.0
    %5692 = vmatprep.subr.mxu0 0.0
    %5693 = vmatpush1.msra.mxu0 0.0
    %5694 = vmatprep.subr.mxu0 0.0
    %5695 = vmatpush1.msra.mxu0 0.0
    %5696 = vmatprep.subr.mxu0 0.0
    %5697 = vmatpush1.msra.mxu0 0.0
    %5698 = vmatprep.subr.mxu0 0.0
    %5699 = vmatpush1.msra.mxu0 0.0
    %5700 = vmatprep.subr.mxu0 0.0
    %5701 = vmatpush1.msra.mxu0 0.0
    %5702 = vmatprep.subr.mxu0 0.0
    %5703 = vmatpush1.msra.mxu0 0.0
    %5704 = vmatprep.subr.mxu0 0.0
    %5705 = vmatpush1.msra.mxu0 %v4335
    %5706 = vmatprep.subr.mxu0 0.0
    %5707 = vmatpush1.msra.mxu0 %v2819
    %5708 = vmatprep.subr.mxu0 0.0
    %5709 = vmatpush2.msra.mxu0 0.0
    %5710 = vmatprep.subr.mxu0 0.0
    %5711 = vmatpush2.msra.mxu0 0.0
    %5712 = vmatprep.subr.mxu0 0.0
    %5713 = vmatpush2.msra.mxu0 0.0
    %5714 = vmatprep.subr.mxu0 0.0
    %5715 = vmatpush2.msra.mxu0 0.0
    %5716 = vmatprep.subr.mxu0 0.0
    %5717 = vmatpush2.msra.mxu0 0.0
    %5718 = vmatprep.subr.mxu0 0.0
    %5719 = vmatpush2.msra.mxu0 0.0
    %5720 = vmatprep.subr.mxu0 0.0
    %5721 = vmatpush2.msra.mxu0 0.0
    %5722 = vmatprep.subr.mxu0 0.0
    %5723 = vmatpush2.msra.mxu0 0.0
    %5724 = vmatprep.subr.mxu0 0.0
    %5725 = vmatpush2.msra.mxu0 0.0
    %5726 = vmatprep.subr.mxu0 0.0
    %5727 = vmatpush2.msra.mxu0 0.0
    %5728 = vmatprep.subr.mxu0 0.0
    %5729 = vmatpush2.msra.mxu0 0.0
    %5730 = vmatprep.subr.mxu0 0.0
    %5731 = vmatpush2.msra.mxu0 0.0
    %5732 = vmatprep.subr.mxu0 0.0
    %5733 = vmatpush2.msra.mxu0 0.0
    %5734 = vmatprep.subr.mxu0 0.0
    %5735 = vmatpush2.msra.mxu0 0.0
    %5736 = vmatprep.subr.mxu0 0.0
    %5737 = vmatpush2.msra.mxu0 0.0
    %5738 = vmatprep.subr.mxu0 0.0
    %5739 = vmatpush2.msra.mxu0 0.0
    %5740 = vmatprep.mubr.f32.mxu0 0.0
    %5741 = vmatmul.mubr.f32.gmra.mxu0 %v5674
    %v5742 = vpop.f32.mrf.mxu0
    %v5743 = vadd.f32 0.0, %v5742
    %v5744 = vpop.f32.mrf.mxu0
    %5745 = vdwg.mxu0
    %5747 = vrot.lane.b32.xlu0 %v5743, 48
    %v5748 = vpop.permute.xlu0 %5747
    %v5750 = vadd.f32 %v5449, %v5748
    %v5751 = vmul.f32 %v5750, 0.5
    %v5752 = vtanh.pop %v5751
    %v5753 = vmul.f32 %v5752, 0.5
    %v5754 = vadd.f32 %v5753, 0.5
    %v5755 = vtanh.pop %v5750
    %v5756 = vmul.f32 %v5754, %v5664
    %5758 = vrot.lane.b32.xlu0 %v5755, 104
    %v5759 = vpop.permute.xlu0 %5758
    %v5761 = vmul.f32 %v5754, %v5759
    %5763 = vrot.lane.b32.xlu0 %v5761, 12
    %v5764 = vpop.permute.xlu0 %5763
    %v5766 = vadd.f32 %v5756, %v5764
    %v5767 = vtanh.pop %v5766
    %5769 = vrot.lane.b32.xlu0 %v5767, 24
    %v5770 = vpop.permute.xlu0 %5769
    %v5772 = vmul.f32 %v5754, %v5770
    %5774 = vrot.lane.b32.xlu0 %v5772, 80
    %v5775 = vpop.permute.xlu0 %5774
    %v5777 = vadd.f32 %v5549, %v5775
    %5778 = vrot.lane.b32.xlu0 %v5670, 80
    %v5779 = vpop.permute.xlu0 %5778
    %v5781 = vadd.f32 %v5647, %v5779
    %v5782 = vld [vmem:[%s53] sm:$0x1]
    %v5783 = vld [vmem:[%s55] sm:$0xff]
    %v5784 = vld [vmem:[%s55 + $0x8] sm:$0xff]
    %v5785 = vld [vmem:[%s57] sm:$0x1]
    %v5786 = vld [vmem:[%s59] sm:$0xff]
    %v5787 = vld [vmem:[#allocation2] sm:$0x1]
    %vm5788 = vcmp.ge.f32.partialorder %v4540, 0.0
    %v5789 = vmul.f32 %v4540, 0.01
    %v5790 = vsel %vm5788, %v4540, %v5789
    %v5791 = vld [vmem:[%s51] sm:$0xff]
    %v5792 = vld [vmem:[%s51 + $0x8] sm:$0xf]
    %5794 = vrot.lane.b32.xlu0 %v5790, 92
    %v5795 = vpop.permute.xlu0 %5794
    %v5796 = vsel %vm2978, %v5795, 0
    %v5799 = vsel %vm2982, %v5792, 0
    %5801 = vmatprep.subr.mxu0 0.0
    %5802 = vmatpush1.msra.mxu0 0.0
    %5803 = vmatprep.subr.mxu0 0.0
    %5804 = vmatpush1.msra.mxu0 0.0
    %5805 = vmatprep.subr.mxu0 0.0
    %5806 = vmatpush1.msra.mxu0 0.0
    %5807 = vmatprep.subr.mxu0 0.0
    %5808 = vmatpush1.msra.mxu0 0.0
    %5809 = vmatprep.subr.mxu0 0.0
    %5810 = vmatpush1.msra.mxu0 0.0
    %5811 = vmatprep.subr.mxu0 0.0
    %5812 = vmatpush1.msra.mxu0 0.0
    %5813 = vmatprep.subr.mxu0 0.0
    %5814 = vmatpush1.msra.mxu0 0.0
    %5815 = vmatprep.subr.mxu0 0.0
    %5816 = vmatpush1.msra.mxu0 0.0
    %5817 = vmatprep.subr.mxu0 0.0
    %5818 = vmatpush1.msra.mxu0 0.0
    %5819 = vmatprep.subr.mxu0 0.0
    %5820 = vmatpush1.msra.mxu0 0.0
    %5821 = vmatprep.subr.mxu0 0.0
    %5822 = vmatpush1.msra.mxu0 0.0
    %5823 = vmatprep.subr.mxu0 0.0
    %5824 = vmatpush1.msra.mxu0 0.0
    %5825 = vmatprep.subr.mxu0 0.0
    %5826 = vmatpush1.msra.mxu0 0.0
    %5827 = vmatprep.subr.mxu0 0.0
    %5828 = vmatpush1.msra.mxu0 0.0
    %5829 = vmatprep.subr.mxu0 0.0
    %5830 = vmatpush1.msra.mxu0 %v5799
    %5831 = vmatprep.subr.mxu0 0.0
    %5832 = vmatpush1.msra.mxu0 %v5791
    %5833 = vmatprep.subr.mxu0 0.0
    %5834 = vmatpush2.msra.mxu0 0.0
    %5835 = vmatprep.subr.mxu0 0.0
    %5836 = vmatpush2.msra.mxu0 0.0
    %5837 = vmatprep.subr.mxu0 0.0
    %5838 = vmatpush2.msra.mxu0 0.0
    %5839 = vmatprep.subr.mxu0 0.0
    %5840 = vmatpush2.msra.mxu0 0.0
    %5841 = vmatprep.subr.mxu0 0.0
    %5842 = vmatpush2.msra.mxu0 0.0
    %5843 = vmatprep.subr.mxu0 0.0
    %5844 = vmatpush2.msra.mxu0 0.0
    %5845 = vmatprep.subr.mxu0 0.0
    %5846 = vmatpush2.msra.mxu0 0.0
    %5847 = vmatprep.subr.mxu0 0.0
    %5848 = vmatpush2.msra.mxu0 0.0
    %5849 = vmatprep.subr.mxu0 0.0
    %5850 = vmatpush2.msra.mxu0 0.0
    %5851 = vmatprep.subr.mxu0 0.0
    %5852 = vmatpush2.msra.mxu0 0.0
    %5853 = vmatprep.subr.mxu0 0.0
    %5854 = vmatpush2.msra.mxu0 0.0
    %5855 = vmatprep.subr.mxu0 0.0
    %5856 = vmatpush2.msra.mxu0 0.0
    %5857 = vmatprep.subr.mxu0 0.0
    %5858 = vmatpush2.msra.mxu0 0.0
    %5859 = vmatprep.subr.mxu0 0.0
    %5860 = vmatpush2.msra.mxu0 0.0
    %5861 = vmatprep.subr.mxu0 0.0
    %5862 = vmatpush2.msra.mxu0 0.0
    %5863 = vmatprep.subr.mxu0 0.0
    %5864 = vmatpush2.msra.mxu0 0.0
    %5865 = vmatprep.mubr.f32.mxu0 0.0
    %5866 = vmatmul.mubr.f32.gmra.mxu0 %v5796
    %v5867 = vpop.f32.mrf.mxu0
    %v5868 = vadd.f32 0.0, %v5867
    %v5869 = vpop.f32.mrf.mxu0
    %5870 = vdwg.mxu0
    %v5871 = vadd.f32 %v5782, %v5868
    %s5872 = scalar_lea.vmem %s51, 16
    %v5873 = vld [vmem:[%s5872] sm:$0xff]
    %v5874 = vld [vmem:[%s5872 + $0x8] sm:$0xf]
    %v5875 = vrot.slane %v5790, 1
    %5876 = vrot.lane.b32.xlu0 %v5875, 92
    %v5877 = vpop.permute.xlu0 %5876
    %v5878 = vsel %vm2978, %v5877, 0
    %v5881 = vsel %vm2982, %v5874, 0
    %5883 = vmatprep.subr.mxu0 0.0
    %5884 = vmatpush1.msra.mxu0 0.0
    %5885 = vmatprep.subr.mxu0 0.0
    %5886 = vmatpush1.msra.mxu0 0.0
    %5887 = vmatprep.subr.mxu0 0.0
    %5888 = vmatpush1.msra.mxu0 0.0
    %5889 = vmatprep.subr.mxu0 0.0
    %5890 = vmatpush1.msra.mxu0 0.0
    %5891 = vmatprep.subr.mxu0 0.0
    %5892 = vmatpush1.msra.mxu0 0.0
    %5893 = vmatprep.subr.mxu0 0.0
    %5894 = vmatpush1.msra.mxu0 0.0
    %5895 = vmatprep.subr.mxu0 0.0
    %5896 = vmatpush1.msra.mxu0 0.0
    %5897 = vmatprep.subr.mxu0 0.0
    %5898 = vmatpush1.msra.mxu0 0.0
    %5899 = vmatprep.subr.mxu0 0.0
    %5900 = vmatpush1.msra.mxu0 0.0
    %5901 = vmatprep.subr.mxu0 0.0
    %5902 = vmatpush1.msra.mxu0 0.0
    %5903 = vmatprep.subr.mxu0 0.0
    %5904 = vmatpush1.msra.mxu0 0.0
    %5905 = vmatprep.subr.mxu0 0.0
    %5906 = vmatpush1.msra.mxu0 0.0
    %5907 = vmatprep.subr.mxu0 0.0
    %5908 = vmatpush1.msra.mxu0 0.0
    %5909 = vmatprep.subr.mxu0 0.0
    %5910 = vmatpush1.msra.mxu0 0.0
    %5911 = vmatprep.subr.mxu0 0.0
    %5912 = vmatpush1.msra.mxu0 %v5881
    %5913 = vmatprep.subr.mxu0 0.0
    %5914 = vmatpush1.msra.mxu0 %v5873
    %5915 = vmatprep.subr.mxu0 0.0
    %5916 = vmatpush2.msra.mxu0 0.0
    %5917 = vmatprep.subr.mxu0 0.0
    %5918 = vmatpush2.msra.mxu0 0.0
    %5919 = vmatprep.subr.mxu0 0.0
    %5920 = vmatpush2.msra.mxu0 0.0
    %5921 = vmatprep.subr.mxu0 0.0
    %5922 = vmatpush2.msra.mxu0 0.0
    %5923 = vmatprep.subr.mxu0 0.0
    %5924 = vmatpush2.msra.mxu0 0.0
    %5925 = vmatprep.subr.mxu0 0.0
    %5926 = vmatpush2.msra.mxu0 0.0
    %5927 = vmatprep.subr.mxu0 0.0
    %5928 = vmatpush2.msra.mxu0 0.0
    %5929 = vmatprep.subr.mxu0 0.0
    %5930 = vmatpush2.msra.mxu0 0.0
    %5931 = vmatprep.subr.mxu0 0.0
    %5932 = vmatpush2.msra.mxu0 0.0
    %5933 = vmatprep.subr.mxu0 0.0
    %5934 = vmatpush2.msra.mxu0 0.0
    %5935 = vmatprep.subr.mxu0 0.0
    %5936 = vmatpush2.msra.mxu0 0.0
    %5937 = vmatprep.subr.mxu0 0.0
    %5938 = vmatpush2.msra.mxu0 0.0
    %5939 = vmatprep.subr.mxu0 0.0
    %5940 = vmatpush2.msra.mxu0 0.0
    %5941 = vmatprep.subr.mxu0 0.0
    %5942 = vmatpush2.msra.mxu0 0.0
    %5943 = vmatprep.subr.mxu0 0.0
    %5944 = vmatpush2.msra.mxu0 0.0
    %5945 = vmatprep.subr.mxu0 0.0
    %5946 = vmatpush2.msra.mxu0 0.0
    %5947 = vmatprep.mubr.f32.mxu0 0.0
    %5948 = vmatmul.mubr.f32.gmra.mxu0 %v5878
    %v5949 = vpop.f32.mrf.mxu0
    %v5950 = vadd.f32 0.0, %v5949
    %v5951 = vpop.f32.mrf.mxu0
    %5952 = vdwg.mxu0
    %v5953 = vadd.f32 %v5871, %v5950
    %s5954 = scalar_lea.vmem %s51, 32
    %v5955 = vld [vmem:[%s5954] sm:$0xff]
    %v5956 = vld [vmem:[%s5954 + $0x8] sm:$0xf]
    %v5957 = vrot.slane %v5790, 2
    %5958 = vrot.lane.b32.xlu0 %v5957, 92
    %v5959 = vpop.permute.xlu0 %5958
    %v5960 = vsel %vm2978, %v5959, 0
    %v5963 = vsel %vm2982, %v5956, 0
    %5965 = vmatprep.subr.mxu0 0.0
    %5966 = vmatpush1.msra.mxu0 0.0
    %5967 = vmatprep.subr.mxu0 0.0
    %5968 = vmatpush1.msra.mxu0 0.0
    %5969 = vmatprep.subr.mxu0 0.0
    %5970 = vmatpush1.msra.mxu0 0.0
    %5971 = vmatprep.subr.mxu0 0.0
    %5972 = vmatpush1.msra.mxu0 0.0
    %5973 = vmatprep.subr.mxu0 0.0
    %5974 = vmatpush1.msra.mxu0 0.0
    %5975 = vmatprep.subr.mxu0 0.0
    %5976 = vmatpush1.msra.mxu0 0.0
    %5977 = vmatprep.subr.mxu0 0.0
    %5978 = vmatpush1.msra.mxu0 0.0
    %5979 = vmatprep.subr.mxu0 0.0
    %5980 = vmatpush1.msra.mxu0 0.0
    %5981 = vmatprep.subr.mxu0 0.0
    %5982 = vmatpush1.msra.mxu0 0.0
    %5983 = vmatprep.subr.mxu0 0.0
    %5984 = vmatpush1.msra.mxu0 0.0
    %5985 = vmatprep.subr.mxu0 0.0
    %5986 = vmatpush1.msra.mxu0 0.0
    %5987 = vmatprep.subr.mxu0 0.0
    %5988 = vmatpush1.msra.mxu0 0.0
    %5989 = vmatprep.subr.mxu0 0.0
    %5990 = vmatpush1.msra.mxu0 0.0
    %5991 = vmatprep.subr.mxu0 0.0
    %5992 = vmatpush1.msra.mxu0 0.0
    %5993 = vmatprep.subr.mxu0 0.0
    %5994 = vmatpush1.msra.mxu0 %v5963
    %5995 = vmatprep.subr.mxu0 0.0
    %5996 = vmatpush1.msra.mxu0 %v5955
    %5997 = vmatprep.subr.mxu0 0.0
    %5998 = vmatpush2.msra.mxu0 0.0
    %5999 = vmatprep.subr.mxu0 0.0
    %6000 = vmatpush2.msra.mxu0 0.0
    %6001 = vmatprep.subr.mxu0 0.0
    %6002 = vmatpush2.msra.mxu0 0.0
    %6003 = vmatprep.subr.mxu0 0.0
    %6004 = vmatpush2.msra.mxu0 0.0
    %6005 = vmatprep.subr.mxu0 0.0
    %6006 = vmatpush2.msra.mxu0 0.0
    %6007 = vmatprep.subr.mxu0 0.0
    %6008 = vmatpush2.msra.mxu0 0.0
    %6009 = vmatprep.subr.mxu0 0.0
    %6010 = vmatpush2.msra.mxu0 0.0
    %6011 = vmatprep.subr.mxu0 0.0
    %6012 = vmatpush2.msra.mxu0 0.0
    %6013 = vmatprep.subr.mxu0 0.0
    %6014 = vmatpush2.msra.mxu0 0.0
    %6015 = vmatprep.subr.mxu0 0.0
    %6016 = vmatpush2.msra.mxu0 0.0
    %6017 = vmatprep.subr.mxu0 0.0
    %6018 = vmatpush2.msra.mxu0 0.0
    %6019 = vmatprep.subr.mxu0 0.0
    %6020 = vmatpush2.msra.mxu0 0.0
    %6021 = vmatprep.subr.mxu0 0.0
    %6022 = vmatpush2.msra.mxu0 0.0
    %6023 = vmatprep.subr.mxu0 0.0
    %6024 = vmatpush2.msra.mxu0 0.0
    %6025 = vmatprep.subr.mxu0 0.0
    %6026 = vmatpush2.msra.mxu0 0.0
    %6027 = vmatprep.subr.mxu0 0.0
    %6028 = vmatpush2.msra.mxu0 0.0
    %6029 = vmatprep.mubr.f32.mxu0 0.0
    %6030 = vmatmul.mubr.f32.gmra.mxu0 %v5960
    %v6031 = vpop.f32.mrf.mxu0
    %v6032 = vadd.f32 0.0, %v6031
    %v6033 = vpop.f32.mrf.mxu0
    %6034 = vdwg.mxu0
    %v6035 = vadd.f32 %v5953, %v6032
    %s6036 = scalar_lea.vmem %s51, 48
    %v6037 = vld [vmem:[%s6036] sm:$0xff]
    %v6038 = vld [vmem:[%s6036 + $0x8] sm:$0xf]
    %v6039 = vrot.slane %v5790, 3
    %6040 = vrot.lane.b32.xlu0 %v6039, 92
    %v6041 = vpop.permute.xlu0 %6040
    %v6042 = vsel %vm2978, %v6041, 0
    %v6045 = vsel %vm2982, %v6038, 0
    %6047 = vmatprep.subr.mxu0 0.0
    %6048 = vmatpush1.msra.mxu0 0.0
    %6049 = vmatprep.subr.mxu0 0.0
    %6050 = vmatpush1.msra.mxu0 0.0
    %6051 = vmatprep.subr.mxu0 0.0
    %6052 = vmatpush1.msra.mxu0 0.0
    %6053 = vmatprep.subr.mxu0 0.0
    %6054 = vmatpush1.msra.mxu0 0.0
    %6055 = vmatprep.subr.mxu0 0.0
    %6056 = vmatpush1.msra.mxu0 0.0
    %6057 = vmatprep.subr.mxu0 0.0
    %6058 = vmatpush1.msra.mxu0 0.0
    %6059 = vmatprep.subr.mxu0 0.0
    %6060 = vmatpush1.msra.mxu0 0.0
    %6061 = vmatprep.subr.mxu0 0.0
    %6062 = vmatpush1.msra.mxu0 0.0
    %6063 = vmatprep.subr.mxu0 0.0
    %6064 = vmatpush1.msra.mxu0 0.0
    %6065 = vmatprep.subr.mxu0 0.0
    %6066 = vmatpush1.msra.mxu0 0.0
    %6067 = vmatprep.subr.mxu0 0.0
    %6068 = vmatpush1.msra.mxu0 0.0
    %6069 = vmatprep.subr.mxu0 0.0
    %6070 = vmatpush1.msra.mxu0 0.0
    %6071 = vmatprep.subr.mxu0 0.0
    %6072 = vmatpush1.msra.mxu0 0.0
    %6073 = vmatprep.subr.mxu0 0.0
    %6074 = vmatpush1.msra.mxu0 0.0
    %6075 = vmatprep.subr.mxu0 0.0
    %6076 = vmatpush1.msra.mxu0 %v6045
    %6077 = vmatprep.subr.mxu0 0.0
    %6078 = vmatpush1.msra.mxu0 %v6037
    %6079 = vmatprep.subr.mxu0 0.0
    %6080 = vmatpush2.msra.mxu0 0.0
    %6081 = vmatprep.subr.mxu0 0.0
    %6082 = vmatpush2.msra.mxu0 0.0
    %6083 = vmatprep.subr.mxu0 0.0
    %6084 = vmatpush2.msra.mxu0 0.0
    %6085 = vmatprep.subr.mxu0 0.0
    %6086 = vmatpush2.msra.mxu0 0.0
    %6087 = vmatprep.subr.mxu0 0.0
    %6088 = vmatpush2.msra.mxu0 0.0
    %6089 = vmatprep.subr.mxu0 0.0
    %6090 = vmatpush2.msra.mxu0 0.0
    %6091 = vmatprep.subr.mxu0 0.0
    %6092 = vmatpush2.msra.mxu0 0.0
    %6093 = vmatprep.subr.mxu0 0.0
    %6094 = vmatpush2.msra.mxu0 0.0
    %6095 = vmatprep.subr.mxu0 0.0
    %6096 = vmatpush2.msra.mxu0 0.0
    %6097 = vmatprep.subr.mxu0 0.0
    %6098 = vmatpush2.msra.mxu0 0.0
    %6099 = vmatprep.subr.mxu0 0.0
    %6100 = vmatpush2.msra.mxu0 0.0
    %6101 = vmatprep.subr.mxu0 0.0
    %6102 = vmatpush2.msra.mxu0 0.0
    %6103 = vmatprep.subr.mxu0 0.0
    %6104 = vmatpush2.msra.mxu0 0.0
    %6105 = vmatprep.subr.mxu0 0.0
    %6106 = vmatpush2.msra.mxu0 0.0
    %6107 = vmatprep.subr.mxu0 0.0
    %6108 = vmatpush2.msra.mxu0 0.0
    %6109 = vmatprep.subr.mxu0 0.0
    %6110 = vmatpush2.msra.mxu0 0.0
    %6111 = vmatprep.mubr.f32.mxu0 0.0
    %6112 = vmatmul.mubr.f32.gmra.mxu0 %v6042
    %v6113 = vpop.f32.mrf.mxu0
    %v6114 = vadd.f32 0.0, %v6113
    %v6115 = vpop.f32.mrf.mxu0
    %6116 = vdwg.mxu0
    %v6117 = vadd.f32 %v6035, %v6114
    %s6118 = scalar_lea.vmem %s51, 64
    %v6119 = vld [vmem:[%s6118] sm:$0xff]
    %v6120 = vld [vmem:[%s6118 + $0x8] sm:$0xf]
    %v6121 = vrot.slane %v5790, 4
    %6122 = vrot.lane.b32.xlu0 %v6121, 92
    %v6123 = vpop.permute.xlu0 %6122
    %v6124 = vsel %vm2978, %v6123, 0
    %v6127 = vsel %vm2982, %v6120, 0
    %6129 = vmatprep.subr.mxu0 0.0
    %6130 = vmatpush1.msra.mxu0 0.0
    %6131 = vmatprep.subr.mxu0 0.0
    %6132 = vmatpush1.msra.mxu0 0.0
    %6133 = vmatprep.subr.mxu0 0.0
    %6134 = vmatpush1.msra.mxu0 0.0
    %6135 = vmatprep.subr.mxu0 0.0
    %6136 = vmatpush1.msra.mxu0 0.0
    %6137 = vmatprep.subr.mxu0 0.0
    %6138 = vmatpush1.msra.mxu0 0.0
    %6139 = vmatprep.subr.mxu0 0.0
    %6140 = vmatpush1.msra.mxu0 0.0
    %6141 = vmatprep.subr.mxu0 0.0
    %6142 = vmatpush1.msra.mxu0 0.0
    %6143 = vmatprep.subr.mxu0 0.0
    %6144 = vmatpush1.msra.mxu0 0.0
    %6145 = vmatprep.subr.mxu0 0.0
    %6146 = vmatpush1.msra.mxu0 0.0
    %6147 = vmatprep.subr.mxu0 0.0
    %6148 = vmatpush1.msra.mxu0 0.0
    %6149 = vmatprep.subr.mxu0 0.0
    %6150 = vmatpush1.msra.mxu0 0.0
    %6151 = vmatprep.subr.mxu0 0.0
    %6152 = vmatpush1.msra.mxu0 0.0
    %6153 = vmatprep.subr.mxu0 0.0
    %6154 = vmatpush1.msra.mxu0 0.0
    %6155 = vmatprep.subr.mxu0 0.0
    %6156 = vmatpush1.msra.mxu0 0.0
    %6157 = vmatprep.subr.mxu0 0.0
    %6158 = vmatpush1.msra.mxu0 %v6127
    %6159 = vmatprep.subr.mxu0 0.0
    %6160 = vmatpush1.msra.mxu0 %v6119
    %6161 = vmatprep.subr.mxu0 0.0
    %6162 = vmatpush2.msra.mxu0 0.0
    %6163 = vmatprep.subr.mxu0 0.0
    %6164 = vmatpush2.msra.mxu0 0.0
    %6165 = vmatprep.subr.mxu0 0.0
    %6166 = vmatpush2.msra.mxu0 0.0
    %6167 = vmatprep.subr.mxu0 0.0
    %6168 = vmatpush2.msra.mxu0 0.0
    %6169 = vmatprep.subr.mxu0 0.0
    %6170 = vmatpush2.msra.mxu0 0.0
    %6171 = vmatprep.subr.mxu0 0.0
    %6172 = vmatpush2.msra.mxu0 0.0
    %6173 = vmatprep.subr.mxu0 0.0
    %6174 = vmatpush2.msra.mxu0 0.0
    %6175 = vmatprep.subr.mxu0 0.0
    %6176 = vmatpush2.msra.mxu0 0.0
    %6177 = vmatprep.subr.mxu0 0.0
    %6178 = vmatpush2.msra.mxu0 0.0
    %6179 = vmatprep.subr.mxu0 0.0
    %6180 = vmatpush2.msra.mxu0 0.0
    %6181 = vmatprep.subr.mxu0 0.0
    %6182 = vmatpush2.msra.mxu0 0.0
    %6183 = vmatprep.subr.mxu0 0.0
    %6184 = vmatpush2.msra.mxu0 0.0
    %6185 = vmatprep.subr.mxu0 0.0
    %6186 = vmatpush2.msra.mxu0 0.0
    %6187 = vmatprep.subr.mxu0 0.0
    %6188 = vmatpush2.msra.mxu0 0.0
    %6189 = vmatprep.subr.mxu0 0.0
    %6190 = vmatpush2.msra.mxu0 0.0
    %6191 = vmatprep.subr.mxu0 0.0
    %6192 = vmatpush2.msra.mxu0 0.0
    %6193 = vmatprep.mubr.f32.mxu0 0.0
    %6194 = vmatmul.mubr.f32.gmra.mxu0 %v6124
    %v6195 = vpop.f32.mrf.mxu0
    %v6196 = vadd.f32 0.0, %v6195
    %v6197 = vpop.f32.mrf.mxu0
    %6198 = vdwg.mxu0
    %v6199 = vadd.f32 %v6117, %v6196
    %vm6200 = vcmp.ge.f32.partialorder %v5777, 0.0
    %v6201 = vmul.f32 %v5777, 0.01
    %v6202 = vsel %vm6200, %v5777, %v6201
    %s6203 = scalar_lea.vmem %s51, 80
    %v6204 = vld [vmem:[%s6203] sm:$0xff]
    %v6205 = vld [vmem:[%s6203 + $0x8] sm:$0xf]
    %6207 = vrot.lane.b32.xlu0 %v6202, 92
    %v6208 = vpop.permute.xlu0 %6207
    %v6209 = vsel %vm2978, %v6208, 0
    %v6212 = vsel %vm2982, %v6205, 0
    %6214 = vmatprep.subr.mxu0 0.0
    %6215 = vmatpush1.msra.mxu0 0.0
    %6216 = vmatprep.subr.mxu0 0.0
    %6217 = vmatpush1.msra.mxu0 0.0
    %6218 = vmatprep.subr.mxu0 0.0
    %6219 = vmatpush1.msra.mxu0 0.0
    %6220 = vmatprep.subr.mxu0 0.0
    %6221 = vmatpush1.msra.mxu0 0.0
    %6222 = vmatprep.subr.mxu0 0.0
    %6223 = vmatpush1.msra.mxu0 0.0
    %6224 = vmatprep.subr.mxu0 0.0
    %6225 = vmatpush1.msra.mxu0 0.0
    %6226 = vmatprep.subr.mxu0 0.0
    %6227 = vmatpush1.msra.mxu0 0.0
    %6228 = vmatprep.subr.mxu0 0.0
    %6229 = vmatpush1.msra.mxu0 0.0
    %6230 = vmatprep.subr.mxu0 0.0
    %6231 = vmatpush1.msra.mxu0 0.0
    %6232 = vmatprep.subr.mxu0 0.0
    %6233 = vmatpush1.msra.mxu0 0.0
    %6234 = vmatprep.subr.mxu0 0.0
    %6235 = vmatpush1.msra.mxu0 0.0
    %6236 = vmatprep.subr.mxu0 0.0
    %6237 = vmatpush1.msra.mxu0 0.0
    %6238 = vmatprep.subr.mxu0 0.0
    %6239 = vmatpush1.msra.mxu0 0.0
    %6240 = vmatprep.subr.mxu0 0.0
    %6241 = vmatpush1.msra.mxu0 0.0
    %6242 = vmatprep.subr.mxu0 0.0
    %6243 = vmatpush1.msra.mxu0 %v6212
    %6244 = vmatprep.subr.mxu0 0.0
    %6245 = vmatpush1.msra.mxu0 %v6204
    %6246 = vmatprep.subr.mxu0 0.0
    %6247 = vmatpush2.msra.mxu0 0.0
    %6248 = vmatprep.subr.mxu0 0.0
    %6249 = vmatpush2.msra.mxu0 0.0
    %6250 = vmatprep.subr.mxu0 0.0
    %6251 = vmatpush2.msra.mxu0 0.0
    %6252 = vmatprep.subr.mxu0 0.0
    %6253 = vmatpush2.msra.mxu0 0.0
    %6254 = vmatprep.subr.mxu0 0.0
    %6255 = vmatpush2.msra.mxu0 0.0
    %6256 = vmatprep.subr.mxu0 0.0
    %6257 = vmatpush2.msra.mxu0 0.0
    %6258 = vmatprep.subr.mxu0 0.0
    %6259 = vmatpush2.msra.mxu0 0.0
    %6260 = vmatprep.subr.mxu0 0.0
    %6261 = vmatpush2.msra.mxu0 0.0
    %6262 = vmatprep.subr.mxu0 0.0
    %6263 = vmatpush2.msra.mxu0 0.0
    %6264 = vmatprep.subr.mxu0 0.0
    %6265 = vmatpush2.msra.mxu0 0.0
    %6266 = vmatprep.subr.mxu0 0.0
    %6267 = vmatpush2.msra.mxu0 0.0
    %6268 = vmatprep.subr.mxu0 0.0
    %6269 = vmatpush2.msra.mxu0 0.0
    %6270 = vmatprep.subr.mxu0 0.0
    %6271 = vmatpush2.msra.mxu0 0.0
    %6272 = vmatprep.subr.mxu0 0.0
    %6273 = vmatpush2.msra.mxu0 0.0
    %6274 = vmatprep.subr.mxu0 0.0
    %6275 = vmatpush2.msra.mxu0 0.0
    %6276 = vmatprep.subr.mxu0 0.0
    %6277 = vmatpush2.msra.mxu0 0.0
    %6278 = vmatprep.mubr.f32.mxu0 0.0
    %6279 = vmatmul.mubr.f32.gmra.mxu0 %v6209
    %v6280 = vpop.f32.mrf.mxu0
    %v6281 = vadd.f32 0.0, %v6280
    %v6282 = vpop.f32.mrf.mxu0
    %6283 = vdwg.mxu0
    %v6284 = vadd.f32 %v6199, %v6281
    %s6285 = scalar_lea.vmem %s51, 96
    %v6286 = vld [vmem:[%s6285] sm:$0xff]
    %v6287 = vld [vmem:[%s6285 + $0x8] sm:$0xf]
    %v6288 = vrot.slane %v6202, 1
    %6289 = vrot.lane.b32.xlu0 %v6288, 92
    %v6290 = vpop.permute.xlu0 %6289
    %v6291 = vsel %vm2978, %v6290, 0
    %v6294 = vsel %vm2982, %v6287, 0
    %6296 = vmatprep.subr.mxu0 0.0
    %6297 = vmatpush1.msra.mxu0 0.0
    %6298 = vmatprep.subr.mxu0 0.0
    %6299 = vmatpush1.msra.mxu0 0.0
    %6300 = vmatprep.subr.mxu0 0.0
    %6301 = vmatpush1.msra.mxu0 0.0
    %6302 = vmatprep.subr.mxu0 0.0
    %6303 = vmatpush1.msra.mxu0 0.0
    %6304 = vmatprep.subr.mxu0 0.0
    %6305 = vmatpush1.msra.mxu0 0.0
    %6306 = vmatprep.subr.mxu0 0.0
    %6307 = vmatpush1.msra.mxu0 0.0
    %6308 = vmatprep.subr.mxu0 0.0
    %6309 = vmatpush1.msra.mxu0 0.0
    %6310 = vmatprep.subr.mxu0 0.0
    %6311 = vmatpush1.msra.mxu0 0.0
    %6312 = vmatprep.subr.mxu0 0.0
    %6313 = vmatpush1.msra.mxu0 0.0
    %6314 = vmatprep.subr.mxu0 0.0
    %6315 = vmatpush1.msra.mxu0 0.0
    %6316 = vmatprep.subr.mxu0 0.0
    %6317 = vmatpush1.msra.mxu0 0.0
    %6318 = vmatprep.subr.mxu0 0.0
    %6319 = vmatpush1.msra.mxu0 0.0
    %6320 = vmatprep.subr.mxu0 0.0
    %6321 = vmatpush1.msra.mxu0 0.0
    %6322 = vmatprep.subr.mxu0 0.0
    %6323 = vmatpush1.msra.mxu0 0.0
    %6324 = vmatprep.subr.mxu0 0.0
    %6325 = vmatpush1.msra.mxu0 %v6294
    %6326 = vmatprep.subr.mxu0 0.0
    %6327 = vmatpush1.msra.mxu0 %v6286
    %6328 = vmatprep.subr.mxu0 0.0
    %6329 = vmatpush2.msra.mxu0 0.0
    %6330 = vmatprep.subr.mxu0 0.0
    %6331 = vmatpush2.msra.mxu0 0.0
    %6332 = vmatprep.subr.mxu0 0.0
    %6333 = vmatpush2.msra.mxu0 0.0
    %6334 = vmatprep.subr.mxu0 0.0
    %6335 = vmatpush2.msra.mxu0 0.0
    %6336 = vmatprep.subr.mxu0 0.0
    %6337 = vmatpush2.msra.mxu0 0.0
    %6338 = vmatprep.subr.mxu0 0.0
    %6339 = vmatpush2.msra.mxu0 0.0
    %6340 = vmatprep.subr.mxu0 0.0
    %6341 = vmatpush2.msra.mxu0 0.0
    %6342 = vmatprep.subr.mxu0 0.0
    %6343 = vmatpush2.msra.mxu0 0.0
    %6344 = vmatprep.subr.mxu0 0.0
    %6345 = vmatpush2.msra.mxu0 0.0
    %6346 = vmatprep.subr.mxu0 0.0
    %6347 = vmatpush2.msra.mxu0 0.0
    %6348 = vmatprep.subr.mxu0 0.0
    %6349 = vmatpush2.msra.mxu0 0.0
    %6350 = vmatprep.subr.mxu0 0.0
    %6351 = vmatpush2.msra.mxu0 0.0
    %6352 = vmatprep.subr.mxu0 0.0
    %6353 = vmatpush2.msra.mxu0 0.0
    %6354 = vmatprep.subr.mxu0 0.0
    %6355 = vmatpush2.msra.mxu0 0.0
    %6356 = vmatprep.subr.mxu0 0.0
    %6357 = vmatpush2.msra.mxu0 0.0
    %6358 = vmatprep.subr.mxu0 0.0
    %6359 = vmatpush2.msra.mxu0 0.0
    %6360 = vmatprep.mubr.f32.mxu0 0.0
    %6361 = vmatmul.mubr.f32.gmra.mxu0 %v6291
    %v6362 = vpop.f32.mrf.mxu0
    %v6363 = vadd.f32 0.0, %v6362
    %v6364 = vpop.f32.mrf.mxu0
    %6365 = vdwg.mxu0
    %v6366 = vadd.f32 %v6284, %v6363
    %s6367 = scalar_lea.vmem %s51, 112
    %v6368 = vld [vmem:[%s6367] sm:$0xff]
    %v6369 = vld [vmem:[%s6367 + $0x8] sm:$0xf]
    %v6370 = vrot.slane %v6202, 2
    %6371 = vrot.lane.b32.xlu0 %v6370, 92
    %v6372 = vpop.permute.xlu0 %6371
    %v6373 = vsel %vm2978, %v6372, 0
    %v6376 = vsel %vm2982, %v6369, 0
    %6378 = vmatprep.subr.mxu0 0.0
    %6379 = vmatpush1.msra.mxu0 0.0
    %6380 = vmatprep.subr.mxu0 0.0
    %6381 = vmatpush1.msra.mxu0 0.0
    %6382 = vmatprep.subr.mxu0 0.0
    %6383 = vmatpush1.msra.mxu0 0.0
    %6384 = vmatprep.subr.mxu0 0.0
    %6385 = vmatpush1.msra.mxu0 0.0
    %6386 = vmatprep.subr.mxu0 0.0
    %6387 = vmatpush1.msra.mxu0 0.0
    %6388 = vmatprep.subr.mxu0 0.0
    %6389 = vmatpush1.msra.mxu0 0.0
    %6390 = vmatprep.subr.mxu0 0.0
    %6391 = vmatpush1.msra.mxu0 0.0
    %6392 = vmatprep.subr.mxu0 0.0
    %6393 = vmatpush1.msra.mxu0 0.0
    %6394 = vmatprep.subr.mxu0 0.0
    %6395 = vmatpush1.msra.mxu0 0.0
    %6396 = vmatprep.subr.mxu0 0.0
    %6397 = vmatpush1.msra.mxu0 0.0
    %6398 = vmatprep.subr.mxu0 0.0
    %6399 = vmatpush1.msra.mxu0 0.0
    %6400 = vmatprep.subr.mxu0 0.0
    %6401 = vmatpush1.msra.mxu0 0.0
    %6402 = vmatprep.subr.mxu0 0.0
    %6403 = vmatpush1.msra.mxu0 0.0
    %6404 = vmatprep.subr.mxu0 0.0
    %6405 = vmatpush1.msra.mxu0 0.0
    %6406 = vmatprep.subr.mxu0 0.0
    %6407 = vmatpush1.msra.mxu0 %v6376
    %6408 = vmatprep.subr.mxu0 0.0
    %6409 = vmatpush1.msra.mxu0 %v6368
    %6410 = vmatprep.subr.mxu0 0.0
    %6411 = vmatpush2.msra.mxu0 0.0
    %6412 = vmatprep.subr.mxu0 0.0
    %6413 = vmatpush2.msra.mxu0 0.0
    %6414 = vmatprep.subr.mxu0 0.0
    %6415 = vmatpush2.msra.mxu0 0.0
    %6416 = vmatprep.subr.mxu0 0.0
    %6417 = vmatpush2.msra.mxu0 0.0
    %6418 = vmatprep.subr.mxu0 0.0
    %6419 = vmatpush2.msra.mxu0 0.0
    %6420 = vmatprep.subr.mxu0 0.0
    %6421 = vmatpush2.msra.mxu0 0.0
    %6422 = vmatprep.subr.mxu0 0.0
    %6423 = vmatpush2.msra.mxu0 0.0
    %6424 = vmatprep.subr.mxu0 0.0
    %6425 = vmatpush2.msra.mxu0 0.0
    %6426 = vmatprep.subr.mxu0 0.0
    %6427 = vmatpush2.msra.mxu0 0.0
    %6428 = vmatprep.subr.mxu0 0.0
    %6429 = vmatpush2.msra.mxu0 0.0
    %6430 = vmatprep.subr.mxu0 0.0
    %6431 = vmatpush2.msra.mxu0 0.0
    %6432 = vmatprep.subr.mxu0 0.0
    %6433 = vmatpush2.msra.mxu0 0.0
    %6434 = vmatprep.subr.mxu0 0.0
    %6435 = vmatpush2.msra.mxu0 0.0
    %6436 = vmatprep.subr.mxu0 0.0
    %6437 = vmatpush2.msra.mxu0 0.0
    %6438 = vmatprep.subr.mxu0 0.0
    %6439 = vmatpush2.msra.mxu0 0.0
    %6440 = vmatprep.subr.mxu0 0.0
    %6441 = vmatpush2.msra.mxu0 0.0
    %6442 = vmatprep.mubr.f32.mxu0 0.0
    %6443 = vmatmul.mubr.f32.gmra.mxu0 %v6373
    %v6444 = vpop.f32.mrf.mxu0
    %v6445 = vadd.f32 0.0, %v6444
    %v6446 = vpop.f32.mrf.mxu0
    %6447 = vdwg.mxu0
    %v6448 = vadd.f32 %v6366, %v6445
    %s6449 = scalar_lea.vmem %s51, 128
    %v6450 = vld [vmem:[%s6449] sm:$0xff]
    %v6451 = vld [vmem:[%s6449 + $0x8] sm:$0xf]
    %v6452 = vrot.slane %v6202, 3
    %6453 = vrot.lane.b32.xlu0 %v6452, 92
    %v6454 = vpop.permute.xlu0 %6453
    %v6455 = vsel %vm2978, %v6454, 0
    %v6458 = vsel %vm2982, %v6451, 0
    %6460 = vmatprep.subr.mxu0 0.0
    %6461 = vmatpush1.msra.mxu0 0.0
    %6462 = vmatprep.subr.mxu0 0.0
    %6463 = vmatpush1.msra.mxu0 0.0
    %6464 = vmatprep.subr.mxu0 0.0
    %6465 = vmatpush1.msra.mxu0 0.0
    %6466 = vmatprep.subr.mxu0 0.0
    %6467 = vmatpush1.msra.mxu0 0.0
    %6468 = vmatprep.subr.mxu0 0.0
    %6469 = vmatpush1.msra.mxu0 0.0
    %6470 = vmatprep.subr.mxu0 0.0
    %6471 = vmatpush1.msra.mxu0 0.0
    %6472 = vmatprep.subr.mxu0 0.0
    %6473 = vmatpush1.msra.mxu0 0.0
    %6474 = vmatprep.subr.mxu0 0.0
    %6475 = vmatpush1.msra.mxu0 0.0
    %6476 = vmatprep.subr.mxu0 0.0
    %6477 = vmatpush1.msra.mxu0 0.0
    %6478 = vmatprep.subr.mxu0 0.0
    %6479 = vmatpush1.msra.mxu0 0.0
    %6480 = vmatprep.subr.mxu0 0.0
    %6481 = vmatpush1.msra.mxu0 0.0
    %6482 = vmatprep.subr.mxu0 0.0
    %6483 = vmatpush1.msra.mxu0 0.0
    %6484 = vmatprep.subr.mxu0 0.0
    %6485 = vmatpush1.msra.mxu0 0.0
    %6486 = vmatprep.subr.mxu0 0.0
    %6487 = vmatpush1.msra.mxu0 0.0
    %6488 = vmatprep.subr.mxu0 0.0
    %6489 = vmatpush1.msra.mxu0 %v6458
    %6490 = vmatprep.subr.mxu0 0.0
    %6491 = vmatpush1.msra.mxu0 %v6450
    %6492 = vmatprep.subr.mxu0 0.0
    %6493 = vmatpush2.msra.mxu0 0.0
    %6494 = vmatprep.subr.mxu0 0.0
    %6495 = vmatpush2.msra.mxu0 0.0
    %6496 = vmatprep.subr.mxu0 0.0
    %6497 = vmatpush2.msra.mxu0 0.0
    %6498 = vmatprep.subr.mxu0 0.0
    %6499 = vmatpush2.msra.mxu0 0.0
    %6500 = vmatprep.subr.mxu0 0.0
    %6501 = vmatpush2.msra.mxu0 0.0
    %6502 = vmatprep.subr.mxu0 0.0
    %6503 = vmatpush2.msra.mxu0 0.0
    %6504 = vmatprep.subr.mxu0 0.0
    %6505 = vmatpush2.msra.mxu0 0.0
    %6506 = vmatprep.subr.mxu0 0.0
    %6507 = vmatpush2.msra.mxu0 0.0
    %6508 = vmatprep.subr.mxu0 0.0
    %6509 = vmatpush2.msra.mxu0 0.0
    %6510 = vmatprep.subr.mxu0 0.0
    %6511 = vmatpush2.msra.mxu0 0.0
    %6512 = vmatprep.subr.mxu0 0.0
    %6513 = vmatpush2.msra.mxu0 0.0
    %6514 = vmatprep.subr.mxu0 0.0
    %6515 = vmatpush2.msra.mxu0 0.0
    %6516 = vmatprep.subr.mxu0 0.0
    %6517 = vmatpush2.msra.mxu0 0.0
    %6518 = vmatprep.subr.mxu0 0.0
    %6519 = vmatpush2.msra.mxu0 0.0
    %6520 = vmatprep.subr.mxu0 0.0
    %6521 = vmatpush2.msra.mxu0 0.0
    %6522 = vmatprep.subr.mxu0 0.0
    %6523 = vmatpush2.msra.mxu0 0.0
    %6524 = vmatprep.mubr.f32.mxu0 0.0
    %6525 = vmatmul.mubr.f32.gmra.mxu0 %v6455
    %v6526 = vpop.f32.mrf.mxu0
    %v6527 = vadd.f32 0.0, %v6526
    %v6528 = vpop.f32.mrf.mxu0
    %6529 = vdwg.mxu0
    %v6530 = vadd.f32 %v6448, %v6527
    %s6531 = scalar_lea.vmem %s51, 144
    %v6532 = vld [vmem:[%s6531] sm:$0xff]
    %v6533 = vld [vmem:[%s6531 + $0x8] sm:$0xf]
    %v6534 = vrot.slane %v6202, 4
    %6535 = vrot.lane.b32.xlu0 %v6534, 92
    %v6536 = vpop.permute.xlu0 %6535
    %v6537 = vsel %vm2978, %v6536, 0
    %v6540 = vsel %vm2982, %v6533, 0
    %6542 = vmatprep.subr.mxu0 0.0
    %6543 = vmatpush1.msra.mxu0 0.0
    %6544 = vmatprep.subr.mxu0 0.0
    %6545 = vmatpush1.msra.mxu0 0.0
    %6546 = vmatprep.subr.mxu0 0.0
    %6547 = vmatpush1.msra.mxu0 0.0
    %6548 = vmatprep.subr.mxu0 0.0
    %6549 = vmatpush1.msra.mxu0 0.0
    %6550 = vmatprep.subr.mxu0 0.0
    %6551 = vmatpush1.msra.mxu0 0.0
    %6552 = vmatprep.subr.mxu0 0.0
    %6553 = vmatpush1.msra.mxu0 0.0
    %6554 = vmatprep.subr.mxu0 0.0
    %6555 = vmatpush1.msra.mxu0 0.0
    %6556 = vmatprep.subr.mxu0 0.0
    %6557 = vmatpush1.msra.mxu0 0.0
    %6558 = vmatprep.subr.mxu0 0.0
    %6559 = vmatpush1.msra.mxu0 0.0
    %6560 = vmatprep.subr.mxu0 0.0
    %6561 = vmatpush1.msra.mxu0 0.0
    %6562 = vmatprep.subr.mxu0 0.0
    %6563 = vmatpush1.msra.mxu0 0.0
    %6564 = vmatprep.subr.mxu0 0.0
    %6565 = vmatpush1.msra.mxu0 0.0
    %6566 = vmatprep.subr.mxu0 0.0
    %6567 = vmatpush1.msra.mxu0 0.0
    %6568 = vmatprep.subr.mxu0 0.0
    %6569 = vmatpush1.msra.mxu0 0.0
    %6570 = vmatprep.subr.mxu0 0.0
    %6571 = vmatpush1.msra.mxu0 %v6540
    %6572 = vmatprep.subr.mxu0 0.0
    %6573 = vmatpush1.msra.mxu0 %v6532
    %6574 = vmatprep.subr.mxu0 0.0
    %6575 = vmatpush2.msra.mxu0 0.0
    %6576 = vmatprep.subr.mxu0 0.0
    %6577 = vmatpush2.msra.mxu0 0.0
    %6578 = vmatprep.subr.mxu0 0.0
    %6579 = vmatpush2.msra.mxu0 0.0
    %6580 = vmatprep.subr.mxu0 0.0
    %6581 = vmatpush2.msra.mxu0 0.0
    %6582 = vmatprep.subr.mxu0 0.0
    %6583 = vmatpush2.msra.mxu0 0.0
    %6584 = vmatprep.subr.mxu0 0.0
    %6585 = vmatpush2.msra.mxu0 0.0
    %6586 = vmatprep.subr.mxu0 0.0
    %6587 = vmatpush2.msra.mxu0 0.0
    %6588 = vmatprep.subr.mxu0 0.0
    %6589 = vmatpush2.msra.mxu0 0.0
    %6590 = vmatprep.subr.mxu0 0.0
    %6591 = vmatpush2.msra.mxu0 0.0
    %6592 = vmatprep.subr.mxu0 0.0
    %6593 = vmatpush2.msra.mxu0 0.0
    %6594 = vmatprep.subr.mxu0 0.0
    %6595 = vmatpush2.msra.mxu0 0.0
    %6596 = vmatprep.subr.mxu0 0.0
    %6597 = vmatpush2.msra.mxu0 0.0
    %6598 = vmatprep.subr.mxu0 0.0
    %6599 = vmatpush2.msra.mxu0 0.0
    %6600 = vmatprep.subr.mxu0 0.0
    %6601 = vmatpush2.msra.mxu0 0.0
    %6602 = vmatprep.subr.mxu0 0.0
    %6603 = vmatpush2.msra.mxu0 0.0
    %6604 = vmatprep.subr.mxu0 0.0
    %6605 = vmatpush2.msra.mxu0 0.0
    %6606 = vmatprep.mubr.f32.mxu0 0.0
    %6607 = vmatmul.mubr.f32.gmra.mxu0 %v6537
    %v6608 = vpop.f32.mrf.mxu0
    %v6609 = vadd.f32 0.0, %v6608
    %v6610 = vpop.f32.mrf.mxu0
    %6611 = vdwg.mxu0
    %v6612 = vadd.f32 %v6530, %v6609
    %v6613 = vmax.f32 %v6612, 0.0
    %vm6614 = vcmask 130048
    %v6616 = vsel %vm6614, %v6613, 0
    %6618 = vmatprep.subr.mxu0 0.0
    %6619 = vmatpush1.msra.mxu0 0.0
    %6620 = vmatprep.subr.mxu0 0.0
    %6621 = vmatpush1.msra.mxu0 0.0
    %6622 = vmatprep.subr.mxu0 0.0
    %6623 = vmatpush1.msra.mxu0 0.0
    %6624 = vmatprep.subr.mxu0 0.0
    %6625 = vmatpush1.msra.mxu0 0.0
    %6626 = vmatprep.subr.mxu0 0.0
    %6627 = vmatpush1.msra.mxu0 0.0
    %6628 = vmatprep.subr.mxu0 0.0
    %6629 = vmatpush1.msra.mxu0 0.0
    %6630 = vmatprep.subr.mxu0 0.0
    %6631 = vmatpush1.msra.mxu0 0.0
    %6632 = vmatprep.subr.mxu0 0.0
    %6633 = vmatpush1.msra.mxu0 0.0
    %6634 = vmatprep.subr.mxu0 0.0
    %6635 = vmatpush1.msra.mxu0 0.0
    %6636 = vmatprep.subr.mxu0 0.0
    %6637 = vmatpush1.msra.mxu0 0.0
    %6638 = vmatprep.subr.mxu0 0.0
    %6639 = vmatpush1.msra.mxu0 0.0
    %6640 = vmatprep.subr.mxu0 0.0
    %6641 = vmatpush1.msra.mxu0 0.0
    %6642 = vmatprep.subr.mxu0 0.0
    %6643 = vmatpush1.msra.mxu0 0.0
    %6644 = vmatprep.subr.mxu0 0.0
    %6645 = vmatpush1.msra.mxu0 0.0
    %6646 = vmatprep.subr.mxu0 0.0
    %6647 = vmatpush1.msra.mxu0 %v5784
    %6648 = vmatprep.subr.mxu0 0.0
    %6649 = vmatpush1.msra.mxu0 %v5783
    %6650 = vmatprep.subr.mxu0 0.0
    %6651 = vmatpush2.msra.mxu0 0.0
    %6652 = vmatprep.subr.mxu0 0.0
    %6653 = vmatpush2.msra.mxu0 0.0
    %6654 = vmatprep.subr.mxu0 0.0
    %6655 = vmatpush2.msra.mxu0 0.0
    %6656 = vmatprep.subr.mxu0 0.0
    %6657 = vmatpush2.msra.mxu0 0.0
    %6658 = vmatprep.subr.mxu0 0.0
    %6659 = vmatpush2.msra.mxu0 0.0
    %6660 = vmatprep.subr.mxu0 0.0
    %6661 = vmatpush2.msra.mxu0 0.0
    %6662 = vmatprep.subr.mxu0 0.0
    %6663 = vmatpush2.msra.mxu0 0.0
    %6664 = vmatprep.subr.mxu0 0.0
    %6665 = vmatpush2.msra.mxu0 0.0
    %6666 = vmatprep.subr.mxu0 0.0
    %6667 = vmatpush2.msra.mxu0 0.0
    %6668 = vmatprep.subr.mxu0 0.0
    %6669 = vmatpush2.msra.mxu0 0.0
    %6670 = vmatprep.subr.mxu0 0.0
    %6671 = vmatpush2.msra.mxu0 0.0
    %6672 = vmatprep.subr.mxu0 0.0
    %6673 = vmatpush2.msra.mxu0 0.0
    %6674 = vmatprep.subr.mxu0 0.0
    %6675 = vmatpush2.msra.mxu0 0.0
    %6676 = vmatprep.subr.mxu0 0.0
    %6677 = vmatpush2.msra.mxu0 0.0
    %6678 = vmatprep.subr.mxu0 0.0
    %6679 = vmatpush2.msra.mxu0 0.0
    %6680 = vmatprep.subr.mxu0 0.0
    %6681 = vmatpush2.msra.mxu0 0.0
    %6682 = vmatprep.mubr.f32.mxu0 0.0
    %6683 = vmatmul.mubr.f32.gmra.mxu0 %v6616
    %v6684 = vpop.f32.mrf.mxu0
    %v6685 = vadd.f32 %v5785, %v6684
    %v6686 = vpop.f32.mrf.mxu0
    %6687 = vdwg.mxu0
    %v6688 = vmax.f32 %v6685, 0.0
    %v6690 = vsel %vm258, %v6688, 0
    %6692 = vmatprep.subr.mxu0 0.0
    %6693 = vmatpush1.msra.mxu0 0.0
    %6694 = vmatprep.subr.mxu0 0.0
    %6695 = vmatpush1.msra.mxu0 0.0
    %6696 = vmatprep.subr.mxu0 0.0
    %6697 = vmatpush1.msra.mxu0 0.0
    %6698 = vmatprep.subr.mxu0 0.0
    %6699 = vmatpush1.msra.mxu0 0.0
    %6700 = vmatprep.subr.mxu0 0.0
    %6701 = vmatpush1.msra.mxu0 0.0
    %6702 = vmatprep.subr.mxu0 0.0
    %6703 = vmatpush1.msra.mxu0 0.0
    %6704 = vmatprep.subr.mxu0 0.0
    %6705 = vmatpush1.msra.mxu0 0.0
    %6706 = vmatprep.subr.mxu0 0.0
    %6707 = vmatpush1.msra.mxu0 0.0
    %6708 = vmatprep.subr.mxu0 0.0
    %6709 = vmatpush1.msra.mxu0 0.0
    %6710 = vmatprep.subr.mxu0 0.0
    %6711 = vmatpush1.msra.mxu0 0.0
    %6712 = vmatprep.subr.mxu0 0.0
    %6713 = vmatpush1.msra.mxu0 0.0
    %6714 = vmatprep.subr.mxu0 0.0
    %6715 = vmatpush1.msra.mxu0 0.0
    %6716 = vmatprep.subr.mxu0 0.0
    %6717 = vmatpush1.msra.mxu0 0.0
    %6718 = vmatprep.subr.mxu0 0.0
    %6719 = vmatpush1.msra.mxu0 0.0
    %6720 = vmatprep.subr.mxu0 0.0
    %6721 = vmatpush1.msra.mxu0 0.0
    %6722 = vmatprep.subr.mxu0 0.0
    %6723 = vmatpush1.msra.mxu0 %v5786
    %6724 = vmatprep.subr.mxu0 0.0
    %6725 = vmatpush2.msra.mxu0 0.0
    %6726 = vmatprep.subr.mxu0 0.0
    %6727 = vmatpush2.msra.mxu0 0.0
    %6728 = vmatprep.subr.mxu0 0.0
    %6729 = vmatpush2.msra.mxu0 0.0
    %6730 = vmatprep.subr.mxu0 0.0
    %6731 = vmatpush2.msra.mxu0 0.0
    %6732 = vmatprep.subr.mxu0 0.0
    %6733 = vmatpush2.msra.mxu0 0.0
    %6734 = vmatprep.subr.mxu0 0.0
    %6735 = vmatpush2.msra.mxu0 0.0
    %6736 = vmatprep.subr.mxu0 0.0
    %6737 = vmatpush2.msra.mxu0 0.0
    %6738 = vmatprep.subr.mxu0 0.0
    %6739 = vmatpush2.msra.mxu0 0.0
    %6740 = vmatprep.subr.mxu0 0.0
    %6741 = vmatpush2.msra.mxu0 0.0
    %6742 = vmatprep.subr.mxu0 0.0
    %6743 = vmatpush2.msra.mxu0 0.0
    %6744 = vmatprep.subr.mxu0 0.0
    %6745 = vmatpush2.msra.mxu0 0.0
    %6746 = vmatprep.subr.mxu0 0.0
    %6747 = vmatpush2.msra.mxu0 0.0
    %6748 = vmatprep.subr.mxu0 0.0
    %6749 = vmatpush2.msra.mxu0 0.0
    %6750 = vmatprep.subr.mxu0 0.0
    %6751 = vmatpush2.msra.mxu0 0.0
    %6752 = vmatprep.subr.mxu0 0.0
    %6753 = vmatpush2.msra.mxu0 0.0
    %6754 = vmatprep.subr.mxu0 0.0
    %6755 = vmatpush2.msra.mxu0 0.0
    %6756 = vmatprep.mubr.f32.mxu0 0.0
    %6757 = vmatmul.mubr.f32.gmra.mxu0 %v6690
    %v6758 = vpop.f32.mrf.mxu0
    %v6759 = vadd.f32 %v5787, %v6758
    %v6760 = vpop.f32.mrf.mxu0
    %6761 = vdwg.mxu0
    %vm6762 = vcmask 0
    %6763 = vst.msk [vmem:[%s63] sm:$0x1] %vm6762, %v6759
    %vm6764 = vcmp.ge.f32.partialorder %v4544, 0.0
    %v6765 = vmul.f32 %v4544, 0.01
    %v6766 = vsel %vm6764, %v4544, %v6765
    %v6767 = vld [vmem:[%s51] sm:$0xff]
    %v6768 = vld [vmem:[%s51 + $0x8] sm:$0xf]
    %6770 = vrot.lane.b32.xlu0 %v6766, 92
    %v6771 = vpop.permute.xlu0 %6770
    %v6772 = vsel %vm2978, %v6771, 0
    %v6775 = vsel %vm2982, %v6768, 0
    %6777 = vmatprep.subr.mxu0 0.0
    %6778 = vmatpush1.msra.mxu0 0.0
    %6779 = vmatprep.subr.mxu0 0.0
    %6780 = vmatpush1.msra.mxu0 0.0
    %6781 = vmatprep.subr.mxu0 0.0
    %6782 = vmatpush1.msra.mxu0 0.0
    %6783 = vmatprep.subr.mxu0 0.0
    %6784 = vmatpush1.msra.mxu0 0.0
    %6785 = vmatprep.subr.mxu0 0.0
    %6786 = vmatpush1.msra.mxu0 0.0
    %6787 = vmatprep.subr.mxu0 0.0
    %6788 = vmatpush1.msra.mxu0 0.0
    %6789 = vmatprep.subr.mxu0 0.0
    %6790 = vmatpush1.msra.mxu0 0.0
    %6791 = vmatprep.subr.mxu0 0.0
    %6792 = vmatpush1.msra.mxu0 0.0
    %6793 = vmatprep.subr.mxu0 0.0
    %6794 = vmatpush1.msra.mxu0 0.0
    %6795 = vmatprep.subr.mxu0 0.0
    %6796 = vmatpush1.msra.mxu0 0.0
    %6797 = vmatprep.subr.mxu0 0.0
    %6798 = vmatpush1.msra.mxu0 0.0
    %6799 = vmatprep.subr.mxu0 0.0
    %6800 = vmatpush1.msra.mxu0 0.0
    %6801 = vmatprep.subr.mxu0 0.0
    %6802 = vmatpush1.msra.mxu0 0.0
    %6803 = vmatprep.subr.mxu0 0.0
    %6804 = vmatpush1.msra.mxu0 0.0
    %6805 = vmatprep.subr.mxu0 0.0
    %6806 = vmatpush1.msra.mxu0 %v6775
    %6807 = vmatprep.subr.mxu0 0.0
    %6808 = vmatpush1.msra.mxu0 %v6767
    %6809 = vmatprep.subr.mxu0 0.0
    %6810 = vmatpush2.msra.mxu0 0.0
    %6811 = vmatprep.subr.mxu0 0.0
    %6812 = vmatpush2.msra.mxu0 0.0
    %6813 = vmatprep.subr.mxu0 0.0
    %6814 = vmatpush2.msra.mxu0 0.0
    %6815 = vmatprep.subr.mxu0 0.0
    %6816 = vmatpush2.msra.mxu0 0.0
    %6817 = vmatprep.subr.mxu0 0.0
    %6818 = vmatpush2.msra.mxu0 0.0
    %6819 = vmatprep.subr.mxu0 0.0
    %6820 = vmatpush2.msra.mxu0 0.0
    %6821 = vmatprep.subr.mxu0 0.0
    %6822 = vmatpush2.msra.mxu0 0.0
    %6823 = vmatprep.subr.mxu0 0.0
    %6824 = vmatpush2.msra.mxu0 0.0
    %6825 = vmatprep.subr.mxu0 0.0
    %6826 = vmatpush2.msra.mxu0 0.0
    %6827 = vmatprep.subr.mxu0 0.0
    %6828 = vmatpush2.msra.mxu0 0.0
    %6829 = vmatprep.subr.mxu0 0.0
    %6830 = vmatpush2.msra.mxu0 0.0
    %6831 = vmatprep.subr.mxu0 0.0
    %6832 = vmatpush2.msra.mxu0 0.0
    %6833 = vmatprep.subr.mxu0 0.0
    %6834 = vmatpush2.msra.mxu0 0.0
    %6835 = vmatprep.subr.mxu0 0.0
    %6836 = vmatpush2.msra.mxu0 0.0
    %6837 = vmatprep.subr.mxu0 0.0
    %6838 = vmatpush2.msra.mxu0 0.0
    %6839 = vmatprep.subr.mxu0 0.0
    %6840 = vmatpush2.msra.mxu0 0.0
    %6841 = vmatprep.mubr.f32.mxu0 0.0
    %6842 = vmatmul.mubr.f32.gmra.mxu0 %v6772
    %v6843 = vpop.f32.mrf.mxu0
    %v6844 = vadd.f32 0.0, %v6843
    %v6845 = vpop.f32.mrf.mxu0
    %6846 = vdwg.mxu0
    %v6847 = vadd.f32 %v5782, %v6844
    %v6848 = vld [vmem:[%s5872] sm:$0xff]
    %v6849 = vld [vmem:[%s5872 + $0x8] sm:$0xf]
    %v6850 = vrot.slane %v6766, 1
    %6851 = vrot.lane.b32.xlu0 %v6850, 92
    %v6852 = vpop.permute.xlu0 %6851
    %v6853 = vsel %vm2978, %v6852, 0
    %v6856 = vsel %vm2982, %v6849, 0
    %6858 = vmatprep.subr.mxu0 0.0
    %6859 = vmatpush1.msra.mxu0 0.0
    %6860 = vmatprep.subr.mxu0 0.0
    %6861 = vmatpush1.msra.mxu0 0.0
    %6862 = vmatprep.subr.mxu0 0.0
    %6863 = vmatpush1.msra.mxu0 0.0
    %6864 = vmatprep.subr.mxu0 0.0
    %6865 = vmatpush1.msra.mxu0 0.0
    %6866 = vmatprep.subr.mxu0 0.0
    %6867 = vmatpush1.msra.mxu0 0.0
    %6868 = vmatprep.subr.mxu0 0.0
    %6869 = vmatpush1.msra.mxu0 0.0
    %6870 = vmatprep.subr.mxu0 0.0
    %6871 = vmatpush1.msra.mxu0 0.0
    %6872 = vmatprep.subr.mxu0 0.0
    %6873 = vmatpush1.msra.mxu0 0.0
    %6874 = vmatprep.subr.mxu0 0.0
    %6875 = vmatpush1.msra.mxu0 0.0
    %6876 = vmatprep.subr.mxu0 0.0
    %6877 = vmatpush1.msra.mxu0 0.0
    %6878 = vmatprep.subr.mxu0 0.0
    %6879 = vmatpush1.msra.mxu0 0.0
    %6880 = vmatprep.subr.mxu0 0.0
    %6881 = vmatpush1.msra.mxu0 0.0
    %6882 = vmatprep.subr.mxu0 0.0
    %6883 = vmatpush1.msra.mxu0 0.0
    %6884 = vmatprep.subr.mxu0 0.0
    %6885 = vmatpush1.msra.mxu0 0.0
    %6886 = vmatprep.subr.mxu0 0.0
    %6887 = vmatpush1.msra.mxu0 %v6856
    %6888 = vmatprep.subr.mxu0 0.0
    %6889 = vmatpush1.msra.mxu0 %v6848
    %6890 = vmatprep.subr.mxu0 0.0
    %6891 = vmatpush2.msra.mxu0 0.0
    %6892 = vmatprep.subr.mxu0 0.0
    %6893 = vmatpush2.msra.mxu0 0.0
    %6894 = vmatprep.subr.mxu0 0.0
    %6895 = vmatpush2.msra.mxu0 0.0
    %6896 = vmatprep.subr.mxu0 0.0
    %6897 = vmatpush2.msra.mxu0 0.0
    %6898 = vmatprep.subr.mxu0 0.0
    %6899 = vmatpush2.msra.mxu0 0.0
    %6900 = vmatprep.subr.mxu0 0.0
    %6901 = vmatpush2.msra.mxu0 0.0
    %6902 = vmatprep.subr.mxu0 0.0
    %6903 = vmatpush2.msra.mxu0 0.0
    %6904 = vmatprep.subr.mxu0 0.0
    %6905 = vmatpush2.msra.mxu0 0.0
    %6906 = vmatprep.subr.mxu0 0.0
    %6907 = vmatpush2.msra.mxu0 0.0
    %6908 = vmatprep.subr.mxu0 0.0
    %6909 = vmatpush2.msra.mxu0 0.0
    %6910 = vmatprep.subr.mxu0 0.0
    %6911 = vmatpush2.msra.mxu0 0.0
    %6912 = vmatprep.subr.mxu0 0.0
    %6913 = vmatpush2.msra.mxu0 0.0
    %6914 = vmatprep.subr.mxu0 0.0
    %6915 = vmatpush2.msra.mxu0 0.0
    %6916 = vmatprep.subr.mxu0 0.0
    %6917 = vmatpush2.msra.mxu0 0.0
    %6918 = vmatprep.subr.mxu0 0.0
    %6919 = vmatpush2.msra.mxu0 0.0
    %6920 = vmatprep.subr.mxu0 0.0
    %6921 = vmatpush2.msra.mxu0 0.0
    %6922 = vmatprep.mubr.f32.mxu0 0.0
    %6923 = vmatmul.mubr.f32.gmra.mxu0 %v6853
    %v6924 = vpop.f32.mrf.mxu0
    %v6925 = vadd.f32 0.0, %v6924
    %v6926 = vpop.f32.mrf.mxu0
    %6927 = vdwg.mxu0
    %v6928 = vadd.f32 %v6847, %v6925
    %v6929 = vld [vmem:[%s5954] sm:$0xff]
    %v6930 = vld [vmem:[%s5954 + $0x8] sm:$0xf]
    %v6931 = vrot.slane %v6766, 2
    %6932 = vrot.lane.b32.xlu0 %v6931, 92
    %v6933 = vpop.permute.xlu0 %6932
    %v6934 = vsel %vm2978, %v6933, 0
    %v6937 = vsel %vm2982, %v6930, 0
    %6939 = vmatprep.subr.mxu0 0.0
    %6940 = vmatpush1.msra.mxu0 0.0
    %6941 = vmatprep.subr.mxu0 0.0
    %6942 = vmatpush1.msra.mxu0 0.0
    %6943 = vmatprep.subr.mxu0 0.0
    %6944 = vmatpush1.msra.mxu0 0.0
    %6945 = vmatprep.subr.mxu0 0.0
    %6946 = vmatpush1.msra.mxu0 0.0
    %6947 = vmatprep.subr.mxu0 0.0
    %6948 = vmatpush1.msra.mxu0 0.0
    %6949 = vmatprep.subr.mxu0 0.0
    %6950 = vmatpush1.msra.mxu0 0.0
    %6951 = vmatprep.subr.mxu0 0.0
    %6952 = vmatpush1.msra.mxu0 0.0
    %6953 = vmatprep.subr.mxu0 0.0
    %6954 = vmatpush1.msra.mxu0 0.0
    %6955 = vmatprep.subr.mxu0 0.0
    %6956 = vmatpush1.msra.mxu0 0.0
    %6957 = vmatprep.subr.mxu0 0.0
    %6958 = vmatpush1.msra.mxu0 0.0
    %6959 = vmatprep.subr.mxu0 0.0
    %6960 = vmatpush1.msra.mxu0 0.0
    %6961 = vmatprep.subr.mxu0 0.0
    %6962 = vmatpush1.msra.mxu0 0.0
    %6963 = vmatprep.subr.mxu0 0.0
    %6964 = vmatpush1.msra.mxu0 0.0
    %6965 = vmatprep.subr.mxu0 0.0
    %6966 = vmatpush1.msra.mxu0 0.0
    %6967 = vmatprep.subr.mxu0 0.0
    %6968 = vmatpush1.msra.mxu0 %v6937
    %6969 = vmatprep.subr.mxu0 0.0
    %6970 = vmatpush1.msra.mxu0 %v6929
    %6971 = vmatprep.subr.mxu0 0.0
    %6972 = vmatpush2.msra.mxu0 0.0
    %6973 = vmatprep.subr.mxu0 0.0
    %6974 = vmatpush2.msra.mxu0 0.0
    %6975 = vmatprep.subr.mxu0 0.0
    %6976 = vmatpush2.msra.mxu0 0.0
    %6977 = vmatprep.subr.mxu0 0.0
    %6978 = vmatpush2.msra.mxu0 0.0
    %6979 = vmatprep.subr.mxu0 0.0
    %6980 = vmatpush2.msra.mxu0 0.0
    %6981 = vmatprep.subr.mxu0 0.0
    %6982 = vmatpush2.msra.mxu0 0.0
    %6983 = vmatprep.subr.mxu0 0.0
    %6984 = vmatpush2.msra.mxu0 0.0
    %6985 = vmatprep.subr.mxu0 0.0
    %6986 = vmatpush2.msra.mxu0 0.0
    %6987 = vmatprep.subr.mxu0 0.0
    %6988 = vmatpush2.msra.mxu0 0.0
    %6989 = vmatprep.subr.mxu0 0.0
    %6990 = vmatpush2.msra.mxu0 0.0
    %6991 = vmatprep.subr.mxu0 0.0
    %6992 = vmatpush2.msra.mxu0 0.0
    %6993 = vmatprep.subr.mxu0 0.0
    %6994 = vmatpush2.msra.mxu0 0.0
    %6995 = vmatprep.subr.mxu0 0.0
    %6996 = vmatpush2.msra.mxu0 0.0
    %6997 = vmatprep.subr.mxu0 0.0
    %6998 = vmatpush2.msra.mxu0 0.0
    %6999 = vmatprep.subr.mxu0 0.0
    %7000 = vmatpush2.msra.mxu0 0.0
    %7001 = vmatprep.subr.mxu0 0.0
    %7002 = vmatpush2.msra.mxu0 0.0
    %7003 = vmatprep.mubr.f32.mxu0 0.0
    %7004 = vmatmul.mubr.f32.gmra.mxu0 %v6934
    %v7005 = vpop.f32.mrf.mxu0
    %v7006 = vadd.f32 0.0, %v7005
    %v7007 = vpop.f32.mrf.mxu0
    %7008 = vdwg.mxu0
    %v7009 = vadd.f32 %v6928, %v7006
    %v7010 = vld [vmem:[%s6036] sm:$0xff]
    %v7011 = vld [vmem:[%s6036 + $0x8] sm:$0xf]
    %v7012 = vrot.slane %v6766, 3
    %7013 = vrot.lane.b32.xlu0 %v7012, 92
    %v7014 = vpop.permute.xlu0 %7013
    %v7015 = vsel %vm2978, %v7014, 0
    %v7018 = vsel %vm2982, %v7011, 0
    %7020 = vmatprep.subr.mxu0 0.0
    %7021 = vmatpush1.msra.mxu0 0.0
    %7022 = vmatprep.subr.mxu0 0.0
    %7023 = vmatpush1.msra.mxu0 0.0
    %7024 = vmatprep.subr.mxu0 0.0
    %7025 = vmatpush1.msra.mxu0 0.0
    %7026 = vmatprep.subr.mxu0 0.0
    %7027 = vmatpush1.msra.mxu0 0.0
    %7028 = vmatprep.subr.mxu0 0.0
    %7029 = vmatpush1.msra.mxu0 0.0
    %7030 = vmatprep.subr.mxu0 0.0
    %7031 = vmatpush1.msra.mxu0 0.0
    %7032 = vmatprep.subr.mxu0 0.0
    %7033 = vmatpush1.msra.mxu0 0.0
    %7034 = vmatprep.subr.mxu0 0.0
    %7035 = vmatpush1.msra.mxu0 0.0
    %7036 = vmatprep.subr.mxu0 0.0
    %7037 = vmatpush1.msra.mxu0 0.0
    %7038 = vmatprep.subr.mxu0 0.0
    %7039 = vmatpush1.msra.mxu0 0.0
    %7040 = vmatprep.subr.mxu0 0.0
    %7041 = vmatpush1.msra.mxu0 0.0
    %7042 = vmatprep.subr.mxu0 0.0
    %7043 = vmatpush1.msra.mxu0 0.0
    %7044 = vmatprep.subr.mxu0 0.0
    %7045 = vmatpush1.msra.mxu0 0.0
    %7046 = vmatprep.subr.mxu0 0.0
    %7047 = vmatpush1.msra.mxu0 0.0
    %7048 = vmatprep.subr.mxu0 0.0
    %7049 = vmatpush1.msra.mxu0 %v7018
    %7050 = vmatprep.subr.mxu0 0.0
    %7051 = vmatpush1.msra.mxu0 %v7010
    %7052 = vmatprep.subr.mxu0 0.0
    %7053 = vmatpush2.msra.mxu0 0.0
    %7054 = vmatprep.subr.mxu0 0.0
    %7055 = vmatpush2.msra.mxu0 0.0
    %7056 = vmatprep.subr.mxu0 0.0
    %7057 = vmatpush2.msra.mxu0 0.0
    %7058 = vmatprep.subr.mxu0 0.0
    %7059 = vmatpush2.msra.mxu0 0.0
    %7060 = vmatprep.subr.mxu0 0.0
    %7061 = vmatpush2.msra.mxu0 0.0
    %7062 = vmatprep.subr.mxu0 0.0
    %7063 = vmatpush2.msra.mxu0 0.0
    %7064 = vmatprep.subr.mxu0 0.0
    %7065 = vmatpush2.msra.mxu0 0.0
    %7066 = vmatprep.subr.mxu0 0.0
    %7067 = vmatpush2.msra.mxu0 0.0
    %7068 = vmatprep.subr.mxu0 0.0
    %7069 = vmatpush2.msra.mxu0 0.0
    %7070 = vmatprep.subr.mxu0 0.0
    %7071 = vmatpush2.msra.mxu0 0.0
    %7072 = vmatprep.subr.mxu0 0.0
    %7073 = vmatpush2.msra.mxu0 0.0
    %7074 = vmatprep.subr.mxu0 0.0
    %7075 = vmatpush2.msra.mxu0 0.0
    %7076 = vmatprep.subr.mxu0 0.0
    %7077 = vmatpush2.msra.mxu0 0.0
    %7078 = vmatprep.subr.mxu0 0.0
    %7079 = vmatpush2.msra.mxu0 0.0
    %7080 = vmatprep.subr.mxu0 0.0
    %7081 = vmatpush2.msra.mxu0 0.0
    %7082 = vmatprep.subr.mxu0 0.0
    %7083 = vmatpush2.msra.mxu0 0.0
    %7084 = vmatprep.mubr.f32.mxu0 0.0
    %7085 = vmatmul.mubr.f32.gmra.mxu0 %v7015
    %v7086 = vpop.f32.mrf.mxu0
    %v7087 = vadd.f32 0.0, %v7086
    %v7088 = vpop.f32.mrf.mxu0
    %7089 = vdwg.mxu0
    %v7090 = vadd.f32 %v7009, %v7087
    %v7091 = vld [vmem:[%s6118] sm:$0xff]
    %v7092 = vld [vmem:[%s6118 + $0x8] sm:$0xf]
    %v7093 = vrot.slane %v6766, 4
    %7094 = vrot.lane.b32.xlu0 %v7093, 92
    %v7095 = vpop.permute.xlu0 %7094
    %v7096 = vsel %vm2978, %v7095, 0
    %v7099 = vsel %vm2982, %v7092, 0
    %7101 = vmatprep.subr.mxu0 0.0
    %7102 = vmatpush1.msra.mxu0 0.0
    %7103 = vmatprep.subr.mxu0 0.0
    %7104 = vmatpush1.msra.mxu0 0.0
    %7105 = vmatprep.subr.mxu0 0.0
    %7106 = vmatpush1.msra.mxu0 0.0
    %7107 = vmatprep.subr.mxu0 0.0
    %7108 = vmatpush1.msra.mxu0 0.0
    %7109 = vmatprep.subr.mxu0 0.0
    %7110 = vmatpush1.msra.mxu0 0.0
    %7111 = vmatprep.subr.mxu0 0.0
    %7112 = vmatpush1.msra.mxu0 0.0
    %7113 = vmatprep.subr.mxu0 0.0
    %7114 = vmatpush1.msra.mxu0 0.0
    %7115 = vmatprep.subr.mxu0 0.0
    %7116 = vmatpush1.msra.mxu0 0.0
    %7117 = vmatprep.subr.mxu0 0.0
    %7118 = vmatpush1.msra.mxu0 0.0
    %7119 = vmatprep.subr.mxu0 0.0
    %7120 = vmatpush1.msra.mxu0 0.0
    %7121 = vmatprep.subr.mxu0 0.0
    %7122 = vmatpush1.msra.mxu0 0.0
    %7123 = vmatprep.subr.mxu0 0.0
    %7124 = vmatpush1.msra.mxu0 0.0
    %7125 = vmatprep.subr.mxu0 0.0
    %7126 = vmatpush1.msra.mxu0 0.0
    %7127 = vmatprep.subr.mxu0 0.0
    %7128 = vmatpush1.msra.mxu0 0.0
    %7129 = vmatprep.subr.mxu0 0.0
    %7130 = vmatpush1.msra.mxu0 %v7099
    %7131 = vmatprep.subr.mxu0 0.0
    %7132 = vmatpush1.msra.mxu0 %v7091
    %7133 = vmatprep.subr.mxu0 0.0
    %7134 = vmatpush2.msra.mxu0 0.0
    %7135 = vmatprep.subr.mxu0 0.0
    %7136 = vmatpush2.msra.mxu0 0.0
    %7137 = vmatprep.subr.mxu0 0.0
    %7138 = vmatpush2.msra.mxu0 0.0
    %7139 = vmatprep.subr.mxu0 0.0
    %7140 = vmatpush2.msra.mxu0 0.0
    %7141 = vmatprep.subr.mxu0 0.0
    %7142 = vmatpush2.msra.mxu0 0.0
    %7143 = vmatprep.subr.mxu0 0.0
    %7144 = vmatpush2.msra.mxu0 0.0
    %7145 = vmatprep.subr.mxu0 0.0
    %7146 = vmatpush2.msra.mxu0 0.0
    %7147 = vmatprep.subr.mxu0 0.0
    %7148 = vmatpush2.msra.mxu0 0.0
    %7149 = vmatprep.subr.mxu0 0.0
    %7150 = vmatpush2.msra.mxu0 0.0
    %7151 = vmatprep.subr.mxu0 0.0
    %7152 = vmatpush2.msra.mxu0 0.0
    %7153 = vmatprep.subr.mxu0 0.0
    %7154 = vmatpush2.msra.mxu0 0.0
    %7155 = vmatprep.subr.mxu0 0.0
    %7156 = vmatpush2.msra.mxu0 0.0
    %7157 = vmatprep.subr.mxu0 0.0
    %7158 = vmatpush2.msra.mxu0 0.0
    %7159 = vmatprep.subr.mxu0 0.0
    %7160 = vmatpush2.msra.mxu0 0.0
    %7161 = vmatprep.subr.mxu0 0.0
    %7162 = vmatpush2.msra.mxu0 0.0
    %7163 = vmatprep.subr.mxu0 0.0
    %7164 = vmatpush2.msra.mxu0 0.0
    %7165 = vmatprep.mubr.f32.mxu0 0.0
    %7166 = vmatmul.mubr.f32.gmra.mxu0 %v7096
    %v7167 = vpop.f32.mrf.mxu0
    %v7168 = vadd.f32 0.0, %v7167
    %v7169 = vpop.f32.mrf.mxu0
    %7170 = vdwg.mxu0
    %v7171 = vadd.f32 %v7090, %v7168
    %vm7172 = vcmp.ge.f32.partialorder %v5781, 0.0
    %v7173 = vmul.f32 %v5781, 0.01
    %v7174 = vsel %vm7172, %v5781, %v7173
    %v7175 = vld [vmem:[%s6203] sm:$0xff]
    %v7176 = vld [vmem:[%s6203 + $0x8] sm:$0xf]
    %7178 = vrot.lane.b32.xlu0 %v7174, 92
    %v7179 = vpop.permute.xlu0 %7178
    %v7180 = vsel %vm2978, %v7179, 0
    %v7183 = vsel %vm2982, %v7176, 0
    %7185 = vmatprep.subr.mxu0 0.0
    %7186 = vmatpush1.msra.mxu0 0.0
    %7187 = vmatprep.subr.mxu0 0.0
    %7188 = vmatpush1.msra.mxu0 0.0
    %7189 = vmatprep.subr.mxu0 0.0
    %7190 = vmatpush1.msra.mxu0 0.0
    %7191 = vmatprep.subr.mxu0 0.0
    %7192 = vmatpush1.msra.mxu0 0.0
    %7193 = vmatprep.subr.mxu0 0.0
    %7194 = vmatpush1.msra.mxu0 0.0
    %7195 = vmatprep.subr.mxu0 0.0
    %7196 = vmatpush1.msra.mxu0 0.0
    %7197 = vmatprep.subr.mxu0 0.0
    %7198 = vmatpush1.msra.mxu0 0.0
    %7199 = vmatprep.subr.mxu0 0.0
    %7200 = vmatpush1.msra.mxu0 0.0
    %7201 = vmatprep.subr.mxu0 0.0
    %7202 = vmatpush1.msra.mxu0 0.0
    %7203 = vmatprep.subr.mxu0 0.0
    %7204 = vmatpush1.msra.mxu0 0.0
    %7205 = vmatprep.subr.mxu0 0.0
    %7206 = vmatpush1.msra.mxu0 0.0
    %7207 = vmatprep.subr.mxu0 0.0
    %7208 = vmatpush1.msra.mxu0 0.0
    %7209 = vmatprep.subr.mxu0 0.0
    %7210 = vmatpush1.msra.mxu0 0.0
    %7211 = vmatprep.subr.mxu0 0.0
    %7212 = vmatpush1.msra.mxu0 0.0
    %7213 = vmatprep.subr.mxu0 0.0
    %7214 = vmatpush1.msra.mxu0 %v7183
    %7215 = vmatprep.subr.mxu0 0.0
    %7216 = vmatpush1.msra.mxu0 %v7175
    %7217 = vmatprep.subr.mxu0 0.0
    %7218 = vmatpush2.msra.mxu0 0.0
    %7219 = vmatprep.subr.mxu0 0.0
    %7220 = vmatpush2.msra.mxu0 0.0
    %7221 = vmatprep.subr.mxu0 0.0
    %7222 = vmatpush2.msra.mxu0 0.0
    %7223 = vmatprep.subr.mxu0 0.0
    %7224 = vmatpush2.msra.mxu0 0.0
    %7225 = vmatprep.subr.mxu0 0.0
    %7226 = vmatpush2.msra.mxu0 0.0
    %7227 = vmatprep.subr.mxu0 0.0
    %7228 = vmatpush2.msra.mxu0 0.0
    %7229 = vmatprep.subr.mxu0 0.0
    %7230 = vmatpush2.msra.mxu0 0.0
    %7231 = vmatprep.subr.mxu0 0.0
    %7232 = vmatpush2.msra.mxu0 0.0
    %7233 = vmatprep.subr.mxu0 0.0
    %7234 = vmatpush2.msra.mxu0 0.0
    %7235 = vmatprep.subr.mxu0 0.0
    %7236 = vmatpush2.msra.mxu0 0.0
    %7237 = vmatprep.subr.mxu0 0.0
    %7238 = vmatpush2.msra.mxu0 0.0
    %7239 = vmatprep.subr.mxu0 0.0
    %7240 = vmatpush2.msra.mxu0 0.0
    %7241 = vmatprep.subr.mxu0 0.0
    %7242 = vmatpush2.msra.mxu0 0.0
    %7243 = vmatprep.subr.mxu0 0.0
    %7244 = vmatpush2.msra.mxu0 0.0
    %7245 = vmatprep.subr.mxu0 0.0
    %7246 = vmatpush2.msra.mxu0 0.0
    %7247 = vmatprep.subr.mxu0 0.0
    %7248 = vmatpush2.msra.mxu0 0.0
    %7249 = vmatprep.mubr.f32.mxu0 0.0
    %7250 = vmatmul.mubr.f32.gmra.mxu0 %v7180
    %v7251 = vpop.f32.mrf.mxu0
    %v7252 = vadd.f32 0.0, %v7251
    %v7253 = vpop.f32.mrf.mxu0
    %7254 = vdwg.mxu0
    %v7255 = vadd.f32 %v7171, %v7252
    %v7256 = vld [vmem:[%s6285] sm:$0xff]
    %v7257 = vld [vmem:[%s6285 + $0x8] sm:$0xf]
    %v7258 = vrot.slane %v7174, 1
    %7259 = vrot.lane.b32.xlu0 %v7258, 92
    %v7260 = vpop.permute.xlu0 %7259
    %v7261 = vsel %vm2978, %v7260, 0
    %v7264 = vsel %vm2982, %v7257, 0
    %7266 = vmatprep.subr.mxu0 0.0
    %7267 = vmatpush1.msra.mxu0 0.0
    %7268 = vmatprep.subr.mxu0 0.0
    %7269 = vmatpush1.msra.mxu0 0.0
    %7270 = vmatprep.subr.mxu0 0.0
    %7271 = vmatpush1.msra.mxu0 0.0
    %7272 = vmatprep.subr.mxu0 0.0
    %7273 = vmatpush1.msra.mxu0 0.0
    %7274 = vmatprep.subr.mxu0 0.0
    %7275 = vmatpush1.msra.mxu0 0.0
    %7276 = vmatprep.subr.mxu0 0.0
    %7277 = vmatpush1.msra.mxu0 0.0
    %7278 = vmatprep.subr.mxu0 0.0
    %7279 = vmatpush1.msra.mxu0 0.0
    %7280 = vmatprep.subr.mxu0 0.0
    %7281 = vmatpush1.msra.mxu0 0.0
    %7282 = vmatprep.subr.mxu0 0.0
    %7283 = vmatpush1.msra.mxu0 0.0
    %7284 = vmatprep.subr.mxu0 0.0
    %7285 = vmatpush1.msra.mxu0 0.0
    %7286 = vmatprep.subr.mxu0 0.0
    %7287 = vmatpush1.msra.mxu0 0.0
    %7288 = vmatprep.subr.mxu0 0.0
    %7289 = vmatpush1.msra.mxu0 0.0
    %7290 = vmatprep.subr.mxu0 0.0
    %7291 = vmatpush1.msra.mxu0 0.0
    %7292 = vmatprep.subr.mxu0 0.0
    %7293 = vmatpush1.msra.mxu0 0.0
    %7294 = vmatprep.subr.mxu0 0.0
    %7295 = vmatpush1.msra.mxu0 %v7264
    %7296 = vmatprep.subr.mxu0 0.0
    %7297 = vmatpush1.msra.mxu0 %v7256
    %7298 = vmatprep.subr.mxu0 0.0
    %7299 = vmatpush2.msra.mxu0 0.0
    %7300 = vmatprep.subr.mxu0 0.0
    %7301 = vmatpush2.msra.mxu0 0.0
    %7302 = vmatprep.subr.mxu0 0.0
    %7303 = vmatpush2.msra.mxu0 0.0
    %7304 = vmatprep.subr.mxu0 0.0
    %7305 = vmatpush2.msra.mxu0 0.0
    %7306 = vmatprep.subr.mxu0 0.0
    %7307 = vmatpush2.msra.mxu0 0.0
    %7308 = vmatprep.subr.mxu0 0.0
    %7309 = vmatpush2.msra.mxu0 0.0
    %7310 = vmatprep.subr.mxu0 0.0
    %7311 = vmatpush2.msra.mxu0 0.0
    %7312 = vmatprep.subr.mxu0 0.0
    %7313 = vmatpush2.msra.mxu0 0.0
    %7314 = vmatprep.subr.mxu0 0.0
    %7315 = vmatpush2.msra.mxu0 0.0
    %7316 = vmatprep.subr.mxu0 0.0
    %7317 = vmatpush2.msra.mxu0 0.0
    %7318 = vmatprep.subr.mxu0 0.0
    %7319 = vmatpush2.msra.mxu0 0.0
    %7320 = vmatprep.subr.mxu0 0.0
    %7321 = vmatpush2.msra.mxu0 0.0
    %7322 = vmatprep.subr.mxu0 0.0
    %7323 = vmatpush2.msra.mxu0 0.0
    %7324 = vmatprep.subr.mxu0 0.0
    %7325 = vmatpush2.msra.mxu0 0.0
    %7326 = vmatprep.subr.mxu0 0.0
    %7327 = vmatpush2.msra.mxu0 0.0
    %7328 = vmatprep.subr.mxu0 0.0
    %7329 = vmatpush2.msra.mxu0 0.0
    %7330 = vmatprep.mubr.f32.mxu0 0.0
    %7331 = vmatmul.mubr.f32.gmra.mxu0 %v7261
    %v7332 = vpop.f32.mrf.mxu0
    %v7333 = vadd.f32 0.0, %v7332
    %v7334 = vpop.f32.mrf.mxu0
    %7335 = vdwg.mxu0
    %v7336 = vadd.f32 %v7255, %v7333
    %v7337 = vld [vmem:[%s6367] sm:$0xff]
    %v7338 = vld [vmem:[%s6367 + $0x8] sm:$0xf]
    %v7339 = vrot.slane %v7174, 2
    %7340 = vrot.lane.b32.xlu0 %v7339, 92
    %v7341 = vpop.permute.xlu0 %7340
    %v7342 = vsel %vm2978, %v7341, 0
    %v7345 = vsel %vm2982, %v7338, 0
    %7347 = vmatprep.subr.mxu0 0.0
    %7348 = vmatpush1.msra.mxu0 0.0
    %7349 = vmatprep.subr.mxu0 0.0
    %7350 = vmatpush1.msra.mxu0 0.0
    %7351 = vmatprep.subr.mxu0 0.0
    %7352 = vmatpush1.msra.mxu0 0.0
    %7353 = vmatprep.subr.mxu0 0.0
    %7354 = vmatpush1.msra.mxu0 0.0
    %7355 = vmatprep.subr.mxu0 0.0
    %7356 = vmatpush1.msra.mxu0 0.0
    %7357 = vmatprep.subr.mxu0 0.0
    %7358 = vmatpush1.msra.mxu0 0.0
    %7359 = vmatprep.subr.mxu0 0.0
    %7360 = vmatpush1.msra.mxu0 0.0
    %7361 = vmatprep.subr.mxu0 0.0
    %7362 = vmatpush1.msra.mxu0 0.0
    %7363 = vmatprep.subr.mxu0 0.0
    %7364 = vmatpush1.msra.mxu0 0.0
    %7365 = vmatprep.subr.mxu0 0.0
    %7366 = vmatpush1.msra.mxu0 0.0
    %7367 = vmatprep.subr.mxu0 0.0
    %7368 = vmatpush1.msra.mxu0 0.0
    %7369 = vmatprep.subr.mxu0 0.0
    %7370 = vmatpush1.msra.mxu0 0.0
    %7371 = vmatprep.subr.mxu0 0.0
    %7372 = vmatpush1.msra.mxu0 0.0
    %7373 = vmatprep.subr.mxu0 0.0
    %7374 = vmatpush1.msra.mxu0 0.0
    %7375 = vmatprep.subr.mxu0 0.0
    %7376 = vmatpush1.msra.mxu0 %v7345
    %7377 = vmatprep.subr.mxu0 0.0
    %7378 = vmatpush1.msra.mxu0 %v7337
    %7379 = vmatprep.subr.mxu0 0.0
    %7380 = vmatpush2.msra.mxu0 0.0
    %7381 = vmatprep.subr.mxu0 0.0
    %7382 = vmatpush2.msra.mxu0 0.0
    %7383 = vmatprep.subr.mxu0 0.0
    %7384 = vmatpush2.msra.mxu0 0.0
    %7385 = vmatprep.subr.mxu0 0.0
    %7386 = vmatpush2.msra.mxu0 0.0
    %7387 = vmatprep.subr.mxu0 0.0
    %7388 = vmatpush2.msra.mxu0 0.0
    %7389 = vmatprep.subr.mxu0 0.0
    %7390 = vmatpush2.msra.mxu0 0.0
    %7391 = vmatprep.subr.mxu0 0.0
    %7392 = vmatpush2.msra.mxu0 0.0
    %7393 = vmatprep.subr.mxu0 0.0
    %7394 = vmatpush2.msra.mxu0 0.0
    %7395 = vmatprep.subr.mxu0 0.0
    %7396 = vmatpush2.msra.mxu0 0.0
    %7397 = vmatprep.subr.mxu0 0.0
    %7398 = vmatpush2.msra.mxu0 0.0
    %7399 = vmatprep.subr.mxu0 0.0
    %7400 = vmatpush2.msra.mxu0 0.0
    %7401 = vmatprep.subr.mxu0 0.0
    %7402 = vmatpush2.msra.mxu0 0.0
    %7403 = vmatprep.subr.mxu0 0.0
    %7404 = vmatpush2.msra.mxu0 0.0
    %7405 = vmatprep.subr.mxu0 0.0
    %7406 = vmatpush2.msra.mxu0 0.0
    %7407 = vmatprep.subr.mxu0 0.0
    %7408 = vmatpush2.msra.mxu0 0.0
    %7409 = vmatprep.subr.mxu0 0.0
    %7410 = vmatpush2.msra.mxu0 0.0
    %7411 = vmatprep.mubr.f32.mxu0 0.0
    %7412 = vmatmul.mubr.f32.gmra.mxu0 %v7342
    %v7413 = vpop.f32.mrf.mxu0
    %v7414 = vadd.f32 0.0, %v7413
    %v7415 = vpop.f32.mrf.mxu0
    %7416 = vdwg.mxu0
    %v7417 = vadd.f32 %v7336, %v7414
    %v7418 = vld [vmem:[%s6449] sm:$0xff]
    %v7419 = vld [vmem:[%s6449 + $0x8] sm:$0xf]
    %v7420 = vrot.slane %v7174, 3
    %7421 = vrot.lane.b32.xlu0 %v7420, 92
    %v7422 = vpop.permute.xlu0 %7421
    %v7423 = vsel %vm2978, %v7422, 0
    %v7426 = vsel %vm2982, %v7419, 0
    %7428 = vmatprep.subr.mxu0 0.0
    %7429 = vmatpush1.msra.mxu0 0.0
    %7430 = vmatprep.subr.mxu0 0.0
    %7431 = vmatpush1.msra.mxu0 0.0
    %7432 = vmatprep.subr.mxu0 0.0
    %7433 = vmatpush1.msra.mxu0 0.0
    %7434 = vmatprep.subr.mxu0 0.0
    %7435 = vmatpush1.msra.mxu0 0.0
    %7436 = vmatprep.subr.mxu0 0.0
    %7437 = vmatpush1.msra.mxu0 0.0
    %7438 = vmatprep.subr.mxu0 0.0
    %7439 = vmatpush1.msra.mxu0 0.0
    %7440 = vmatprep.subr.mxu0 0.0
    %7441 = vmatpush1.msra.mxu0 0.0
    %7442 = vmatprep.subr.mxu0 0.0
    %7443 = vmatpush1.msra.mxu0 0.0
    %7444 = vmatprep.subr.mxu0 0.0
    %7445 = vmatpush1.msra.mxu0 0.0
    %7446 = vmatprep.subr.mxu0 0.0
    %7447 = vmatpush1.msra.mxu0 0.0
    %7448 = vmatprep.subr.mxu0 0.0
    %7449 = vmatpush1.msra.mxu0 0.0
    %7450 = vmatprep.subr.mxu0 0.0
    %7451 = vmatpush1.msra.mxu0 0.0
    %7452 = vmatprep.subr.mxu0 0.0
    %7453 = vmatpush1.msra.mxu0 0.0
    %7454 = vmatprep.subr.mxu0 0.0
    %7455 = vmatpush1.msra.mxu0 0.0
    %7456 = vmatprep.subr.mxu0 0.0
    %7457 = vmatpush1.msra.mxu0 %v7426
    %7458 = vmatprep.subr.mxu0 0.0
    %7459 = vmatpush1.msra.mxu0 %v7418
    %7460 = vmatprep.subr.mxu0 0.0
    %7461 = vmatpush2.msra.mxu0 0.0
    %7462 = vmatprep.subr.mxu0 0.0
    %7463 = vmatpush2.msra.mxu0 0.0
    %7464 = vmatprep.subr.mxu0 0.0
    %7465 = vmatpush2.msra.mxu0 0.0
    %7466 = vmatprep.subr.mxu0 0.0
    %7467 = vmatpush2.msra.mxu0 0.0
    %7468 = vmatprep.subr.mxu0 0.0
    %7469 = vmatpush2.msra.mxu0 0.0
    %7470 = vmatprep.subr.mxu0 0.0
    %7471 = vmatpush2.msra.mxu0 0.0
    %7472 = vmatprep.subr.mxu0 0.0
    %7473 = vmatpush2.msra.mxu0 0.0
    %7474 = vmatprep.subr.mxu0 0.0
    %7475 = vmatpush2.msra.mxu0 0.0
    %7476 = vmatprep.subr.mxu0 0.0
    %7477 = vmatpush2.msra.mxu0 0.0
    %7478 = vmatprep.subr.mxu0 0.0
    %7479 = vmatpush2.msra.mxu0 0.0
    %7480 = vmatprep.subr.mxu0 0.0
    %7481 = vmatpush2.msra.mxu0 0.0
    %7482 = vmatprep.subr.mxu0 0.0
    %7483 = vmatpush2.msra.mxu0 0.0
    %7484 = vmatprep.subr.mxu0 0.0
    %7485 = vmatpush2.msra.mxu0 0.0
    %7486 = vmatprep.subr.mxu0 0.0
    %7487 = vmatpush2.msra.mxu0 0.0
    %7488 = vmatprep.subr.mxu0 0.0
    %7489 = vmatpush2.msra.mxu0 0.0
    %7490 = vmatprep.subr.mxu0 0.0
    %7491 = vmatpush2.msra.mxu0 0.0
    %7492 = vmatprep.mubr.f32.mxu0 0.0
    %7493 = vmatmul.mubr.f32.gmra.mxu0 %v7423
    %v7494 = vpop.f32.mrf.mxu0
    %v7495 = vadd.f32 0.0, %v7494
    %v7496 = vpop.f32.mrf.mxu0
    %7497 = vdwg.mxu0
    %v7498 = vadd.f32 %v7417, %v7495
    %v7499 = vld [vmem:[%s6531] sm:$0xff]
    %v7500 = vld [vmem:[%s6531 + $0x8] sm:$0xf]
    %v7501 = vrot.slane %v7174, 4
    %7502 = vrot.lane.b32.xlu0 %v7501, 92
    %v7503 = vpop.permute.xlu0 %7502
    %v7504 = vsel %vm2978, %v7503, 0
    %v7507 = vsel %vm2982, %v7500, 0
    %7509 = vmatprep.subr.mxu0 0.0
    %7510 = vmatpush1.msra.mxu0 0.0
    %7511 = vmatprep.subr.mxu0 0.0
    %7512 = vmatpush1.msra.mxu0 0.0
    %7513 = vmatprep.subr.mxu0 0.0
    %7514 = vmatpush1.msra.mxu0 0.0
    %7515 = vmatprep.subr.mxu0 0.0
    %7516 = vmatpush1.msra.mxu0 0.0
    %7517 = vmatprep.subr.mxu0 0.0
    %7518 = vmatpush1.msra.mxu0 0.0
    %7519 = vmatprep.subr.mxu0 0.0
    %7520 = vmatpush1.msra.mxu0 0.0
    %7521 = vmatprep.subr.mxu0 0.0
    %7522 = vmatpush1.msra.mxu0 0.0
    %7523 = vmatprep.subr.mxu0 0.0
    %7524 = vmatpush1.msra.mxu0 0.0
    %7525 = vmatprep.subr.mxu0 0.0
    %7526 = vmatpush1.msra.mxu0 0.0
    %7527 = vmatprep.subr.mxu0 0.0
    %7528 = vmatpush1.msra.mxu0 0.0
    %7529 = vmatprep.subr.mxu0 0.0
    %7530 = vmatpush1.msra.mxu0 0.0
    %7531 = vmatprep.subr.mxu0 0.0
    %7532 = vmatpush1.msra.mxu0 0.0
    %7533 = vmatprep.subr.mxu0 0.0
    %7534 = vmatpush1.msra.mxu0 0.0
    %7535 = vmatprep.subr.mxu0 0.0
    %7536 = vmatpush1.msra.mxu0 0.0
    %7537 = vmatprep.subr.mxu0 0.0
    %7538 = vmatpush1.msra.mxu0 %v7507
    %7539 = vmatprep.subr.mxu0 0.0
    %7540 = vmatpush1.msra.mxu0 %v7499
    %7541 = vmatprep.subr.mxu0 0.0
    %7542 = vmatpush2.msra.mxu0 0.0
    %7543 = vmatprep.subr.mxu0 0.0
    %7544 = vmatpush2.msra.mxu0 0.0
    %7545 = vmatprep.subr.mxu0 0.0
    %7546 = vmatpush2.msra.mxu0 0.0
    %7547 = vmatprep.subr.mxu0 0.0
    %7548 = vmatpush2.msra.mxu0 0.0
    %7549 = vmatprep.subr.mxu0 0.0
    %7550 = vmatpush2.msra.mxu0 0.0
    %7551 = vmatprep.subr.mxu0 0.0
    %7552 = vmatpush2.msra.mxu0 0.0
    %7553 = vmatprep.subr.mxu0 0.0
    %7554 = vmatpush2.msra.mxu0 0.0
    %7555 = vmatprep.subr.mxu0 0.0
    %7556 = vmatpush2.msra.mxu0 0.0
    %7557 = vmatprep.subr.mxu0 0.0
    %7558 = vmatpush2.msra.mxu0 0.0
    %7559 = vmatprep.subr.mxu0 0.0
    %7560 = vmatpush2.msra.mxu0 0.0
    %7561 = vmatprep.subr.mxu0 0.0
    %7562 = vmatpush2.msra.mxu0 0.0
    %7563 = vmatprep.subr.mxu0 0.0
    %7564 = vmatpush2.msra.mxu0 0.0
    %7565 = vmatprep.subr.mxu0 0.0
    %7566 = vmatpush2.msra.mxu0 0.0
    %7567 = vmatprep.subr.mxu0 0.0
    %7568 = vmatpush2.msra.mxu0 0.0
    %7569 = vmatprep.subr.mxu0 0.0
    %7570 = vmatpush2.msra.mxu0 0.0
    %7571 = vmatprep.subr.mxu0 0.0
    %7572 = vmatpush2.msra.mxu0 0.0
    %7573 = vmatprep.mubr.f32.mxu0 0.0
    %7574 = vmatmul.mubr.f32.gmra.mxu0 %v7504
    %v7575 = vpop.f32.mrf.mxu0
    %v7576 = vadd.f32 0.0, %v7575
    %v7577 = vpop.f32.mrf.mxu0
    %7578 = vdwg.mxu0
    %v7579 = vadd.f32 %v7498, %v7576
    %v7580 = vmax.f32 %v7579, 0.0
    %v7582 = vsel %vm6614, %v7580, 0
    %7584 = vmatprep.subr.mxu0 0.0
    %7585 = vmatpush1.msra.mxu0 0.0
    %7586 = vmatprep.subr.mxu0 0.0
    %7587 = vmatpush1.msra.mxu0 0.0
    %7588 = vmatprep.subr.mxu0 0.0
    %7589 = vmatpush1.msra.mxu0 0.0
    %7590 = vmatprep.subr.mxu0 0.0
    %7591 = vmatpush1.msra.mxu0 0.0
    %7592 = vmatprep.subr.mxu0 0.0
    %7593 = vmatpush1.msra.mxu0 0.0
    %7594 = vmatprep.subr.mxu0 0.0
    %7595 = vmatpush1.msra.mxu0 0.0
    %7596 = vmatprep.subr.mxu0 0.0
    %7597 = vmatpush1.msra.mxu0 0.0
    %7598 = vmatprep.subr.mxu0 0.0
    %7599 = vmatpush1.msra.mxu0 0.0
    %7600 = vmatprep.subr.mxu0 0.0
    %7601 = vmatpush1.msra.mxu0 0.0
    %7602 = vmatprep.subr.mxu0 0.0
    %7603 = vmatpush1.msra.mxu0 0.0
    %7604 = vmatprep.subr.mxu0 0.0
    %7605 = vmatpush1.msra.mxu0 0.0
    %7606 = vmatprep.subr.mxu0 0.0
    %7607 = vmatpush1.msra.mxu0 0.0
    %7608 = vmatprep.subr.mxu0 0.0
    %7609 = vmatpush1.msra.mxu0 0.0
    %7610 = vmatprep.subr.mxu0 0.0
    %7611 = vmatpush1.msra.mxu0 0.0
    %7612 = vmatprep.subr.mxu0 0.0
    %7613 = vmatpush1.msra.mxu0 %v5784
    %7614 = vmatprep.subr.mxu0 0.0
    %7615 = vmatpush1.msra.mxu0 %v5783
    %7616 = vmatprep.subr.mxu0 0.0
    %7617 = vmatpush2.msra.mxu0 0.0
    %7618 = vmatprep.subr.mxu0 0.0
    %7619 = vmatpush2.msra.mxu0 0.0
    %7620 = vmatprep.subr.mxu0 0.0
    %7621 = vmatpush2.msra.mxu0 0.0
    %7622 = vmatprep.subr.mxu0 0.0
    %7623 = vmatpush2.msra.mxu0 0.0
    %7624 = vmatprep.subr.mxu0 0.0
    %7625 = vmatpush2.msra.mxu0 0.0
    %7626 = vmatprep.subr.mxu0 0.0
    %7627 = vmatpush2.msra.mxu0 0.0
    %7628 = vmatprep.subr.mxu0 0.0
    %7629 = vmatpush2.msra.mxu0 0.0
    %7630 = vmatprep.subr.mxu0 0.0
    %7631 = vmatpush2.msra.mxu0 0.0
    %7632 = vmatprep.subr.mxu0 0.0
    %7633 = vmatpush2.msra.mxu0 0.0
    %7634 = vmatprep.subr.mxu0 0.0
    %7635 = vmatpush2.msra.mxu0 0.0
    %7636 = vmatprep.subr.mxu0 0.0
    %7637 = vmatpush2.msra.mxu0 0.0
    %7638 = vmatprep.subr.mxu0 0.0
    %7639 = vmatpush2.msra.mxu0 0.0
    %7640 = vmatprep.subr.mxu0 0.0
    %7641 = vmatpush2.msra.mxu0 0.0
    %7642 = vmatprep.subr.mxu0 0.0
    %7643 = vmatpush2.msra.mxu0 0.0
    %7644 = vmatprep.subr.mxu0 0.0
    %7645 = vmatpush2.msra.mxu0 0.0
    %7646 = vmatprep.subr.mxu0 0.0
    %7647 = vmatpush2.msra.mxu0 0.0
    %7648 = vmatprep.mubr.f32.mxu0 0.0
    %7649 = vmatmul.mubr.f32.gmra.mxu0 %v7582
    %v7650 = vpop.f32.mrf.mxu0
    %v7651 = vadd.f32 %v5785, %v7650
    %v7652 = vpop.f32.mrf.mxu0
    %7653 = vdwg.mxu0
    %v7654 = vmax.f32 %v7651, 0.0
    %v7656 = vsel %vm258, %v7654, 0
    %7658 = vmatprep.subr.mxu0 0.0
    %7659 = vmatpush1.msra.mxu0 0.0
    %7660 = vmatprep.subr.mxu0 0.0
    %7661 = vmatpush1.msra.mxu0 0.0
    %7662 = vmatprep.subr.mxu0 0.0
    %7663 = vmatpush1.msra.mxu0 0.0
    %7664 = vmatprep.subr.mxu0 0.0
    %7665 = vmatpush1.msra.mxu0 0.0
    %7666 = vmatprep.subr.mxu0 0.0
    %7667 = vmatpush1.msra.mxu0 0.0
    %7668 = vmatprep.subr.mxu0 0.0
    %7669 = vmatpush1.msra.mxu0 0.0
    %7670 = vmatprep.subr.mxu0 0.0
    %7671 = vmatpush1.msra.mxu0 0.0
    %7672 = vmatprep.subr.mxu0 0.0
    %7673 = vmatpush1.msra.mxu0 0.0
    %7674 = vmatprep.subr.mxu0 0.0
    %7675 = vmatpush1.msra.mxu0 0.0
    %7676 = vmatprep.subr.mxu0 0.0
    %7677 = vmatpush1.msra.mxu0 0.0
    %7678 = vmatprep.subr.mxu0 0.0
    %7679 = vmatpush1.msra.mxu0 0.0
    %7680 = vmatprep.subr.mxu0 0.0
    %7681 = vmatpush1.msra.mxu0 0.0
    %7682 = vmatprep.subr.mxu0 0.0
    %7683 = vmatpush1.msra.mxu0 0.0
    %7684 = vmatprep.subr.mxu0 0.0
    %7685 = vmatpush1.msra.mxu0 0.0
    %7686 = vmatprep.subr.mxu0 0.0
    %7687 = vmatpush1.msra.mxu0 0.0
    %7688 = vmatprep.subr.mxu0 0.0
    %7689 = vmatpush1.msra.mxu0 %v5786
    %7690 = vmatprep.subr.mxu0 0.0
    %7691 = vmatpush2.msra.mxu0 0.0
    %7692 = vmatprep.subr.mxu0 0.0
    %7693 = vmatpush2.msra.mxu0 0.0
    %7694 = vmatprep.subr.mxu0 0.0
    %7695 = vmatpush2.msra.mxu0 0.0
    %7696 = vmatprep.subr.mxu0 0.0
    %7697 = vmatpush2.msra.mxu0 0.0
    %7698 = vmatprep.subr.mxu0 0.0
    %7699 = vmatpush2.msra.mxu0 0.0
    %7700 = vmatprep.subr.mxu0 0.0
    %7701 = vmatpush2.msra.mxu0 0.0
    %7702 = vmatprep.subr.mxu0 0.0
    %7703 = vmatpush2.msra.mxu0 0.0
    %7704 = vmatprep.subr.mxu0 0.0
    %7705 = vmatpush2.msra.mxu0 0.0
    %7706 = vmatprep.subr.mxu0 0.0
    %7707 = vmatpush2.msra.mxu0 0.0
    %7708 = vmatprep.subr.mxu0 0.0
    %7709 = vmatpush2.msra.mxu0 0.0
    %7710 = vmatprep.subr.mxu0 0.0
    %7711 = vmatpush2.msra.mxu0 0.0
    %7712 = vmatprep.subr.mxu0 0.0
    %7713 = vmatpush2.msra.mxu0 0.0
    %7714 = vmatprep.subr.mxu0 0.0
    %7715 = vmatpush2.msra.mxu0 0.0
    %7716 = vmatprep.subr.mxu0 0.0
    %7717 = vmatpush2.msra.mxu0 0.0
    %7718 = vmatprep.subr.mxu0 0.0
    %7719 = vmatpush2.msra.mxu0 0.0
    %7720 = vmatprep.subr.mxu0 0.0
    %7721 = vmatpush2.msra.mxu0 0.0
    %7722 = vmatprep.mubr.f32.mxu0 0.0
    %7723 = vmatmul.mubr.f32.gmra.mxu0 %v7656
    %v7724 = vpop.f32.mrf.mxu0
    %v7725 = vadd.f32 %v5787, %v7724
    %v7726 = vpop.f32.mrf.mxu0
    %7727 = vdwg.mxu0
    %7728 = vst.msk [vmem:[%s63 + $0x1] sm:$0x1] %vm6762, %v7725
    // Predicated region
    $region166: #{forward.1} parent=1 // pred_check
      _
    $region167: #{forward.1} parent=1 // pred_check_branch
      %7730 = sbr.rel (0) target = $region169
    $region168: #{forward.1} parent=1 // pred_region
      _
    $region169: #{forward.1} parent=1 // pred_fallthru
      _
    // Predicated region
    $region170: #{forward.1} parent=1 // pred_check
      _
    $region171: #{forward.1} parent=1 // pred_check_branch
      %7732 = sbr.rel (0) target = $region173
    $region172: #{forward.1} parent=1 // pred_region
      _
    $region173: #{forward.1} parent=1 // pred_fallthru
      _
    %7733 = vsyncpa [#allocation4], 1
    %7734 = vsyncpa [#allocation6], 1
    %7735 = vsyncpa [#allocation9], 1
    %7736 = vsyncpa [#allocation12], 1
    %7737 = vsyncpa [#allocation15], 1
    %7738 = vsyncpa [#allocation18], 1

</llo_original>
